<compile_context>
chip_gen: v7x
topology: tpu7x:2x2x1
jax: 0.10.0
libtpu: 0.0.40
codegen_flags: <defaults>
</compile_context>

<pallas_src>
import functools

import jax
import jax.numpy as jnp
from jax.experimental import pallas as pl
from jax.experimental.pallas import tpu as pltpu


# ------------------------------ fused kernel --------------------------------
def _rfb_kernel(x_ref,
                w_stem_ref, b_stem_ref,
                w_m1_ref, b_m1_ref,
                w_m23_ref, b_m23_ref,
                w_m3_ref, b_m3_ref,
                w_f0_ref, b_f0_ref,
                w_f1_ref, b_f1_ref,
                w_f2_ref, b_f2_ref,
                w_f3_ref, b_f3_ref,
                w_lin_ref, b_lin_ref,
                o_ref, *, scale, H, W):
    HW = H * W
    x = x_ref[0]                                           # (Cin, HW) f32

    # flattened-spatial coordinate (lane axis), for conv boundary masks
    pos = jax.lax.broadcasted_iota(jnp.int32, (1, HW), 1)  # = y*W + x
    if W & (W - 1) == 0:                                   # x within the row
        xpos = pos & (W - 1)
    else:
        xpos = pos % W

    def shift2d(a, dy, dx):
        # b[:, y*W + x] = a[:, (y+dy)*W + (x+dx)], zero outside the image.
        if dy == 0 and dx == 0:
            return a
        delta = dy * W + dx
        rolled = pltpu.roll(a, shift=(-delta) % HW, axis=1)
        # y+dy in [0,H)  <=>  pos + dy*W in [0, HW)   (since 0 <= x < W)
        valid = ((pos + dy * W >= 0) & (pos + dy * W < HW) &
                 (xpos + dx >= 0) & (xpos + dx < W))
        return jnp.where(valid, rolled, 0.0)

    def conv(a, w_ref, b_ref, taps, relu):
        # a: (Cin, HW) f32; w_ref: (T, Cout, Cin) bf16; b_ref: (Cout, 1) f32
        acc = None
        for t, (dy, dx) in enumerate(taps):
            at = shift2d(a, dy, dx).astype(jnp.bfloat16)
            p = jnp.dot(w_ref[t], at, preferred_element_type=jnp.float32)
            acc = p if acc is None else acc + p
        y = acc + b_ref[...]
        return jnp.maximum(y, 0.0) if relu else y

    t31 = [(-1, 0), (0, 0), (1, 0)]          # (3,1) conv, pad (1,0)
    t13 = [(0, -1), (0, 0), (0, 1)]          # (1,3) conv, pad (0,1)

    def t33(d):                              # 3x3 conv, dilation d, pad d
        return [((i - 1) * d, (j - 1) * d) for i in range(3) for j in range(3)]

    # merged 1x1 stem: output channels = [branch0 | branch1 | branch2 | branch3]
    stem = conv(x, w_stem_ref, b_stem_ref, [(0, 0)], relu=True)     # (14, HW)
    # branch mid convs (stem-readers use zero-padded-Cin weights: no slicing)
    z1 = conv(stem, w_m1_ref, b_m1_ref, t31, relu=True)             # (4, HW)
    z23 = conv(stem, w_m23_ref, b_m23_ref, t13, relu=True)          # (7, HW) = [z2 | z3a]
    z3 = conv(z23, w_m3_ref, b_m3_ref, t31, relu=True)              # (4, HW)
    # branch-final dilated 3x3 sep convs (no relu)
    x0 = conv(stem, w_f0_ref, b_f0_ref, t33(1), relu=False)         # (4, HW)
    x1 = conv(z1, w_f1_ref, b_f1_ref, t33(3), relu=False)           # (4, HW)
    x2 = conv(z23, w_f2_ref, b_f2_ref, t33(3), relu=False)          # (4, HW)
    x3 = conv(z3, w_f3_ref, b_f3_ref, t33(5), relu=False)           # (4, HW)
    # ConvLinear as K-split accumulation over the four branch outputs (no concat)
    lin = (jnp.dot(w_lin_ref[0], x0.astype(jnp.bfloat16), preferred_element_type=jnp.float32)
           + jnp.dot(w_lin_ref[1], x1.astype(jnp.bfloat16), preferred_element_type=jnp.float32)
           + jnp.dot(w_lin_ref[2], x2.astype(jnp.bfloat16), preferred_element_type=jnp.float32)
           + jnp.dot(w_lin_ref[3], x3.astype(jnp.bfloat16), preferred_element_type=jnp.float32)
           + b_lin_ref[...])
    # residual + final ReLU; lane-dense (1, C, HW) store
    o_ref[0] = jnp.maximum(lin * scale + x, 0.0).astype(o_ref.dtype)


# ----------------------- trace-time weight preparation ----------------------
def _fold(p, eps=1e-5):
    # Fold BN (inference stats) into the conv; return (T, Cout, Cin) + (Cout, 1).
    s = p["gamma"] / jnp.sqrt(p["var"] + eps)
    w = p["w"] * s                                        # (kh, kw, cin, cout)
    b = p["beta"] - p["mean"] * s
    kh, kw, cin, cout = p["w"].shape
    wt = jnp.transpose(w.reshape(kh * kw, cin, cout), (0, 2, 1))
    return wt, b.reshape(cout, 1)


def _embed_cin(wt, cin_total, off):
    # Place a (T, Cout, cin) weight into a zero (T, Cout, cin_total) block so
    # the conv can read the full upstream activation without channel slicing.
    t, cout, cin = wt.shape
    return jnp.zeros((t, cout, cin_total), wt.dtype).at[:, :, off:off + cin].set(wt)


def _prep_consts(params, in_planes):
    inter = in_planes // 4
    f = {k: _fold(v) for k, v in params.items()}

    # merged 1x1 stem (4 convs -> one matmul)
    w_stem = jnp.concatenate([f["b0_0"][0], f["b1_0"][0],
                              f["b2_0"][0], f["b3_0"][0]], axis=1)   # (1, 14, Cin)
    b_stem = jnp.concatenate([f["b0_0"][1], f["b1_0"][1],
                              f["b2_0"][1], f["b3_0"][1]], axis=0)   # (14, 1)
    c_stem = w_stem.shape[1]
    off0, off1, off2, off3 = 0, inter, 2 * inter, 3 * inter

    w_m1 = _embed_cin(f["b1_1"][0], c_stem, off1)                    # (3,1) on stem
    # merged (1,3) mids of branch2 and branch3 -> output [z2 | z3a]
    w_m23 = jnp.concatenate([_embed_cin(f["b2_1"][0], c_stem, off2),
                             _embed_cin(f["b3_1"][0], c_stem, off3)], axis=1)
    b_m23 = jnp.concatenate([f["b2_1"][1], f["b3_1"][1]], axis=0)
    c_m23 = w_m23.shape[1]
    z2_ch = f["b2_1"][0].shape[1]
    w_m3 = _embed_cin(f["b3_2"][0], c_m23, z2_ch)                    # (3,1) on z3a

    w_f0 = _embed_cin(f["b0_1"][0], c_stem, off0)                    # 3x3 d=1
    w_f1 = f["b1_2"][0]                                              # 3x3 d=3
    w_f2 = _embed_cin(f["b2_2"][0], c_m23, 0)                        # 3x3 d=3
    w_f3 = f["b3_3"][0]                                              # 3x3 d=5

    wl = f["linear"][0][0]                                           # (out, 4*inter)
    w_lin = jnp.stack([wl[:, i * inter:(i + 1) * inter] for i in range(4)])

    weights = [w_stem, w_m1, w_m23, w_m3, w_f0, w_f1, w_f2, w_f3, w_lin]
    biases = [b_stem, f["b1_1"][1], b_m23, f["b3_2"][1], f["b0_1"][1],
              f["b1_2"][1], f["b2_2"][1], f["b3_3"][1], f["linear"][1]]
    consts = []
    for w, b in zip(weights, biases):
        consts.append(w.astype(jnp.bfloat16))    # MXU-native bf16 matmul inputs
        consts.append(b.astype(jnp.float32))
    return consts


# -------------------------------- forward -----------------------------------
def rfb_a_lite_forward(x_nchw, params, scale=0.1):
    n, c, h, w = x_nchw.shape
    hw = h * w
    # lane axis = flattened spatial; keep it 128-aligned so loads/stores and
    # lane rolls are full-width (general sizes would need lane padding).
    assert hw % 128 == 0, "H*W must be a multiple of 128 for this kernel"
    out_planes = params["linear"]["w"].shape[-1]
    assert out_planes == c, "residual epilogue requires in_planes == out_planes"

    consts = _prep_consts(params, in_planes=c)

    def _const_spec(a):
        zeros = (0,) * a.ndim
        return pl.BlockSpec(a.shape, lambda i, _z=zeros: _z)

    out = pl.pallas_call(
        functools.partial(_rfb_kernel, scale=scale, H=h, W=w),
        out_shape=jax.ShapeDtypeStruct((n, c, hw), jnp.float32),
        grid=(n,),
        in_specs=[pl.BlockSpec((1, c, hw), lambda i: (i, 0, 0))]
                + [_const_spec(a) for a in consts],
        out_specs=pl.BlockSpec((1, c, hw), lambda i: (i, 0, 0)),
        compiler_params=pltpu.CompilerParams(
            dimension_semantics=("parallel",)),   # batch across v7x's 2 TCs
    )(x_nchw.reshape(n, c, hw), *consts)
    return out.reshape(n, c, h, w)


# ------------------------------- parameters ---------------------------------
def make_conv_params(key, kh, kw, cin, cout):
    kw_, kg, kb, km, kv = jax.random.split(key, 5)
    return {
        "w": 0.1 * jax.random.normal(kw_, (kh, kw, cin, cout), jnp.float32),
        "gamma": 1.0 + 0.05 * jax.random.normal(kg, (cout,), jnp.float32),
        "beta": 0.05 * jax.random.normal(kb, (cout,), jnp.float32),
        "mean": 0.05 * jax.random.normal(km, (cout,), jnp.float32),
        "var": jax.random.uniform(kv, (cout,), jnp.float32, 0.5, 1.5),
    }


def init_rfb_a_lite(key, in_planes, out_planes):
    assert in_planes % 4 == 0 and in_planes >= 8
    assert in_planes == out_planes, "residual requires in_planes == out_planes"
    inter = in_planes // 4
    ks = jax.random.split(key, 13)
    p = {}
    # branch0: 1x1 -> 3x3 (full conv; BasicSepConv does not pass groups)
    p["b0_0"] = make_conv_params(ks[0], 1, 1, in_planes, inter)
    p["b0_1"] = make_conv_params(ks[1], 3, 3, inter, inter)
    # branch1: 1x1 -> (3,1) -> 3x3 dil3
    p["b1_0"] = make_conv_params(ks[2], 1, 1, in_planes, inter)
    p["b1_1"] = make_conv_params(ks[3], 3, 1, inter, inter)
    p["b1_2"] = make_conv_params(ks[4], 3, 3, inter, inter)
    # branch2: 1x1 -> (1,3) -> 3x3 dil3
    p["b2_0"] = make_conv_params(ks[5], 1, 1, in_planes, inter)
    p["b2_1"] = make_conv_params(ks[6], 1, 3, inter, inter)
    p["b2_2"] = make_conv_params(ks[7], 3, 3, inter, inter)
    # branch3: 1x1 -> (1,3) -> (3,1) -> 3x3 dil5
    p["b3_0"] = make_conv_params(ks[8], 1, 1, in_planes, inter // 2)
    p["b3_1"] = make_conv_params(ks[9], 1, 3, inter // 2, inter // 4 * 3)
    p["b3_2"] = make_conv_params(ks[10], 3, 1, inter // 4 * 3, inter)
    p["b3_3"] = make_conv_params(ks[11], 3, 3, inter, inter)
    # ConvLinear 1x1 (no relu; residual epilogue fused in kernel)
    p["linear"] = make_conv_params(ks[12], 1, 1, 4 * inter, out_planes)
    return p


if __name__ == "__main__":
    key = jax.random.PRNGKey(0)
    kx, kp = jax.random.split(key)

    # NCHW input, matching the PyTorch module (in_planes=16 -> inter_planes=4)
    N, C, H, W = 2, 16, 16, 16
    x = jax.random.normal(kx, (N, C, H, W), jnp.float32)
    params = init_rfb_a_lite(kp, in_planes=C, out_planes=C)

    out = rfb_a_lite_forward(x, params, scale=0.1)
    out = jax.block_until_ready(out)
    assert out.shape == (N, C, H, W)
    assert bool(jnp.all(jnp.isfinite(out)))
    assert bool(jnp.all(out >= 0.0))  # final ReLU
    print("KERNEL_OK")
</pallas_src>

<mosaic_0001>
module attributes {stable_mosaic.version = 11 : i64} {
  func.func @_rfb_kernel(%arg0: i32, %arg1: memref<1x16x256xf32, #tpu.memory_space<vmem>>, %arg2: memref<1x14x16xbf16, #tpu.memory_space<vmem>>, %arg3: memref<14x1xf32, #tpu.memory_space<vmem>>, %arg4: memref<3x4x14xbf16, #tpu.memory_space<vmem>>, %arg5: memref<4x1xf32, #tpu.memory_space<vmem>>, %arg6: memref<3x7x14xbf16, #tpu.memory_space<vmem>>, %arg7: memref<7x1xf32, #tpu.memory_space<vmem>>, %arg8: memref<3x4x7xbf16, #tpu.memory_space<vmem>>, %arg9: memref<4x1xf32, #tpu.memory_space<vmem>>, %arg10: memref<9x4x14xbf16, #tpu.memory_space<vmem>>, %arg11: memref<4x1xf32, #tpu.memory_space<vmem>>, %arg12: memref<9x4x4xbf16, #tpu.memory_space<vmem>>, %arg13: memref<4x1xf32, #tpu.memory_space<vmem>>, %arg14: memref<9x4x7xbf16, #tpu.memory_space<vmem>>, %arg15: memref<4x1xf32, #tpu.memory_space<vmem>>, %arg16: memref<9x4x4xbf16, #tpu.memory_space<vmem>>, %arg17: memref<4x1xf32, #tpu.memory_space<vmem>>, %arg18: memref<4x16x4xbf16, #tpu.memory_space<vmem>>, %arg19: memref<16x1xf32, #tpu.memory_space<vmem>>, %arg20: memref<1x16x256xf32, #tpu.memory_space<vmem>>) attributes {dimension_semantics = [#tpu.dimension_semantics<parallel>], iteration_bounds = array<i64: 2>, scalar_prefetch = 0 : i64, scratch_operands = 0 : i64, tpu.core_type = #tpu.core_type<tc>, window_params = [{transform_indices = @transform_0, window_bounds = array<i64: 1, 16, 256>}, {pipeline_mode = #tpu.pipeline_mode<synchronous>, transform_indices = @transform_1, window_bounds = array<i64: 1, 14, 16>}, {pipeline_mode = #tpu.pipeline_mode<synchronous>, transform_indices = @transform_2, window_bounds = array<i64: 14, 1>}, {pipeline_mode = #tpu.pipeline_mode<synchronous>, transform_indices = @transform_3, window_bounds = array<i64: 3, 4, 14>}, {pipeline_mode = #tpu.pipeline_mode<synchronous>, transform_indices = @transform_4, window_bounds = array<i64: 4, 1>}, {pipeline_mode = #tpu.pipeline_mode<synchronous>, transform_indices = @transform_5, window_bounds = array<i64: 3, 7, 14>}, {pipeline_mode = #tpu.pipeline_mode<synchronous>, transform_indices = @transform_6, window_bounds = array<i64: 7, 1>}, {pipeline_mode = #tpu.pipeline_mode<synchronous>, transform_indices = @transform_7, window_bounds = array<i64: 3, 4, 7>}, {pipeline_mode = #tpu.pipeline_mode<synchronous>, transform_indices = @transform_8, window_bounds = array<i64: 4, 1>}, {pipeline_mode = #tpu.pipeline_mode<synchronous>, transform_indices = @transform_9, window_bounds = array<i64: 9, 4, 14>}, {pipeline_mode = #tpu.pipeline_mode<synchronous>, transform_indices = @transform_10, window_bounds = array<i64: 4, 1>}, {pipeline_mode = #tpu.pipeline_mode<synchronous>, transform_indices = @transform_11, window_bounds = array<i64: 9, 4, 4>}, {pipeline_mode = #tpu.pipeline_mode<synchronous>, transform_indices = @transform_12, window_bounds = array<i64: 4, 1>}, {pipeline_mode = #tpu.pipeline_mode<synchronous>, transform_indices = @transform_13, window_bounds = array<i64: 9, 4, 7>}, {pipeline_mode = #tpu.pipeline_mode<synchronous>, transform_indices = @transform_14, window_bounds = array<i64: 4, 1>}, {pipeline_mode = #tpu.pipeline_mode<synchronous>, transform_indices = @transform_15, window_bounds = array<i64: 9, 4, 4>}, {pipeline_mode = #tpu.pipeline_mode<synchronous>, transform_indices = @transform_16, window_bounds = array<i64: 4, 1>}, {pipeline_mode = #tpu.pipeline_mode<synchronous>, transform_indices = @transform_17, window_bounds = array<i64: 4, 16, 4>}, {pipeline_mode = #tpu.pipeline_mode<synchronous>, transform_indices = @transform_18, window_bounds = array<i64: 16, 1>}, {transform_indices = @transform_19, window_bounds = array<i64: 1, 16, 256>}]} {
    %c0 = arith.constant 0 : index
    %c0_0 = arith.constant 0 : index
    %c0_1 = arith.constant 0 : index
    %0 = vector.load %arg1[%c0, %c0_0, %c0_1] : memref<1x16x256xf32, #tpu.memory_space<vmem>>, vector<1x16x256xf32>
    %1 = vector.shape_cast %0 : vector<1x16x256xf32> to vector<16x256xf32>
    %2 = tpu.iota {dimensions = array<i32: 1>} : vector<1x256xi32>
    %c15_i32 = arith.constant 15 : i32
    %3 = vector.broadcast %c15_i32 : i32 to vector<1x256xi32>
    %4 = arith.andi %2, %3 : vector<1x256xi32>
    %5 = arith.truncf %1 : vector<16x256xf32> to vector<16x256xbf16>
    %c0_2 = arith.constant 0 : index
    %c0_3 = arith.constant 0 : index
    %c0_4 = arith.constant 0 : index
    %6 = vector.load %arg2[%c0_2, %c0_3, %c0_4] : memref<1x14x16xbf16, #tpu.memory_space<vmem>>, vector<1x14x16xbf16>
    %7 = vector.shape_cast %6 : vector<1x14x16xbf16> to vector<14x16xbf16>
    %cst = arith.constant dense<0.000000e+00> : vector<14x256xf32>
    %8 = tpu.matmul %7, %5, %cst {dimension_numbers = #tpu.dot_dimension_numbers<[1], [0], [0], [1], [0, 0, 1, 1], [], []>} : vector<14x16xbf16>, vector<16x256xbf16>, vector<14x256xf32> -> vector<14x256xf32>
    %c0_5 = arith.constant 0 : index
    %c0_6 = arith.constant 0 : index
    %9 = vector.load %arg3[%c0_5, %c0_6] : memref<14x1xf32, #tpu.memory_space<vmem>>, vector<14x1xf32>
    %10 = vector.broadcast %9 : vector<14x1xf32> to vector<14x256xf32>
    %11 = arith.addf %8, %10 : vector<14x256xf32>
    %cst_7 = arith.constant 0.000000e+00 : f32
    %12 = vector.broadcast %cst_7 : f32 to vector<14x256xf32>
    %13 = arith.maximumf %11, %12 : vector<14x256xf32>
    %c16_i32 = arith.constant 16 : i32
    %14 = tpu.dynamic_rotate %13 by %c16_i32 dim 1 : vector<14x256xf32>, i32 -> vector<14x256xf32>
    %c-16_i32 = arith.constant -16 : i32
    %15 = vector.broadcast %c-16_i32 : i32 to vector<1x256xi32>
    %16 = arith.addi %2, %15 : vector<1x256xi32>
    %c0_i32 = arith.constant 0 : i32
    %17 = vector.broadcast %c0_i32 : i32 to vector<1x256xi32>
    %18 = arith.cmpi sge, %16, %17 : vector<1x256xi32>
    %c-16_i32_8 = arith.constant -16 : i32
    %19 = vector.broadcast %c-16_i32_8 : i32 to vector<1x256xi32>
    %20 = arith.addi %2, %19 : vector<1x256xi32>
    %c256_i32 = arith.constant 256 : i32
    %21 = vector.broadcast %c256_i32 : i32 to vector<1x256xi32>
    %22 = arith.cmpi slt, %20, %21 : vector<1x256xi32>
    %23 = arith.andi %18, %22 : vector<1x256xi1>
    %c0_i32_9 = arith.constant 0 : i32
    %24 = vector.broadcast %c0_i32_9 : i32 to vector<1x256xi32>
    %25 = arith.addi %4, %24 : vector<1x256xi32>
    %c0_i32_10 = arith.constant 0 : i32
    %26 = vector.broadcast %c0_i32_10 : i32 to vector<1x256xi32>
    %27 = arith.cmpi sge, %25, %26 : vector<1x256xi32>
    %28 = arith.andi %23, %27 : vector<1x256xi1>
    %c0_i32_11 = arith.constant 0 : i32
    %29 = vector.broadcast %c0_i32_11 : i32 to vector<1x256xi32>
    %30 = arith.addi %4, %29 : vector<1x256xi32>
    %c16_i32_12 = arith.constant 16 : i32
    %31 = vector.broadcast %c16_i32_12 : i32 to vector<1x256xi32>
    %32 = arith.cmpi slt, %30, %31 : vector<1x256xi32>
    %33 = arith.andi %28, %32 : vector<1x256xi1>
    %cst_13 = arith.constant 0.000000e+00 : f32
    %34 = vector.shape_cast %33 : vector<1x256xi1> to vector<1x256xi1>
    %35 = vector.broadcast %34 : vector<1x256xi1> to vector<14x256xi1>
    %36 = vector.broadcast %cst_13 : f32 to vector<14x256xf32>
    %37 = arith.select %35, %14, %36 : vector<14x256xi1>, vector<14x256xf32>
    %38 = arith.truncf %37 : vector<14x256xf32> to vector<14x256xbf16>
    %c0_14 = arith.constant 0 : index
    %c0_15 = arith.constant 0 : index
    %c0_16 = arith.constant 0 : index
    %39 = vector.load %arg4[%c0_14, %c0_15, %c0_16] : memref<3x4x14xbf16, #tpu.memory_space<vmem>>, vector<1x4x14xbf16>
    %40 = vector.shape_cast %39 : vector<1x4x14xbf16> to vector<4x14xbf16>
    %cst_17 = arith.constant dense<0.000000e+00> : vector<4x256xf32>
    %41 = tpu.matmul %40, %38, %cst_17 {dimension_numbers = #tpu.dot_dimension_numbers<[1], [0], [0], [1], [0, 0, 1, 1], [], []>} : vector<4x14xbf16>, vector<14x256xbf16>, vector<4x256xf32> -> vector<4x256xf32>
    %42 = arith.truncf %13 : vector<14x256xf32> to vector<14x256xbf16>
    %c1 = arith.constant 1 : index
    %c0_18 = arith.constant 0 : index
    %c0_19 = arith.constant 0 : index
    %43 = vector.load %arg4[%c1, %c0_18, %c0_19] : memref<3x4x14xbf16, #tpu.memory_space<vmem>>, vector<1x4x14xbf16>
    %44 = vector.shape_cast %43 : vector<1x4x14xbf16> to vector<4x14xbf16>
    %cst_20 = arith.constant dense<0.000000e+00> : vector<4x256xf32>
    %45 = tpu.matmul %44, %42, %cst_20 {dimension_numbers = #tpu.dot_dimension_numbers<[1], [0], [0], [1], [0, 0, 1, 1], [], []>} : vector<4x14xbf16>, vector<14x256xbf16>, vector<4x256xf32> -> vector<4x256xf32>
    %46 = arith.addf %41, %45 : vector<4x256xf32>
    %c240_i32 = arith.constant 240 : i32
    %47 = tpu.dynamic_rotate %13 by %c240_i32 dim 1 : vector<14x256xf32>, i32 -> vector<14x256xf32>
    %c16_i32_21 = arith.constant 16 : i32
    %48 = vector.broadcast %c16_i32_21 : i32 to vector<1x256xi32>
    %49 = arith.addi %2, %48 : vector<1x256xi32>
    %c0_i32_22 = arith.constant 0 : i32
    %50 = vector.broadcast %c0_i32_22 : i32 to vector<1x256xi32>
    %51 = arith.cmpi sge, %49, %50 : vector<1x256xi32>
    %c16_i32_23 = arith.constant 16 : i32
    %52 = vector.broadcast %c16_i32_23 : i32 to vector<1x256xi32>
    %53 = arith.addi %2, %52 : vector<1x256xi32>
    %c256_i32_24 = arith.constant 256 : i32
    %54 = vector.broadcast %c256_i32_24 : i32 to vector<1x256xi32>
    %55 = arith.cmpi slt, %53, %54 : vector<1x256xi32>
    %56 = arith.andi %51, %55 : vector<1x256xi1>
    %c0_i32_25 = arith.constant 0 : i32
    %57 = vector.broadcast %c0_i32_25 : i32 to vector<1x256xi32>
    %58 = arith.addi %4, %57 : vector<1x256xi32>
    %c0_i32_26 = arith.constant 0 : i32
    %59 = vector.broadcast %c0_i32_26 : i32 to vector<1x256xi32>
    %60 = arith.cmpi sge, %58, %59 : vector<1x256xi32>
    %61 = arith.andi %56, %60 : vector<1x256xi1>
    %c0_i32_27 = arith.constant 0 : i32
    %62 = vector.broadcast %c0_i32_27 : i32 to vector<1x256xi32>
    %63 = arith.addi %4, %62 : vector<1x256xi32>
    %c16_i32_28 = arith.constant 16 : i32
    %64 = vector.broadcast %c16_i32_28 : i32 to vector<1x256xi32>
    %65 = arith.cmpi slt, %63, %64 : vector<1x256xi32>
    %66 = arith.andi %61, %65 : vector<1x256xi1>
    %cst_29 = arith.constant 0.000000e+00 : f32
    %67 = vector.shape_cast %66 : vector<1x256xi1> to vector<1x256xi1>
    %68 = vector.broadcast %67 : vector<1x256xi1> to vector<14x256xi1>
    %69 = vector.broadcast %cst_29 : f32 to vector<14x256xf32>
    %70 = arith.select %68, %47, %69 : vector<14x256xi1>, vector<14x256xf32>
    %71 = arith.truncf %70 : vector<14x256xf32> to vector<14x256xbf16>
    %c2 = arith.constant 2 : index
    %c0_30 = arith.constant 0 : index
    %c0_31 = arith.constant 0 : index
    %72 = vector.load %arg4[%c2, %c0_30, %c0_31] : memref<3x4x14xbf16, #tpu.memory_space<vmem>>, vector<1x4x14xbf16>
    %73 = vector.shape_cast %72 : vector<1x4x14xbf16> to vector<4x14xbf16>
    %cst_32 = arith.constant dense<0.000000e+00> : vector<4x256xf32>
    %74 = tpu.matmul %73, %71, %cst_32 {dimension_numbers = #tpu.dot_dimension_numbers<[1], [0], [0], [1], [0, 0, 1, 1], [], []>} : vector<4x14xbf16>, vector<14x256xbf16>, vector<4x256xf32> -> vector<4x256xf32>
    %75 = arith.addf %46, %74 : vector<4x256xf32>
    %c0_33 = arith.constant 0 : index
    %c0_34 = arith.constant 0 : index
    %76 = vector.load %arg5[%c0_33, %c0_34] : memref<4x1xf32, #tpu.memory_space<vmem>>, vector<4x1xf32>
    %77 = vector.broadcast %76 : vector<4x1xf32> to vector<4x256xf32>
    %78 = arith.addf %75, %77 : vector<4x256xf32>
    %cst_35 = arith.constant 0.000000e+00 : f32
    %79 = vector.broadcast %cst_35 : f32 to vector<4x256xf32>
    %80 = arith.maximumf %78, %79 : vector<4x256xf32>
    %c1_i32 = arith.constant 1 : i32
    %81 = tpu.dynamic_rotate %13 by %c1_i32 dim 1 : vector<14x256xf32>, i32 -> vector<14x256xf32>
    %c0_i32_36 = arith.constant 0 : i32
    %82 = vector.broadcast %c0_i32_36 : i32 to vector<1x256xi32>
    %83 = arith.addi %2, %82 : vector<1x256xi32>
    %c0_i32_37 = arith.constant 0 : i32
    %84 = vector.broadcast %c0_i32_37 : i32 to vector<1x256xi32>
    %85 = arith.cmpi sge, %83, %84 : vector<1x256xi32>
    %c0_i32_38 = arith.constant 0 : i32
    %86 = vector.broadcast %c0_i32_38 : i32 to vector<1x256xi32>
    %87 = arith.addi %2, %86 : vector<1x256xi32>
    %c256_i32_39 = arith.constant 256 : i32
    %88 = vector.broadcast %c256_i32_39 : i32 to vector<1x256xi32>
    %89 = arith.cmpi slt, %87, %88 : vector<1x256xi32>
    %90 = arith.andi %85, %89 : vector<1x256xi1>
    %c-1_i32 = arith.constant -1 : i32
    %91 = vector.broadcast %c-1_i32 : i32 to vector<1x256xi32>
    %92 = arith.addi %4, %91 : vector<1x256xi32>
    %c0_i32_40 = arith.constant 0 : i32
    %93 = vector.broadcast %c0_i32_40 : i32 to vector<1x256xi32>
    %94 = arith.cmpi sge, %92, %93 : vector<1x256xi32>
    %95 = arith.andi %90, %94 : vector<1x256xi1>
    %c-1_i32_41 = arith.constant -1 : i32
    %96 = vector.broadcast %c-1_i32_41 : i32 to vector<1x256xi32>
    %97 = arith.addi %4, %96 : vector<1x256xi32>
    %c16_i32_42 = arith.constant 16 : i32
    %98 = vector.broadcast %c16_i32_42 : i32 to vector<1x256xi32>
    %99 = arith.cmpi slt, %97, %98 : vector<1x256xi32>
    %100 = arith.andi %95, %99 : vector<1x256xi1>
    %cst_43 = arith.constant 0.000000e+00 : f32
    %101 = vector.shape_cast %100 : vector<1x256xi1> to vector<1x256xi1>
    %102 = vector.broadcast %101 : vector<1x256xi1> to vector<14x256xi1>
    %103 = vector.broadcast %cst_43 : f32 to vector<14x256xf32>
    %104 = arith.select %102, %81, %103 : vector<14x256xi1>, vector<14x256xf32>
    %105 = arith.truncf %104 : vector<14x256xf32> to vector<14x256xbf16>
    %c0_44 = arith.constant 0 : index
    %c0_45 = arith.constant 0 : index
    %c0_46 = arith.constant 0 : index
    %106 = vector.load %arg6[%c0_44, %c0_45, %c0_46] : memref<3x7x14xbf16, #tpu.memory_space<vmem>>, vector<1x7x14xbf16>
    %107 = vector.shape_cast %106 : vector<1x7x14xbf16> to vector<7x14xbf16>
    %cst_47 = arith.constant dense<0.000000e+00> : vector<7x256xf32>
    %108 = tpu.matmul %107, %105, %cst_47 {dimension_numbers = #tpu.dot_dimension_numbers<[1], [0], [0], [1], [0, 0, 1, 1], [], []>} : vector<7x14xbf16>, vector<14x256xbf16>, vector<7x256xf32> -> vector<7x256xf32>
    %109 = arith.truncf %13 : vector<14x256xf32> to vector<14x256xbf16>
    %c1_48 = arith.constant 1 : index
    %c0_49 = arith.constant 0 : index
    %c0_50 = arith.constant 0 : index
    %110 = vector.load %arg6[%c1_48, %c0_49, %c0_50] : memref<3x7x14xbf16, #tpu.memory_space<vmem>>, vector<1x7x14xbf16>
    %111 = vector.shape_cast %110 : vector<1x7x14xbf16> to vector<7x14xbf16>
    %cst_51 = arith.constant dense<0.000000e+00> : vector<7x256xf32>
    %112 = tpu.matmul %111, %109, %cst_51 {dimension_numbers = #tpu.dot_dimension_numbers<[1], [0], [0], [1], [0, 0, 1, 1], [], []>} : vector<7x14xbf16>, vector<14x256xbf16>, vector<7x256xf32> -> vector<7x256xf32>
    %113 = arith.addf %108, %112 : vector<7x256xf32>
    %c255_i32 = arith.constant 255 : i32
    %114 = tpu.dynamic_rotate %13 by %c255_i32 dim 1 : vector<14x256xf32>, i32 -> vector<14x256xf32>
    %c0_i32_52 = arith.constant 0 : i32
    %115 = vector.broadcast %c0_i32_52 : i32 to vector<1x256xi32>
    %116 = arith.addi %2, %115 : vector<1x256xi32>
    %c0_i32_53 = arith.constant 0 : i32
    %117 = vector.broadcast %c0_i32_53 : i32 to vector<1x256xi32>
    %118 = arith.cmpi sge, %116, %117 : vector<1x256xi32>
    %c0_i32_54 = arith.constant 0 : i32
    %119 = vector.broadcast %c0_i32_54 : i32 to vector<1x256xi32>
    %120 = arith.addi %2, %119 : vector<1x256xi32>
    %c256_i32_55 = arith.constant 256 : i32
    %121 = vector.broadcast %c256_i32_55 : i32 to vector<1x256xi32>
    %122 = arith.cmpi slt, %120, %121 : vector<1x256xi32>
    %123 = arith.andi %118, %122 : vector<1x256xi1>
    %c1_i32_56 = arith.constant 1 : i32
    %124 = vector.broadcast %c1_i32_56 : i32 to vector<1x256xi32>
    %125 = arith.addi %4, %124 : vector<1x256xi32>
    %c0_i32_57 = arith.constant 0 : i32
    %126 = vector.broadcast %c0_i32_57 : i32 to vector<1x256xi32>
    %127 = arith.cmpi sge, %125, %126 : vector<1x256xi32>
    %128 = arith.andi %123, %127 : vector<1x256xi1>
    %c1_i32_58 = arith.constant 1 : i32
    %129 = vector.broadcast %c1_i32_58 : i32 to vector<1x256xi32>
    %130 = arith.addi %4, %129 : vector<1x256xi32>
    %c16_i32_59 = arith.constant 16 : i32
    %131 = vector.broadcast %c16_i32_59 : i32 to vector<1x256xi32>
    %132 = arith.cmpi slt, %130, %131 : vector<1x256xi32>
    %133 = arith.andi %128, %132 : vector<1x256xi1>
    %cst_60 = arith.constant 0.000000e+00 : f32
    %134 = vector.shape_cast %133 : vector<1x256xi1> to vector<1x256xi1>
    %135 = vector.broadcast %134 : vector<1x256xi1> to vector<14x256xi1>
    %136 = vector.broadcast %cst_60 : f32 to vector<14x256xf32>
    %137 = arith.select %135, %114, %136 : vector<14x256xi1>, vector<14x256xf32>
    %138 = arith.truncf %137 : vector<14x256xf32> to vector<14x256xbf16>
    %c2_61 = arith.constant 2 : index
    %c0_62 = arith.constant 0 : index
    %c0_63 = arith.constant 0 : index
    %139 = vector.load %arg6[%c2_61, %c0_62, %c0_63] : memref<3x7x14xbf16, #tpu.memory_space<vmem>>, vector<1x7x14xbf16>
    %140 = vector.shape_cast %139 : vector<1x7x14xbf16> to vector<7x14xbf16>
    %cst_64 = arith.constant dense<0.000000e+00> : vector<7x256xf32>
    %141 = tpu.matmul %140, %138, %cst_64 {dimension_numbers = #tpu.dot_dimension_numbers<[1], [0], [0], [1], [0, 0, 1, 1], [], []>} : vector<7x14xbf16>, vector<14x256xbf16>, vector<7x256xf32> -> vector<7x256xf32>
    %142 = arith.addf %113, %141 : vector<7x256xf32>
    %c0_65 = arith.constant 0 : index
    %c0_66 = arith.constant 0 : index
    %143 = vector.load %arg7[%c0_65, %c0_66] : memref<7x1xf32, #tpu.memory_space<vmem>>, vector<7x1xf32>
    %144 = vector.broadcast %143 : vector<7x1xf32> to vector<7x256xf32>
    %145 = arith.addf %142, %144 : vector<7x256xf32>
    %cst_67 = arith.constant 0.000000e+00 : f32
    %146 = vector.broadcast %cst_67 : f32 to vector<7x256xf32>
    %147 = arith.maximumf %145, %146 : vector<7x256xf32>
    %c16_i32_68 = arith.constant 16 : i32
    %148 = tpu.dynamic_rotate %147 by %c16_i32_68 dim 1 : vector<7x256xf32>, i32 -> vector<7x256xf32>
    %c-16_i32_69 = arith.constant -16 : i32
    %149 = vector.broadcast %c-16_i32_69 : i32 to vector<1x256xi32>
    %150 = arith.addi %2, %149 : vector<1x256xi32>
    %c0_i32_70 = arith.constant 0 : i32
    %151 = vector.broadcast %c0_i32_70 : i32 to vector<1x256xi32>
    %152 = arith.cmpi sge, %150, %151 : vector<1x256xi32>
    %c-16_i32_71 = arith.constant -16 : i32
    %153 = vector.broadcast %c-16_i32_71 : i32 to vector<1x256xi32>
    %154 = arith.addi %2, %153 : vector<1x256xi32>
    %c256_i32_72 = arith.constant 256 : i32
    %155 = vector.broadcast %c256_i32_72 : i32 to vector<1x256xi32>
    %156 = arith.cmpi slt, %154, %155 : vector<1x256xi32>
    %157 = arith.andi %152, %156 : vector<1x256xi1>
    %c0_i32_73 = arith.constant 0 : i32
    %158 = vector.broadcast %c0_i32_73 : i32 to vector<1x256xi32>
    %159 = arith.addi %4, %158 : vector<1x256xi32>
    %c0_i32_74 = arith.constant 0 : i32
    %160 = vector.broadcast %c0_i32_74 : i32 to vector<1x256xi32>
    %161 = arith.cmpi sge, %159, %160 : vector<1x256xi32>
    %162 = arith.andi %157, %161 : vector<1x256xi1>
    %c0_i32_75 = arith.constant 0 : i32
    %163 = vector.broadcast %c0_i32_75 : i32 to vector<1x256xi32>
    %164 = arith.addi %4, %163 : vector<1x256xi32>
    %c16_i32_76 = arith.constant 16 : i32
    %165 = vector.broadcast %c16_i32_76 : i32 to vector<1x256xi32>
    %166 = arith.cmpi slt, %164, %165 : vector<1x256xi32>
    %167 = arith.andi %162, %166 : vector<1x256xi1>
    %cst_77 = arith.constant 0.000000e+00 : f32
    %168 = vector.shape_cast %167 : vector<1x256xi1> to vector<1x256xi1>
    %169 = vector.broadcast %168 : vector<1x256xi1> to vector<7x256xi1>
    %170 = vector.broadcast %cst_77 : f32 to vector<7x256xf32>
    %171 = arith.select %169, %148, %170 : vector<7x256xi1>, vector<7x256xf32>
    %172 = arith.truncf %171 : vector<7x256xf32> to vector<7x256xbf16>
    %c0_78 = arith.constant 0 : index
    %c0_79 = arith.constant 0 : index
    %c0_80 = arith.constant 0 : index
    %173 = vector.load %arg8[%c0_78, %c0_79, %c0_80] : memref<3x4x7xbf16, #tpu.memory_space<vmem>>, vector<1x4x7xbf16>
    %174 = vector.shape_cast %173 : vector<1x4x7xbf16> to vector<4x7xbf16>
    %cst_81 = arith.constant dense<0.000000e+00> : vector<4x256xf32>
    %175 = tpu.matmul %174, %172, %cst_81 {dimension_numbers = #tpu.dot_dimension_numbers<[1], [0], [0], [1], [0, 0, 1, 1], [], []>} : vector<4x7xbf16>, vector<7x256xbf16>, vector<4x256xf32> -> vector<4x256xf32>
    %176 = arith.truncf %147 : vector<7x256xf32> to vector<7x256xbf16>
    %c1_82 = arith.constant 1 : index
    %c0_83 = arith.constant 0 : index
    %c0_84 = arith.constant 0 : index
    %177 = vector.load %arg8[%c1_82, %c0_83, %c0_84] : memref<3x4x7xbf16, #tpu.memory_space<vmem>>, vector<1x4x7xbf16>
    %178 = vector.shape_cast %177 : vector<1x4x7xbf16> to vector<4x7xbf16>
    %cst_85 = arith.constant dense<0.000000e+00> : vector<4x256xf32>
    %179 = tpu.matmul %178, %176, %cst_85 {dimension_numbers = #tpu.dot_dimension_numbers<[1], [0], [0], [1], [0, 0, 1, 1], [], []>} : vector<4x7xbf16>, vector<7x256xbf16>, vector<4x256xf32> -> vector<4x256xf32>
    %180 = arith.addf %175, %179 : vector<4x256xf32>
    %c240_i32_86 = arith.constant 240 : i32
    %181 = tpu.dynamic_rotate %147 by %c240_i32_86 dim 1 : vector<7x256xf32>, i32 -> vector<7x256xf32>
    %c16_i32_87 = arith.constant 16 : i32
    %182 = vector.broadcast %c16_i32_87 : i32 to vector<1x256xi32>
    %183 = arith.addi %2, %182 : vector<1x256xi32>
    %c0_i32_88 = arith.constant 0 : i32
    %184 = vector.broadcast %c0_i32_88 : i32 to vector<1x256xi32>
    %185 = arith.cmpi sge, %183, %184 : vector<1x256xi32>
    %c16_i32_89 = arith.constant 16 : i32
    %186 = vector.broadcast %c16_i32_89 : i32 to vector<1x256xi32>
    %187 = arith.addi %2, %186 : vector<1x256xi32>
    %c256_i32_90 = arith.constant 256 : i32
    %188 = vector.broadcast %c256_i32_90 : i32 to vector<1x256xi32>
    %189 = arith.cmpi slt, %187, %188 : vector<1x256xi32>
    %190 = arith.andi %185, %189 : vector<1x256xi1>
    %c0_i32_91 = arith.constant 0 : i32
    %191 = vector.broadcast %c0_i32_91 : i32 to vector<1x256xi32>
    %192 = arith.addi %4, %191 : vector<1x256xi32>
    %c0_i32_92 = arith.constant 0 : i32
    %193 = vector.broadcast %c0_i32_92 : i32 to vector<1x256xi32>
    %194 = arith.cmpi sge, %192, %193 : vector<1x256xi32>
    %195 = arith.andi %190, %194 : vector<1x256xi1>
    %c0_i32_93 = arith.constant 0 : i32
    %196 = vector.broadcast %c0_i32_93 : i32 to vector<1x256xi32>
    %197 = arith.addi %4, %196 : vector<1x256xi32>
    %c16_i32_94 = arith.constant 16 : i32
    %198 = vector.broadcast %c16_i32_94 : i32 to vector<1x256xi32>
    %199 = arith.cmpi slt, %197, %198 : vector<1x256xi32>
    %200 = arith.andi %195, %199 : vector<1x256xi1>
    %cst_95 = arith.constant 0.000000e+00 : f32
    %201 = vector.shape_cast %200 : vector<1x256xi1> to vector<1x256xi1>
    %202 = vector.broadcast %201 : vector<1x256xi1> to vector<7x256xi1>
    %203 = vector.broadcast %cst_95 : f32 to vector<7x256xf32>
    %204 = arith.select %202, %181, %203 : vector<7x256xi1>, vector<7x256xf32>
    %205 = arith.truncf %204 : vector<7x256xf32> to vector<7x256xbf16>
    %c2_96 = arith.constant 2 : index
    %c0_97 = arith.constant 0 : index
    %c0_98 = arith.constant 0 : index
    %206 = vector.load %arg8[%c2_96, %c0_97, %c0_98] : memref<3x4x7xbf16, #tpu.memory_space<vmem>>, vector<1x4x7xbf16>
    %207 = vector.shape_cast %206 : vector<1x4x7xbf16> to vector<4x7xbf16>
    %cst_99 = arith.constant dense<0.000000e+00> : vector<4x256xf32>
    %208 = tpu.matmul %207, %205, %cst_99 {dimension_numbers = #tpu.dot_dimension_numbers<[1], [0], [0], [1], [0, 0, 1, 1], [], []>} : vector<4x7xbf16>, vector<7x256xbf16>, vector<4x256xf32> -> vector<4x256xf32>
    %209 = arith.addf %180, %208 : vector<4x256xf32>
    %c0_100 = arith.constant 0 : index
    %c0_101 = arith.constant 0 : index
    %210 = vector.load %arg9[%c0_100, %c0_101] : memref<4x1xf32, #tpu.memory_space<vmem>>, vector<4x1xf32>
    %211 = vector.broadcast %210 : vector<4x1xf32> to vector<4x256xf32>
    %212 = arith.addf %209, %211 : vector<4x256xf32>
    %cst_102 = arith.constant 0.000000e+00 : f32
    %213 = vector.broadcast %cst_102 : f32 to vector<4x256xf32>
    %214 = arith.maximumf %212, %213 : vector<4x256xf32>
    %c17_i32 = arith.constant 17 : i32
    %215 = tpu.dynamic_rotate %13 by %c17_i32 dim 1 : vector<14x256xf32>, i32 -> vector<14x256xf32>
    %c-16_i32_103 = arith.constant -16 : i32
    %216 = vector.broadcast %c-16_i32_103 : i32 to vector<1x256xi32>
    %217 = arith.addi %2, %216 : vector<1x256xi32>
    %c0_i32_104 = arith.constant 0 : i32
    %218 = vector.broadcast %c0_i32_104 : i32 to vector<1x256xi32>
    %219 = arith.cmpi sge, %217, %218 : vector<1x256xi32>
    %c-16_i32_105 = arith.constant -16 : i32
    %220 = vector.broadcast %c-16_i32_105 : i32 to vector<1x256xi32>
    %221 = arith.addi %2, %220 : vector<1x256xi32>
    %c256_i32_106 = arith.constant 256 : i32
    %222 = vector.broadcast %c256_i32_106 : i32 to vector<1x256xi32>
    %223 = arith.cmpi slt, %221, %222 : vector<1x256xi32>
    %224 = arith.andi %219, %223 : vector<1x256xi1>
    %c-1_i32_107 = arith.constant -1 : i32
    %225 = vector.broadcast %c-1_i32_107 : i32 to vector<1x256xi32>
    %226 = arith.addi %4, %225 : vector<1x256xi32>
    %c0_i32_108 = arith.constant 0 : i32
    %227 = vector.broadcast %c0_i32_108 : i32 to vector<1x256xi32>
    %228 = arith.cmpi sge, %226, %227 : vector<1x256xi32>
    %229 = arith.andi %224, %228 : vector<1x256xi1>
    %c-1_i32_109 = arith.constant -1 : i32
    %230 = vector.broadcast %c-1_i32_109 : i32 to vector<1x256xi32>
    %231 = arith.addi %4, %230 : vector<1x256xi32>
    %c16_i32_110 = arith.constant 16 : i32
    %232 = vector.broadcast %c16_i32_110 : i32 to vector<1x256xi32>
    %233 = arith.cmpi slt, %231, %232 : vector<1x256xi32>
    %234 = arith.andi %229, %233 : vector<1x256xi1>
    %cst_111 = arith.constant 0.000000e+00 : f32
    %235 = vector.shape_cast %234 : vector<1x256xi1> to vector<1x256xi1>
    %236 = vector.broadcast %235 : vector<1x256xi1> to vector<14x256xi1>
    %237 = vector.broadcast %cst_111 : f32 to vector<14x256xf32>
    %238 = arith.select %236, %215, %237 : vector<14x256xi1>, vector<14x256xf32>
    %239 = arith.truncf %238 : vector<14x256xf32> to vector<14x256xbf16>
    %c0_112 = arith.constant 0 : index
    %c0_113 = arith.constant 0 : index
    %c0_114 = arith.constant 0 : index
    %240 = vector.load %arg10[%c0_112, %c0_113, %c0_114] : memref<9x4x14xbf16, #tpu.memory_space<vmem>>, vector<1x4x14xbf16>
    %241 = vector.shape_cast %240 : vector<1x4x14xbf16> to vector<4x14xbf16>
    %cst_115 = arith.constant dense<0.000000e+00> : vector<4x256xf32>
    %242 = tpu.matmul %241, %239, %cst_115 {dimension_numbers = #tpu.dot_dimension_numbers<[1], [0], [0], [1], [0, 0, 1, 1], [], []>} : vector<4x14xbf16>, vector<14x256xbf16>, vector<4x256xf32> -> vector<4x256xf32>
    %c16_i32_116 = arith.constant 16 : i32
    %243 = tpu.dynamic_rotate %13 by %c16_i32_116 dim 1 : vector<14x256xf32>, i32 -> vector<14x256xf32>
    %c-16_i32_117 = arith.constant -16 : i32
    %244 = vector.broadcast %c-16_i32_117 : i32 to vector<1x256xi32>
    %245 = arith.addi %2, %244 : vector<1x256xi32>
    %c0_i32_118 = arith.constant 0 : i32
    %246 = vector.broadcast %c0_i32_118 : i32 to vector<1x256xi32>
    %247 = arith.cmpi sge, %245, %246 : vector<1x256xi32>
    %c-16_i32_119 = arith.constant -16 : i32
    %248 = vector.broadcast %c-16_i32_119 : i32 to vector<1x256xi32>
    %249 = arith.addi %2, %248 : vector<1x256xi32>
    %c256_i32_120 = arith.constant 256 : i32
    %250 = vector.broadcast %c256_i32_120 : i32 to vector<1x256xi32>
    %251 = arith.cmpi slt, %249, %250 : vector<1x256xi32>
    %252 = arith.andi %247, %251 : vector<1x256xi1>
    %c0_i32_121 = arith.constant 0 : i32
    %253 = vector.broadcast %c0_i32_121 : i32 to vector<1x256xi32>
    %254 = arith.addi %4, %253 : vector<1x256xi32>
    %c0_i32_122 = arith.constant 0 : i32
    %255 = vector.broadcast %c0_i32_122 : i32 to vector<1x256xi32>
    %256 = arith.cmpi sge, %254, %255 : vector<1x256xi32>
    %257 = arith.andi %252, %256 : vector<1x256xi1>
    %c0_i32_123 = arith.constant 0 : i32
    %258 = vector.broadcast %c0_i32_123 : i32 to vector<1x256xi32>
    %259 = arith.addi %4, %258 : vector<1x256xi32>
    %c16_i32_124 = arith.constant 16 : i32
    %260 = vector.broadcast %c16_i32_124 : i32 to vector<1x256xi32>
    %261 = arith.cmpi slt, %259, %260 : vector<1x256xi32>
    %262 = arith.andi %257, %261 : vector<1x256xi1>
    %cst_125 = arith.constant 0.000000e+00 : f32
    %263 = vector.shape_cast %262 : vector<1x256xi1> to vector<1x256xi1>
    %264 = vector.broadcast %263 : vector<1x256xi1> to vector<14x256xi1>
    %265 = vector.broadcast %cst_125 : f32 to vector<14x256xf32>
    %266 = arith.select %264, %243, %265 : vector<14x256xi1>, vector<14x256xf32>
    %267 = arith.truncf %266 : vector<14x256xf32> to vector<14x256xbf16>
    %c1_126 = arith.constant 1 : index
    %c0_127 = arith.constant 0 : index
    %c0_128 = arith.constant 0 : index
    %268 = vector.load %arg10[%c1_126, %c0_127, %c0_128] : memref<9x4x14xbf16, #tpu.memory_space<vmem>>, vector<1x4x14xbf16>
    %269 = vector.shape_cast %268 : vector<1x4x14xbf16> to vector<4x14xbf16>
    %cst_129 = arith.constant dense<0.000000e+00> : vector<4x256xf32>
    %270 = tpu.matmul %269, %267, %cst_129 {dimension_numbers = #tpu.dot_dimension_numbers<[1], [0], [0], [1], [0, 0, 1, 1], [], []>} : vector<4x14xbf16>, vector<14x256xbf16>, vector<4x256xf32> -> vector<4x256xf32>
    %271 = arith.addf %242, %270 : vector<4x256xf32>
    %c15_i32_130 = arith.constant 15 : i32
    %272 = tpu.dynamic_rotate %13 by %c15_i32_130 dim 1 : vector<14x256xf32>, i32 -> vector<14x256xf32>
    %c-16_i32_131 = arith.constant -16 : i32
    %273 = vector.broadcast %c-16_i32_131 : i32 to vector<1x256xi32>
    %274 = arith.addi %2, %273 : vector<1x256xi32>
    %c0_i32_132 = arith.constant 0 : i32
    %275 = vector.broadcast %c0_i32_132 : i32 to vector<1x256xi32>
    %276 = arith.cmpi sge, %274, %275 : vector<1x256xi32>
    %c-16_i32_133 = arith.constant -16 : i32
    %277 = vector.broadcast %c-16_i32_133 : i32 to vector<1x256xi32>
    %278 = arith.addi %2, %277 : vector<1x256xi32>
    %c256_i32_134 = arith.constant 256 : i32
    %279 = vector.broadcast %c256_i32_134 : i32 to vector<1x256xi32>
    %280 = arith.cmpi slt, %278, %279 : vector<1x256xi32>
    %281 = arith.andi %276, %280 : vector<1x256xi1>
    %c1_i32_135 = arith.constant 1 : i32
    %282 = vector.broadcast %c1_i32_135 : i32 to vector<1x256xi32>
    %283 = arith.addi %4, %282 : vector<1x256xi32>
    %c0_i32_136 = arith.constant 0 : i32
    %284 = vector.broadcast %c0_i32_136 : i32 to vector<1x256xi32>
    %285 = arith.cmpi sge, %283, %284 : vector<1x256xi32>
    %286 = arith.andi %281, %285 : vector<1x256xi1>
    %c1_i32_137 = arith.constant 1 : i32
    %287 = vector.broadcast %c1_i32_137 : i32 to vector<1x256xi32>
    %288 = arith.addi %4, %287 : vector<1x256xi32>
    %c16_i32_138 = arith.constant 16 : i32
    %289 = vector.broadcast %c16_i32_138 : i32 to vector<1x256xi32>
    %290 = arith.cmpi slt, %288, %289 : vector<1x256xi32>
    %291 = arith.andi %286, %290 : vector<1x256xi1>
    %cst_139 = arith.constant 0.000000e+00 : f32
    %292 = vector.shape_cast %291 : vector<1x256xi1> to vector<1x256xi1>
    %293 = vector.broadcast %292 : vector<1x256xi1> to vector<14x256xi1>
    %294 = vector.broadcast %cst_139 : f32 to vector<14x256xf32>
    %295 = arith.select %293, %272, %294 : vector<14x256xi1>, vector<14x256xf32>
    %296 = arith.truncf %295 : vector<14x256xf32> to vector<14x256xbf16>
    %c2_140 = arith.constant 2 : index
    %c0_141 = arith.constant 0 : index
    %c0_142 = arith.constant 0 : index
    %297 = vector.load %arg10[%c2_140, %c0_141, %c0_142] : memref<9x4x14xbf16, #tpu.memory_space<vmem>>, vector<1x4x14xbf16>
    %298 = vector.shape_cast %297 : vector<1x4x14xbf16> to vector<4x14xbf16>
    %cst_143 = arith.constant dense<0.000000e+00> : vector<4x256xf32>
    %299 = tpu.matmul %298, %296, %cst_143 {dimension_numbers = #tpu.dot_dimension_numbers<[1], [0], [0], [1], [0, 0, 1, 1], [], []>} : vector<4x14xbf16>, vector<14x256xbf16>, vector<4x256xf32> -> vector<4x256xf32>
    %300 = arith.addf %271, %299 : vector<4x256xf32>
    %c1_i32_144 = arith.constant 1 : i32
    %301 = tpu.dynamic_rotate %13 by %c1_i32_144 dim 1 : vector<14x256xf32>, i32 -> vector<14x256xf32>
    %c0_i32_145 = arith.constant 0 : i32
    %302 = vector.broadcast %c0_i32_145 : i32 to vector<1x256xi32>
    %303 = arith.addi %2, %302 : vector<1x256xi32>
    %c0_i32_146 = arith.constant 0 : i32
    %304 = vector.broadcast %c0_i32_146 : i32 to vector<1x256xi32>
    %305 = arith.cmpi sge, %303, %304 : vector<1x256xi32>
    %c0_i32_147 = arith.constant 0 : i32
    %306 = vector.broadcast %c0_i32_147 : i32 to vector<1x256xi32>
    %307 = arith.addi %2, %306 : vector<1x256xi32>
    %c256_i32_148 = arith.constant 256 : i32
    %308 = vector.broadcast %c256_i32_148 : i32 to vector<1x256xi32>
    %309 = arith.cmpi slt, %307, %308 : vector<1x256xi32>
    %310 = arith.andi %305, %309 : vector<1x256xi1>
    %c-1_i32_149 = arith.constant -1 : i32
    %311 = vector.broadcast %c-1_i32_149 : i32 to vector<1x256xi32>
    %312 = arith.addi %4, %311 : vector<1x256xi32>
    %c0_i32_150 = arith.constant 0 : i32
    %313 = vector.broadcast %c0_i32_150 : i32 to vector<1x256xi32>
    %314 = arith.cmpi sge, %312, %313 : vector<1x256xi32>
    %315 = arith.andi %310, %314 : vector<1x256xi1>
    %c-1_i32_151 = arith.constant -1 : i32
    %316 = vector.broadcast %c-1_i32_151 : i32 to vector<1x256xi32>
    %317 = arith.addi %4, %316 : vector<1x256xi32>
    %c16_i32_152 = arith.constant 16 : i32
    %318 = vector.broadcast %c16_i32_152 : i32 to vector<1x256xi32>
    %319 = arith.cmpi slt, %317, %318 : vector<1x256xi32>
    %320 = arith.andi %315, %319 : vector<1x256xi1>
    %cst_153 = arith.constant 0.000000e+00 : f32
    %321 = vector.shape_cast %320 : vector<1x256xi1> to vector<1x256xi1>
    %322 = vector.broadcast %321 : vector<1x256xi1> to vector<14x256xi1>
    %323 = vector.broadcast %cst_153 : f32 to vector<14x256xf32>
    %324 = arith.select %322, %301, %323 : vector<14x256xi1>, vector<14x256xf32>
    %325 = arith.truncf %324 : vector<14x256xf32> to vector<14x256xbf16>
    %c3 = arith.constant 3 : index
    %c0_154 = arith.constant 0 : index
    %c0_155 = arith.constant 0 : index
    %326 = vector.load %arg10[%c3, %c0_154, %c0_155] : memref<9x4x14xbf16, #tpu.memory_space<vmem>>, vector<1x4x14xbf16>
    %327 = vector.shape_cast %326 : vector<1x4x14xbf16> to vector<4x14xbf16>
    %cst_156 = arith.constant dense<0.000000e+00> : vector<4x256xf32>
    %328 = tpu.matmul %327, %325, %cst_156 {dimension_numbers = #tpu.dot_dimension_numbers<[1], [0], [0], [1], [0, 0, 1, 1], [], []>} : vector<4x14xbf16>, vector<14x256xbf16>, vector<4x256xf32> -> vector<4x256xf32>
    %329 = arith.addf %300, %328 : vector<4x256xf32>
    %330 = arith.truncf %13 : vector<14x256xf32> to vector<14x256xbf16>
    %c4 = arith.constant 4 : index
    %c0_157 = arith.constant 0 : index
    %c0_158 = arith.constant 0 : index
    %331 = vector.load %arg10[%c4, %c0_157, %c0_158] : memref<9x4x14xbf16, #tpu.memory_space<vmem>>, vector<1x4x14xbf16>
    %332 = vector.shape_cast %331 : vector<1x4x14xbf16> to vector<4x14xbf16>
    %cst_159 = arith.constant dense<0.000000e+00> : vector<4x256xf32>
    %333 = tpu.matmul %332, %330, %cst_159 {dimension_numbers = #tpu.dot_dimension_numbers<[1], [0], [0], [1], [0, 0, 1, 1], [], []>} : vector<4x14xbf16>, vector<14x256xbf16>, vector<4x256xf32> -> vector<4x256xf32>
    %334 = arith.addf %329, %333 : vector<4x256xf32>
    %c255_i32_160 = arith.constant 255 : i32
    %335 = tpu.dynamic_rotate %13 by %c255_i32_160 dim 1 : vector<14x256xf32>, i32 -> vector<14x256xf32>
    %c0_i32_161 = arith.constant 0 : i32
    %336 = vector.broadcast %c0_i32_161 : i32 to vector<1x256xi32>
    %337 = arith.addi %2, %336 : vector<1x256xi32>
    %c0_i32_162 = arith.constant 0 : i32
    %338 = vector.broadcast %c0_i32_162 : i32 to vector<1x256xi32>
    %339 = arith.cmpi sge, %337, %338 : vector<1x256xi32>
    %c0_i32_163 = arith.constant 0 : i32
    %340 = vector.broadcast %c0_i32_163 : i32 to vector<1x256xi32>
    %341 = arith.addi %2, %340 : vector<1x256xi32>
    %c256_i32_164 = arith.constant 256 : i32
    %342 = vector.broadcast %c256_i32_164 : i32 to vector<1x256xi32>
    %343 = arith.cmpi slt, %341, %342 : vector<1x256xi32>
    %344 = arith.andi %339, %343 : vector<1x256xi1>
    %c1_i32_165 = arith.constant 1 : i32
    %345 = vector.broadcast %c1_i32_165 : i32 to vector<1x256xi32>
    %346 = arith.addi %4, %345 : vector<1x256xi32>
    %c0_i32_166 = arith.constant 0 : i32
    %347 = vector.broadcast %c0_i32_166 : i32 to vector<1x256xi32>
    %348 = arith.cmpi sge, %346, %347 : vector<1x256xi32>
    %349 = arith.andi %344, %348 : vector<1x256xi1>
    %c1_i32_167 = arith.constant 1 : i32
    %350 = vector.broadcast %c1_i32_167 : i32 to vector<1x256xi32>
    %351 = arith.addi %4, %350 : vector<1x256xi32>
    %c16_i32_168 = arith.constant 16 : i32
    %352 = vector.broadcast %c16_i32_168 : i32 to vector<1x256xi32>
    %353 = arith.cmpi slt, %351, %352 : vector<1x256xi32>
    %354 = arith.andi %349, %353 : vector<1x256xi1>
    %cst_169 = arith.constant 0.000000e+00 : f32
    %355 = vector.shape_cast %354 : vector<1x256xi1> to vector<1x256xi1>
    %356 = vector.broadcast %355 : vector<1x256xi1> to vector<14x256xi1>
    %357 = vector.broadcast %cst_169 : f32 to vector<14x256xf32>
    %358 = arith.select %356, %335, %357 : vector<14x256xi1>, vector<14x256xf32>
    %359 = arith.truncf %358 : vector<14x256xf32> to vector<14x256xbf16>
    %c5 = arith.constant 5 : index
    %c0_170 = arith.constant 0 : index
    %c0_171 = arith.constant 0 : index
    %360 = vector.load %arg10[%c5, %c0_170, %c0_171] : memref<9x4x14xbf16, #tpu.memory_space<vmem>>, vector<1x4x14xbf16>
    %361 = vector.shape_cast %360 : vector<1x4x14xbf16> to vector<4x14xbf16>
    %cst_172 = arith.constant dense<0.000000e+00> : vector<4x256xf32>
    %362 = tpu.matmul %361, %359, %cst_172 {dimension_numbers = #tpu.dot_dimension_numbers<[1], [0], [0], [1], [0, 0, 1, 1], [], []>} : vector<4x14xbf16>, vector<14x256xbf16>, vector<4x256xf32> -> vector<4x256xf32>
    %363 = arith.addf %334, %362 : vector<4x256xf32>
    %c241_i32 = arith.constant 241 : i32
    %364 = tpu.dynamic_rotate %13 by %c241_i32 dim 1 : vector<14x256xf32>, i32 -> vector<14x256xf32>
    %c16_i32_173 = arith.constant 16 : i32
    %365 = vector.broadcast %c16_i32_173 : i32 to vector<1x256xi32>
    %366 = arith.addi %2, %365 : vector<1x256xi32>
    %c0_i32_174 = arith.constant 0 : i32
    %367 = vector.broadcast %c0_i32_174 : i32 to vector<1x256xi32>
    %368 = arith.cmpi sge, %366, %367 : vector<1x256xi32>
    %c16_i32_175 = arith.constant 16 : i32
    %369 = vector.broadcast %c16_i32_175 : i32 to vector<1x256xi32>
    %370 = arith.addi %2, %369 : vector<1x256xi32>
    %c256_i32_176 = arith.constant 256 : i32
    %371 = vector.broadcast %c256_i32_176 : i32 to vector<1x256xi32>
    %372 = arith.cmpi slt, %370, %371 : vector<1x256xi32>
    %373 = arith.andi %368, %372 : vector<1x256xi1>
    %c-1_i32_177 = arith.constant -1 : i32
    %374 = vector.broadcast %c-1_i32_177 : i32 to vector<1x256xi32>
    %375 = arith.addi %4, %374 : vector<1x256xi32>
    %c0_i32_178 = arith.constant 0 : i32
    %376 = vector.broadcast %c0_i32_178 : i32 to vector<1x256xi32>
    %377 = arith.cmpi sge, %375, %376 : vector<1x256xi32>
    %378 = arith.andi %373, %377 : vector<1x256xi1>
    %c-1_i32_179 = arith.constant -1 : i32
    %379 = vector.broadcast %c-1_i32_179 : i32 to vector<1x256xi32>
    %380 = arith.addi %4, %379 : vector<1x256xi32>
    %c16_i32_180 = arith.constant 16 : i32
    %381 = vector.broadcast %c16_i32_180 : i32 to vector<1x256xi32>
    %382 = arith.cmpi slt, %380, %381 : vector<1x256xi32>
    %383 = arith.andi %378, %382 : vector<1x256xi1>
    %cst_181 = arith.constant 0.000000e+00 : f32
    %384 = vector.shape_cast %383 : vector<1x256xi1> to vector<1x256xi1>
    %385 = vector.broadcast %384 : vector<1x256xi1> to vector<14x256xi1>
    %386 = vector.broadcast %cst_181 : f32 to vector<14x256xf32>
    %387 = arith.select %385, %364, %386 : vector<14x256xi1>, vector<14x256xf32>
    %388 = arith.truncf %387 : vector<14x256xf32> to vector<14x256xbf16>
    %c6 = arith.constant 6 : index
    %c0_182 = arith.constant 0 : index
    %c0_183 = arith.constant 0 : index
    %389 = vector.load %arg10[%c6, %c0_182, %c0_183] : memref<9x4x14xbf16, #tpu.memory_space<vmem>>, vector<1x4x14xbf16>
    %390 = vector.shape_cast %389 : vector<1x4x14xbf16> to vector<4x14xbf16>
    %cst_184 = arith.constant dense<0.000000e+00> : vector<4x256xf32>
    %391 = tpu.matmul %390, %388, %cst_184 {dimension_numbers = #tpu.dot_dimension_numbers<[1], [0], [0], [1], [0, 0, 1, 1], [], []>} : vector<4x14xbf16>, vector<14x256xbf16>, vector<4x256xf32> -> vector<4x256xf32>
    %392 = arith.addf %363, %391 : vector<4x256xf32>
    %c240_i32_185 = arith.constant 240 : i32
    %393 = tpu.dynamic_rotate %13 by %c240_i32_185 dim 1 : vector<14x256xf32>, i32 -> vector<14x256xf32>
    %c16_i32_186 = arith.constant 16 : i32
    %394 = vector.broadcast %c16_i32_186 : i32 to vector<1x256xi32>
    %395 = arith.addi %2, %394 : vector<1x256xi32>
    %c0_i32_187 = arith.constant 0 : i32
    %396 = vector.broadcast %c0_i32_187 : i32 to vector<1x256xi32>
    %397 = arith.cmpi sge, %395, %396 : vector<1x256xi32>
    %c16_i32_188 = arith.constant 16 : i32
    %398 = vector.broadcast %c16_i32_188 : i32 to vector<1x256xi32>
    %399 = arith.addi %2, %398 : vector<1x256xi32>
    %c256_i32_189 = arith.constant 256 : i32
    %400 = vector.broadcast %c256_i32_189 : i32 to vector<1x256xi32>
    %401 = arith.cmpi slt, %399, %400 : vector<1x256xi32>
    %402 = arith.andi %397, %401 : vector<1x256xi1>
    %c0_i32_190 = arith.constant 0 : i32
    %403 = vector.broadcast %c0_i32_190 : i32 to vector<1x256xi32>
    %404 = arith.addi %4, %403 : vector<1x256xi32>
    %c0_i32_191 = arith.constant 0 : i32
    %405 = vector.broadcast %c0_i32_191 : i32 to vector<1x256xi32>
    %406 = arith.cmpi sge, %404, %405 : vector<1x256xi32>
    %407 = arith.andi %402, %406 : vector<1x256xi1>
    %c0_i32_192 = arith.constant 0 : i32
    %408 = vector.broadcast %c0_i32_192 : i32 to vector<1x256xi32>
    %409 = arith.addi %4, %408 : vector<1x256xi32>
    %c16_i32_193 = arith.constant 16 : i32
    %410 = vector.broadcast %c16_i32_193 : i32 to vector<1x256xi32>
    %411 = arith.cmpi slt, %409, %410 : vector<1x256xi32>
    %412 = arith.andi %407, %411 : vector<1x256xi1>
    %cst_194 = arith.constant 0.000000e+00 : f32
    %413 = vector.shape_cast %412 : vector<1x256xi1> to vector<1x256xi1>
    %414 = vector.broadcast %413 : vector<1x256xi1> to vector<14x256xi1>
    %415 = vector.broadcast %cst_194 : f32 to vector<14x256xf32>
    %416 = arith.select %414, %393, %415 : vector<14x256xi1>, vector<14x256xf32>
    %417 = arith.truncf %416 : vector<14x256xf32> to vector<14x256xbf16>
    %c7 = arith.constant 7 : index
    %c0_195 = arith.constant 0 : index
    %c0_196 = arith.constant 0 : index
    %418 = vector.load %arg10[%c7, %c0_195, %c0_196] : memref<9x4x14xbf16, #tpu.memory_space<vmem>>, vector<1x4x14xbf16>
    %419 = vector.shape_cast %418 : vector<1x4x14xbf16> to vector<4x14xbf16>
    %cst_197 = arith.constant dense<0.000000e+00> : vector<4x256xf32>
    %420 = tpu.matmul %419, %417, %cst_197 {dimension_numbers = #tpu.dot_dimension_numbers<[1], [0], [0], [1], [0, 0, 1, 1], [], []>} : vector<4x14xbf16>, vector<14x256xbf16>, vector<4x256xf32> -> vector<4x256xf32>
    %421 = arith.addf %392, %420 : vector<4x256xf32>
    %c239_i32 = arith.constant 239 : i32
    %422 = tpu.dynamic_rotate %13 by %c239_i32 dim 1 : vector<14x256xf32>, i32 -> vector<14x256xf32>
    %c16_i32_198 = arith.constant 16 : i32
    %423 = vector.broadcast %c16_i32_198 : i32 to vector<1x256xi32>
    %424 = arith.addi %2, %423 : vector<1x256xi32>
    %c0_i32_199 = arith.constant 0 : i32
    %425 = vector.broadcast %c0_i32_199 : i32 to vector<1x256xi32>
    %426 = arith.cmpi sge, %424, %425 : vector<1x256xi32>
    %c16_i32_200 = arith.constant 16 : i32
    %427 = vector.broadcast %c16_i32_200 : i32 to vector<1x256xi32>
    %428 = arith.addi %2, %427 : vector<1x256xi32>
    %c256_i32_201 = arith.constant 256 : i32
    %429 = vector.broadcast %c256_i32_201 : i32 to vector<1x256xi32>
    %430 = arith.cmpi slt, %428, %429 : vector<1x256xi32>
    %431 = arith.andi %426, %430 : vector<1x256xi1>
    %c1_i32_202 = arith.constant 1 : i32
    %432 = vector.broadcast %c1_i32_202 : i32 to vector<1x256xi32>
    %433 = arith.addi %4, %432 : vector<1x256xi32>
    %c0_i32_203 = arith.constant 0 : i32
    %434 = vector.broadcast %c0_i32_203 : i32 to vector<1x256xi32>
    %435 = arith.cmpi sge, %433, %434 : vector<1x256xi32>
    %436 = arith.andi %431, %435 : vector<1x256xi1>
    %c1_i32_204 = arith.constant 1 : i32
    %437 = vector.broadcast %c1_i32_204 : i32 to vector<1x256xi32>
    %438 = arith.addi %4, %437 : vector<1x256xi32>
    %c16_i32_205 = arith.constant 16 : i32
    %439 = vector.broadcast %c16_i32_205 : i32 to vector<1x256xi32>
    %440 = arith.cmpi slt, %438, %439 : vector<1x256xi32>
    %441 = arith.andi %436, %440 : vector<1x256xi1>
    %cst_206 = arith.constant 0.000000e+00 : f32
    %442 = vector.shape_cast %441 : vector<1x256xi1> to vector<1x256xi1>
    %443 = vector.broadcast %442 : vector<1x256xi1> to vector<14x256xi1>
    %444 = vector.broadcast %cst_206 : f32 to vector<14x256xf32>
    %445 = arith.select %443, %422, %444 : vector<14x256xi1>, vector<14x256xf32>
    %446 = arith.truncf %445 : vector<14x256xf32> to vector<14x256xbf16>
    %c8 = arith.constant 8 : index
    %c0_207 = arith.constant 0 : index
    %c0_208 = arith.constant 0 : index
    %447 = vector.load %arg10[%c8, %c0_207, %c0_208] : memref<9x4x14xbf16, #tpu.memory_space<vmem>>, vector<1x4x14xbf16>
    %448 = vector.shape_cast %447 : vector<1x4x14xbf16> to vector<4x14xbf16>
    %cst_209 = arith.constant dense<0.000000e+00> : vector<4x256xf32>
    %449 = tpu.matmul %448, %446, %cst_209 {dimension_numbers = #tpu.dot_dimension_numbers<[1], [0], [0], [1], [0, 0, 1, 1], [], []>} : vector<4x14xbf16>, vector<14x256xbf16>, vector<4x256xf32> -> vector<4x256xf32>
    %450 = arith.addf %421, %449 : vector<4x256xf32>
    %c0_210 = arith.constant 0 : index
    %c0_211 = arith.constant 0 : index
    %451 = vector.load %arg11[%c0_210, %c0_211] : memref<4x1xf32, #tpu.memory_space<vmem>>, vector<4x1xf32>
    %452 = vector.broadcast %451 : vector<4x1xf32> to vector<4x256xf32>
    %453 = arith.addf %450, %452 : vector<4x256xf32>
    %c51_i32 = arith.constant 51 : i32
    %454 = tpu.dynamic_rotate %80 by %c51_i32 dim 1 : vector<4x256xf32>, i32 -> vector<4x256xf32>
    %c-48_i32 = arith.constant -48 : i32
    %455 = vector.broadcast %c-48_i32 : i32 to vector<1x256xi32>
    %456 = arith.addi %2, %455 : vector<1x256xi32>
    %c0_i32_212 = arith.constant 0 : i32
    %457 = vector.broadcast %c0_i32_212 : i32 to vector<1x256xi32>
    %458 = arith.cmpi sge, %456, %457 : vector<1x256xi32>
    %c-48_i32_213 = arith.constant -48 : i32
    %459 = vector.broadcast %c-48_i32_213 : i32 to vector<1x256xi32>
    %460 = arith.addi %2, %459 : vector<1x256xi32>
    %c256_i32_214 = arith.constant 256 : i32
    %461 = vector.broadcast %c256_i32_214 : i32 to vector<1x256xi32>
    %462 = arith.cmpi slt, %460, %461 : vector<1x256xi32>
    %463 = arith.andi %458, %462 : vector<1x256xi1>
    %c-3_i32 = arith.constant -3 : i32
    %464 = vector.broadcast %c-3_i32 : i32 to vector<1x256xi32>
    %465 = arith.addi %4, %464 : vector<1x256xi32>
    %c0_i32_215 = arith.constant 0 : i32
    %466 = vector.broadcast %c0_i32_215 : i32 to vector<1x256xi32>
    %467 = arith.cmpi sge, %465, %466 : vector<1x256xi32>
    %468 = arith.andi %463, %467 : vector<1x256xi1>
    %c-3_i32_216 = arith.constant -3 : i32
    %469 = vector.broadcast %c-3_i32_216 : i32 to vector<1x256xi32>
    %470 = arith.addi %4, %469 : vector<1x256xi32>
    %c16_i32_217 = arith.constant 16 : i32
    %471 = vector.broadcast %c16_i32_217 : i32 to vector<1x256xi32>
    %472 = arith.cmpi slt, %470, %471 : vector<1x256xi32>
    %473 = arith.andi %468, %472 : vector<1x256xi1>
    %cst_218 = arith.constant 0.000000e+00 : f32
    %474 = vector.shape_cast %473 : vector<1x256xi1> to vector<1x256xi1>
    %475 = vector.broadcast %474 : vector<1x256xi1> to vector<4x256xi1>
    %476 = vector.broadcast %cst_218 : f32 to vector<4x256xf32>
    %477 = arith.select %475, %454, %476 : vector<4x256xi1>, vector<4x256xf32>
    %478 = arith.truncf %477 : vector<4x256xf32> to vector<4x256xbf16>
    %c0_219 = arith.constant 0 : index
    %c0_220 = arith.constant 0 : index
    %c0_221 = arith.constant 0 : index
    %479 = vector.load %arg12[%c0_219, %c0_220, %c0_221] : memref<9x4x4xbf16, #tpu.memory_space<vmem>>, vector<1x4x4xbf16>
    %480 = vector.shape_cast %479 : vector<1x4x4xbf16> to vector<4x4xbf16>
    %cst_222 = arith.constant dense<0.000000e+00> : vector<4x256xf32>
    %481 = tpu.matmul %480, %478, %cst_222 {dimension_numbers = #tpu.dot_dimension_numbers<[1], [0], [0], [1], [0, 0, 1, 1], [], []>} : vector<4x4xbf16>, vector<4x256xbf16>, vector<4x256xf32> -> vector<4x256xf32>
    %c48_i32 = arith.constant 48 : i32
    %482 = tpu.dynamic_rotate %80 by %c48_i32 dim 1 : vector<4x256xf32>, i32 -> vector<4x256xf32>
    %c-48_i32_223 = arith.constant -48 : i32
    %483 = vector.broadcast %c-48_i32_223 : i32 to vector<1x256xi32>
    %484 = arith.addi %2, %483 : vector<1x256xi32>
    %c0_i32_224 = arith.constant 0 : i32
    %485 = vector.broadcast %c0_i32_224 : i32 to vector<1x256xi32>
    %486 = arith.cmpi sge, %484, %485 : vector<1x256xi32>
    %c-48_i32_225 = arith.constant -48 : i32
    %487 = vector.broadcast %c-48_i32_225 : i32 to vector<1x256xi32>
    %488 = arith.addi %2, %487 : vector<1x256xi32>
    %c256_i32_226 = arith.constant 256 : i32
    %489 = vector.broadcast %c256_i32_226 : i32 to vector<1x256xi32>
    %490 = arith.cmpi slt, %488, %489 : vector<1x256xi32>
    %491 = arith.andi %486, %490 : vector<1x256xi1>
    %c0_i32_227 = arith.constant 0 : i32
    %492 = vector.broadcast %c0_i32_227 : i32 to vector<1x256xi32>
    %493 = arith.addi %4, %492 : vector<1x256xi32>
    %c0_i32_228 = arith.constant 0 : i32
    %494 = vector.broadcast %c0_i32_228 : i32 to vector<1x256xi32>
    %495 = arith.cmpi sge, %493, %494 : vector<1x256xi32>
    %496 = arith.andi %491, %495 : vector<1x256xi1>
    %c0_i32_229 = arith.constant 0 : i32
    %497 = vector.broadcast %c0_i32_229 : i32 to vector<1x256xi32>
    %498 = arith.addi %4, %497 : vector<1x256xi32>
    %c16_i32_230 = arith.constant 16 : i32
    %499 = vector.broadcast %c16_i32_230 : i32 to vector<1x256xi32>
    %500 = arith.cmpi slt, %498, %499 : vector<1x256xi32>
    %501 = arith.andi %496, %500 : vector<1x256xi1>
    %cst_231 = arith.constant 0.000000e+00 : f32
    %502 = vector.shape_cast %501 : vector<1x256xi1> to vector<1x256xi1>
    %503 = vector.broadcast %502 : vector<1x256xi1> to vector<4x256xi1>
    %504 = vector.broadcast %cst_231 : f32 to vector<4x256xf32>
    %505 = arith.select %503, %482, %504 : vector<4x256xi1>, vector<4x256xf32>
    %506 = arith.truncf %505 : vector<4x256xf32> to vector<4x256xbf16>
    %c1_232 = arith.constant 1 : index
    %c0_233 = arith.constant 0 : index
    %c0_234 = arith.constant 0 : index
    %507 = vector.load %arg12[%c1_232, %c0_233, %c0_234] : memref<9x4x4xbf16, #tpu.memory_space<vmem>>, vector<1x4x4xbf16>
    %508 = vector.shape_cast %507 : vector<1x4x4xbf16> to vector<4x4xbf16>
    %cst_235 = arith.constant dense<0.000000e+00> : vector<4x256xf32>
    %509 = tpu.matmul %508, %506, %cst_235 {dimension_numbers = #tpu.dot_dimension_numbers<[1], [0], [0], [1], [0, 0, 1, 1], [], []>} : vector<4x4xbf16>, vector<4x256xbf16>, vector<4x256xf32> -> vector<4x256xf32>
    %510 = arith.addf %481, %509 : vector<4x256xf32>
    %c45_i32 = arith.constant 45 : i32
    %511 = tpu.dynamic_rotate %80 by %c45_i32 dim 1 : vector<4x256xf32>, i32 -> vector<4x256xf32>
    %c-48_i32_236 = arith.constant -48 : i32
    %512 = vector.broadcast %c-48_i32_236 : i32 to vector<1x256xi32>
    %513 = arith.addi %2, %512 : vector<1x256xi32>
    %c0_i32_237 = arith.constant 0 : i32
    %514 = vector.broadcast %c0_i32_237 : i32 to vector<1x256xi32>
    %515 = arith.cmpi sge, %513, %514 : vector<1x256xi32>
    %c-48_i32_238 = arith.constant -48 : i32
    %516 = vector.broadcast %c-48_i32_238 : i32 to vector<1x256xi32>
    %517 = arith.addi %2, %516 : vector<1x256xi32>
    %c256_i32_239 = arith.constant 256 : i32
    %518 = vector.broadcast %c256_i32_239 : i32 to vector<1x256xi32>
    %519 = arith.cmpi slt, %517, %518 : vector<1x256xi32>
    %520 = arith.andi %515, %519 : vector<1x256xi1>
    %c3_i32 = arith.constant 3 : i32
    %521 = vector.broadcast %c3_i32 : i32 to vector<1x256xi32>
    %522 = arith.addi %4, %521 : vector<1x256xi32>
    %c0_i32_240 = arith.constant 0 : i32
    %523 = vector.broadcast %c0_i32_240 : i32 to vector<1x256xi32>
    %524 = arith.cmpi sge, %522, %523 : vector<1x256xi32>
    %525 = arith.andi %520, %524 : vector<1x256xi1>
    %c3_i32_241 = arith.constant 3 : i32
    %526 = vector.broadcast %c3_i32_241 : i32 to vector<1x256xi32>
    %527 = arith.addi %4, %526 : vector<1x256xi32>
    %c16_i32_242 = arith.constant 16 : i32
    %528 = vector.broadcast %c16_i32_242 : i32 to vector<1x256xi32>
    %529 = arith.cmpi slt, %527, %528 : vector<1x256xi32>
    %530 = arith.andi %525, %529 : vector<1x256xi1>
    %cst_243 = arith.constant 0.000000e+00 : f32
    %531 = vector.shape_cast %530 : vector<1x256xi1> to vector<1x256xi1>
    %532 = vector.broadcast %531 : vector<1x256xi1> to vector<4x256xi1>
    %533 = vector.broadcast %cst_243 : f32 to vector<4x256xf32>
    %534 = arith.select %532, %511, %533 : vector<4x256xi1>, vector<4x256xf32>
    %535 = arith.truncf %534 : vector<4x256xf32> to vector<4x256xbf16>
    %c2_244 = arith.constant 2 : index
    %c0_245 = arith.constant 0 : index
    %c0_246 = arith.constant 0 : index
    %536 = vector.load %arg12[%c2_244, %c0_245, %c0_246] : memref<9x4x4xbf16, #tpu.memory_space<vmem>>, vector<1x4x4xbf16>
    %537 = vector.shape_cast %536 : vector<1x4x4xbf16> to vector<4x4xbf16>
    %cst_247 = arith.constant dense<0.000000e+00> : vector<4x256xf32>
    %538 = tpu.matmul %537, %535, %cst_247 {dimension_numbers = #tpu.dot_dimension_numbers<[1], [0], [0], [1], [0, 0, 1, 1], [], []>} : vector<4x4xbf16>, vector<4x256xbf16>, vector<4x256xf32> -> vector<4x256xf32>
    %539 = arith.addf %510, %538 : vector<4x256xf32>
    %c3_i32_248 = arith.constant 3 : i32
    %540 = tpu.dynamic_rotate %80 by %c3_i32_248 dim 1 : vector<4x256xf32>, i32 -> vector<4x256xf32>
    %c0_i32_249 = arith.constant 0 : i32
    %541 = vector.broadcast %c0_i32_249 : i32 to vector<1x256xi32>
    %542 = arith.addi %2, %541 : vector<1x256xi32>
    %c0_i32_250 = arith.constant 0 : i32
    %543 = vector.broadcast %c0_i32_250 : i32 to vector<1x256xi32>
    %544 = arith.cmpi sge, %542, %543 : vector<1x256xi32>
    %c0_i32_251 = arith.constant 0 : i32
    %545 = vector.broadcast %c0_i32_251 : i32 to vector<1x256xi32>
    %546 = arith.addi %2, %545 : vector<1x256xi32>
    %c256_i32_252 = arith.constant 256 : i32
    %547 = vector.broadcast %c256_i32_252 : i32 to vector<1x256xi32>
    %548 = arith.cmpi slt, %546, %547 : vector<1x256xi32>
    %549 = arith.andi %544, %548 : vector<1x256xi1>
    %c-3_i32_253 = arith.constant -3 : i32
    %550 = vector.broadcast %c-3_i32_253 : i32 to vector<1x256xi32>
    %551 = arith.addi %4, %550 : vector<1x256xi32>
    %c0_i32_254 = arith.constant 0 : i32
    %552 = vector.broadcast %c0_i32_254 : i32 to vector<1x256xi32>
    %553 = arith.cmpi sge, %551, %552 : vector<1x256xi32>
    %554 = arith.andi %549, %553 : vector<1x256xi1>
    %c-3_i32_255 = arith.constant -3 : i32
    %555 = vector.broadcast %c-3_i32_255 : i32 to vector<1x256xi32>
    %556 = arith.addi %4, %555 : vector<1x256xi32>
    %c16_i32_256 = arith.constant 16 : i32
    %557 = vector.broadcast %c16_i32_256 : i32 to vector<1x256xi32>
    %558 = arith.cmpi slt, %556, %557 : vector<1x256xi32>
    %559 = arith.andi %554, %558 : vector<1x256xi1>
    %cst_257 = arith.constant 0.000000e+00 : f32
    %560 = vector.shape_cast %559 : vector<1x256xi1> to vector<1x256xi1>
    %561 = vector.broadcast %560 : vector<1x256xi1> to vector<4x256xi1>
    %562 = vector.broadcast %cst_257 : f32 to vector<4x256xf32>
    %563 = arith.select %561, %540, %562 : vector<4x256xi1>, vector<4x256xf32>
    %564 = arith.truncf %563 : vector<4x256xf32> to vector<4x256xbf16>
    %c3_258 = arith.constant 3 : index
    %c0_259 = arith.constant 0 : index
    %c0_260 = arith.constant 0 : index
    %565 = vector.load %arg12[%c3_258, %c0_259, %c0_260] : memref<9x4x4xbf16, #tpu.memory_space<vmem>>, vector<1x4x4xbf16>
    %566 = vector.shape_cast %565 : vector<1x4x4xbf16> to vector<4x4xbf16>
    %cst_261 = arith.constant dense<0.000000e+00> : vector<4x256xf32>
    %567 = tpu.matmul %566, %564, %cst_261 {dimension_numbers = #tpu.dot_dimension_numbers<[1], [0], [0], [1], [0, 0, 1, 1], [], []>} : vector<4x4xbf16>, vector<4x256xbf16>, vector<4x256xf32> -> vector<4x256xf32>
    %568 = arith.addf %539, %567 : vector<4x256xf32>
    %569 = arith.truncf %80 : vector<4x256xf32> to vector<4x256xbf16>
    %c4_262 = arith.constant 4 : index
    %c0_263 = arith.constant 0 : index
    %c0_264 = arith.constant 0 : index
    %570 = vector.load %arg12[%c4_262, %c0_263, %c0_264] : memref<9x4x4xbf16, #tpu.memory_space<vmem>>, vector<1x4x4xbf16>
    %571 = vector.shape_cast %570 : vector<1x4x4xbf16> to vector<4x4xbf16>
    %cst_265 = arith.constant dense<0.000000e+00> : vector<4x256xf32>
    %572 = tpu.matmul %571, %569, %cst_265 {dimension_numbers = #tpu.dot_dimension_numbers<[1], [0], [0], [1], [0, 0, 1, 1], [], []>} : vector<4x4xbf16>, vector<4x256xbf16>, vector<4x256xf32> -> vector<4x256xf32>
    %573 = arith.addf %568, %572 : vector<4x256xf32>
    %c253_i32 = arith.constant 253 : i32
    %574 = tpu.dynamic_rotate %80 by %c253_i32 dim 1 : vector<4x256xf32>, i32 -> vector<4x256xf32>
    %c0_i32_266 = arith.constant 0 : i32
    %575 = vector.broadcast %c0_i32_266 : i32 to vector<1x256xi32>
    %576 = arith.addi %2, %575 : vector<1x256xi32>
    %c0_i32_267 = arith.constant 0 : i32
    %577 = vector.broadcast %c0_i32_267 : i32 to vector<1x256xi32>
    %578 = arith.cmpi sge, %576, %577 : vector<1x256xi32>
    %c0_i32_268 = arith.constant 0 : i32
    %579 = vector.broadcast %c0_i32_268 : i32 to vector<1x256xi32>
    %580 = arith.addi %2, %579 : vector<1x256xi32>
    %c256_i32_269 = arith.constant 256 : i32
    %581 = vector.broadcast %c256_i32_269 : i32 to vector<1x256xi32>
    %582 = arith.cmpi slt, %580, %581 : vector<1x256xi32>
    %583 = arith.andi %578, %582 : vector<1x256xi1>
    %c3_i32_270 = arith.constant 3 : i32
    %584 = vector.broadcast %c3_i32_270 : i32 to vector<1x256xi32>
    %585 = arith.addi %4, %584 : vector<1x256xi32>
    %c0_i32_271 = arith.constant 0 : i32
    %586 = vector.broadcast %c0_i32_271 : i32 to vector<1x256xi32>
    %587 = arith.cmpi sge, %585, %586 : vector<1x256xi32>
    %588 = arith.andi %583, %587 : vector<1x256xi1>
    %c3_i32_272 = arith.constant 3 : i32
    %589 = vector.broadcast %c3_i32_272 : i32 to vector<1x256xi32>
    %590 = arith.addi %4, %589 : vector<1x256xi32>
    %c16_i32_273 = arith.constant 16 : i32
    %591 = vector.broadcast %c16_i32_273 : i32 to vector<1x256xi32>
    %592 = arith.cmpi slt, %590, %591 : vector<1x256xi32>
    %593 = arith.andi %588, %592 : vector<1x256xi1>
    %cst_274 = arith.constant 0.000000e+00 : f32
    %594 = vector.shape_cast %593 : vector<1x256xi1> to vector<1x256xi1>
    %595 = vector.broadcast %594 : vector<1x256xi1> to vector<4x256xi1>
    %596 = vector.broadcast %cst_274 : f32 to vector<4x256xf32>
    %597 = arith.select %595, %574, %596 : vector<4x256xi1>, vector<4x256xf32>
    %598 = arith.truncf %597 : vector<4x256xf32> to vector<4x256xbf16>
    %c5_275 = arith.constant 5 : index
    %c0_276 = arith.constant 0 : index
    %c0_277 = arith.constant 0 : index
    %599 = vector.load %arg12[%c5_275, %c0_276, %c0_277] : memref<9x4x4xbf16, #tpu.memory_space<vmem>>, vector<1x4x4xbf16>
    %600 = vector.shape_cast %599 : vector<1x4x4xbf16> to vector<4x4xbf16>
    %cst_278 = arith.constant dense<0.000000e+00> : vector<4x256xf32>
    %601 = tpu.matmul %600, %598, %cst_278 {dimension_numbers = #tpu.dot_dimension_numbers<[1], [0], [0], [1], [0, 0, 1, 1], [], []>} : vector<4x4xbf16>, vector<4x256xbf16>, vector<4x256xf32> -> vector<4x256xf32>
    %602 = arith.addf %573, %601 : vector<4x256xf32>
    %c211_i32 = arith.constant 211 : i32
    %603 = tpu.dynamic_rotate %80 by %c211_i32 dim 1 : vector<4x256xf32>, i32 -> vector<4x256xf32>
    %c48_i32_279 = arith.constant 48 : i32
    %604 = vector.broadcast %c48_i32_279 : i32 to vector<1x256xi32>
    %605 = arith.addi %2, %604 : vector<1x256xi32>
    %c0_i32_280 = arith.constant 0 : i32
    %606 = vector.broadcast %c0_i32_280 : i32 to vector<1x256xi32>
    %607 = arith.cmpi sge, %605, %606 : vector<1x256xi32>
    %c48_i32_281 = arith.constant 48 : i32
    %608 = vector.broadcast %c48_i32_281 : i32 to vector<1x256xi32>
    %609 = arith.addi %2, %608 : vector<1x256xi32>
    %c256_i32_282 = arith.constant 256 : i32
    %610 = vector.broadcast %c256_i32_282 : i32 to vector<1x256xi32>
    %611 = arith.cmpi slt, %609, %610 : vector<1x256xi32>
    %612 = arith.andi %607, %611 : vector<1x256xi1>
    %c-3_i32_283 = arith.constant -3 : i32
    %613 = vector.broadcast %c-3_i32_283 : i32 to vector<1x256xi32>
    %614 = arith.addi %4, %613 : vector<1x256xi32>
    %c0_i32_284 = arith.constant 0 : i32
    %615 = vector.broadcast %c0_i32_284 : i32 to vector<1x256xi32>
    %616 = arith.cmpi sge, %614, %615 : vector<1x256xi32>
    %617 = arith.andi %612, %616 : vector<1x256xi1>
    %c-3_i32_285 = arith.constant -3 : i32
    %618 = vector.broadcast %c-3_i32_285 : i32 to vector<1x256xi32>
    %619 = arith.addi %4, %618 : vector<1x256xi32>
    %c16_i32_286 = arith.constant 16 : i32
    %620 = vector.broadcast %c16_i32_286 : i32 to vector<1x256xi32>
    %621 = arith.cmpi slt, %619, %620 : vector<1x256xi32>
    %622 = arith.andi %617, %621 : vector<1x256xi1>
    %cst_287 = arith.constant 0.000000e+00 : f32
    %623 = vector.shape_cast %622 : vector<1x256xi1> to vector<1x256xi1>
    %624 = vector.broadcast %623 : vector<1x256xi1> to vector<4x256xi1>
    %625 = vector.broadcast %cst_287 : f32 to vector<4x256xf32>
    %626 = arith.select %624, %603, %625 : vector<4x256xi1>, vector<4x256xf32>
    %627 = arith.truncf %626 : vector<4x256xf32> to vector<4x256xbf16>
    %c6_288 = arith.constant 6 : index
    %c0_289 = arith.constant 0 : index
    %c0_290 = arith.constant 0 : index
    %628 = vector.load %arg12[%c6_288, %c0_289, %c0_290] : memref<9x4x4xbf16, #tpu.memory_space<vmem>>, vector<1x4x4xbf16>
    %629 = vector.shape_cast %628 : vector<1x4x4xbf16> to vector<4x4xbf16>
    %cst_291 = arith.constant dense<0.000000e+00> : vector<4x256xf32>
    %630 = tpu.matmul %629, %627, %cst_291 {dimension_numbers = #tpu.dot_dimension_numbers<[1], [0], [0], [1], [0, 0, 1, 1], [], []>} : vector<4x4xbf16>, vector<4x256xbf16>, vector<4x256xf32> -> vector<4x256xf32>
    %631 = arith.addf %602, %630 : vector<4x256xf32>
    %c208_i32 = arith.constant 208 : i32
    %632 = tpu.dynamic_rotate %80 by %c208_i32 dim 1 : vector<4x256xf32>, i32 -> vector<4x256xf32>
    %c48_i32_292 = arith.constant 48 : i32
    %633 = vector.broadcast %c48_i32_292 : i32 to vector<1x256xi32>
    %634 = arith.addi %2, %633 : vector<1x256xi32>
    %c0_i32_293 = arith.constant 0 : i32
    %635 = vector.broadcast %c0_i32_293 : i32 to vector<1x256xi32>
    %636 = arith.cmpi sge, %634, %635 : vector<1x256xi32>
    %c48_i32_294 = arith.constant 48 : i32
    %637 = vector.broadcast %c48_i32_294 : i32 to vector<1x256xi32>
    %638 = arith.addi %2, %637 : vector<1x256xi32>
    %c256_i32_295 = arith.constant 256 : i32
    %639 = vector.broadcast %c256_i32_295 : i32 to vector<1x256xi32>
    %640 = arith.cmpi slt, %638, %639 : vector<1x256xi32>
    %641 = arith.andi %636, %640 : vector<1x256xi1>
    %c0_i32_296 = arith.constant 0 : i32
    %642 = vector.broadcast %c0_i32_296 : i32 to vector<1x256xi32>
    %643 = arith.addi %4, %642 : vector<1x256xi32>
    %c0_i32_297 = arith.constant 0 : i32
    %644 = vector.broadcast %c0_i32_297 : i32 to vector<1x256xi32>
    %645 = arith.cmpi sge, %643, %644 : vector<1x256xi32>
    %646 = arith.andi %641, %645 : vector<1x256xi1>
    %c0_i32_298 = arith.constant 0 : i32
    %647 = vector.broadcast %c0_i32_298 : i32 to vector<1x256xi32>
    %648 = arith.addi %4, %647 : vector<1x256xi32>
    %c16_i32_299 = arith.constant 16 : i32
    %649 = vector.broadcast %c16_i32_299 : i32 to vector<1x256xi32>
    %650 = arith.cmpi slt, %648, %649 : vector<1x256xi32>
    %651 = arith.andi %646, %650 : vector<1x256xi1>
    %cst_300 = arith.constant 0.000000e+00 : f32
    %652 = vector.shape_cast %651 : vector<1x256xi1> to vector<1x256xi1>
    %653 = vector.broadcast %652 : vector<1x256xi1> to vector<4x256xi1>
    %654 = vector.broadcast %cst_300 : f32 to vector<4x256xf32>
    %655 = arith.select %653, %632, %654 : vector<4x256xi1>, vector<4x256xf32>
    %656 = arith.truncf %655 : vector<4x256xf32> to vector<4x256xbf16>
    %c7_301 = arith.constant 7 : index
    %c0_302 = arith.constant 0 : index
    %c0_303 = arith.constant 0 : index
    %657 = vector.load %arg12[%c7_301, %c0_302, %c0_303] : memref<9x4x4xbf16, #tpu.memory_space<vmem>>, vector<1x4x4xbf16>
    %658 = vector.shape_cast %657 : vector<1x4x4xbf16> to vector<4x4xbf16>
    %cst_304 = arith.constant dense<0.000000e+00> : vector<4x256xf32>
    %659 = tpu.matmul %658, %656, %cst_304 {dimension_numbers = #tpu.dot_dimension_numbers<[1], [0], [0], [1], [0, 0, 1, 1], [], []>} : vector<4x4xbf16>, vector<4x256xbf16>, vector<4x256xf32> -> vector<4x256xf32>
    %660 = arith.addf %631, %659 : vector<4x256xf32>
    %c205_i32 = arith.constant 205 : i32
    %661 = tpu.dynamic_rotate %80 by %c205_i32 dim 1 : vector<4x256xf32>, i32 -> vector<4x256xf32>
    %c48_i32_305 = arith.constant 48 : i32
    %662 = vector.broadcast %c48_i32_305 : i32 to vector<1x256xi32>
    %663 = arith.addi %2, %662 : vector<1x256xi32>
    %c0_i32_306 = arith.constant 0 : i32
    %664 = vector.broadcast %c0_i32_306 : i32 to vector<1x256xi32>
    %665 = arith.cmpi sge, %663, %664 : vector<1x256xi32>
    %c48_i32_307 = arith.constant 48 : i32
    %666 = vector.broadcast %c48_i32_307 : i32 to vector<1x256xi32>
    %667 = arith.addi %2, %666 : vector<1x256xi32>
    %c256_i32_308 = arith.constant 256 : i32
    %668 = vector.broadcast %c256_i32_308 : i32 to vector<1x256xi32>
    %669 = arith.cmpi slt, %667, %668 : vector<1x256xi32>
    %670 = arith.andi %665, %669 : vector<1x256xi1>
    %c3_i32_309 = arith.constant 3 : i32
    %671 = vector.broadcast %c3_i32_309 : i32 to vector<1x256xi32>
    %672 = arith.addi %4, %671 : vector<1x256xi32>
    %c0_i32_310 = arith.constant 0 : i32
    %673 = vector.broadcast %c0_i32_310 : i32 to vector<1x256xi32>
    %674 = arith.cmpi sge, %672, %673 : vector<1x256xi32>
    %675 = arith.andi %670, %674 : vector<1x256xi1>
    %c3_i32_311 = arith.constant 3 : i32
    %676 = vector.broadcast %c3_i32_311 : i32 to vector<1x256xi32>
    %677 = arith.addi %4, %676 : vector<1x256xi32>
    %c16_i32_312 = arith.constant 16 : i32
    %678 = vector.broadcast %c16_i32_312 : i32 to vector<1x256xi32>
    %679 = arith.cmpi slt, %677, %678 : vector<1x256xi32>
    %680 = arith.andi %675, %679 : vector<1x256xi1>
    %cst_313 = arith.constant 0.000000e+00 : f32
    %681 = vector.shape_cast %680 : vector<1x256xi1> to vector<1x256xi1>
    %682 = vector.broadcast %681 : vector<1x256xi1> to vector<4x256xi1>
    %683 = vector.broadcast %cst_313 : f32 to vector<4x256xf32>
    %684 = arith.select %682, %661, %683 : vector<4x256xi1>, vector<4x256xf32>
    %685 = arith.truncf %684 : vector<4x256xf32> to vector<4x256xbf16>
    %c8_314 = arith.constant 8 : index
    %c0_315 = arith.constant 0 : index
    %c0_316 = arith.constant 0 : index
    %686 = vector.load %arg12[%c8_314, %c0_315, %c0_316] : memref<9x4x4xbf16, #tpu.memory_space<vmem>>, vector<1x4x4xbf16>
    %687 = vector.shape_cast %686 : vector<1x4x4xbf16> to vector<4x4xbf16>
    %cst_317 = arith.constant dense<0.000000e+00> : vector<4x256xf32>
    %688 = tpu.matmul %687, %685, %cst_317 {dimension_numbers = #tpu.dot_dimension_numbers<[1], [0], [0], [1], [0, 0, 1, 1], [], []>} : vector<4x4xbf16>, vector<4x256xbf16>, vector<4x256xf32> -> vector<4x256xf32>
    %689 = arith.addf %660, %688 : vector<4x256xf32>
    %c0_318 = arith.constant 0 : index
    %c0_319 = arith.constant 0 : index
    %690 = vector.load %arg13[%c0_318, %c0_319] : memref<4x1xf32, #tpu.memory_space<vmem>>, vector<4x1xf32>
    %691 = vector.broadcast %690 : vector<4x1xf32> to vector<4x256xf32>
    %692 = arith.addf %689, %691 : vector<4x256xf32>
    %c51_i32_320 = arith.constant 51 : i32
    %693 = tpu.dynamic_rotate %147 by %c51_i32_320 dim 1 : vector<7x256xf32>, i32 -> vector<7x256xf32>
    %c-48_i32_321 = arith.constant -48 : i32
    %694 = vector.broadcast %c-48_i32_321 : i32 to vector<1x256xi32>
    %695 = arith.addi %2, %694 : vector<1x256xi32>
    %c0_i32_322 = arith.constant 0 : i32
    %696 = vector.broadcast %c0_i32_322 : i32 to vector<1x256xi32>
    %697 = arith.cmpi sge, %695, %696 : vector<1x256xi32>
    %c-48_i32_323 = arith.constant -48 : i32
    %698 = vector.broadcast %c-48_i32_323 : i32 to vector<1x256xi32>
    %699 = arith.addi %2, %698 : vector<1x256xi32>
    %c256_i32_324 = arith.constant 256 : i32
    %700 = vector.broadcast %c256_i32_324 : i32 to vector<1x256xi32>
    %701 = arith.cmpi slt, %699, %700 : vector<1x256xi32>
    %702 = arith.andi %697, %701 : vector<1x256xi1>
    %c-3_i32_325 = arith.constant -3 : i32
    %703 = vector.broadcast %c-3_i32_325 : i32 to vector<1x256xi32>
    %704 = arith.addi %4, %703 : vector<1x256xi32>
    %c0_i32_326 = arith.constant 0 : i32
    %705 = vector.broadcast %c0_i32_326 : i32 to vector<1x256xi32>
    %706 = arith.cmpi sge, %704, %705 : vector<1x256xi32>
    %707 = arith.andi %702, %706 : vector<1x256xi1>
    %c-3_i32_327 = arith.constant -3 : i32
    %708 = vector.broadcast %c-3_i32_327 : i32 to vector<1x256xi32>
    %709 = arith.addi %4, %708 : vector<1x256xi32>
    %c16_i32_328 = arith.constant 16 : i32
    %710 = vector.broadcast %c16_i32_328 : i32 to vector<1x256xi32>
    %711 = arith.cmpi slt, %709, %710 : vector<1x256xi32>
    %712 = arith.andi %707, %711 : vector<1x256xi1>
    %cst_329 = arith.constant 0.000000e+00 : f32
    %713 = vector.shape_cast %712 : vector<1x256xi1> to vector<1x256xi1>
    %714 = vector.broadcast %713 : vector<1x256xi1> to vector<7x256xi1>
    %715 = vector.broadcast %cst_329 : f32 to vector<7x256xf32>
    %716 = arith.select %714, %693, %715 : vector<7x256xi1>, vector<7x256xf32>
    %717 = arith.truncf %716 : vector<7x256xf32> to vector<7x256xbf16>
    %c0_330 = arith.constant 0 : index
    %c0_331 = arith.constant 0 : index
    %c0_332 = arith.constant 0 : index
    %718 = vector.load %arg14[%c0_330, %c0_331, %c0_332] : memref<9x4x7xbf16, #tpu.memory_space<vmem>>, vector<1x4x7xbf16>
    %719 = vector.shape_cast %718 : vector<1x4x7xbf16> to vector<4x7xbf16>
    %cst_333 = arith.constant dense<0.000000e+00> : vector<4x256xf32>
    %720 = tpu.matmul %719, %717, %cst_333 {dimension_numbers = #tpu.dot_dimension_numbers<[1], [0], [0], [1], [0, 0, 1, 1], [], []>} : vector<4x7xbf16>, vector<7x256xbf16>, vector<4x256xf32> -> vector<4x256xf32>
    %c48_i32_334 = arith.constant 48 : i32
    %721 = tpu.dynamic_rotate %147 by %c48_i32_334 dim 1 : vector<7x256xf32>, i32 -> vector<7x256xf32>
    %c-48_i32_335 = arith.constant -48 : i32
    %722 = vector.broadcast %c-48_i32_335 : i32 to vector<1x256xi32>
    %723 = arith.addi %2, %722 : vector<1x256xi32>
    %c0_i32_336 = arith.constant 0 : i32
    %724 = vector.broadcast %c0_i32_336 : i32 to vector<1x256xi32>
    %725 = arith.cmpi sge, %723, %724 : vector<1x256xi32>
    %c-48_i32_337 = arith.constant -48 : i32
    %726 = vector.broadcast %c-48_i32_337 : i32 to vector<1x256xi32>
    %727 = arith.addi %2, %726 : vector<1x256xi32>
    %c256_i32_338 = arith.constant 256 : i32
    %728 = vector.broadcast %c256_i32_338 : i32 to vector<1x256xi32>
    %729 = arith.cmpi slt, %727, %728 : vector<1x256xi32>
    %730 = arith.andi %725, %729 : vector<1x256xi1>
    %c0_i32_339 = arith.constant 0 : i32
    %731 = vector.broadcast %c0_i32_339 : i32 to vector<1x256xi32>
    %732 = arith.addi %4, %731 : vector<1x256xi32>
    %c0_i32_340 = arith.constant 0 : i32
    %733 = vector.broadcast %c0_i32_340 : i32 to vector<1x256xi32>
    %734 = arith.cmpi sge, %732, %733 : vector<1x256xi32>
    %735 = arith.andi %730, %734 : vector<1x256xi1>
    %c0_i32_341 = arith.constant 0 : i32
    %736 = vector.broadcast %c0_i32_341 : i32 to vector<1x256xi32>
    %737 = arith.addi %4, %736 : vector<1x256xi32>
    %c16_i32_342 = arith.constant 16 : i32
    %738 = vector.broadcast %c16_i32_342 : i32 to vector<1x256xi32>
    %739 = arith.cmpi slt, %737, %738 : vector<1x256xi32>
    %740 = arith.andi %735, %739 : vector<1x256xi1>
    %cst_343 = arith.constant 0.000000e+00 : f32
    %741 = vector.shape_cast %740 : vector<1x256xi1> to vector<1x256xi1>
    %742 = vector.broadcast %741 : vector<1x256xi1> to vector<7x256xi1>
    %743 = vector.broadcast %cst_343 : f32 to vector<7x256xf32>
    %744 = arith.select %742, %721, %743 : vector<7x256xi1>, vector<7x256xf32>
    %745 = arith.truncf %744 : vector<7x256xf32> to vector<7x256xbf16>
    %c1_344 = arith.constant 1 : index
    %c0_345 = arith.constant 0 : index
    %c0_346 = arith.constant 0 : index
    %746 = vector.load %arg14[%c1_344, %c0_345, %c0_346] : memref<9x4x7xbf16, #tpu.memory_space<vmem>>, vector<1x4x7xbf16>
    %747 = vector.shape_cast %746 : vector<1x4x7xbf16> to vector<4x7xbf16>
    %cst_347 = arith.constant dense<0.000000e+00> : vector<4x256xf32>
    %748 = tpu.matmul %747, %745, %cst_347 {dimension_numbers = #tpu.dot_dimension_numbers<[1], [0], [0], [1], [0, 0, 1, 1], [], []>} : vector<4x7xbf16>, vector<7x256xbf16>, vector<4x256xf32> -> vector<4x256xf32>
    %749 = arith.addf %720, %748 : vector<4x256xf32>
    %c45_i32_348 = arith.constant 45 : i32
    %750 = tpu.dynamic_rotate %147 by %c45_i32_348 dim 1 : vector<7x256xf32>, i32 -> vector<7x256xf32>
    %c-48_i32_349 = arith.constant -48 : i32
    %751 = vector.broadcast %c-48_i32_349 : i32 to vector<1x256xi32>
    %752 = arith.addi %2, %751 : vector<1x256xi32>
    %c0_i32_350 = arith.constant 0 : i32
    %753 = vector.broadcast %c0_i32_350 : i32 to vector<1x256xi32>
    %754 = arith.cmpi sge, %752, %753 : vector<1x256xi32>
    %c-48_i32_351 = arith.constant -48 : i32
    %755 = vector.broadcast %c-48_i32_351 : i32 to vector<1x256xi32>
    %756 = arith.addi %2, %755 : vector<1x256xi32>
    %c256_i32_352 = arith.constant 256 : i32
    %757 = vector.broadcast %c256_i32_352 : i32 to vector<1x256xi32>
    %758 = arith.cmpi slt, %756, %757 : vector<1x256xi32>
    %759 = arith.andi %754, %758 : vector<1x256xi1>
    %c3_i32_353 = arith.constant 3 : i32
    %760 = vector.broadcast %c3_i32_353 : i32 to vector<1x256xi32>
    %761 = arith.addi %4, %760 : vector<1x256xi32>
    %c0_i32_354 = arith.constant 0 : i32
    %762 = vector.broadcast %c0_i32_354 : i32 to vector<1x256xi32>
    %763 = arith.cmpi sge, %761, %762 : vector<1x256xi32>
    %764 = arith.andi %759, %763 : vector<1x256xi1>
    %c3_i32_355 = arith.constant 3 : i32
    %765 = vector.broadcast %c3_i32_355 : i32 to vector<1x256xi32>
    %766 = arith.addi %4, %765 : vector<1x256xi32>
    %c16_i32_356 = arith.constant 16 : i32
    %767 = vector.broadcast %c16_i32_356 : i32 to vector<1x256xi32>
    %768 = arith.cmpi slt, %766, %767 : vector<1x256xi32>
    %769 = arith.andi %764, %768 : vector<1x256xi1>
    %cst_357 = arith.constant 0.000000e+00 : f32
    %770 = vector.shape_cast %769 : vector<1x256xi1> to vector<1x256xi1>
    %771 = vector.broadcast %770 : vector<1x256xi1> to vector<7x256xi1>
    %772 = vector.broadcast %cst_357 : f32 to vector<7x256xf32>
    %773 = arith.select %771, %750, %772 : vector<7x256xi1>, vector<7x256xf32>
    %774 = arith.truncf %773 : vector<7x256xf32> to vector<7x256xbf16>
    %c2_358 = arith.constant 2 : index
    %c0_359 = arith.constant 0 : index
    %c0_360 = arith.constant 0 : index
    %775 = vector.load %arg14[%c2_358, %c0_359, %c0_360] : memref<9x4x7xbf16, #tpu.memory_space<vmem>>, vector<1x4x7xbf16>
    %776 = vector.shape_cast %775 : vector<1x4x7xbf16> to vector<4x7xbf16>
    %cst_361 = arith.constant dense<0.000000e+00> : vector<4x256xf32>
    %777 = tpu.matmul %776, %774, %cst_361 {dimension_numbers = #tpu.dot_dimension_numbers<[1], [0], [0], [1], [0, 0, 1, 1], [], []>} : vector<4x7xbf16>, vector<7x256xbf16>, vector<4x256xf32> -> vector<4x256xf32>
    %778 = arith.addf %749, %777 : vector<4x256xf32>
    %c3_i32_362 = arith.constant 3 : i32
    %779 = tpu.dynamic_rotate %147 by %c3_i32_362 dim 1 : vector<7x256xf32>, i32 -> vector<7x256xf32>
    %c0_i32_363 = arith.constant 0 : i32
    %780 = vector.broadcast %c0_i32_363 : i32 to vector<1x256xi32>
    %781 = arith.addi %2, %780 : vector<1x256xi32>
    %c0_i32_364 = arith.constant 0 : i32
    %782 = vector.broadcast %c0_i32_364 : i32 to vector<1x256xi32>
    %783 = arith.cmpi sge, %781, %782 : vector<1x256xi32>
    %c0_i32_365 = arith.constant 0 : i32
    %784 = vector.broadcast %c0_i32_365 : i32 to vector<1x256xi32>
    %785 = arith.addi %2, %784 : vector<1x256xi32>
    %c256_i32_366 = arith.constant 256 : i32
    %786 = vector.broadcast %c256_i32_366 : i32 to vector<1x256xi32>
    %787 = arith.cmpi slt, %785, %786 : vector<1x256xi32>
    %788 = arith.andi %783, %787 : vector<1x256xi1>
    %c-3_i32_367 = arith.constant -3 : i32
    %789 = vector.broadcast %c-3_i32_367 : i32 to vector<1x256xi32>
    %790 = arith.addi %4, %789 : vector<1x256xi32>
    %c0_i32_368 = arith.constant 0 : i32
    %791 = vector.broadcast %c0_i32_368 : i32 to vector<1x256xi32>
    %792 = arith.cmpi sge, %790, %791 : vector<1x256xi32>
    %793 = arith.andi %788, %792 : vector<1x256xi1>
    %c-3_i32_369 = arith.constant -3 : i32
    %794 = vector.broadcast %c-3_i32_369 : i32 to vector<1x256xi32>
    %795 = arith.addi %4, %794 : vector<1x256xi32>
    %c16_i32_370 = arith.constant 16 : i32
    %796 = vector.broadcast %c16_i32_370 : i32 to vector<1x256xi32>
    %797 = arith.cmpi slt, %795, %796 : vector<1x256xi32>
    %798 = arith.andi %793, %797 : vector<1x256xi1>
    %cst_371 = arith.constant 0.000000e+00 : f32
    %799 = vector.shape_cast %798 : vector<1x256xi1> to vector<1x256xi1>
    %800 = vector.broadcast %799 : vector<1x256xi1> to vector<7x256xi1>
    %801 = vector.broadcast %cst_371 : f32 to vector<7x256xf32>
    %802 = arith.select %800, %779, %801 : vector<7x256xi1>, vector<7x256xf32>
    %803 = arith.truncf %802 : vector<7x256xf32> to vector<7x256xbf16>
    %c3_372 = arith.constant 3 : index
    %c0_373 = arith.constant 0 : index
    %c0_374 = arith.constant 0 : index
    %804 = vector.load %arg14[%c3_372, %c0_373, %c0_374] : memref<9x4x7xbf16, #tpu.memory_space<vmem>>, vector<1x4x7xbf16>
    %805 = vector.shape_cast %804 : vector<1x4x7xbf16> to vector<4x7xbf16>
    %cst_375 = arith.constant dense<0.000000e+00> : vector<4x256xf32>
    %806 = tpu.matmul %805, %803, %cst_375 {dimension_numbers = #tpu.dot_dimension_numbers<[1], [0], [0], [1], [0, 0, 1, 1], [], []>} : vector<4x7xbf16>, vector<7x256xbf16>, vector<4x256xf32> -> vector<4x256xf32>
    %807 = arith.addf %778, %806 : vector<4x256xf32>
    %808 = arith.truncf %147 : vector<7x256xf32> to vector<7x256xbf16>
    %c4_376 = arith.constant 4 : index
    %c0_377 = arith.constant 0 : index
    %c0_378 = arith.constant 0 : index
    %809 = vector.load %arg14[%c4_376, %c0_377, %c0_378] : memref<9x4x7xbf16, #tpu.memory_space<vmem>>, vector<1x4x7xbf16>
    %810 = vector.shape_cast %809 : vector<1x4x7xbf16> to vector<4x7xbf16>
    %cst_379 = arith.constant dense<0.000000e+00> : vector<4x256xf32>
    %811 = tpu.matmul %810, %808, %cst_379 {dimension_numbers = #tpu.dot_dimension_numbers<[1], [0], [0], [1], [0, 0, 1, 1], [], []>} : vector<4x7xbf16>, vector<7x256xbf16>, vector<4x256xf32> -> vector<4x256xf32>
    %812 = arith.addf %807, %811 : vector<4x256xf32>
    %c253_i32_380 = arith.constant 253 : i32
    %813 = tpu.dynamic_rotate %147 by %c253_i32_380 dim 1 : vector<7x256xf32>, i32 -> vector<7x256xf32>
    %c0_i32_381 = arith.constant 0 : i32
    %814 = vector.broadcast %c0_i32_381 : i32 to vector<1x256xi32>
    %815 = arith.addi %2, %814 : vector<1x256xi32>
    %c0_i32_382 = arith.constant 0 : i32
    %816 = vector.broadcast %c0_i32_382 : i32 to vector<1x256xi32>
    %817 = arith.cmpi sge, %815, %816 : vector<1x256xi32>
    %c0_i32_383 = arith.constant 0 : i32
    %818 = vector.broadcast %c0_i32_383 : i32 to vector<1x256xi32>
    %819 = arith.addi %2, %818 : vector<1x256xi32>
    %c256_i32_384 = arith.constant 256 : i32
    %820 = vector.broadcast %c256_i32_384 : i32 to vector<1x256xi32>
    %821 = arith.cmpi slt, %819, %820 : vector<1x256xi32>
    %822 = arith.andi %817, %821 : vector<1x256xi1>
    %c3_i32_385 = arith.constant 3 : i32
    %823 = vector.broadcast %c3_i32_385 : i32 to vector<1x256xi32>
    %824 = arith.addi %4, %823 : vector<1x256xi32>
    %c0_i32_386 = arith.constant 0 : i32
    %825 = vector.broadcast %c0_i32_386 : i32 to vector<1x256xi32>
    %826 = arith.cmpi sge, %824, %825 : vector<1x256xi32>
    %827 = arith.andi %822, %826 : vector<1x256xi1>
    %c3_i32_387 = arith.constant 3 : i32
    %828 = vector.broadcast %c3_i32_387 : i32 to vector<1x256xi32>
    %829 = arith.addi %4, %828 : vector<1x256xi32>
    %c16_i32_388 = arith.constant 16 : i32
    %830 = vector.broadcast %c16_i32_388 : i32 to vector<1x256xi32>
    %831 = arith.cmpi slt, %829, %830 : vector<1x256xi32>
    %832 = arith.andi %827, %831 : vector<1x256xi1>
    %cst_389 = arith.constant 0.000000e+00 : f32
    %833 = vector.shape_cast %832 : vector<1x256xi1> to vector<1x256xi1>
    %834 = vector.broadcast %833 : vector<1x256xi1> to vector<7x256xi1>
    %835 = vector.broadcast %cst_389 : f32 to vector<7x256xf32>
    %836 = arith.select %834, %813, %835 : vector<7x256xi1>, vector<7x256xf32>
    %837 = arith.truncf %836 : vector<7x256xf32> to vector<7x256xbf16>
    %c5_390 = arith.constant 5 : index
    %c0_391 = arith.constant 0 : index
    %c0_392 = arith.constant 0 : index
    %838 = vector.load %arg14[%c5_390, %c0_391, %c0_392] : memref<9x4x7xbf16, #tpu.memory_space<vmem>>, vector<1x4x7xbf16>
    %839 = vector.shape_cast %838 : vector<1x4x7xbf16> to vector<4x7xbf16>
    %cst_393 = arith.constant dense<0.000000e+00> : vector<4x256xf32>
    %840 = tpu.matmul %839, %837, %cst_393 {dimension_numbers = #tpu.dot_dimension_numbers<[1], [0], [0], [1], [0, 0, 1, 1], [], []>} : vector<4x7xbf16>, vector<7x256xbf16>, vector<4x256xf32> -> vector<4x256xf32>
    %841 = arith.addf %812, %840 : vector<4x256xf32>
    %c211_i32_394 = arith.constant 211 : i32
    %842 = tpu.dynamic_rotate %147 by %c211_i32_394 dim 1 : vector<7x256xf32>, i32 -> vector<7x256xf32>
    %c48_i32_395 = arith.constant 48 : i32
    %843 = vector.broadcast %c48_i32_395 : i32 to vector<1x256xi32>
    %844 = arith.addi %2, %843 : vector<1x256xi32>
    %c0_i32_396 = arith.constant 0 : i32
    %845 = vector.broadcast %c0_i32_396 : i32 to vector<1x256xi32>
    %846 = arith.cmpi sge, %844, %845 : vector<1x256xi32>
    %c48_i32_397 = arith.constant 48 : i32
    %847 = vector.broadcast %c48_i32_397 : i32 to vector<1x256xi32>
    %848 = arith.addi %2, %847 : vector<1x256xi32>
    %c256_i32_398 = arith.constant 256 : i32
    %849 = vector.broadcast %c256_i32_398 : i32 to vector<1x256xi32>
    %850 = arith.cmpi slt, %848, %849 : vector<1x256xi32>
    %851 = arith.andi %846, %850 : vector<1x256xi1>
    %c-3_i32_399 = arith.constant -3 : i32
    %852 = vector.broadcast %c-3_i32_399 : i32 to vector<1x256xi32>
    %853 = arith.addi %4, %852 : vector<1x256xi32>
    %c0_i32_400 = arith.constant 0 : i32
    %854 = vector.broadcast %c0_i32_400 : i32 to vector<1x256xi32>
    %855 = arith.cmpi sge, %853, %854 : vector<1x256xi32>
    %856 = arith.andi %851, %855 : vector<1x256xi1>
    %c-3_i32_401 = arith.constant -3 : i32
    %857 = vector.broadcast %c-3_i32_401 : i32 to vector<1x256xi32>
    %858 = arith.addi %4, %857 : vector<1x256xi32>
    %c16_i32_402 = arith.constant 16 : i32
    %859 = vector.broadcast %c16_i32_402 : i32 to vector<1x256xi32>
    %860 = arith.cmpi slt, %858, %859 : vector<1x256xi32>
    %861 = arith.andi %856, %860 : vector<1x256xi1>
    %cst_403 = arith.constant 0.000000e+00 : f32
    %862 = vector.shape_cast %861 : vector<1x256xi1> to vector<1x256xi1>
    %863 = vector.broadcast %862 : vector<1x256xi1> to vector<7x256xi1>
    %864 = vector.broadcast %cst_403 : f32 to vector<7x256xf32>
    %865 = arith.select %863, %842, %864 : vector<7x256xi1>, vector<7x256xf32>
    %866 = arith.truncf %865 : vector<7x256xf32> to vector<7x256xbf16>
    %c6_404 = arith.constant 6 : index
    %c0_405 = arith.constant 0 : index
    %c0_406 = arith.constant 0 : index
    %867 = vector.load %arg14[%c6_404, %c0_405, %c0_406] : memref<9x4x7xbf16, #tpu.memory_space<vmem>>, vector<1x4x7xbf16>
    %868 = vector.shape_cast %867 : vector<1x4x7xbf16> to vector<4x7xbf16>
    %cst_407 = arith.constant dense<0.000000e+00> : vector<4x256xf32>
    %869 = tpu.matmul %868, %866, %cst_407 {dimension_numbers = #tpu.dot_dimension_numbers<[1], [0], [0], [1], [0, 0, 1, 1], [], []>} : vector<4x7xbf16>, vector<7x256xbf16>, vector<4x256xf32> -> vector<4x256xf32>
    %870 = arith.addf %841, %869 : vector<4x256xf32>
    %c208_i32_408 = arith.constant 208 : i32
    %871 = tpu.dynamic_rotate %147 by %c208_i32_408 dim 1 : vector<7x256xf32>, i32 -> vector<7x256xf32>
    %c48_i32_409 = arith.constant 48 : i32
    %872 = vector.broadcast %c48_i32_409 : i32 to vector<1x256xi32>
    %873 = arith.addi %2, %872 : vector<1x256xi32>
    %c0_i32_410 = arith.constant 0 : i32
    %874 = vector.broadcast %c0_i32_410 : i32 to vector<1x256xi32>
    %875 = arith.cmpi sge, %873, %874 : vector<1x256xi32>
    %c48_i32_411 = arith.constant 48 : i32
    %876 = vector.broadcast %c48_i32_411 : i32 to vector<1x256xi32>
    %877 = arith.addi %2, %876 : vector<1x256xi32>
    %c256_i32_412 = arith.constant 256 : i32
    %878 = vector.broadcast %c256_i32_412 : i32 to vector<1x256xi32>
    %879 = arith.cmpi slt, %877, %878 : vector<1x256xi32>
    %880 = arith.andi %875, %879 : vector<1x256xi1>
    %c0_i32_413 = arith.constant 0 : i32
    %881 = vector.broadcast %c0_i32_413 : i32 to vector<1x256xi32>
    %882 = arith.addi %4, %881 : vector<1x256xi32>
    %c0_i32_414 = arith.constant 0 : i32
    %883 = vector.broadcast %c0_i32_414 : i32 to vector<1x256xi32>
    %884 = arith.cmpi sge, %882, %883 : vector<1x256xi32>
    %885 = arith.andi %880, %884 : vector<1x256xi1>
    %c0_i32_415 = arith.constant 0 : i32
    %886 = vector.broadcast %c0_i32_415 : i32 to vector<1x256xi32>
    %887 = arith.addi %4, %886 : vector<1x256xi32>
    %c16_i32_416 = arith.constant 16 : i32
    %888 = vector.broadcast %c16_i32_416 : i32 to vector<1x256xi32>
    %889 = arith.cmpi slt, %887, %888 : vector<1x256xi32>
    %890 = arith.andi %885, %889 : vector<1x256xi1>
    %cst_417 = arith.constant 0.000000e+00 : f32
    %891 = vector.shape_cast %890 : vector<1x256xi1> to vector<1x256xi1>
    %892 = vector.broadcast %891 : vector<1x256xi1> to vector<7x256xi1>
    %893 = vector.broadcast %cst_417 : f32 to vector<7x256xf32>
    %894 = arith.select %892, %871, %893 : vector<7x256xi1>, vector<7x256xf32>
    %895 = arith.truncf %894 : vector<7x256xf32> to vector<7x256xbf16>
    %c7_418 = arith.constant 7 : index
    %c0_419 = arith.constant 0 : index
    %c0_420 = arith.constant 0 : index
    %896 = vector.load %arg14[%c7_418, %c0_419, %c0_420] : memref<9x4x7xbf16, #tpu.memory_space<vmem>>, vector<1x4x7xbf16>
    %897 = vector.shape_cast %896 : vector<1x4x7xbf16> to vector<4x7xbf16>
    %cst_421 = arith.constant dense<0.000000e+00> : vector<4x256xf32>
    %898 = tpu.matmul %897, %895, %cst_421 {dimension_numbers = #tpu.dot_dimension_numbers<[1], [0], [0], [1], [0, 0, 1, 1], [], []>} : vector<4x7xbf16>, vector<7x256xbf16>, vector<4x256xf32> -> vector<4x256xf32>
    %899 = arith.addf %870, %898 : vector<4x256xf32>
    %c205_i32_422 = arith.constant 205 : i32
    %900 = tpu.dynamic_rotate %147 by %c205_i32_422 dim 1 : vector<7x256xf32>, i32 -> vector<7x256xf32>
    %c48_i32_423 = arith.constant 48 : i32
    %901 = vector.broadcast %c48_i32_423 : i32 to vector<1x256xi32>
    %902 = arith.addi %2, %901 : vector<1x256xi32>
    %c0_i32_424 = arith.constant 0 : i32
    %903 = vector.broadcast %c0_i32_424 : i32 to vector<1x256xi32>
    %904 = arith.cmpi sge, %902, %903 : vector<1x256xi32>
    %c48_i32_425 = arith.constant 48 : i32
    %905 = vector.broadcast %c48_i32_425 : i32 to vector<1x256xi32>
    %906 = arith.addi %2, %905 : vector<1x256xi32>
    %c256_i32_426 = arith.constant 256 : i32
    %907 = vector.broadcast %c256_i32_426 : i32 to vector<1x256xi32>
    %908 = arith.cmpi slt, %906, %907 : vector<1x256xi32>
    %909 = arith.andi %904, %908 : vector<1x256xi1>
    %c3_i32_427 = arith.constant 3 : i32
    %910 = vector.broadcast %c3_i32_427 : i32 to vector<1x256xi32>
    %911 = arith.addi %4, %910 : vector<1x256xi32>
    %c0_i32_428 = arith.constant 0 : i32
    %912 = vector.broadcast %c0_i32_428 : i32 to vector<1x256xi32>
    %913 = arith.cmpi sge, %911, %912 : vector<1x256xi32>
    %914 = arith.andi %909, %913 : vector<1x256xi1>
    %c3_i32_429 = arith.constant 3 : i32
    %915 = vector.broadcast %c3_i32_429 : i32 to vector<1x256xi32>
    %916 = arith.addi %4, %915 : vector<1x256xi32>
    %c16_i32_430 = arith.constant 16 : i32
    %917 = vector.broadcast %c16_i32_430 : i32 to vector<1x256xi32>
    %918 = arith.cmpi slt, %916, %917 : vector<1x256xi32>
    %919 = arith.andi %914, %918 : vector<1x256xi1>
    %cst_431 = arith.constant 0.000000e+00 : f32
    %920 = vector.shape_cast %919 : vector<1x256xi1> to vector<1x256xi1>
    %921 = vector.broadcast %920 : vector<1x256xi1> to vector<7x256xi1>
    %922 = vector.broadcast %cst_431 : f32 to vector<7x256xf32>
    %923 = arith.select %921, %900, %922 : vector<7x256xi1>, vector<7x256xf32>
    %924 = arith.truncf %923 : vector<7x256xf32> to vector<7x256xbf16>
    %c8_432 = arith.constant 8 : index
    %c0_433 = arith.constant 0 : index
    %c0_434 = arith.constant 0 : index
    %925 = vector.load %arg14[%c8_432, %c0_433, %c0_434] : memref<9x4x7xbf16, #tpu.memory_space<vmem>>, vector<1x4x7xbf16>
    %926 = vector.shape_cast %925 : vector<1x4x7xbf16> to vector<4x7xbf16>
    %cst_435 = arith.constant dense<0.000000e+00> : vector<4x256xf32>
    %927 = tpu.matmul %926, %924, %cst_435 {dimension_numbers = #tpu.dot_dimension_numbers<[1], [0], [0], [1], [0, 0, 1, 1], [], []>} : vector<4x7xbf16>, vector<7x256xbf16>, vector<4x256xf32> -> vector<4x256xf32>
    %928 = arith.addf %899, %927 : vector<4x256xf32>
    %c0_436 = arith.constant 0 : index
    %c0_437 = arith.constant 0 : index
    %929 = vector.load %arg15[%c0_436, %c0_437] : memref<4x1xf32, #tpu.memory_space<vmem>>, vector<4x1xf32>
    %930 = vector.broadcast %929 : vector<4x1xf32> to vector<4x256xf32>
    %931 = arith.addf %928, %930 : vector<4x256xf32>
    %c85_i32 = arith.constant 85 : i32
    %932 = tpu.dynamic_rotate %214 by %c85_i32 dim 1 : vector<4x256xf32>, i32 -> vector<4x256xf32>
    %c-80_i32 = arith.constant -80 : i32
    %933 = vector.broadcast %c-80_i32 : i32 to vector<1x256xi32>
    %934 = arith.addi %2, %933 : vector<1x256xi32>
    %c0_i32_438 = arith.constant 0 : i32
    %935 = vector.broadcast %c0_i32_438 : i32 to vector<1x256xi32>
    %936 = arith.cmpi sge, %934, %935 : vector<1x256xi32>
    %c-80_i32_439 = arith.constant -80 : i32
    %937 = vector.broadcast %c-80_i32_439 : i32 to vector<1x256xi32>
    %938 = arith.addi %2, %937 : vector<1x256xi32>
    %c256_i32_440 = arith.constant 256 : i32
    %939 = vector.broadcast %c256_i32_440 : i32 to vector<1x256xi32>
    %940 = arith.cmpi slt, %938, %939 : vector<1x256xi32>
    %941 = arith.andi %936, %940 : vector<1x256xi1>
    %c-5_i32 = arith.constant -5 : i32
    %942 = vector.broadcast %c-5_i32 : i32 to vector<1x256xi32>
    %943 = arith.addi %4, %942 : vector<1x256xi32>
    %c0_i32_441 = arith.constant 0 : i32
    %944 = vector.broadcast %c0_i32_441 : i32 to vector<1x256xi32>
    %945 = arith.cmpi sge, %943, %944 : vector<1x256xi32>
    %946 = arith.andi %941, %945 : vector<1x256xi1>
    %c-5_i32_442 = arith.constant -5 : i32
    %947 = vector.broadcast %c-5_i32_442 : i32 to vector<1x256xi32>
    %948 = arith.addi %4, %947 : vector<1x256xi32>
    %c16_i32_443 = arith.constant 16 : i32
    %949 = vector.broadcast %c16_i32_443 : i32 to vector<1x256xi32>
    %950 = arith.cmpi slt, %948, %949 : vector<1x256xi32>
    %951 = arith.andi %946, %950 : vector<1x256xi1>
    %cst_444 = arith.constant 0.000000e+00 : f32
    %952 = vector.shape_cast %951 : vector<1x256xi1> to vector<1x256xi1>
    %953 = vector.broadcast %952 : vector<1x256xi1> to vector<4x256xi1>
    %954 = vector.broadcast %cst_444 : f32 to vector<4x256xf32>
    %955 = arith.select %953, %932, %954 : vector<4x256xi1>, vector<4x256xf32>
    %956 = arith.truncf %955 : vector<4x256xf32> to vector<4x256xbf16>
    %c0_445 = arith.constant 0 : index
    %c0_446 = arith.constant 0 : index
    %c0_447 = arith.constant 0 : index
    %957 = vector.load %arg16[%c0_445, %c0_446, %c0_447] : memref<9x4x4xbf16, #tpu.memory_space<vmem>>, vector<1x4x4xbf16>
    %958 = vector.shape_cast %957 : vector<1x4x4xbf16> to vector<4x4xbf16>
    %cst_448 = arith.constant dense<0.000000e+00> : vector<4x256xf32>
    %959 = tpu.matmul %958, %956, %cst_448 {dimension_numbers = #tpu.dot_dimension_numbers<[1], [0], [0], [1], [0, 0, 1, 1], [], []>} : vector<4x4xbf16>, vector<4x256xbf16>, vector<4x256xf32> -> vector<4x256xf32>
    %c80_i32 = arith.constant 80 : i32
    %960 = tpu.dynamic_rotate %214 by %c80_i32 dim 1 : vector<4x256xf32>, i32 -> vector<4x256xf32>
    %c-80_i32_449 = arith.constant -80 : i32
    %961 = vector.broadcast %c-80_i32_449 : i32 to vector<1x256xi32>
    %962 = arith.addi %2, %961 : vector<1x256xi32>
    %c0_i32_450 = arith.constant 0 : i32
    %963 = vector.broadcast %c0_i32_450 : i32 to vector<1x256xi32>
    %964 = arith.cmpi sge, %962, %963 : vector<1x256xi32>
    %c-80_i32_451 = arith.constant -80 : i32
    %965 = vector.broadcast %c-80_i32_451 : i32 to vector<1x256xi32>
    %966 = arith.addi %2, %965 : vector<1x256xi32>
    %c256_i32_452 = arith.constant 256 : i32
    %967 = vector.broadcast %c256_i32_452 : i32 to vector<1x256xi32>
    %968 = arith.cmpi slt, %966, %967 : vector<1x256xi32>
    %969 = arith.andi %964, %968 : vector<1x256xi1>
    %c0_i32_453 = arith.constant 0 : i32
    %970 = vector.broadcast %c0_i32_453 : i32 to vector<1x256xi32>
    %971 = arith.addi %4, %970 : vector<1x256xi32>
    %c0_i32_454 = arith.constant 0 : i32
    %972 = vector.broadcast %c0_i32_454 : i32 to vector<1x256xi32>
    %973 = arith.cmpi sge, %971, %972 : vector<1x256xi32>
    %974 = arith.andi %969, %973 : vector<1x256xi1>
    %c0_i32_455 = arith.constant 0 : i32
    %975 = vector.broadcast %c0_i32_455 : i32 to vector<1x256xi32>
    %976 = arith.addi %4, %975 : vector<1x256xi32>
    %c16_i32_456 = arith.constant 16 : i32
    %977 = vector.broadcast %c16_i32_456 : i32 to vector<1x256xi32>
    %978 = arith.cmpi slt, %976, %977 : vector<1x256xi32>
    %979 = arith.andi %974, %978 : vector<1x256xi1>
    %cst_457 = arith.constant 0.000000e+00 : f32
    %980 = vector.shape_cast %979 : vector<1x256xi1> to vector<1x256xi1>
    %981 = vector.broadcast %980 : vector<1x256xi1> to vector<4x256xi1>
    %982 = vector.broadcast %cst_457 : f32 to vector<4x256xf32>
    %983 = arith.select %981, %960, %982 : vector<4x256xi1>, vector<4x256xf32>
    %984 = arith.truncf %983 : vector<4x256xf32> to vector<4x256xbf16>
    %c1_458 = arith.constant 1 : index
    %c0_459 = arith.constant 0 : index
    %c0_460 = arith.constant 0 : index
    %985 = vector.load %arg16[%c1_458, %c0_459, %c0_460] : memref<9x4x4xbf16, #tpu.memory_space<vmem>>, vector<1x4x4xbf16>
    %986 = vector.shape_cast %985 : vector<1x4x4xbf16> to vector<4x4xbf16>
    %cst_461 = arith.constant dense<0.000000e+00> : vector<4x256xf32>
    %987 = tpu.matmul %986, %984, %cst_461 {dimension_numbers = #tpu.dot_dimension_numbers<[1], [0], [0], [1], [0, 0, 1, 1], [], []>} : vector<4x4xbf16>, vector<4x256xbf16>, vector<4x256xf32> -> vector<4x256xf32>
    %988 = arith.addf %959, %987 : vector<4x256xf32>
    %c75_i32 = arith.constant 75 : i32
    %989 = tpu.dynamic_rotate %214 by %c75_i32 dim 1 : vector<4x256xf32>, i32 -> vector<4x256xf32>
    %c-80_i32_462 = arith.constant -80 : i32
    %990 = vector.broadcast %c-80_i32_462 : i32 to vector<1x256xi32>
    %991 = arith.addi %2, %990 : vector<1x256xi32>
    %c0_i32_463 = arith.constant 0 : i32
    %992 = vector.broadcast %c0_i32_463 : i32 to vector<1x256xi32>
    %993 = arith.cmpi sge, %991, %992 : vector<1x256xi32>
    %c-80_i32_464 = arith.constant -80 : i32
    %994 = vector.broadcast %c-80_i32_464 : i32 to vector<1x256xi32>
    %995 = arith.addi %2, %994 : vector<1x256xi32>
    %c256_i32_465 = arith.constant 256 : i32
    %996 = vector.broadcast %c256_i32_465 : i32 to vector<1x256xi32>
    %997 = arith.cmpi slt, %995, %996 : vector<1x256xi32>
    %998 = arith.andi %993, %997 : vector<1x256xi1>
    %c5_i32 = arith.constant 5 : i32
    %999 = vector.broadcast %c5_i32 : i32 to vector<1x256xi32>
    %1000 = arith.addi %4, %999 : vector<1x256xi32>
    %c0_i32_466 = arith.constant 0 : i32
    %1001 = vector.broadcast %c0_i32_466 : i32 to vector<1x256xi32>
    %1002 = arith.cmpi sge, %1000, %1001 : vector<1x256xi32>
    %1003 = arith.andi %998, %1002 : vector<1x256xi1>
    %c5_i32_467 = arith.constant 5 : i32
    %1004 = vector.broadcast %c5_i32_467 : i32 to vector<1x256xi32>
    %1005 = arith.addi %4, %1004 : vector<1x256xi32>
    %c16_i32_468 = arith.constant 16 : i32
    %1006 = vector.broadcast %c16_i32_468 : i32 to vector<1x256xi32>
    %1007 = arith.cmpi slt, %1005, %1006 : vector<1x256xi32>
    %1008 = arith.andi %1003, %1007 : vector<1x256xi1>
    %cst_469 = arith.constant 0.000000e+00 : f32
    %1009 = vector.shape_cast %1008 : vector<1x256xi1> to vector<1x256xi1>
    %1010 = vector.broadcast %1009 : vector<1x256xi1> to vector<4x256xi1>
    %1011 = vector.broadcast %cst_469 : f32 to vector<4x256xf32>
    %1012 = arith.select %1010, %989, %1011 : vector<4x256xi1>, vector<4x256xf32>
    %1013 = arith.truncf %1012 : vector<4x256xf32> to vector<4x256xbf16>
    %c2_470 = arith.constant 2 : index
    %c0_471 = arith.constant 0 : index
    %c0_472 = arith.constant 0 : index
    %1014 = vector.load %arg16[%c2_470, %c0_471, %c0_472] : memref<9x4x4xbf16, #tpu.memory_space<vmem>>, vector<1x4x4xbf16>
    %1015 = vector.shape_cast %1014 : vector<1x4x4xbf16> to vector<4x4xbf16>
    %cst_473 = arith.constant dense<0.000000e+00> : vector<4x256xf32>
    %1016 = tpu.matmul %1015, %1013, %cst_473 {dimension_numbers = #tpu.dot_dimension_numbers<[1], [0], [0], [1], [0, 0, 1, 1], [], []>} : vector<4x4xbf16>, vector<4x256xbf16>, vector<4x256xf32> -> vector<4x256xf32>
    %1017 = arith.addf %988, %1016 : vector<4x256xf32>
    %c5_i32_474 = arith.constant 5 : i32
    %1018 = tpu.dynamic_rotate %214 by %c5_i32_474 dim 1 : vector<4x256xf32>, i32 -> vector<4x256xf32>
    %c0_i32_475 = arith.constant 0 : i32
    %1019 = vector.broadcast %c0_i32_475 : i32 to vector<1x256xi32>
    %1020 = arith.addi %2, %1019 : vector<1x256xi32>
    %c0_i32_476 = arith.constant 0 : i32
    %1021 = vector.broadcast %c0_i32_476 : i32 to vector<1x256xi32>
    %1022 = arith.cmpi sge, %1020, %1021 : vector<1x256xi32>
    %c0_i32_477 = arith.constant 0 : i32
    %1023 = vector.broadcast %c0_i32_477 : i32 to vector<1x256xi32>
    %1024 = arith.addi %2, %1023 : vector<1x256xi32>
    %c256_i32_478 = arith.constant 256 : i32
    %1025 = vector.broadcast %c256_i32_478 : i32 to vector<1x256xi32>
    %1026 = arith.cmpi slt, %1024, %1025 : vector<1x256xi32>
    %1027 = arith.andi %1022, %1026 : vector<1x256xi1>
    %c-5_i32_479 = arith.constant -5 : i32
    %1028 = vector.broadcast %c-5_i32_479 : i32 to vector<1x256xi32>
    %1029 = arith.addi %4, %1028 : vector<1x256xi32>
    %c0_i32_480 = arith.constant 0 : i32
    %1030 = vector.broadcast %c0_i32_480 : i32 to vector<1x256xi32>
    %1031 = arith.cmpi sge, %1029, %1030 : vector<1x256xi32>
    %1032 = arith.andi %1027, %1031 : vector<1x256xi1>
    %c-5_i32_481 = arith.constant -5 : i32
    %1033 = vector.broadcast %c-5_i32_481 : i32 to vector<1x256xi32>
    %1034 = arith.addi %4, %1033 : vector<1x256xi32>
    %c16_i32_482 = arith.constant 16 : i32
    %1035 = vector.broadcast %c16_i32_482 : i32 to vector<1x256xi32>
    %1036 = arith.cmpi slt, %1034, %1035 : vector<1x256xi32>
    %1037 = arith.andi %1032, %1036 : vector<1x256xi1>
    %cst_483 = arith.constant 0.000000e+00 : f32
    %1038 = vector.shape_cast %1037 : vector<1x256xi1> to vector<1x256xi1>
    %1039 = vector.broadcast %1038 : vector<1x256xi1> to vector<4x256xi1>
    %1040 = vector.broadcast %cst_483 : f32 to vector<4x256xf32>
    %1041 = arith.select %1039, %1018, %1040 : vector<4x256xi1>, vector<4x256xf32>
    %1042 = arith.truncf %1041 : vector<4x256xf32> to vector<4x256xbf16>
    %c3_484 = arith.constant 3 : index
    %c0_485 = arith.constant 0 : index
    %c0_486 = arith.constant 0 : index
    %1043 = vector.load %arg16[%c3_484, %c0_485, %c0_486] : memref<9x4x4xbf16, #tpu.memory_space<vmem>>, vector<1x4x4xbf16>
    %1044 = vector.shape_cast %1043 : vector<1x4x4xbf16> to vector<4x4xbf16>
    %cst_487 = arith.constant dense<0.000000e+00> : vector<4x256xf32>
    %1045 = tpu.matmul %1044, %1042, %cst_487 {dimension_numbers = #tpu.dot_dimension_numbers<[1], [0], [0], [1], [0, 0, 1, 1], [], []>} : vector<4x4xbf16>, vector<4x256xbf16>, vector<4x256xf32> -> vector<4x256xf32>
    %1046 = arith.addf %1017, %1045 : vector<4x256xf32>
    %1047 = arith.truncf %214 : vector<4x256xf32> to vector<4x256xbf16>
    %c4_488 = arith.constant 4 : index
    %c0_489 = arith.constant 0 : index
    %c0_490 = arith.constant 0 : index
    %1048 = vector.load %arg16[%c4_488, %c0_489, %c0_490] : memref<9x4x4xbf16, #tpu.memory_space<vmem>>, vector<1x4x4xbf16>
    %1049 = vector.shape_cast %1048 : vector<1x4x4xbf16> to vector<4x4xbf16>
    %cst_491 = arith.constant dense<0.000000e+00> : vector<4x256xf32>
    %1050 = tpu.matmul %1049, %1047, %cst_491 {dimension_numbers = #tpu.dot_dimension_numbers<[1], [0], [0], [1], [0, 0, 1, 1], [], []>} : vector<4x4xbf16>, vector<4x256xbf16>, vector<4x256xf32> -> vector<4x256xf32>
    %1051 = arith.addf %1046, %1050 : vector<4x256xf32>
    %c251_i32 = arith.constant 251 : i32
    %1052 = tpu.dynamic_rotate %214 by %c251_i32 dim 1 : vector<4x256xf32>, i32 -> vector<4x256xf32>
    %c0_i32_492 = arith.constant 0 : i32
    %1053 = vector.broadcast %c0_i32_492 : i32 to vector<1x256xi32>
    %1054 = arith.addi %2, %1053 : vector<1x256xi32>
    %c0_i32_493 = arith.constant 0 : i32
    %1055 = vector.broadcast %c0_i32_493 : i32 to vector<1x256xi32>
    %1056 = arith.cmpi sge, %1054, %1055 : vector<1x256xi32>
    %c0_i32_494 = arith.constant 0 : i32
    %1057 = vector.broadcast %c0_i32_494 : i32 to vector<1x256xi32>
    %1058 = arith.addi %2, %1057 : vector<1x256xi32>
    %c256_i32_495 = arith.constant 256 : i32
    %1059 = vector.broadcast %c256_i32_495 : i32 to vector<1x256xi32>
    %1060 = arith.cmpi slt, %1058, %1059 : vector<1x256xi32>
    %1061 = arith.andi %1056, %1060 : vector<1x256xi1>
    %c5_i32_496 = arith.constant 5 : i32
    %1062 = vector.broadcast %c5_i32_496 : i32 to vector<1x256xi32>
    %1063 = arith.addi %4, %1062 : vector<1x256xi32>
    %c0_i32_497 = arith.constant 0 : i32
    %1064 = vector.broadcast %c0_i32_497 : i32 to vector<1x256xi32>
    %1065 = arith.cmpi sge, %1063, %1064 : vector<1x256xi32>
    %1066 = arith.andi %1061, %1065 : vector<1x256xi1>
    %c5_i32_498 = arith.constant 5 : i32
    %1067 = vector.broadcast %c5_i32_498 : i32 to vector<1x256xi32>
    %1068 = arith.addi %4, %1067 : vector<1x256xi32>
    %c16_i32_499 = arith.constant 16 : i32
    %1069 = vector.broadcast %c16_i32_499 : i32 to vector<1x256xi32>
    %1070 = arith.cmpi slt, %1068, %1069 : vector<1x256xi32>
    %1071 = arith.andi %1066, %1070 : vector<1x256xi1>
    %cst_500 = arith.constant 0.000000e+00 : f32
    %1072 = vector.shape_cast %1071 : vector<1x256xi1> to vector<1x256xi1>
    %1073 = vector.broadcast %1072 : vector<1x256xi1> to vector<4x256xi1>
    %1074 = vector.broadcast %cst_500 : f32 to vector<4x256xf32>
    %1075 = arith.select %1073, %1052, %1074 : vector<4x256xi1>, vector<4x256xf32>
    %1076 = arith.truncf %1075 : vector<4x256xf32> to vector<4x256xbf16>
    %c5_501 = arith.constant 5 : index
    %c0_502 = arith.constant 0 : index
    %c0_503 = arith.constant 0 : index
    %1077 = vector.load %arg16[%c5_501, %c0_502, %c0_503] : memref<9x4x4xbf16, #tpu.memory_space<vmem>>, vector<1x4x4xbf16>
    %1078 = vector.shape_cast %1077 : vector<1x4x4xbf16> to vector<4x4xbf16>
    %cst_504 = arith.constant dense<0.000000e+00> : vector<4x256xf32>
    %1079 = tpu.matmul %1078, %1076, %cst_504 {dimension_numbers = #tpu.dot_dimension_numbers<[1], [0], [0], [1], [0, 0, 1, 1], [], []>} : vector<4x4xbf16>, vector<4x256xbf16>, vector<4x256xf32> -> vector<4x256xf32>
    %1080 = arith.addf %1051, %1079 : vector<4x256xf32>
    %c181_i32 = arith.constant 181 : i32
    %1081 = tpu.dynamic_rotate %214 by %c181_i32 dim 1 : vector<4x256xf32>, i32 -> vector<4x256xf32>
    %c80_i32_505 = arith.constant 80 : i32
    %1082 = vector.broadcast %c80_i32_505 : i32 to vector<1x256xi32>
    %1083 = arith.addi %2, %1082 : vector<1x256xi32>
    %c0_i32_506 = arith.constant 0 : i32
    %1084 = vector.broadcast %c0_i32_506 : i32 to vector<1x256xi32>
    %1085 = arith.cmpi sge, %1083, %1084 : vector<1x256xi32>
    %c80_i32_507 = arith.constant 80 : i32
    %1086 = vector.broadcast %c80_i32_507 : i32 to vector<1x256xi32>
    %1087 = arith.addi %2, %1086 : vector<1x256xi32>
    %c256_i32_508 = arith.constant 256 : i32
    %1088 = vector.broadcast %c256_i32_508 : i32 to vector<1x256xi32>
    %1089 = arith.cmpi slt, %1087, %1088 : vector<1x256xi32>
    %1090 = arith.andi %1085, %1089 : vector<1x256xi1>
    %c-5_i32_509 = arith.constant -5 : i32
    %1091 = vector.broadcast %c-5_i32_509 : i32 to vector<1x256xi32>
    %1092 = arith.addi %4, %1091 : vector<1x256xi32>
    %c0_i32_510 = arith.constant 0 : i32
    %1093 = vector.broadcast %c0_i32_510 : i32 to vector<1x256xi32>
    %1094 = arith.cmpi sge, %1092, %1093 : vector<1x256xi32>
    %1095 = arith.andi %1090, %1094 : vector<1x256xi1>
    %c-5_i32_511 = arith.constant -5 : i32
    %1096 = vector.broadcast %c-5_i32_511 : i32 to vector<1x256xi32>
    %1097 = arith.addi %4, %1096 : vector<1x256xi32>
    %c16_i32_512 = arith.constant 16 : i32
    %1098 = vector.broadcast %c16_i32_512 : i32 to vector<1x256xi32>
    %1099 = arith.cmpi slt, %1097, %1098 : vector<1x256xi32>
    %1100 = arith.andi %1095, %1099 : vector<1x256xi1>
    %cst_513 = arith.constant 0.000000e+00 : f32
    %1101 = vector.shape_cast %1100 : vector<1x256xi1> to vector<1x256xi1>
    %1102 = vector.broadcast %1101 : vector<1x256xi1> to vector<4x256xi1>
    %1103 = vector.broadcast %cst_513 : f32 to vector<4x256xf32>
    %1104 = arith.select %1102, %1081, %1103 : vector<4x256xi1>, vector<4x256xf32>
    %1105 = arith.truncf %1104 : vector<4x256xf32> to vector<4x256xbf16>
    %c6_514 = arith.constant 6 : index
    %c0_515 = arith.constant 0 : index
    %c0_516 = arith.constant 0 : index
    %1106 = vector.load %arg16[%c6_514, %c0_515, %c0_516] : memref<9x4x4xbf16, #tpu.memory_space<vmem>>, vector<1x4x4xbf16>
    %1107 = vector.shape_cast %1106 : vector<1x4x4xbf16> to vector<4x4xbf16>
    %cst_517 = arith.constant dense<0.000000e+00> : vector<4x256xf32>
    %1108 = tpu.matmul %1107, %1105, %cst_517 {dimension_numbers = #tpu.dot_dimension_numbers<[1], [0], [0], [1], [0, 0, 1, 1], [], []>} : vector<4x4xbf16>, vector<4x256xbf16>, vector<4x256xf32> -> vector<4x256xf32>
    %1109 = arith.addf %1080, %1108 : vector<4x256xf32>
    %c176_i32 = arith.constant 176 : i32
    %1110 = tpu.dynamic_rotate %214 by %c176_i32 dim 1 : vector<4x256xf32>, i32 -> vector<4x256xf32>
    %c80_i32_518 = arith.constant 80 : i32
    %1111 = vector.broadcast %c80_i32_518 : i32 to vector<1x256xi32>
    %1112 = arith.addi %2, %1111 : vector<1x256xi32>
    %c0_i32_519 = arith.constant 0 : i32
    %1113 = vector.broadcast %c0_i32_519 : i32 to vector<1x256xi32>
    %1114 = arith.cmpi sge, %1112, %1113 : vector<1x256xi32>
    %c80_i32_520 = arith.constant 80 : i32
    %1115 = vector.broadcast %c80_i32_520 : i32 to vector<1x256xi32>
    %1116 = arith.addi %2, %1115 : vector<1x256xi32>
    %c256_i32_521 = arith.constant 256 : i32
    %1117 = vector.broadcast %c256_i32_521 : i32 to vector<1x256xi32>
    %1118 = arith.cmpi slt, %1116, %1117 : vector<1x256xi32>
    %1119 = arith.andi %1114, %1118 : vector<1x256xi1>
    %c0_i32_522 = arith.constant 0 : i32
    %1120 = vector.broadcast %c0_i32_522 : i32 to vector<1x256xi32>
    %1121 = arith.addi %4, %1120 : vector<1x256xi32>
    %c0_i32_523 = arith.constant 0 : i32
    %1122 = vector.broadcast %c0_i32_523 : i32 to vector<1x256xi32>
    %1123 = arith.cmpi sge, %1121, %1122 : vector<1x256xi32>
    %1124 = arith.andi %1119, %1123 : vector<1x256xi1>
    %c0_i32_524 = arith.constant 0 : i32
    %1125 = vector.broadcast %c0_i32_524 : i32 to vector<1x256xi32>
    %1126 = arith.addi %4, %1125 : vector<1x256xi32>
    %c16_i32_525 = arith.constant 16 : i32
    %1127 = vector.broadcast %c16_i32_525 : i32 to vector<1x256xi32>
    %1128 = arith.cmpi slt, %1126, %1127 : vector<1x256xi32>
    %1129 = arith.andi %1124, %1128 : vector<1x256xi1>
    %cst_526 = arith.constant 0.000000e+00 : f32
    %1130 = vector.shape_cast %1129 : vector<1x256xi1> to vector<1x256xi1>
    %1131 = vector.broadcast %1130 : vector<1x256xi1> to vector<4x256xi1>
    %1132 = vector.broadcast %cst_526 : f32 to vector<4x256xf32>
    %1133 = arith.select %1131, %1110, %1132 : vector<4x256xi1>, vector<4x256xf32>
    %1134 = arith.truncf %1133 : vector<4x256xf32> to vector<4x256xbf16>
    %c7_527 = arith.constant 7 : index
    %c0_528 = arith.constant 0 : index
    %c0_529 = arith.constant 0 : index
    %1135 = vector.load %arg16[%c7_527, %c0_528, %c0_529] : memref<9x4x4xbf16, #tpu.memory_space<vmem>>, vector<1x4x4xbf16>
    %1136 = vector.shape_cast %1135 : vector<1x4x4xbf16> to vector<4x4xbf16>
    %cst_530 = arith.constant dense<0.000000e+00> : vector<4x256xf32>
    %1137 = tpu.matmul %1136, %1134, %cst_530 {dimension_numbers = #tpu.dot_dimension_numbers<[1], [0], [0], [1], [0, 0, 1, 1], [], []>} : vector<4x4xbf16>, vector<4x256xbf16>, vector<4x256xf32> -> vector<4x256xf32>
    %1138 = arith.addf %1109, %1137 : vector<4x256xf32>
    %c171_i32 = arith.constant 171 : i32
    %1139 = tpu.dynamic_rotate %214 by %c171_i32 dim 1 : vector<4x256xf32>, i32 -> vector<4x256xf32>
    %c80_i32_531 = arith.constant 80 : i32
    %1140 = vector.broadcast %c80_i32_531 : i32 to vector<1x256xi32>
    %1141 = arith.addi %2, %1140 : vector<1x256xi32>
    %c0_i32_532 = arith.constant 0 : i32
    %1142 = vector.broadcast %c0_i32_532 : i32 to vector<1x256xi32>
    %1143 = arith.cmpi sge, %1141, %1142 : vector<1x256xi32>
    %c80_i32_533 = arith.constant 80 : i32
    %1144 = vector.broadcast %c80_i32_533 : i32 to vector<1x256xi32>
    %1145 = arith.addi %2, %1144 : vector<1x256xi32>
    %c256_i32_534 = arith.constant 256 : i32
    %1146 = vector.broadcast %c256_i32_534 : i32 to vector<1x256xi32>
    %1147 = arith.cmpi slt, %1145, %1146 : vector<1x256xi32>
    %1148 = arith.andi %1143, %1147 : vector<1x256xi1>
    %c5_i32_535 = arith.constant 5 : i32
    %1149 = vector.broadcast %c5_i32_535 : i32 to vector<1x256xi32>
    %1150 = arith.addi %4, %1149 : vector<1x256xi32>
    %c0_i32_536 = arith.constant 0 : i32
    %1151 = vector.broadcast %c0_i32_536 : i32 to vector<1x256xi32>
    %1152 = arith.cmpi sge, %1150, %1151 : vector<1x256xi32>
    %1153 = arith.andi %1148, %1152 : vector<1x256xi1>
    %c5_i32_537 = arith.constant 5 : i32
    %1154 = vector.broadcast %c5_i32_537 : i32 to vector<1x256xi32>
    %1155 = arith.addi %4, %1154 : vector<1x256xi32>
    %c16_i32_538 = arith.constant 16 : i32
    %1156 = vector.broadcast %c16_i32_538 : i32 to vector<1x256xi32>
    %1157 = arith.cmpi slt, %1155, %1156 : vector<1x256xi32>
    %1158 = arith.andi %1153, %1157 : vector<1x256xi1>
    %cst_539 = arith.constant 0.000000e+00 : f32
    %1159 = vector.shape_cast %1158 : vector<1x256xi1> to vector<1x256xi1>
    %1160 = vector.broadcast %1159 : vector<1x256xi1> to vector<4x256xi1>
    %1161 = vector.broadcast %cst_539 : f32 to vector<4x256xf32>
    %1162 = arith.select %1160, %1139, %1161 : vector<4x256xi1>, vector<4x256xf32>
    %1163 = arith.truncf %1162 : vector<4x256xf32> to vector<4x256xbf16>
    %c8_540 = arith.constant 8 : index
    %c0_541 = arith.constant 0 : index
    %c0_542 = arith.constant 0 : index
    %1164 = vector.load %arg16[%c8_540, %c0_541, %c0_542] : memref<9x4x4xbf16, #tpu.memory_space<vmem>>, vector<1x4x4xbf16>
    %1165 = vector.shape_cast %1164 : vector<1x4x4xbf16> to vector<4x4xbf16>
    %cst_543 = arith.constant dense<0.000000e+00> : vector<4x256xf32>
    %1166 = tpu.matmul %1165, %1163, %cst_543 {dimension_numbers = #tpu.dot_dimension_numbers<[1], [0], [0], [1], [0, 0, 1, 1], [], []>} : vector<4x4xbf16>, vector<4x256xbf16>, vector<4x256xf32> -> vector<4x256xf32>
    %1167 = arith.addf %1138, %1166 : vector<4x256xf32>
    %c0_544 = arith.constant 0 : index
    %c0_545 = arith.constant 0 : index
    %1168 = vector.load %arg17[%c0_544, %c0_545] : memref<4x1xf32, #tpu.memory_space<vmem>>, vector<4x1xf32>
    %1169 = vector.broadcast %1168 : vector<4x1xf32> to vector<4x256xf32>
    %1170 = arith.addf %1167, %1169 : vector<4x256xf32>
    %c0_546 = arith.constant 0 : index
    %c0_547 = arith.constant 0 : index
    %c0_548 = arith.constant 0 : index
    %1171 = vector.load %arg18[%c0_546, %c0_547, %c0_548] : memref<4x16x4xbf16, #tpu.memory_space<vmem>>, vector<1x16x4xbf16>
    %1172 = vector.shape_cast %1171 : vector<1x16x4xbf16> to vector<16x4xbf16>
    %1173 = arith.truncf %453 : vector<4x256xf32> to vector<4x256xbf16>
    %cst_549 = arith.constant dense<0.000000e+00> : vector<16x256xf32>
    %1174 = tpu.matmul %1172, %1173, %cst_549 {dimension_numbers = #tpu.dot_dimension_numbers<[1], [0], [0], [1], [0, 0, 1, 1], [], []>} : vector<16x4xbf16>, vector<4x256xbf16>, vector<16x256xf32> -> vector<16x256xf32>
    %c1_550 = arith.constant 1 : index
    %c0_551 = arith.constant 0 : index
    %c0_552 = arith.constant 0 : index
    %1175 = vector.load %arg18[%c1_550, %c0_551, %c0_552] : memref<4x16x4xbf16, #tpu.memory_space<vmem>>, vector<1x16x4xbf16>
    %1176 = vector.shape_cast %1175 : vector<1x16x4xbf16> to vector<16x4xbf16>
    %1177 = arith.truncf %692 : vector<4x256xf32> to vector<4x256xbf16>
    %cst_553 = arith.constant dense<0.000000e+00> : vector<16x256xf32>
    %1178 = tpu.matmul %1176, %1177, %cst_553 {dimension_numbers = #tpu.dot_dimension_numbers<[1], [0], [0], [1], [0, 0, 1, 1], [], []>} : vector<16x4xbf16>, vector<4x256xbf16>, vector<16x256xf32> -> vector<16x256xf32>
    %1179 = arith.addf %1174, %1178 : vector<16x256xf32>
    %c2_554 = arith.constant 2 : index
    %c0_555 = arith.constant 0 : index
    %c0_556 = arith.constant 0 : index
    %1180 = vector.load %arg18[%c2_554, %c0_555, %c0_556] : memref<4x16x4xbf16, #tpu.memory_space<vmem>>, vector<1x16x4xbf16>
    %1181 = vector.shape_cast %1180 : vector<1x16x4xbf16> to vector<16x4xbf16>
    %1182 = arith.truncf %931 : vector<4x256xf32> to vector<4x256xbf16>
    %cst_557 = arith.constant dense<0.000000e+00> : vector<16x256xf32>
    %1183 = tpu.matmul %1181, %1182, %cst_557 {dimension_numbers = #tpu.dot_dimension_numbers<[1], [0], [0], [1], [0, 0, 1, 1], [], []>} : vector<16x4xbf16>, vector<4x256xbf16>, vector<16x256xf32> -> vector<16x256xf32>
    %1184 = arith.addf %1179, %1183 : vector<16x256xf32>
    %c3_558 = arith.constant 3 : index
    %c0_559 = arith.constant 0 : index
    %c0_560 = arith.constant 0 : index
    %1185 = vector.load %arg18[%c3_558, %c0_559, %c0_560] : memref<4x16x4xbf16, #tpu.memory_space<vmem>>, vector<1x16x4xbf16>
    %1186 = vector.shape_cast %1185 : vector<1x16x4xbf16> to vector<16x4xbf16>
    %1187 = arith.truncf %1170 : vector<4x256xf32> to vector<4x256xbf16>
    %cst_561 = arith.constant dense<0.000000e+00> : vector<16x256xf32>
    %1188 = tpu.matmul %1186, %1187, %cst_561 {dimension_numbers = #tpu.dot_dimension_numbers<[1], [0], [0], [1], [0, 0, 1, 1], [], []>} : vector<16x4xbf16>, vector<4x256xbf16>, vector<16x256xf32> -> vector<16x256xf32>
    %1189 = arith.addf %1184, %1188 : vector<16x256xf32>
    %c0_562 = arith.constant 0 : index
    %c0_563 = arith.constant 0 : index
    %1190 = vector.load %arg19[%c0_562, %c0_563] : memref<16x1xf32, #tpu.memory_space<vmem>>, vector<16x1xf32>
    %1191 = vector.broadcast %1190 : vector<16x1xf32> to vector<16x256xf32>
    %1192 = arith.addf %1189, %1191 : vector<16x256xf32>
    %cst_564 = arith.constant 1.000000e-01 : f32
    %1193 = vector.broadcast %cst_564 : f32 to vector<16x256xf32>
    %1194 = arith.mulf %1192, %1193 : vector<16x256xf32>
    %1195 = arith.addf %1194, %1 : vector<16x256xf32>
    %cst_565 = arith.constant 0.000000e+00 : f32
    %1196 = vector.broadcast %cst_565 : f32 to vector<16x256xf32>
    %1197 = arith.maximumf %1195, %1196 : vector<16x256xf32>
    %c0_566 = arith.constant 0 : index
    %c0_567 = arith.constant 0 : index
    %c0_568 = arith.constant 0 : index
    %1198 = vector.load %arg20[%c0_566, %c0_567, %c0_568] : memref<1x16x256xf32, #tpu.memory_space<vmem>>, vector<1x16x256xf32>
    %1199 = vector.shape_cast %1198 : vector<1x16x256xf32> to vector<16x256xf32>
    %1200 = vector.shape_cast %1197 : vector<16x256xf32> to vector<1x16x256xf32>
    tpu.vector_store %arg20[%c0_566, %c0_567, %c0_568], %1200 {strides = array<i32>} : memref<1x16x256xf32, #tpu.memory_space<vmem>>, vector<1x16x256xf32>,
    return
  }
  func.func @transform_0(%arg0: i32) -> (i32, i32, i32) {
    %c0_i32 = arith.constant 0 : i32
    %c0_i32_0 = arith.constant 0 : i32
    %c0_i32_1 = arith.constant 0 : i32
    return %arg0, %c0_i32, %c0_i32_0 : i32, i32, i32
  }
  func.func @transform_1(%arg0: i32) -> (i32, i32, i32) {
    %c0_i32 = arith.constant 0 : i32
    %c0_i32_0 = arith.constant 0 : i32
    %c0_i32_1 = arith.constant 0 : i32
    %c0_i32_2 = arith.constant 0 : i32
    return %c0_i32, %c0_i32_0, %c0_i32_1 : i32, i32, i32
  }
  func.func @transform_2(%arg0: i32) -> (i32, i32) {
    %c0_i32 = arith.constant 0 : i32
    %c0_i32_0 = arith.constant 0 : i32
    %c0_i32_1 = arith.constant 0 : i32
    return %c0_i32, %c0_i32_0 : i32, i32
  }
  func.func @transform_3(%arg0: i32) -> (i32, i32, i32) {
    %c0_i32 = arith.constant 0 : i32
    %c0_i32_0 = arith.constant 0 : i32
    %c0_i32_1 = arith.constant 0 : i32
    %c0_i32_2 = arith.constant 0 : i32
    return %c0_i32, %c0_i32_0, %c0_i32_1 : i32, i32, i32
  }
  func.func @transform_4(%arg0: i32) -> (i32, i32) {
    %c0_i32 = arith.constant 0 : i32
    %c0_i32_0 = arith.constant 0 : i32
    %c0_i32_1 = arith.constant 0 : i32
    return %c0_i32, %c0_i32_0 : i32, i32
  }
  func.func @transform_5(%arg0: i32) -> (i32, i32, i32) {
    %c0_i32 = arith.constant 0 : i32
    %c0_i32_0 = arith.constant 0 : i32
    %c0_i32_1 = arith.constant 0 : i32
    %c0_i32_2 = arith.constant 0 : i32
    return %c0_i32, %c0_i32_0, %c0_i32_1 : i32, i32, i32
  }
  func.func @transform_6(%arg0: i32) -> (i32, i32) {
    %c0_i32 = arith.constant 0 : i32
    %c0_i32_0 = arith.constant 0 : i32
    %c0_i32_1 = arith.constant 0 : i32
    return %c0_i32, %c0_i32_0 : i32, i32
  }
  func.func @transform_7(%arg0: i32) -> (i32, i32, i32) {
    %c0_i32 = arith.constant 0 : i32
    %c0_i32_0 = arith.constant 0 : i32
    %c0_i32_1 = arith.constant 0 : i32
    %c0_i32_2 = arith.constant 0 : i32
    return %c0_i32, %c0_i32_0, %c0_i32_1 : i32, i32, i32
  }
  func.func @transform_8(%arg0: i32) -> (i32, i32) {
    %c0_i32 = arith.constant 0 : i32
    %c0_i32_0 = arith.constant 0 : i32
    %c0_i32_1 = arith.constant 0 : i32
    return %c0_i32, %c0_i32_0 : i32, i32
  }
  func.func @transform_9(%arg0: i32) -> (i32, i32, i32) {
    %c0_i32 = arith.constant 0 : i32
    %c0_i32_0 = arith.constant 0 : i32
    %c0_i32_1 = arith.constant 0 : i32
    %c0_i32_2 = arith.constant 0 : i32
    return %c0_i32, %c0_i32_0, %c0_i32_1 : i32, i32, i32
  }
  func.func @transform_10(%arg0: i32) -> (i32, i32) {
    %c0_i32 = arith.constant 0 : i32
    %c0_i32_0 = arith.constant 0 : i32
    %c0_i32_1 = arith.constant 0 : i32
    return %c0_i32, %c0_i32_0 : i32, i32
  }
  func.func @transform_11(%arg0: i32) -> (i32, i32, i32) {
    %c0_i32 = arith.constant 0 : i32
    %c0_i32_0 = arith.constant 0 : i32
    %c0_i32_1 = arith.constant 0 : i32
    %c0_i32_2 = arith.constant 0 : i32
    return %c0_i32, %c0_i32_0, %c0_i32_1 : i32, i32, i32
  }
  func.func @transform_12(%arg0: i32) -> (i32, i32) {
    %c0_i32 = arith.constant 0 : i32
    %c0_i32_0 = arith.constant 0 : i32
    %c0_i32_1 = arith.constant 0 : i32
    return %c0_i32, %c0_i32_0 : i32, i32
  }
  func.func @transform_13(%arg0: i32) -> (i32, i32, i32) {
    %c0_i32 = arith.constant 0 : i32
    %c0_i32_0 = arith.constant 0 : i32
    %c0_i32_1 = arith.constant 0 : i32
    %c0_i32_2 = arith.constant 0 : i32
    return %c0_i32, %c0_i32_0, %c0_i32_1 : i32, i32, i32
  }
  func.func @transform_14(%arg0: i32) -> (i32, i32) {
    %c0_i32 = arith.constant 0 : i32
    %c0_i32_0 = arith.constant 0 : i32
    %c0_i32_1 = arith.constant 0 : i32
    return %c0_i32, %c0_i32_0 : i32, i32
  }
  func.func @transform_15(%arg0: i32) -> (i32, i32, i32) {
    %c0_i32 = arith.constant 0 : i32
    %c0_i32_0 = arith.constant 0 : i32
    %c0_i32_1 = arith.constant 0 : i32
    %c0_i32_2 = arith.constant 0 : i32
    return %c0_i32, %c0_i32_0, %c0_i32_1 : i32, i32, i32
  }
  func.func @transform_16(%arg0: i32) -> (i32, i32) {
    %c0_i32 = arith.constant 0 : i32
    %c0_i32_0 = arith.constant 0 : i32
    %c0_i32_1 = arith.constant 0 : i32
    return %c0_i32, %c0_i32_0 : i32, i32
  }
  func.func @transform_17(%arg0: i32) -> (i32, i32, i32) {
    %c0_i32 = arith.constant 0 : i32
    %c0_i32_0 = arith.constant 0 : i32
    %c0_i32_1 = arith.constant 0 : i32
    %c0_i32_2 = arith.constant 0 : i32
    return %c0_i32, %c0_i32_0, %c0_i32_1 : i32, i32, i32
  }
  func.func @transform_18(%arg0: i32) -> (i32, i32) {
    %c0_i32 = arith.constant 0 : i32
    %c0_i32_0 = arith.constant 0 : i32
    %c0_i32_1 = arith.constant 0 : i32
    return %c0_i32, %c0_i32_0 : i32, i32
  }
  func.func @transform_19(%arg0: i32) -> (i32, i32, i32) {
    %c0_i32 = arith.constant 0 : i32
    %c0_i32_0 = arith.constant 0 : i32
    %c0_i32_1 = arith.constant 0 : i32
    return %arg0, %c0_i32, %c0_i32_0 : i32, i32, i32
  }
}

</mosaic_0001>

<llo_original>
// kernel: tpu_custom_call.1
$region0: #{tpu_custom_call.1}
  #allocation0 [shape = 'u32[]', space=smem, size = 0x4, offset = 0x4, fixed_abs, tag = 'smem constant byte address 0x4 - core index']
  #allocation1 [shape = 'u32[144,128]{1,0:T(1,128)}', space=vmem, size = 0x12000, scoped, tag = 'internal scratch']
  %s0 = inlined_call_operand.vmem [shape: f32[2,16,256], index: 0, kind: input, shape index: {}]
  %s1 = inlined_call_operand.vmem [shape: bf16[1,14,16], index: 1, kind: input, shape index: {}]
  %s2 = inlined_call_operand.vmem [shape: f32[14,1], index: 2, kind: input, shape index: {}]
  %s3 = inlined_call_operand.vmem [shape: bf16[3,4,14], index: 3, kind: input, shape index: {}]
  %s4 = inlined_call_operand.vmem [shape: f32[4,1], index: 4, kind: input, shape index: {}]
  %s5 = inlined_call_operand.vmem [shape: bf16[3,7,14], index: 5, kind: input, shape index: {}]
  %s6 = inlined_call_operand.vmem [shape: f32[7,1], index: 6, kind: input, shape index: {}]
  %s7 = inlined_call_operand.vmem [shape: bf16[3,4,7], index: 7, kind: input, shape index: {}]
  %s8 = inlined_call_operand.vmem [shape: f32[4,1], index: 8, kind: input, shape index: {}]
  %s9 = inlined_call_operand.vmem [shape: bf16[9,4,14], index: 9, kind: input, shape index: {}]
  %s10 = inlined_call_operand.vmem [shape: f32[4,1], index: 10, kind: input, shape index: {}]
  %s11 = inlined_call_operand.vmem [shape: bf16[9,4,4], index: 11, kind: input, shape index: {}]
  %s12 = inlined_call_operand.vmem [shape: f32[4,1], index: 12, kind: input, shape index: {}]
  %s13 = inlined_call_operand.vmem [shape: bf16[9,4,7], index: 13, kind: input, shape index: {}]
  %s14 = inlined_call_operand.vmem [shape: f32[4,1], index: 14, kind: input, shape index: {}]
  %s15 = inlined_call_operand.vmem [shape: bf16[9,4,4], index: 15, kind: input, shape index: {}]
  %s16 = inlined_call_operand.vmem [shape: f32[4,1], index: 16, kind: input, shape index: {}]
  %s17 = inlined_call_operand.vmem [shape: bf16[4,16,4], index: 17, kind: input, shape index: {}]
  %s18 = inlined_call_operand.vmem [shape: f32[16,1], index: 18, kind: input, shape index: {}]
  %s19 = inlined_call_operand.hbm [shape: f32[2,16,256], index: 19, kind: output, shape index: {}]
  %s20 = sld [smem:[#allocation0]]
  $region109: #{tpu_custom_call.1} parent=0
    _
  %s22 = ssub.s32 1, %s20
  %s23 = scalar_select 0, %s22, %s20
  $region1: #{tpu_custom_call.1} parent=0
    #allocation2 [shape = 'u8[32768]{0}', space=vmem, size = 0x8000, scoped, tag = 'output window, operand 0']
    #allocation3 [shape = 's32[2]{0}', space=sflag, size = 0x8, scoped, tag = 'scoped memory for tpu_custom_call.1']
    %24 = vsyncpa [#allocation3], 0
    %s25 = scalar_lea.sflag [#allocation3], 1
    %26 = vsyncpa %s25, 0
    loop: start=0, step=1, limit=4
    $region2: #{tpu_custom_call.1} parent=1 // loop_pre_header
      _
    $region3: #{tpu_custom_call.1} parent=1 // loop_header
      %s28 = sphi 0, %s32
      %p29 = scmp.ge.s32.totalorder %s28, 4
      %s38 = sphi 0, %s40
      %s41 = sphi 0, %s38
      %s42 = sphi 0, %s41
      %s58 = sphi 0, %s42
      %s62 = sphi 0, %s62
      %s64 = sphi 0, %s62
      %s65 = sphi 0, %s64
      %s79 = sphi 0, %s65
      %s83 = sphi 0, %s83
      %s85 = sphi 0, %s83
      %s86 = sphi 0, %s85
      %s100 = sphi 0, %s86
      %s104 = sphi 0, %s104
      %s106 = sphi 0, %s104
      %s107 = sphi 0, %s106
      %s121 = sphi 0, %s107
      %s125 = sphi 0, %s125
      %s127 = sphi 0, %s125
      %s128 = sphi 0, %s127
      %s142 = sphi 0, %s128
      %s146 = sphi 0, %s146
      %s148 = sphi 0, %s146
      %s149 = sphi 0, %s148
      %s163 = sphi 0, %s149
      %s167 = sphi 0, %s167
      %s169 = sphi 0, %s167
      %s170 = sphi 0, %s169
      %s184 = sphi 0, %s170
      %s188 = sphi 0, %s188
      %s190 = sphi 0, %s188
      %s191 = sphi 0, %s190
      %s205 = sphi 0, %s191
      %s209 = sphi 0, %s209
      %s211 = sphi 0, %s209
      %s212 = sphi 0, %s211
      %s226 = sphi 0, %s212
      %s230 = sphi 0, %s230
      %s232 = sphi 0, %s230
      %s233 = sphi 0, %s232
      %s247 = sphi 0, %s233
      %s251 = sphi 0, %s251
      %s253 = sphi 0, %s251
      %s254 = sphi 0, %s253
      %s268 = sphi 0, %s254
      %s272 = sphi 0, %s272
      %s274 = sphi 0, %s272
      %s275 = sphi 0, %s274
      %s289 = sphi 0, %s275
      %s293 = sphi 0, %s293
      %s295 = sphi 0, %s293
      %s296 = sphi 0, %s295
      %s310 = sphi 0, %s296
      %s314 = sphi 0, %s314
      %s316 = sphi 0, %s314
      %s317 = sphi 0, %s316
      %s331 = sphi 0, %s317
      %s335 = sphi 0, %s335
      %s337 = sphi 0, %s335
      %s338 = sphi 0, %s337
      %s352 = sphi 0, %s338
      %s356 = sphi 0, %s356
      %s358 = sphi 0, %s356
      %s359 = sphi 0, %s358
      %s373 = sphi 0, %s359
      %s377 = sphi 0, %s377
      %s379 = sphi 0, %s377
      %s380 = sphi 0, %s379
      %s394 = sphi 0, %s380
      %s398 = sphi 0, %s398
      %s400 = sphi 0, %s398
      %s401 = sphi 0, %s400
      %s415 = sphi 0, %s401
      %s419 = sphi 0, %s419
      %s421 = sphi 0, %s419
      %s422 = sphi 0, %s421
      %s436 = sphi 0, %s422
      %s442 = sphi 0, %s444
      %s445 = sphi 0, %s442
      %s446 = sphi 0, %s445
      %s462 = sphi 0, %s446
    $region4: #{tpu_custom_call.1} parent=1 // loop_header_branch
      %31 = sbr.rel (%p29) target = $region8
    $region5: #{tpu_custom_call.1} parent=1 // loop_body
      %s33 = ssub.s32 %s28, 1
      %s34 = ssub.s32 %s28, 2
      %s35 = sadd.s32 %s28, 1
      %s36 = ssub.s32 %s28, %s35
      %p37 = scmp.eq.s32.totalorder %s36, 0
      %s39 = sadd.s32 %s38, 1
      %s40 = scalar_select %p37, %s38, %s39
      %p43 = pneg %p37
      %p44 = scmp.eq.s32.totalorder %s28, 1
      %p45 = por %p43, %p44
      %p46 = scmp.ne.s32.totalorder %s38, %s41
      %p47 = scmp.eq.s32.totalorder %s28, 0
      %p48 = por %p46, %p47
      %p49 = scmp.ne.s32.totalorder %s38, %s41
      %p50 = scmp.eq.s32.totalorder %s33, 1
      %p51 = por %p49, %p50
      %p52 = scmp.ne.s32.totalorder %s41, %s42
      %p53 = scmp.eq.s32.totalorder %s33, 0
      %p54 = por %p52, %p53
      %p55 = scmp.ne.s32.totalorder %s41, %s42
      %p56 = scmp.eq.s32.totalorder %s34, 1
      %p57 = por %p55, %p56
      %p59 = scmp.ne.s32.totalorder %s42, %s58
      %p60 = scmp.eq.s32.totalorder %s34, 0
      %p61 = por %p59, %p60
      %s63 = sadd.s32 %s62, 1
      %p66 = scmp.eq.s32.totalorder %s28, 1
      %p67 = scmp.ne.s32.totalorder %s62, %s64
      %p68 = scmp.eq.s32.totalorder %s28, 0
      %p69 = por %p67, %p68
      %p70 = scmp.ne.s32.totalorder %s62, %s64
      %p71 = scmp.eq.s32.totalorder %s33, 1
      %p72 = por %p70, %p71
      %p73 = scmp.ne.s32.totalorder %s64, %s65
      %p74 = scmp.eq.s32.totalorder %s33, 0
      %p75 = por %p73, %p74
      %p76 = scmp.ne.s32.totalorder %s64, %s65
      %p77 = scmp.eq.s32.totalorder %s34, 1
      %p78 = por %p76, %p77
      %p80 = scmp.ne.s32.totalorder %s65, %s79
      %p81 = scmp.eq.s32.totalorder %s34, 0
      %p82 = por %p80, %p81
      %s84 = sadd.s32 %s83, 1
      %p87 = scmp.eq.s32.totalorder %s28, 1
      %p88 = scmp.ne.s32.totalorder %s83, %s85
      %p89 = scmp.eq.s32.totalorder %s28, 0
      %p90 = por %p88, %p89
      %p91 = scmp.ne.s32.totalorder %s83, %s85
      %p92 = scmp.eq.s32.totalorder %s33, 1
      %p93 = por %p91, %p92
      %p94 = scmp.ne.s32.totalorder %s85, %s86
      %p95 = scmp.eq.s32.totalorder %s33, 0
      %p96 = por %p94, %p95
      %p97 = scmp.ne.s32.totalorder %s85, %s86
      %p98 = scmp.eq.s32.totalorder %s34, 1
      %p99 = por %p97, %p98
      %p101 = scmp.ne.s32.totalorder %s86, %s100
      %p102 = scmp.eq.s32.totalorder %s34, 0
      %p103 = por %p101, %p102
      %s105 = sadd.s32 %s104, 1
      %p108 = scmp.eq.s32.totalorder %s28, 1
      %p109 = scmp.ne.s32.totalorder %s104, %s106
      %p110 = scmp.eq.s32.totalorder %s28, 0
      %p111 = por %p109, %p110
      %p112 = scmp.ne.s32.totalorder %s104, %s106
      %p113 = scmp.eq.s32.totalorder %s33, 1
      %p114 = por %p112, %p113
      %p115 = scmp.ne.s32.totalorder %s106, %s107
      %p116 = scmp.eq.s32.totalorder %s33, 0
      %p117 = por %p115, %p116
      %p118 = scmp.ne.s32.totalorder %s106, %s107
      %p119 = scmp.eq.s32.totalorder %s34, 1
      %p120 = por %p118, %p119
      %p122 = scmp.ne.s32.totalorder %s107, %s121
      %p123 = scmp.eq.s32.totalorder %s34, 0
      %p124 = por %p122, %p123
      %s126 = sadd.s32 %s125, 1
      %p129 = scmp.eq.s32.totalorder %s28, 1
      %p130 = scmp.ne.s32.totalorder %s125, %s127
      %p131 = scmp.eq.s32.totalorder %s28, 0
      %p132 = por %p130, %p131
      %p133 = scmp.ne.s32.totalorder %s125, %s127
      %p134 = scmp.eq.s32.totalorder %s33, 1
      %p135 = por %p133, %p134
      %p136 = scmp.ne.s32.totalorder %s127, %s128
      %p137 = scmp.eq.s32.totalorder %s33, 0
      %p138 = por %p136, %p137
      %p139 = scmp.ne.s32.totalorder %s127, %s128
      %p140 = scmp.eq.s32.totalorder %s34, 1
      %p141 = por %p139, %p140
      %p143 = scmp.ne.s32.totalorder %s128, %s142
      %p144 = scmp.eq.s32.totalorder %s34, 0
      %p145 = por %p143, %p144
      %s147 = sadd.s32 %s146, 1
      %p150 = scmp.eq.s32.totalorder %s28, 1
      %p151 = scmp.ne.s32.totalorder %s146, %s148
      %p152 = scmp.eq.s32.totalorder %s28, 0
      %p153 = por %p151, %p152
      %p154 = scmp.ne.s32.totalorder %s146, %s148
      %p155 = scmp.eq.s32.totalorder %s33, 1
      %p156 = por %p154, %p155
      %p157 = scmp.ne.s32.totalorder %s148, %s149
      %p158 = scmp.eq.s32.totalorder %s33, 0
      %p159 = por %p157, %p158
      %p160 = scmp.ne.s32.totalorder %s148, %s149
      %p161 = scmp.eq.s32.totalorder %s34, 1
      %p162 = por %p160, %p161
      %p164 = scmp.ne.s32.totalorder %s149, %s163
      %p165 = scmp.eq.s32.totalorder %s34, 0
      %p166 = por %p164, %p165
      %s168 = sadd.s32 %s167, 1
      %p171 = scmp.eq.s32.totalorder %s28, 1
      %p172 = scmp.ne.s32.totalorder %s167, %s169
      %p173 = scmp.eq.s32.totalorder %s28, 0
      %p174 = por %p172, %p173
      %p175 = scmp.ne.s32.totalorder %s167, %s169
      %p176 = scmp.eq.s32.totalorder %s33, 1
      %p177 = por %p175, %p176
      %p178 = scmp.ne.s32.totalorder %s169, %s170
      %p179 = scmp.eq.s32.totalorder %s33, 0
      %p180 = por %p178, %p179
      %p181 = scmp.ne.s32.totalorder %s169, %s170
      %p182 = scmp.eq.s32.totalorder %s34, 1
      %p183 = por %p181, %p182
      %p185 = scmp.ne.s32.totalorder %s170, %s184
      %p186 = scmp.eq.s32.totalorder %s34, 0
      %p187 = por %p185, %p186
      %s189 = sadd.s32 %s188, 1
      %p192 = scmp.eq.s32.totalorder %s28, 1
      %p193 = scmp.ne.s32.totalorder %s188, %s190
      %p194 = scmp.eq.s32.totalorder %s28, 0
      %p195 = por %p193, %p194
      %p196 = scmp.ne.s32.totalorder %s188, %s190
      %p197 = scmp.eq.s32.totalorder %s33, 1
      %p198 = por %p196, %p197
      %p199 = scmp.ne.s32.totalorder %s190, %s191
      %p200 = scmp.eq.s32.totalorder %s33, 0
      %p201 = por %p199, %p200
      %p202 = scmp.ne.s32.totalorder %s190, %s191
      %p203 = scmp.eq.s32.totalorder %s34, 1
      %p204 = por %p202, %p203
      %p206 = scmp.ne.s32.totalorder %s191, %s205
      %p207 = scmp.eq.s32.totalorder %s34, 0
      %p208 = por %p206, %p207
      %s210 = sadd.s32 %s209, 1
      %p213 = scmp.eq.s32.totalorder %s28, 1
      %p214 = scmp.ne.s32.totalorder %s209, %s211
      %p215 = scmp.eq.s32.totalorder %s28, 0
      %p216 = por %p214, %p215
      %p217 = scmp.ne.s32.totalorder %s209, %s211
      %p218 = scmp.eq.s32.totalorder %s33, 1
      %p219 = por %p217, %p218
      %p220 = scmp.ne.s32.totalorder %s211, %s212
      %p221 = scmp.eq.s32.totalorder %s33, 0
      %p222 = por %p220, %p221
      %p223 = scmp.ne.s32.totalorder %s211, %s212
      %p224 = scmp.eq.s32.totalorder %s34, 1
      %p225 = por %p223, %p224
      %p227 = scmp.ne.s32.totalorder %s212, %s226
      %p228 = scmp.eq.s32.totalorder %s34, 0
      %p229 = por %p227, %p228
      %s231 = sadd.s32 %s230, 1
      %p234 = scmp.eq.s32.totalorder %s28, 1
      %p235 = scmp.ne.s32.totalorder %s230, %s232
      %p236 = scmp.eq.s32.totalorder %s28, 0
      %p237 = por %p235, %p236
      %p238 = scmp.ne.s32.totalorder %s230, %s232
      %p239 = scmp.eq.s32.totalorder %s33, 1
      %p240 = por %p238, %p239
      %p241 = scmp.ne.s32.totalorder %s232, %s233
      %p242 = scmp.eq.s32.totalorder %s33, 0
      %p243 = por %p241, %p242
      %p244 = scmp.ne.s32.totalorder %s232, %s233
      %p245 = scmp.eq.s32.totalorder %s34, 1
      %p246 = por %p244, %p245
      %p248 = scmp.ne.s32.totalorder %s233, %s247
      %p249 = scmp.eq.s32.totalorder %s34, 0
      %p250 = por %p248, %p249
      %s252 = sadd.s32 %s251, 1
      %p255 = scmp.eq.s32.totalorder %s28, 1
      %p256 = scmp.ne.s32.totalorder %s251, %s253
      %p257 = scmp.eq.s32.totalorder %s28, 0
      %p258 = por %p256, %p257
      %p259 = scmp.ne.s32.totalorder %s251, %s253
      %p260 = scmp.eq.s32.totalorder %s33, 1
      %p261 = por %p259, %p260
      %p262 = scmp.ne.s32.totalorder %s253, %s254
      %p263 = scmp.eq.s32.totalorder %s33, 0
      %p264 = por %p262, %p263
      %p265 = scmp.ne.s32.totalorder %s253, %s254
      %p266 = scmp.eq.s32.totalorder %s34, 1
      %p267 = por %p265, %p266
      %p269 = scmp.ne.s32.totalorder %s254, %s268
      %p270 = scmp.eq.s32.totalorder %s34, 0
      %p271 = por %p269, %p270
      %s273 = sadd.s32 %s272, 1
      %p276 = scmp.eq.s32.totalorder %s28, 1
      %p277 = scmp.ne.s32.totalorder %s272, %s274
      %p278 = scmp.eq.s32.totalorder %s28, 0
      %p279 = por %p277, %p278
      %p280 = scmp.ne.s32.totalorder %s272, %s274
      %p281 = scmp.eq.s32.totalorder %s33, 1
      %p282 = por %p280, %p281
      %p283 = scmp.ne.s32.totalorder %s274, %s275
      %p284 = scmp.eq.s32.totalorder %s33, 0
      %p285 = por %p283, %p284
      %p286 = scmp.ne.s32.totalorder %s274, %s275
      %p287 = scmp.eq.s32.totalorder %s34, 1
      %p288 = por %p286, %p287
      %p290 = scmp.ne.s32.totalorder %s275, %s289
      %p291 = scmp.eq.s32.totalorder %s34, 0
      %p292 = por %p290, %p291
      %s294 = sadd.s32 %s293, 1
      %p297 = scmp.eq.s32.totalorder %s28, 1
      %p298 = scmp.ne.s32.totalorder %s293, %s295
      %p299 = scmp.eq.s32.totalorder %s28, 0
      %p300 = por %p298, %p299
      %p301 = scmp.ne.s32.totalorder %s293, %s295
      %p302 = scmp.eq.s32.totalorder %s33, 1
      %p303 = por %p301, %p302
      %p304 = scmp.ne.s32.totalorder %s295, %s296
      %p305 = scmp.eq.s32.totalorder %s33, 0
      %p306 = por %p304, %p305
      %p307 = scmp.ne.s32.totalorder %s295, %s296
      %p308 = scmp.eq.s32.totalorder %s34, 1
      %p309 = por %p307, %p308
      %p311 = scmp.ne.s32.totalorder %s296, %s310
      %p312 = scmp.eq.s32.totalorder %s34, 0
      %p313 = por %p311, %p312
      %s315 = sadd.s32 %s314, 1
      %p318 = scmp.eq.s32.totalorder %s28, 1
      %p319 = scmp.ne.s32.totalorder %s314, %s316
      %p320 = scmp.eq.s32.totalorder %s28, 0
      %p321 = por %p319, %p320
      %p322 = scmp.ne.s32.totalorder %s314, %s316
      %p323 = scmp.eq.s32.totalorder %s33, 1
      %p324 = por %p322, %p323
      %p325 = scmp.ne.s32.totalorder %s316, %s317
      %p326 = scmp.eq.s32.totalorder %s33, 0
      %p327 = por %p325, %p326
      %p328 = scmp.ne.s32.totalorder %s316, %s317
      %p329 = scmp.eq.s32.totalorder %s34, 1
      %p330 = por %p328, %p329
      %p332 = scmp.ne.s32.totalorder %s317, %s331
      %p333 = scmp.eq.s32.totalorder %s34, 0
      %p334 = por %p332, %p333
      %s336 = sadd.s32 %s335, 1
      %p339 = scmp.eq.s32.totalorder %s28, 1
      %p340 = scmp.ne.s32.totalorder %s335, %s337
      %p341 = scmp.eq.s32.totalorder %s28, 0
      %p342 = por %p340, %p341
      %p343 = scmp.ne.s32.totalorder %s335, %s337
      %p344 = scmp.eq.s32.totalorder %s33, 1
      %p345 = por %p343, %p344
      %p346 = scmp.ne.s32.totalorder %s337, %s338
      %p347 = scmp.eq.s32.totalorder %s33, 0
      %p348 = por %p346, %p347
      %p349 = scmp.ne.s32.totalorder %s337, %s338
      %p350 = scmp.eq.s32.totalorder %s34, 1
      %p351 = por %p349, %p350
      %p353 = scmp.ne.s32.totalorder %s338, %s352
      %p354 = scmp.eq.s32.totalorder %s34, 0
      %p355 = por %p353, %p354
      %s357 = sadd.s32 %s356, 1
      %p360 = scmp.eq.s32.totalorder %s28, 1
      %p361 = scmp.ne.s32.totalorder %s356, %s358
      %p362 = scmp.eq.s32.totalorder %s28, 0
      %p363 = por %p361, %p362
      %p364 = scmp.ne.s32.totalorder %s356, %s358
      %p365 = scmp.eq.s32.totalorder %s33, 1
      %p366 = por %p364, %p365
      %p367 = scmp.ne.s32.totalorder %s358, %s359
      %p368 = scmp.eq.s32.totalorder %s33, 0
      %p369 = por %p367, %p368
      %p370 = scmp.ne.s32.totalorder %s358, %s359
      %p371 = scmp.eq.s32.totalorder %s34, 1
      %p372 = por %p370, %p371
      %p374 = scmp.ne.s32.totalorder %s359, %s373
      %p375 = scmp.eq.s32.totalorder %s34, 0
      %p376 = por %p374, %p375
      %s378 = sadd.s32 %s377, 1
      %p381 = scmp.eq.s32.totalorder %s28, 1
      %p382 = scmp.ne.s32.totalorder %s377, %s379
      %p383 = scmp.eq.s32.totalorder %s28, 0
      %p384 = por %p382, %p383
      %p385 = scmp.ne.s32.totalorder %s377, %s379
      %p386 = scmp.eq.s32.totalorder %s33, 1
      %p387 = por %p385, %p386
      %p388 = scmp.ne.s32.totalorder %s379, %s380
      %p389 = scmp.eq.s32.totalorder %s33, 0
      %p390 = por %p388, %p389
      %p391 = scmp.ne.s32.totalorder %s379, %s380
      %p392 = scmp.eq.s32.totalorder %s34, 1
      %p393 = por %p391, %p392
      %p395 = scmp.ne.s32.totalorder %s380, %s394
      %p396 = scmp.eq.s32.totalorder %s34, 0
      %p397 = por %p395, %p396
      %s399 = sadd.s32 %s398, 1
      %p402 = scmp.eq.s32.totalorder %s28, 1
      %p403 = scmp.ne.s32.totalorder %s398, %s400
      %p404 = scmp.eq.s32.totalorder %s28, 0
      %p405 = por %p403, %p404
      %p406 = scmp.ne.s32.totalorder %s398, %s400
      %p407 = scmp.eq.s32.totalorder %s33, 1
      %p408 = por %p406, %p407
      %p409 = scmp.ne.s32.totalorder %s400, %s401
      %p410 = scmp.eq.s32.totalorder %s33, 0
      %p411 = por %p409, %p410
      %p412 = scmp.ne.s32.totalorder %s400, %s401
      %p413 = scmp.eq.s32.totalorder %s34, 1
      %p414 = por %p412, %p413
      %p416 = scmp.ne.s32.totalorder %s401, %s415
      %p417 = scmp.eq.s32.totalorder %s34, 0
      %p418 = por %p416, %p417
      %s420 = sadd.s32 %s419, 1
      %p423 = scmp.eq.s32.totalorder %s28, 1
      %p424 = scmp.ne.s32.totalorder %s419, %s421
      %p425 = scmp.eq.s32.totalorder %s28, 0
      %p426 = por %p424, %p425
      %p427 = scmp.ne.s32.totalorder %s419, %s421
      %p428 = scmp.eq.s32.totalorder %s33, 1
      %p429 = por %p427, %p428
      %p430 = scmp.ne.s32.totalorder %s421, %s422
      %p431 = scmp.eq.s32.totalorder %s33, 0
      %p432 = por %p430, %p431
      %p433 = scmp.ne.s32.totalorder %s421, %s422
      %p434 = scmp.eq.s32.totalorder %s34, 1
      %p435 = por %p433, %p434
      %p437 = scmp.ne.s32.totalorder %s422, %s436
      %p438 = scmp.eq.s32.totalorder %s34, 0
      %p439 = por %p437, %p438
      %s440 = ssub.s32 %s28, %s35
      %p441 = scmp.eq.s32.totalorder %s440, 0
      %s443 = sadd.s32 %s442, 1
      %s444 = scalar_select %p441, %s442, %s443
      %p447 = pneg %p441
      %p448 = scmp.eq.s32.totalorder %s28, 1
      %p449 = por %p447, %p448
      %p450 = scmp.ne.s32.totalorder %s442, %s445
      %p451 = scmp.eq.s32.totalorder %s28, 0
      %p452 = por %p450, %p451
      %p453 = scmp.ne.s32.totalorder %s442, %s445
      %p454 = scmp.eq.s32.totalorder %s33, 1
      %p455 = por %p453, %p454
      %p456 = scmp.ne.s32.totalorder %s445, %s446
      %p457 = scmp.eq.s32.totalorder %s33, 0
      %p458 = por %p456, %p457
      %p459 = scmp.ne.s32.totalorder %s445, %s446
      %p460 = scmp.eq.s32.totalorder %s34, 1
      %p461 = por %p459, %p460
      %p463 = scmp.ne.s32.totalorder %s446, %s462
      %p464 = scmp.eq.s32.totalorder %s34, 0
      %p465 = por %p463, %p464
      %p466 = scmp.le.s32.totalorder 1, %s28
      %p467 = scmp.lt.s32.totalorder %s28, 3
      %p468 = pnand %p466, %p467
      %p469 = pneg %p468
      // Predicated region
      $region9: #{tpu_custom_call.1} parent=5 // pred_check
        _
      $region10: #{tpu_custom_call.1} parent=5 // pred_check_branch
        %471 = sbr.rel (%p468) target = $region12
      $region11: #{tpu_custom_call.1} parent=5 // pred_region
        %s472 = ssub.s32 %s28, 1
        // Predicated region
        $region13: #{tpu_custom_call.1} parent=11 // pred_check
          %p473 = pneg %p75
        $region14: #{tpu_custom_call.1} parent=11 // pred_check_branch
          %475 = sbr.rel (%p473) target = $region16
        $region15: #{tpu_custom_call.1} parent=11 // pred_region
          _
        $region16: #{tpu_custom_call.1} parent=11 // pred_fallthru
          _
        // Predicated region
        $region17: #{tpu_custom_call.1} parent=11 // pred_check
          %p476 = pneg %p96
        $region18: #{tpu_custom_call.1} parent=11 // pred_check_branch
          %478 = sbr.rel (%p476) target = $region20
        $region19: #{tpu_custom_call.1} parent=11 // pred_region
          _
        $region20: #{tpu_custom_call.1} parent=11 // pred_fallthru
          _
        // Predicated region
        $region21: #{tpu_custom_call.1} parent=11 // pred_check
          %p479 = pneg %p117
        $region22: #{tpu_custom_call.1} parent=11 // pred_check_branch
          %481 = sbr.rel (%p479) target = $region24
        $region23: #{tpu_custom_call.1} parent=11 // pred_region
          _
        $region24: #{tpu_custom_call.1} parent=11 // pred_fallthru
          _
        // Predicated region
        $region25: #{tpu_custom_call.1} parent=11 // pred_check
          %p482 = pneg %p138
        $region26: #{tpu_custom_call.1} parent=11 // pred_check_branch
          %484 = sbr.rel (%p482) target = $region28
        $region27: #{tpu_custom_call.1} parent=11 // pred_region
          _
        $region28: #{tpu_custom_call.1} parent=11 // pred_fallthru
          _
        // Predicated region
        $region29: #{tpu_custom_call.1} parent=11 // pred_check
          %p485 = pneg %p159
        $region30: #{tpu_custom_call.1} parent=11 // pred_check_branch
          %487 = sbr.rel (%p485) target = $region32
        $region31: #{tpu_custom_call.1} parent=11 // pred_region
          _
        $region32: #{tpu_custom_call.1} parent=11 // pred_fallthru
          _
        // Predicated region
        $region33: #{tpu_custom_call.1} parent=11 // pred_check
          %p488 = pneg %p180
        $region34: #{tpu_custom_call.1} parent=11 // pred_check_branch
          %490 = sbr.rel (%p488) target = $region36
        $region35: #{tpu_custom_call.1} parent=11 // pred_region
          _
        $region36: #{tpu_custom_call.1} parent=11 // pred_fallthru
          _
        // Predicated region
        $region37: #{tpu_custom_call.1} parent=11 // pred_check
          %p491 = pneg %p201
        $region38: #{tpu_custom_call.1} parent=11 // pred_check_branch
          %493 = sbr.rel (%p491) target = $region40
        $region39: #{tpu_custom_call.1} parent=11 // pred_region
          _
        $region40: #{tpu_custom_call.1} parent=11 // pred_fallthru
          _
        // Predicated region
        $region41: #{tpu_custom_call.1} parent=11 // pred_check
          %p494 = pneg %p222
        $region42: #{tpu_custom_call.1} parent=11 // pred_check_branch
          %496 = sbr.rel (%p494) target = $region44
        $region43: #{tpu_custom_call.1} parent=11 // pred_region
          _
        $region44: #{tpu_custom_call.1} parent=11 // pred_fallthru
          _
        // Predicated region
        $region45: #{tpu_custom_call.1} parent=11 // pred_check
          %p497 = pneg %p243
        $region46: #{tpu_custom_call.1} parent=11 // pred_check_branch
          %499 = sbr.rel (%p497) target = $region48
        $region47: #{tpu_custom_call.1} parent=11 // pred_region
          _
        $region48: #{tpu_custom_call.1} parent=11 // pred_fallthru
          _
        // Predicated region
        $region49: #{tpu_custom_call.1} parent=11 // pred_check
          %p500 = pneg %p264
        $region50: #{tpu_custom_call.1} parent=11 // pred_check_branch
          %502 = sbr.rel (%p500) target = $region52
        $region51: #{tpu_custom_call.1} parent=11 // pred_region
          _
        $region52: #{tpu_custom_call.1} parent=11 // pred_fallthru
          _
        // Predicated region
        $region53: #{tpu_custom_call.1} parent=11 // pred_check
          %p503 = pneg %p285
        $region54: #{tpu_custom_call.1} parent=11 // pred_check_branch
          %505 = sbr.rel (%p503) target = $region56
        $region55: #{tpu_custom_call.1} parent=11 // pred_region
          _
        $region56: #{tpu_custom_call.1} parent=11 // pred_fallthru
          _
        // Predicated region
        $region57: #{tpu_custom_call.1} parent=11 // pred_check
          %p506 = pneg %p306
        $region58: #{tpu_custom_call.1} parent=11 // pred_check_branch
          %508 = sbr.rel (%p506) target = $region60
        $region59: #{tpu_custom_call.1} parent=11 // pred_region
          _
        $region60: #{tpu_custom_call.1} parent=11 // pred_fallthru
          _
        // Predicated region
        $region61: #{tpu_custom_call.1} parent=11 // pred_check
          %p509 = pneg %p327
        $region62: #{tpu_custom_call.1} parent=11 // pred_check_branch
          %511 = sbr.rel (%p509) target = $region64
        $region63: #{tpu_custom_call.1} parent=11 // pred_region
          _
        $region64: #{tpu_custom_call.1} parent=11 // pred_fallthru
          _
        // Predicated region
        $region65: #{tpu_custom_call.1} parent=11 // pred_check
          %p512 = pneg %p348
        $region66: #{tpu_custom_call.1} parent=11 // pred_check_branch
          %514 = sbr.rel (%p512) target = $region68
        $region67: #{tpu_custom_call.1} parent=11 // pred_region
          _
        $region68: #{tpu_custom_call.1} parent=11 // pred_fallthru
          _
        // Predicated region
        $region69: #{tpu_custom_call.1} parent=11 // pred_check
          %p515 = pneg %p369
        $region70: #{tpu_custom_call.1} parent=11 // pred_check_branch
          %517 = sbr.rel (%p515) target = $region72
        $region71: #{tpu_custom_call.1} parent=11 // pred_region
          _
        $region72: #{tpu_custom_call.1} parent=11 // pred_fallthru
          _
        // Predicated region
        $region73: #{tpu_custom_call.1} parent=11 // pred_check
          %p518 = pneg %p390
        $region74: #{tpu_custom_call.1} parent=11 // pred_check_branch
          %520 = sbr.rel (%p518) target = $region76
        $region75: #{tpu_custom_call.1} parent=11 // pred_region
          _
        $region76: #{tpu_custom_call.1} parent=11 // pred_fallthru
          _
        // Predicated region
        $region77: #{tpu_custom_call.1} parent=11 // pred_check
          %p521 = pneg %p411
        $region78: #{tpu_custom_call.1} parent=11 // pred_check_branch
          %523 = sbr.rel (%p521) target = $region80
        $region79: #{tpu_custom_call.1} parent=11 // pred_region
          _
        $region80: #{tpu_custom_call.1} parent=11 // pred_fallthru
          _
        // Predicated region
        $region81: #{tpu_custom_call.1} parent=11 // pred_check
          %p524 = pneg %p432
        $region82: #{tpu_custom_call.1} parent=11 // pred_check_branch
          %526 = sbr.rel (%p524) target = $region84
        $region83: #{tpu_custom_call.1} parent=11 // pred_region
          _
        $region84: #{tpu_custom_call.1} parent=11 // pred_fallthru
          _
      $region12: #{tpu_custom_call.1} parent=5 // pred_fallthru
        _
      %p527 = scmp.lt.s32.totalorder %s28, 2
      // Predicated region
      $region85: #{tpu_custom_call.1} parent=5 // pred_check
        %p528 = pneg %p527
      $region86: #{tpu_custom_call.1} parent=5 // pred_check_branch
        %530 = sbr.rel (%p528) target = $region88
      $region87: #{tpu_custom_call.1} parent=5 // pred_region
        // Predicated region
        $region89: #{tpu_custom_call.1} parent=87 // pred_check
          %p531 = pneg %p48
        $region90: #{tpu_custom_call.1} parent=87 // pred_check_branch
          %533 = sbr.rel (%p531) target = $region92
        $region91: #{tpu_custom_call.1} parent=87 // pred_region
          %p534 = scmp.lt.s32.totalorder %s28, 1
          %s535 = scalar_select %p534, %s28, 1
          %s536 = smul.addr %s535, 4
          %s537 = smul.addr %s536, 8
          %s538 = scalar_lea.vmem %s0, %s537
        $region92: #{tpu_custom_call.1} parent=87 // pred_fallthru
          _
      $region88: #{tpu_custom_call.1} parent=5 // pred_fallthru
        _
      %p539 = scmp.le.s32.totalorder 1, %s28
      %p540 = scmp.lt.s32.totalorder %s28, 3
      %p541 = pnand %p539, %p540
      %p542 = pneg %p541
      // Predicated region
      $region93: #{tpu_custom_call.1} parent=5 // pred_check
        _
      $region94: #{tpu_custom_call.1} parent=5 // pred_check_branch
        %544 = sbr.rel (%p541) target = $region96
      $region95: #{tpu_custom_call.1} parent=5 // pred_region
        %s545 = ssub.s32 %s28, 1
        %p546 = scmp.lt.s32.totalorder %s33, 1
        %s547 = scalar_select %p546, %s33, 1
        %s548 = smul.addr %s547, 4
        %s549 = smul.addr %s548, 8
        %s550 = scalar_lea.vmem %s0, %s549
        %p551 = pneg %p54
        %p552 = pneg %p51
        %p553 = pneg %p75
        %p554 = pneg %p72
        %p555 = pneg %p96
        %p556 = pneg %p93
        %p557 = pneg %p117
        %p558 = pneg %p114
        %p559 = pneg %p138
        %p560 = pneg %p135
        %p561 = pneg %p159
        %p562 = pneg %p156
        %p563 = pneg %p180
        %p564 = pneg %p177
        %p565 = pneg %p201
        %p566 = pneg %p198
        %p567 = pneg %p222
        %p568 = pneg %p219
        %p569 = pneg %p243
        %p570 = pneg %p240
        %p571 = pneg %p264
        %p572 = pneg %p261
        %p573 = pneg %p285
        %p574 = pneg %p282
        %p575 = pneg %p306
        %p576 = pneg %p303
        %p577 = pneg %p327
        %p578 = pneg %p324
        %p579 = pneg %p348
        %p580 = pneg %p345
        %p581 = pneg %p369
        %p582 = pneg %p366
        %p583 = pneg %p390
        %p584 = pneg %p387
        %p585 = pneg %p411
        %p586 = pneg %p408
        %p587 = pneg %p432
        %p588 = pneg %p429
        %p589 = pneg %p458
        %p590 = pneg %p455
        %s591 = sand.u32 %s445, 1
        %s592 = scalar_lea.sflag [#allocation3], %s591
        %s593 = sand.u32 %s445, 1
        %s594 = smul.addr %s593, 32
        %s595 = scalar_lea.vmem [#allocation2], %s594
        %p596 = scmp.lt.s32.totalorder %s33, 1
        %s597 = scalar_select %p596, %s33, 1
        %s598 = smul.addr %s597, 4
        %s599 = smul.addr %s598, 8
        %s600 = scalar_lea.vmem %s0, %s599
        %v602 = vld [vmem:[%s600] sm:$0xff]
        %v603 = vld [vmem:[%s600 + $0x8] sm:$0xff]
        %v604 = vld [vmem:[%s600 + $0x10] sm:$0xff]
        %v605 = vld [vmem:[%s600 + $0x18] sm:$0xff]
        %v606 = vlaneseq
        %v607 = vand.u32 %v606, 127
        %v608 = vadd.s32 %v607, 128
        %v609 = vand.u32 %v607, 15
        %v610 = vand.u32 %v608, 15
        %v611 = vpack.c.bf16 %v604, %v602
        %v612 = vpack.c.bf16 %v605, %v603
        %v613 = vld [vmem:[%s1] sm:$0xf]
        %v614 = vld [vmem:[%s1 + $0x4] sm:$0x7]
        %v615 = vld [vmem:[%s2] sm:$0xff]
        %v616 = vld [vmem:[%s2 + $0x8] sm:$0x3f]
        %618 = vset.pattern.permute.xlu0 0
        %619 = vperm.xlu0 %618, %v615
        %v620 = vpop.permute.xlu0 %619
        %623 = vset.pattern.permute.xlu0 0
        %624 = vperm.xlu0 %623, %v616
        %v625 = vpop.permute.xlu0 %624
        %v629 = vunpack.c.l.b16 %v613
        %v630 = vunpack.c.l.b16 %v614
        %v631 = vpack.c.b16 %v630, %v629
        %vm632 = vcmask 130048
        %v634 = vsel %vm632, %v631, 0
        %636 = vmatprep.subr.bf16.mxu0 %v612
        %637 = vmatpush1.bf16.msra.mxu0 %v611
        %638 = vmatprep.subr.bf16.mxu0 0
        %639 = vmatpush1.bf16.msra.mxu0 0
        %640 = vmatprep.subr.bf16.mxu0 0
        %641 = vmatpush1.bf16.msra.mxu0 0
        %642 = vmatprep.subr.bf16.mxu0 0
        %643 = vmatpush1.bf16.msra.mxu0 0
        %644 = vmatprep.subr.bf16.mxu0 0
        %645 = vmatpush1.bf16.msra.mxu0 0
        %646 = vmatprep.subr.bf16.mxu0 0
        %647 = vmatpush1.bf16.msra.mxu0 0
        %648 = vmatprep.subr.bf16.mxu0 0
        %649 = vmatpush1.bf16.msra.mxu0 0
        %650 = vmatprep.subr.bf16.mxu0 0
        %651 = vmatpush1.bf16.msra.mxu0 0
        %652 = vmatprep.subr.bf16.mxu0 0
        %653 = vmatpush1.bf16.msra.mxu0 0
        %654 = vmatprep.subr.bf16.mxu0 0
        %655 = vmatpush1.bf16.msra.mxu0 0
        %656 = vmatprep.subr.bf16.mxu0 0
        %657 = vmatpush1.bf16.msra.mxu0 0
        %658 = vmatprep.subr.bf16.mxu0 0
        %659 = vmatpush1.bf16.msra.mxu0 0
        %660 = vmatprep.subr.bf16.mxu0 0
        %661 = vmatpush1.bf16.msra.mxu0 0
        %662 = vmatprep.subr.bf16.mxu0 0
        %663 = vmatpush1.bf16.msra.mxu0 0
        %664 = vmatprep.subr.bf16.mxu0 0
        %665 = vmatpush1.bf16.msra.mxu0 0
        %666 = vmatprep.subr.bf16.mxu0 0
        %667 = vmatpush1.bf16.msra.mxu0 0
        %668 = vmatprep.mubr.bf16.mxu0 0
        %669 = vmatmul.mubr.bf16.gmra.mrb[0].mxu0 %v634
        %v670 = vpop.f32.mrb[0].mxu0
        %v671 = vadd.f32 %v620, %v670
        %v672 = vpop.f32.mrb[0].mxu0
        %v673 = vadd.f32 %v620, %v672
        %v674 = vpop.f32.mrb[0].mxu0
        %v675 = vadd.f32 %v625, %v674
        %v676 = vpop.f32.mrb[0].mxu0
        %v677 = vadd.f32 %v625, %v676
        %678 = vdwg.mxu0
        %v679 = vmax.f32 %v671, 0.0
        %v680 = vmax.f32 %v673, 0.0
        %v681 = vmax.f32 %v675, 0.0
        %v682 = vmax.f32 %v677, 0.0
        %683 = vrot.lane.b32.xlu0 %v679, 16
        %v684 = vpop.permute.xlu0 %683
        %685 = vrot.lane.b32.xlu0 %v681, 16
        %v686 = vpop.permute.xlu0 %685
        %687 = vrot.lane.b32.xlu0 %v680, 16
        %v688 = vpop.permute.xlu0 %687
        %689 = vrot.lane.b32.xlu0 %v682, 16
        %v690 = vpop.permute.xlu0 %689
        %vm691 = vcmp.lt.s32.totalorder %v607, 16
        %v692 = vsel %vm691, %v684, %v688
        %v693 = vsel %vm691, %v686, %v690
        %v694 = vsel %vm691, %v688, %v684
        %v695 = vsel %vm691, %v690, %v686
        %v696 = vadd.s32 %v607, 4294967280
        %v697 = vadd.s32 %v608, 4294967280
        %vm698 = vcmp.ge.s32.totalorder %v696, 0
        %vm699 = vcmp.ge.s32.totalorder %v697, 0
        %vm700 = vcmp.lt.s32.totalorder %v696, 256
        %vm701 = vcmp.lt.s32.totalorder %v697, 256
        %vm702 = vmand %vm698, %vm700
        %vm703 = vmand %vm699, %vm701
        %vm704 = vcmp.ge.s32.totalorder %v609, 0
        %vm705 = vcmp.ge.s32.totalorder %v610, 0
        %vm706 = vmand %vm702, %vm704
        %vm707 = vmand %vm703, %vm705
        %vm708 = vcmp.lt.s32.totalorder %v609, 16
        %vm709 = vcmp.lt.s32.totalorder %v610, 16
        %vm710 = vmand %vm706, %vm708
        %vm711 = vmand %vm707, %vm709
        %v712 = vsel %vm710, 1, 0
        %v713 = vsel %vm711, 1, 0
        %vm714 = vcmp.eq.s32.totalorder %v712, 1
        %vm715 = vcmp.eq.s32.totalorder %v713, 1
        %v716 = vsel %vm714, %v694, 0.0
        %v717 = vsel %vm715, %v692, 0.0
        %v718 = vsel %vm714, %v695, 0.0
        %v719 = vsel %vm715, %v693, 0.0
        %v720 = vpack.c.bf16 %v718, %v716
        %v721 = vpack.c.bf16 %v719, %v717
        %v722 = vld [vmem:[%s3] sm:$0x3]
        %v723 = vpack.c.bf16 %v681, %v679
        %v724 = vpack.c.bf16 %v682, %v680
        %s725 = scalar_lea.vmem %s3, 2
        %v726 = vld [vmem:[%s725] sm:$0x3]
        %vm727 = vcmask 113664
        %v729 = vsel %vm727, %v726, 0
        %vm731 = vcmask 1046528
        %v733 = vsel %vm731, %v723, 0
        %v736 = vsel %vm731, %v724, 0
        %738 = vmatprep.subr.bf16.mxu0 %v736
        %739 = vmatpush1.bf16.msra.mxu0 %v733
        %740 = vmatprep.subr.bf16.mxu0 0
        %741 = vmatpush1.bf16.msra.mxu0 0
        %742 = vmatprep.subr.bf16.mxu0 0
        %743 = vmatpush1.bf16.msra.mxu0 0
        %744 = vmatprep.subr.bf16.mxu0 0
        %745 = vmatpush1.bf16.msra.mxu0 0
        %746 = vmatprep.subr.bf16.mxu0 0
        %747 = vmatpush1.bf16.msra.mxu0 0
        %748 = vmatprep.subr.bf16.mxu0 0
        %749 = vmatpush1.bf16.msra.mxu0 0
        %750 = vmatprep.subr.bf16.mxu0 0
        %751 = vmatpush1.bf16.msra.mxu0 0
        %752 = vmatprep.subr.bf16.mxu0 0
        %753 = vmatpush1.bf16.msra.mxu0 0
        %754 = vmatprep.subr.bf16.mxu0 0
        %755 = vmatpush1.bf16.msra.mxu0 0
        %756 = vmatprep.subr.bf16.mxu0 0
        %757 = vmatpush1.bf16.msra.mxu0 0
        %758 = vmatprep.subr.bf16.mxu0 0
        %759 = vmatpush1.bf16.msra.mxu0 0
        %760 = vmatprep.subr.bf16.mxu0 0
        %761 = vmatpush1.bf16.msra.mxu0 0
        %762 = vmatprep.subr.bf16.mxu0 0
        %763 = vmatpush1.bf16.msra.mxu0 0
        %764 = vmatprep.subr.bf16.mxu0 0
        %765 = vmatpush1.bf16.msra.mxu0 0
        %766 = vmatprep.subr.bf16.mxu0 0
        %767 = vmatpush1.bf16.msra.mxu0 0
        %768 = vmatprep.subr.bf16.mxu0 0
        %769 = vmatpush1.bf16.msra.mxu0 0
        %770 = vmatprep.mubr.bf16.mxu0 0
        %771 = vmatmul.mubr.bf16.gmra.mrb[0].mxu0 %v729
        %v772 = vpop.f32.mrb[0].mxu0
        %v773 = vadd.f32 0.0, %v772
        %v774 = vpop.f32.mrb[0].mxu0
        %v775 = vadd.f32 0.0, %v774
        %v776 = vpop.f32.mrb[0].mxu0
        %v777 = vpop.f32.mrb[0].mxu0
        %778 = vdwg.mxu0
        %v780 = vsel %vm727, %v722, 0
        %v783 = vsel %vm731, %v720, 0
        %v786 = vsel %vm731, %v721, 0
        %788 = vmatprep.subr.bf16.mxu0 %v786
        %789 = vmatpush1.bf16.msra.mxu0 %v783
        %790 = vmatprep.subr.bf16.mxu0 0
        %791 = vmatpush1.bf16.msra.mxu0 0
        %792 = vmatprep.subr.bf16.mxu0 0
        %793 = vmatpush1.bf16.msra.mxu0 0
        %794 = vmatprep.subr.bf16.mxu0 0
        %795 = vmatpush1.bf16.msra.mxu0 0
        %796 = vmatprep.subr.bf16.mxu0 0
        %797 = vmatpush1.bf16.msra.mxu0 0
        %798 = vmatprep.subr.bf16.mxu0 0
        %799 = vmatpush1.bf16.msra.mxu0 0
        %800 = vmatprep.subr.bf16.mxu0 0
        %801 = vmatpush1.bf16.msra.mxu0 0
        %802 = vmatprep.subr.bf16.mxu0 0
        %803 = vmatpush1.bf16.msra.mxu0 0
        %804 = vmatprep.subr.bf16.mxu0 0
        %805 = vmatpush1.bf16.msra.mxu0 0
        %806 = vmatprep.subr.bf16.mxu0 0
        %807 = vmatpush1.bf16.msra.mxu0 0
        %808 = vmatprep.subr.bf16.mxu0 0
        %809 = vmatpush1.bf16.msra.mxu0 0
        %810 = vmatprep.subr.bf16.mxu0 0
        %811 = vmatpush1.bf16.msra.mxu0 0
        %812 = vmatprep.subr.bf16.mxu0 0
        %813 = vmatpush1.bf16.msra.mxu0 0
        %814 = vmatprep.subr.bf16.mxu0 0
        %815 = vmatpush1.bf16.msra.mxu0 0
        %816 = vmatprep.subr.bf16.mxu0 0
        %817 = vmatpush1.bf16.msra.mxu0 0
        %818 = vmatprep.subr.bf16.mxu0 0
        %819 = vmatpush1.bf16.msra.mxu0 0
        %820 = vmatprep.mubr.bf16.mxu0 0
        %821 = vmatmul.mubr.bf16.gmra.mrb[0].mxu0 %v780
        %v822 = vpop.f32.mrb[0].mxu0
        %v823 = vadd.f32 %v773, %v822
        %v824 = vpop.f32.mrb[0].mxu0
        %v825 = vadd.f32 %v775, %v824
        %v826 = vpop.f32.mrb[0].mxu0
        %v827 = vpop.f32.mrb[0].mxu0
        %828 = vdwg.mxu0
        %829 = vrot.lane.b32.xlu0 %v679, 112
        %v830 = vpop.permute.xlu0 %829
        %831 = vrot.lane.b32.xlu0 %v681, 112
        %v832 = vpop.permute.xlu0 %831
        %833 = vrot.lane.b32.xlu0 %v680, 112
        %v834 = vpop.permute.xlu0 %833
        %835 = vrot.lane.b32.xlu0 %v682, 112
        %v836 = vpop.permute.xlu0 %835
        %vm837 = vcmp.lt.s32.totalorder %v607, 112
        %v838 = vsel %vm837, %v830, %v834
        %v839 = vsel %vm837, %v832, %v836
        %v840 = vsel %vm837, %v834, %v830
        %v841 = vsel %vm837, %v836, %v832
        %v842 = vadd.s32 %v607, 16
        %v843 = vadd.s32 %v608, 16
        %vm844 = vcmp.ge.s32.totalorder %v842, 0
        %vm845 = vcmp.ge.s32.totalorder %v843, 0
        %vm846 = vcmp.lt.s32.totalorder %v842, 256
        %vm847 = vcmp.lt.s32.totalorder %v843, 256
        %vm848 = vmand %vm844, %vm846
        %vm849 = vmand %vm845, %vm847
        %vm850 = vmand %vm848, %vm704
        %vm851 = vmand %vm849, %vm705
        %vm852 = vmand %vm850, %vm708
        %vm853 = vmand %vm851, %vm709
        %v854 = vsel %vm852, 1, 0
        %v855 = vsel %vm853, 1, 0
        %vm856 = vcmp.eq.s32.totalorder %v854, 1
        %vm857 = vcmp.eq.s32.totalorder %v855, 1
        %v858 = vsel %vm856, %v838, 0.0
        %v859 = vsel %vm857, %v840, 0.0
        %v860 = vsel %vm856, %v839, 0.0
        %v861 = vsel %vm857, %v841, 0.0
        %v862 = vpack.c.bf16 %v860, %v858
        %v863 = vpack.c.bf16 %v861, %v859
        %s864 = scalar_lea.vmem %s3, 4
        %v865 = vld [vmem:[%s864] sm:$0x3]
        %v867 = vsel %vm727, %v865, 0
        %v870 = vsel %vm731, %v862, 0
        %v873 = vsel %vm731, %v863, 0
        %875 = vmatprep.subr.bf16.mxu0 %v873
        %876 = vmatpush1.bf16.msra.mxu0 %v870
        %877 = vmatprep.subr.bf16.mxu0 0
        %878 = vmatpush1.bf16.msra.mxu0 0
        %879 = vmatprep.subr.bf16.mxu0 0
        %880 = vmatpush1.bf16.msra.mxu0 0
        %881 = vmatprep.subr.bf16.mxu0 0
        %882 = vmatpush1.bf16.msra.mxu0 0
        %883 = vmatprep.subr.bf16.mxu0 0
        %884 = vmatpush1.bf16.msra.mxu0 0
        %885 = vmatprep.subr.bf16.mxu0 0
        %886 = vmatpush1.bf16.msra.mxu0 0
        %887 = vmatprep.subr.bf16.mxu0 0
        %888 = vmatpush1.bf16.msra.mxu0 0
        %889 = vmatprep.subr.bf16.mxu0 0
        %890 = vmatpush1.bf16.msra.mxu0 0
        %891 = vmatprep.subr.bf16.mxu0 0
        %892 = vmatpush1.bf16.msra.mxu0 0
        %893 = vmatprep.subr.bf16.mxu0 0
        %894 = vmatpush1.bf16.msra.mxu0 0
        %895 = vmatprep.subr.bf16.mxu0 0
        %896 = vmatpush1.bf16.msra.mxu0 0
        %897 = vmatprep.subr.bf16.mxu0 0
        %898 = vmatpush1.bf16.msra.mxu0 0
        %899 = vmatprep.subr.bf16.mxu0 0
        %900 = vmatpush1.bf16.msra.mxu0 0
        %901 = vmatprep.subr.bf16.mxu0 0
        %902 = vmatpush1.bf16.msra.mxu0 0
        %903 = vmatprep.subr.bf16.mxu0 0
        %904 = vmatpush1.bf16.msra.mxu0 0
        %905 = vmatprep.subr.bf16.mxu0 0
        %906 = vmatpush1.bf16.msra.mxu0 0
        %907 = vmatprep.mubr.bf16.mxu0 0
        %908 = vmatmul.mubr.bf16.gmra.mrb[0].mxu0 %v867
        %v909 = vpop.f32.mrb[0].mxu0
        %v910 = vadd.f32 0.0, %v909
        %v911 = vpop.f32.mrb[0].mxu0
        %v912 = vadd.f32 0.0, %v911
        %v913 = vpop.f32.mrb[0].mxu0
        %v914 = vpop.f32.mrb[0].mxu0
        %915 = vdwg.mxu0
        %v916 = vadd.f32 %v823, %v910
        %v917 = vadd.f32 %v825, %v912
        %v918 = vld [vmem:[%s4] sm:$0xf]
        %920 = vset.pattern.permute.xlu0 0
        %921 = vperm.xlu0 %920, %v918
        %v922 = vpop.permute.xlu0 %921
        %v924 = vadd.f32 %v916, %v922
        %v925 = vadd.f32 %v917, %v922
        %v926 = vmax.f32 %v924, 0.0
        %v927 = vmax.f32 %v925, 0.0
        %928 = vrot.lane.b32.xlu0 %v679, 1
        %v929 = vpop.permute.xlu0 %928
        %930 = vrot.lane.b32.xlu0 %v681, 1
        %v931 = vpop.permute.xlu0 %930
        %932 = vrot.lane.b32.xlu0 %v680, 1
        %v933 = vpop.permute.xlu0 %932
        %934 = vrot.lane.b32.xlu0 %v682, 1
        %v935 = vpop.permute.xlu0 %934
        %vm936 = vcmp.lt.s32.totalorder %v607, 1
        %v937 = vsel %vm936, %v929, %v933
        %v938 = vsel %vm936, %v931, %v935
        %v939 = vsel %vm936, %v933, %v929
        %v940 = vsel %vm936, %v935, %v931
        %vm941 = vcmp.ge.s32.totalorder %v607, 0
        %vm942 = vcmp.ge.s32.totalorder %v608, 0
        %vm943 = vcmp.lt.s32.totalorder %v607, 256
        %vm944 = vcmp.lt.s32.totalorder %v608, 256
        %vm945 = vmand %vm941, %vm943
        %vm946 = vmand %vm942, %vm944
        %v947 = vadd.s32 %v609, 4294967295
        %v948 = vadd.s32 %v610, 4294967295
        %vm949 = vcmp.ge.s32.totalorder %v947, 0
        %vm950 = vcmp.ge.s32.totalorder %v948, 0
        %vm951 = vmand %vm945, %vm949
        %vm952 = vmand %vm946, %vm950
        %vm953 = vcmp.lt.s32.totalorder %v947, 16
        %vm954 = vcmp.lt.s32.totalorder %v948, 16
        %vm955 = vmand %vm951, %vm953
        %vm956 = vmand %vm952, %vm954
        %v957 = vsel %vm955, 1, 0
        %v958 = vsel %vm956, 1, 0
        %vm959 = vcmp.eq.s32.totalorder %v957, 1
        %vm960 = vcmp.eq.s32.totalorder %v958, 1
        %v961 = vsel %vm959, %v939, 0.0
        %v962 = vsel %vm960, %v937, 0.0
        %v963 = vsel %vm959, %v940, 0.0
        %v964 = vsel %vm960, %v938, 0.0
        %v965 = vpack.c.bf16 %v963, %v961
        %v966 = vpack.c.bf16 %v964, %v962
        %v967 = vld [vmem:[%s5] sm:$0xf]
        %s968 = scalar_lea.vmem %s5, 4
        %v969 = vld [vmem:[%s968] sm:$0xf]
        %v971 = vsel %vm727, %v969, 0
        %973 = vmatprep.subr.bf16.mxu0 %v736
        %974 = vmatpush1.bf16.msra.mxu0 %v733
        %975 = vmatprep.subr.bf16.mxu0 0
        %976 = vmatpush1.bf16.msra.mxu0 0
        %977 = vmatprep.subr.bf16.mxu0 0
        %978 = vmatpush1.bf16.msra.mxu0 0
        %979 = vmatprep.subr.bf16.mxu0 0
        %980 = vmatpush1.bf16.msra.mxu0 0
        %981 = vmatprep.subr.bf16.mxu0 0
        %982 = vmatpush1.bf16.msra.mxu0 0
        %983 = vmatprep.subr.bf16.mxu0 0
        %984 = vmatpush1.bf16.msra.mxu0 0
        %985 = vmatprep.subr.bf16.mxu0 0
        %986 = vmatpush1.bf16.msra.mxu0 0
        %987 = vmatprep.subr.bf16.mxu0 0
        %988 = vmatpush1.bf16.msra.mxu0 0
        %989 = vmatprep.subr.bf16.mxu0 0
        %990 = vmatpush1.bf16.msra.mxu0 0
        %991 = vmatprep.subr.bf16.mxu0 0
        %992 = vmatpush1.bf16.msra.mxu0 0
        %993 = vmatprep.subr.bf16.mxu0 0
        %994 = vmatpush1.bf16.msra.mxu0 0
        %995 = vmatprep.subr.bf16.mxu0 0
        %996 = vmatpush1.bf16.msra.mxu0 0
        %997 = vmatprep.subr.bf16.mxu0 0
        %998 = vmatpush1.bf16.msra.mxu0 0
        %999 = vmatprep.subr.bf16.mxu0 0
        %1000 = vmatpush1.bf16.msra.mxu0 0
        %1001 = vmatprep.subr.bf16.mxu0 0
        %1002 = vmatpush1.bf16.msra.mxu0 0
        %1003 = vmatprep.subr.bf16.mxu0 0
        %1004 = vmatpush1.bf16.msra.mxu0 0
        %1005 = vmatprep.mubr.bf16.mxu0 0
        %1006 = vmatmul.mubr.bf16.gmra.mrb[0].mxu0 %v971
        %v1007 = vpop.f32.mrb[0].mxu0
        %v1008 = vadd.f32 0.0, %v1007
        %v1009 = vpop.f32.mrb[0].mxu0
        %v1010 = vadd.f32 0.0, %v1009
        %v1011 = vpop.f32.mrb[0].mxu0
        %v1012 = vpop.f32.mrb[0].mxu0
        %1013 = vdwg.mxu0
        %v1015 = vsel %vm727, %v967, 0
        %v1018 = vsel %vm731, %v965, 0
        %v1021 = vsel %vm731, %v966, 0
        %1023 = vmatprep.subr.bf16.mxu0 %v1021
        %1024 = vmatpush1.bf16.msra.mxu0 %v1018
        %1025 = vmatprep.subr.bf16.mxu0 0
        %1026 = vmatpush1.bf16.msra.mxu0 0
        %1027 = vmatprep.subr.bf16.mxu0 0
        %1028 = vmatpush1.bf16.msra.mxu0 0
        %1029 = vmatprep.subr.bf16.mxu0 0
        %1030 = vmatpush1.bf16.msra.mxu0 0
        %1031 = vmatprep.subr.bf16.mxu0 0
        %1032 = vmatpush1.bf16.msra.mxu0 0
        %1033 = vmatprep.subr.bf16.mxu0 0
        %1034 = vmatpush1.bf16.msra.mxu0 0
        %1035 = vmatprep.subr.bf16.mxu0 0
        %1036 = vmatpush1.bf16.msra.mxu0 0
        %1037 = vmatprep.subr.bf16.mxu0 0
        %1038 = vmatpush1.bf16.msra.mxu0 0
        %1039 = vmatprep.subr.bf16.mxu0 0
        %1040 = vmatpush1.bf16.msra.mxu0 0
        %1041 = vmatprep.subr.bf16.mxu0 0
        %1042 = vmatpush1.bf16.msra.mxu0 0
        %1043 = vmatprep.subr.bf16.mxu0 0
        %1044 = vmatpush1.bf16.msra.mxu0 0
        %1045 = vmatprep.subr.bf16.mxu0 0
        %1046 = vmatpush1.bf16.msra.mxu0 0
        %1047 = vmatprep.subr.bf16.mxu0 0
        %1048 = vmatpush1.bf16.msra.mxu0 0
        %1049 = vmatprep.subr.bf16.mxu0 0
        %1050 = vmatpush1.bf16.msra.mxu0 0
        %1051 = vmatprep.subr.bf16.mxu0 0
        %1052 = vmatpush1.bf16.msra.mxu0 0
        %1053 = vmatprep.subr.bf16.mxu0 0
        %1054 = vmatpush1.bf16.msra.mxu0 0
        %1055 = vmatprep.mubr.bf16.mxu0 0
        %1056 = vmatmul.mubr.bf16.gmra.mrb[0].mxu0 %v1015
        %v1057 = vpop.f32.mrb[0].mxu0
        %v1058 = vadd.f32 %v1008, %v1057
        %v1059 = vpop.f32.mrb[0].mxu0
        %v1060 = vadd.f32 %v1010, %v1059
        %v1061 = vpop.f32.mrb[0].mxu0
        %v1062 = vpop.f32.mrb[0].mxu0
        %1063 = vdwg.mxu0
        %1064 = vrot.lane.b32.xlu0 %v679, 127
        %v1065 = vpop.permute.xlu0 %1064
        %1066 = vrot.lane.b32.xlu0 %v681, 127
        %v1067 = vpop.permute.xlu0 %1066
        %1068 = vrot.lane.b32.xlu0 %v680, 127
        %v1069 = vpop.permute.xlu0 %1068
        %1070 = vrot.lane.b32.xlu0 %v682, 127
        %v1071 = vpop.permute.xlu0 %1070
        %vm1072 = vcmp.lt.s32.totalorder %v607, 127
        %v1073 = vsel %vm1072, %v1065, %v1069
        %v1074 = vsel %vm1072, %v1067, %v1071
        %v1075 = vsel %vm1072, %v1069, %v1065
        %v1076 = vsel %vm1072, %v1071, %v1067
        %v1077 = vadd.s32 %v609, 1
        %v1078 = vadd.s32 %v610, 1
        %vm1079 = vcmp.ge.s32.totalorder %v1077, 0
        %vm1080 = vcmp.ge.s32.totalorder %v1078, 0
        %vm1081 = vmand %vm945, %vm1079
        %vm1082 = vmand %vm946, %vm1080
        %vm1083 = vcmp.lt.s32.totalorder %v1077, 16
        %vm1084 = vcmp.lt.s32.totalorder %v1078, 16
        %vm1085 = vmand %vm1081, %vm1083
        %vm1086 = vmand %vm1082, %vm1084
        %v1087 = vsel %vm1085, 1, 0
        %v1088 = vsel %vm1086, 1, 0
        %vm1089 = vcmp.eq.s32.totalorder %v1087, 1
        %vm1090 = vcmp.eq.s32.totalorder %v1088, 1
        %v1091 = vsel %vm1089, %v1073, 0.0
        %v1092 = vsel %vm1090, %v1075, 0.0
        %v1093 = vsel %vm1089, %v1074, 0.0
        %v1094 = vsel %vm1090, %v1076, 0.0
        %v1095 = vpack.c.bf16 %v1093, %v1091
        %v1096 = vpack.c.bf16 %v1094, %v1092
        %s1097 = scalar_lea.vmem %s5, 8
        %v1098 = vld [vmem:[%s1097] sm:$0xf]
        %v1100 = vsel %vm727, %v1098, 0
        %v1103 = vsel %vm731, %v1095, 0
        %v1106 = vsel %vm731, %v1096, 0
        %1108 = vmatprep.subr.bf16.mxu0 %v1106
        %1109 = vmatpush1.bf16.msra.mxu0 %v1103
        %1110 = vmatprep.subr.bf16.mxu0 0
        %1111 = vmatpush1.bf16.msra.mxu0 0
        %1112 = vmatprep.subr.bf16.mxu0 0
        %1113 = vmatpush1.bf16.msra.mxu0 0
        %1114 = vmatprep.subr.bf16.mxu0 0
        %1115 = vmatpush1.bf16.msra.mxu0 0
        %1116 = vmatprep.subr.bf16.mxu0 0
        %1117 = vmatpush1.bf16.msra.mxu0 0
        %1118 = vmatprep.subr.bf16.mxu0 0
        %1119 = vmatpush1.bf16.msra.mxu0 0
        %1120 = vmatprep.subr.bf16.mxu0 0
        %1121 = vmatpush1.bf16.msra.mxu0 0
        %1122 = vmatprep.subr.bf16.mxu0 0
        %1123 = vmatpush1.bf16.msra.mxu0 0
        %1124 = vmatprep.subr.bf16.mxu0 0
        %1125 = vmatpush1.bf16.msra.mxu0 0
        %1126 = vmatprep.subr.bf16.mxu0 0
        %1127 = vmatpush1.bf16.msra.mxu0 0
        %1128 = vmatprep.subr.bf16.mxu0 0
        %1129 = vmatpush1.bf16.msra.mxu0 0
        %1130 = vmatprep.subr.bf16.mxu0 0
        %1131 = vmatpush1.bf16.msra.mxu0 0
        %1132 = vmatprep.subr.bf16.mxu0 0
        %1133 = vmatpush1.bf16.msra.mxu0 0
        %1134 = vmatprep.subr.bf16.mxu0 0
        %1135 = vmatpush1.bf16.msra.mxu0 0
        %1136 = vmatprep.subr.bf16.mxu0 0
        %1137 = vmatpush1.bf16.msra.mxu0 0
        %1138 = vmatprep.subr.bf16.mxu0 0
        %1139 = vmatpush1.bf16.msra.mxu0 0
        %1140 = vmatprep.mubr.bf16.mxu0 0
        %1141 = vmatmul.mubr.bf16.gmra.mrb[0].mxu0 %v1100
        %v1142 = vpop.f32.mrb[0].mxu0
        %v1143 = vadd.f32 0.0, %v1142
        %v1144 = vpop.f32.mrb[0].mxu0
        %v1145 = vadd.f32 0.0, %v1144
        %v1146 = vpop.f32.mrb[0].mxu0
        %v1147 = vpop.f32.mrb[0].mxu0
        %1148 = vdwg.mxu0
        %v1149 = vadd.f32 %v1058, %v1143
        %v1150 = vadd.f32 %v1060, %v1145
        %v1151 = vld [vmem:[%s6] sm:$0x7f]
        %1153 = vset.pattern.permute.xlu0 0
        %1154 = vperm.xlu0 %1153, %v1151
        %v1155 = vpop.permute.xlu0 %1154
        %v1157 = vadd.f32 %v1149, %v1155
        %v1158 = vadd.f32 %v1150, %v1155
        %v1159 = vmax.f32 %v1157, 0.0
        %v1160 = vmax.f32 %v1158, 0.0
        %1161 = vrot.lane.b32.xlu0 %v1159, 16
        %v1162 = vpop.permute.xlu0 %1161
        %1163 = vrot.lane.b32.xlu0 %v1160, 16
        %v1164 = vpop.permute.xlu0 %1163
        %v1165 = vsel %vm691, %v1162, %v1164
        %v1166 = vsel %vm691, %v1164, %v1162
        %v1167 = vsel %vm714, %v1166, 0.0
        %v1168 = vsel %vm715, %v1165, 0.0
        %v1169 = vpack.c.bf16 %v1167, %v1167
        %v1170 = vpack.c.bf16 %v1168, %v1168
        %v1171 = vld [vmem:[%s7] sm:$0x3]
        %v1172 = vpack.c.bf16 %v1159, %v1159
        %v1173 = vpack.c.bf16 %v1160, %v1160
        %s1174 = scalar_lea.vmem %s7, 2
        %v1175 = vld [vmem:[%s1174] sm:$0x3]
        %vm1176 = vcmask 56320
        %v1178 = vsel %vm1176, %v1175, 0
        %vm1180 = vcmask 1042432
        %vm1181 = vcmask 1043456
        %v1182 = vsel %vm1180, 4294967295, 65535
        %v1183 = vsel %vm1181, %v1182, 0
        %v1185 = vand.u32 %v1172, %v1183
        %v1188 = vand.u32 %v1173, %v1183
        %1190 = vmatprep.subr.bf16.mxu0 %v1188
        %1191 = vmatpush1.bf16.msra.mxu0 %v1185
        %1192 = vmatprep.subr.bf16.mxu0 0
        %1193 = vmatpush1.bf16.msra.mxu0 0
        %1194 = vmatprep.subr.bf16.mxu0 0
        %1195 = vmatpush1.bf16.msra.mxu0 0
        %1196 = vmatprep.subr.bf16.mxu0 0
        %1197 = vmatpush1.bf16.msra.mxu0 0
        %1198 = vmatprep.subr.bf16.mxu0 0
        %1199 = vmatpush1.bf16.msra.mxu0 0
        %1200 = vmatprep.subr.bf16.mxu0 0
        %1201 = vmatpush1.bf16.msra.mxu0 0
        %1202 = vmatprep.subr.bf16.mxu0 0
        %1203 = vmatpush1.bf16.msra.mxu0 0
        %1204 = vmatprep.subr.bf16.mxu0 0
        %1205 = vmatpush1.bf16.msra.mxu0 0
        %1206 = vmatprep.subr.bf16.mxu0 0
        %1207 = vmatpush1.bf16.msra.mxu0 0
        %1208 = vmatprep.subr.bf16.mxu0 0
        %1209 = vmatpush1.bf16.msra.mxu0 0
        %1210 = vmatprep.subr.bf16.mxu0 0
        %1211 = vmatpush1.bf16.msra.mxu0 0
        %1212 = vmatprep.subr.bf16.mxu0 0
        %1213 = vmatpush1.bf16.msra.mxu0 0
        %1214 = vmatprep.subr.bf16.mxu0 0
        %1215 = vmatpush1.bf16.msra.mxu0 0
        %1216 = vmatprep.subr.bf16.mxu0 0
        %1217 = vmatpush1.bf16.msra.mxu0 0
        %1218 = vmatprep.subr.bf16.mxu0 0
        %1219 = vmatpush1.bf16.msra.mxu0 0
        %1220 = vmatprep.subr.bf16.mxu0 0
        %1221 = vmatpush1.bf16.msra.mxu0 0
        %1222 = vmatprep.mubr.bf16.mxu0 0
        %1223 = vmatmul.mubr.bf16.gmra.mrb[0].mxu0 %v1178
        %v1224 = vpop.f32.mrb[0].mxu0
        %v1225 = vadd.f32 0.0, %v1224
        %v1226 = vpop.f32.mrb[0].mxu0
        %v1227 = vadd.f32 0.0, %v1226
        %v1228 = vpop.f32.mrb[0].mxu0
        %v1229 = vpop.f32.mrb[0].mxu0
        %1230 = vdwg.mxu0
        %v1232 = vsel %vm1176, %v1171, 0
        %v1235 = vand.u32 %v1169, %v1183
        %v1238 = vand.u32 %v1170, %v1183
        %1240 = vmatprep.subr.bf16.mxu0 %v1238
        %1241 = vmatpush1.bf16.msra.mxu0 %v1235
        %1242 = vmatprep.subr.bf16.mxu0 0
        %1243 = vmatpush1.bf16.msra.mxu0 0
        %1244 = vmatprep.subr.bf16.mxu0 0
        %1245 = vmatpush1.bf16.msra.mxu0 0
        %1246 = vmatprep.subr.bf16.mxu0 0
        %1247 = vmatpush1.bf16.msra.mxu0 0
        %1248 = vmatprep.subr.bf16.mxu0 0
        %1249 = vmatpush1.bf16.msra.mxu0 0
        %1250 = vmatprep.subr.bf16.mxu0 0
        %1251 = vmatpush1.bf16.msra.mxu0 0
        %1252 = vmatprep.subr.bf16.mxu0 0
        %1253 = vmatpush1.bf16.msra.mxu0 0
        %1254 = vmatprep.subr.bf16.mxu0 0
        %1255 = vmatpush1.bf16.msra.mxu0 0
        %1256 = vmatprep.subr.bf16.mxu0 0
        %1257 = vmatpush1.bf16.msra.mxu0 0
        %1258 = vmatprep.subr.bf16.mxu0 0
        %1259 = vmatpush1.bf16.msra.mxu0 0
        %1260 = vmatprep.subr.bf16.mxu0 0
        %1261 = vmatpush1.bf16.msra.mxu0 0
        %1262 = vmatprep.subr.bf16.mxu0 0
        %1263 = vmatpush1.bf16.msra.mxu0 0
        %1264 = vmatprep.subr.bf16.mxu0 0
        %1265 = vmatpush1.bf16.msra.mxu0 0
        %1266 = vmatprep.subr.bf16.mxu0 0
        %1267 = vmatpush1.bf16.msra.mxu0 0
        %1268 = vmatprep.subr.bf16.mxu0 0
        %1269 = vmatpush1.bf16.msra.mxu0 0
        %1270 = vmatprep.subr.bf16.mxu0 0
        %1271 = vmatpush1.bf16.msra.mxu0 0
        %1272 = vmatprep.mubr.bf16.mxu0 0
        %1273 = vmatmul.mubr.bf16.gmra.mrb[0].mxu0 %v1232
        %v1274 = vpop.f32.mrb[0].mxu0
        %v1275 = vadd.f32 %v1225, %v1274
        %v1276 = vpop.f32.mrb[0].mxu0
        %v1277 = vadd.f32 %v1227, %v1276
        %v1278 = vpop.f32.mrb[0].mxu0
        %v1279 = vpop.f32.mrb[0].mxu0
        %1280 = vdwg.mxu0
        %1281 = vrot.lane.b32.xlu0 %v1159, 112
        %v1282 = vpop.permute.xlu0 %1281
        %1283 = vrot.lane.b32.xlu0 %v1160, 112
        %v1284 = vpop.permute.xlu0 %1283
        %v1285 = vsel %vm837, %v1282, %v1284
        %v1286 = vsel %vm837, %v1284, %v1282
        %v1287 = vsel %vm856, %v1285, 0.0
        %v1288 = vsel %vm857, %v1286, 0.0
        %v1289 = vpack.c.bf16 %v1287, %v1287
        %v1290 = vpack.c.bf16 %v1288, %v1288
        %s1291 = scalar_lea.vmem %s7, 4
        %v1292 = vld [vmem:[%s1291] sm:$0x3]
        %v1294 = vsel %vm1176, %v1292, 0
        %v1297 = vand.u32 %v1289, %v1183
        %v1300 = vand.u32 %v1290, %v1183
        %1302 = vmatprep.subr.bf16.mxu0 %v1300
        %1303 = vmatpush1.bf16.msra.mxu0 %v1297
        %1304 = vmatprep.subr.bf16.mxu0 0
        %1305 = vmatpush1.bf16.msra.mxu0 0
        %1306 = vmatprep.subr.bf16.mxu0 0
        %1307 = vmatpush1.bf16.msra.mxu0 0
        %1308 = vmatprep.subr.bf16.mxu0 0
        %1309 = vmatpush1.bf16.msra.mxu0 0
        %1310 = vmatprep.subr.bf16.mxu0 0
        %1311 = vmatpush1.bf16.msra.mxu0 0
        %1312 = vmatprep.subr.bf16.mxu0 0
        %1313 = vmatpush1.bf16.msra.mxu0 0
        %1314 = vmatprep.subr.bf16.mxu0 0
        %1315 = vmatpush1.bf16.msra.mxu0 0
        %1316 = vmatprep.subr.bf16.mxu0 0
        %1317 = vmatpush1.bf16.msra.mxu0 0
        %1318 = vmatprep.subr.bf16.mxu0 0
        %1319 = vmatpush1.bf16.msra.mxu0 0
        %1320 = vmatprep.subr.bf16.mxu0 0
        %1321 = vmatpush1.bf16.msra.mxu0 0
        %1322 = vmatprep.subr.bf16.mxu0 0
        %1323 = vmatpush1.bf16.msra.mxu0 0
        %1324 = vmatprep.subr.bf16.mxu0 0
        %1325 = vmatpush1.bf16.msra.mxu0 0
        %1326 = vmatprep.subr.bf16.mxu0 0
        %1327 = vmatpush1.bf16.msra.mxu0 0
        %1328 = vmatprep.subr.bf16.mxu0 0
        %1329 = vmatpush1.bf16.msra.mxu0 0
        %1330 = vmatprep.subr.bf16.mxu0 0
        %1331 = vmatpush1.bf16.msra.mxu0 0
        %1332 = vmatprep.subr.bf16.mxu0 0
        %1333 = vmatpush1.bf16.msra.mxu0 0
        %1334 = vmatprep.mubr.bf16.mxu0 0
        %1335 = vmatmul.mubr.bf16.gmra.mrb[0].mxu0 %v1294
        %v1336 = vpop.f32.mrb[0].mxu0
        %v1337 = vadd.f32 0.0, %v1336
        %v1338 = vpop.f32.mrb[0].mxu0
        %v1339 = vadd.f32 0.0, %v1338
        %v1340 = vpop.f32.mrb[0].mxu0
        %v1341 = vpop.f32.mrb[0].mxu0
        %1342 = vdwg.mxu0
        %v1343 = vadd.f32 %v1275, %v1337
        %v1344 = vadd.f32 %v1277, %v1339
        %v1345 = vld [vmem:[%s8] sm:$0xf]
        %1347 = vset.pattern.permute.xlu0 0
        %1348 = vperm.xlu0 %1347, %v1345
        %v1349 = vpop.permute.xlu0 %1348
        %v1351 = vadd.f32 %v1343, %v1349
        %v1352 = vadd.f32 %v1344, %v1349
        %v1353 = vmax.f32 %v1351, 0.0
        %v1354 = vmax.f32 %v1352, 0.0
        %1355 = vrot.lane.b32.xlu0 %v679, 17
        %v1356 = vpop.permute.xlu0 %1355
        %1357 = vrot.lane.b32.xlu0 %v681, 17
        %v1358 = vpop.permute.xlu0 %1357
        %1359 = vrot.lane.b32.xlu0 %v680, 17
        %v1360 = vpop.permute.xlu0 %1359
        %1361 = vrot.lane.b32.xlu0 %v682, 17
        %v1362 = vpop.permute.xlu0 %1361
        %vm1363 = vcmp.lt.s32.totalorder %v607, 17
        %v1364 = vsel %vm1363, %v1356, %v1360
        %v1365 = vsel %vm1363, %v1358, %v1362
        %v1366 = vsel %vm1363, %v1360, %v1356
        %v1367 = vsel %vm1363, %v1362, %v1358
        %vm1368 = vmand %vm702, %vm949
        %vm1369 = vmand %vm703, %vm950
        %vm1370 = vmand %vm1368, %vm953
        %vm1371 = vmand %vm1369, %vm954
        %v1372 = vsel %vm1370, 1, 0
        %v1373 = vsel %vm1371, 1, 0
        %vm1374 = vcmp.eq.s32.totalorder %v1372, 1
        %vm1375 = vcmp.eq.s32.totalorder %v1373, 1
        %v1376 = vsel %vm1374, %v1366, 0.0
        %v1377 = vsel %vm1375, %v1364, 0.0
        %v1378 = vsel %vm1374, %v1367, 0.0
        %v1379 = vsel %vm1375, %v1365, 0.0
        %v1380 = vpack.c.bf16 %v1378, %v1376
        %v1381 = vpack.c.bf16 %v1379, %v1377
        %v1382 = vld [vmem:[%s9] sm:$0x3]
        %s1383 = scalar_lea.vmem %s9, 2
        %v1384 = vld [vmem:[%s1383] sm:$0x3]
        %v1386 = vsel %vm727, %v1384, 0
        %1388 = vmatprep.subr.bf16.mxu0 %v786
        %1389 = vmatpush1.bf16.msra.mxu0 %v783
        %1390 = vmatprep.subr.bf16.mxu0 0
        %1391 = vmatpush1.bf16.msra.mxu0 0
        %1392 = vmatprep.subr.bf16.mxu0 0
        %1393 = vmatpush1.bf16.msra.mxu0 0
        %1394 = vmatprep.subr.bf16.mxu0 0
        %1395 = vmatpush1.bf16.msra.mxu0 0
        %1396 = vmatprep.subr.bf16.mxu0 0
        %1397 = vmatpush1.bf16.msra.mxu0 0
        %1398 = vmatprep.subr.bf16.mxu0 0
        %1399 = vmatpush1.bf16.msra.mxu0 0
        %1400 = vmatprep.subr.bf16.mxu0 0
        %1401 = vmatpush1.bf16.msra.mxu0 0
        %1402 = vmatprep.subr.bf16.mxu0 0
        %1403 = vmatpush1.bf16.msra.mxu0 0
        %1404 = vmatprep.subr.bf16.mxu0 0
        %1405 = vmatpush1.bf16.msra.mxu0 0
        %1406 = vmatprep.subr.bf16.mxu0 0
        %1407 = vmatpush1.bf16.msra.mxu0 0
        %1408 = vmatprep.subr.bf16.mxu0 0
        %1409 = vmatpush1.bf16.msra.mxu0 0
        %1410 = vmatprep.subr.bf16.mxu0 0
        %1411 = vmatpush1.bf16.msra.mxu0 0
        %1412 = vmatprep.subr.bf16.mxu0 0
        %1413 = vmatpush1.bf16.msra.mxu0 0
        %1414 = vmatprep.subr.bf16.mxu0 0
        %1415 = vmatpush1.bf16.msra.mxu0 0
        %1416 = vmatprep.subr.bf16.mxu0 0
        %1417 = vmatpush1.bf16.msra.mxu0 0
        %1418 = vmatprep.subr.bf16.mxu0 0
        %1419 = vmatpush1.bf16.msra.mxu0 0
        %1420 = vmatprep.mubr.bf16.mxu0 0
        %1421 = vmatmul.mubr.bf16.gmra.mrb[0].mxu0 %v1386
        %v1422 = vpop.f32.mrb[0].mxu0
        %v1423 = vadd.f32 0.0, %v1422
        %v1424 = vpop.f32.mrb[0].mxu0
        %v1425 = vadd.f32 0.0, %v1424
        %v1426 = vpop.f32.mrb[0].mxu0
        %v1427 = vpop.f32.mrb[0].mxu0
        %1428 = vdwg.mxu0
        %v1430 = vsel %vm727, %v1382, 0
        %v1433 = vsel %vm731, %v1380, 0
        %v1436 = vsel %vm731, %v1381, 0
        %1438 = vmatprep.subr.bf16.mxu0 %v1436
        %1439 = vmatpush1.bf16.msra.mxu0 %v1433
        %1440 = vmatprep.subr.bf16.mxu0 0
        %1441 = vmatpush1.bf16.msra.mxu0 0
        %1442 = vmatprep.subr.bf16.mxu0 0
        %1443 = vmatpush1.bf16.msra.mxu0 0
        %1444 = vmatprep.subr.bf16.mxu0 0
        %1445 = vmatpush1.bf16.msra.mxu0 0
        %1446 = vmatprep.subr.bf16.mxu0 0
        %1447 = vmatpush1.bf16.msra.mxu0 0
        %1448 = vmatprep.subr.bf16.mxu0 0
        %1449 = vmatpush1.bf16.msra.mxu0 0
        %1450 = vmatprep.subr.bf16.mxu0 0
        %1451 = vmatpush1.bf16.msra.mxu0 0
        %1452 = vmatprep.subr.bf16.mxu0 0
        %1453 = vmatpush1.bf16.msra.mxu0 0
        %1454 = vmatprep.subr.bf16.mxu0 0
        %1455 = vmatpush1.bf16.msra.mxu0 0
        %1456 = vmatprep.subr.bf16.mxu0 0
        %1457 = vmatpush1.bf16.msra.mxu0 0
        %1458 = vmatprep.subr.bf16.mxu0 0
        %1459 = vmatpush1.bf16.msra.mxu0 0
        %1460 = vmatprep.subr.bf16.mxu0 0
        %1461 = vmatpush1.bf16.msra.mxu0 0
        %1462 = vmatprep.subr.bf16.mxu0 0
        %1463 = vmatpush1.bf16.msra.mxu0 0
        %1464 = vmatprep.subr.bf16.mxu0 0
        %1465 = vmatpush1.bf16.msra.mxu0 0
        %1466 = vmatprep.subr.bf16.mxu0 0
        %1467 = vmatpush1.bf16.msra.mxu0 0
        %1468 = vmatprep.subr.bf16.mxu0 0
        %1469 = vmatpush1.bf16.msra.mxu0 0
        %1470 = vmatprep.mubr.bf16.mxu0 0
        %1471 = vmatmul.mubr.bf16.gmra.mrb[0].mxu0 %v1430
        %v1472 = vpop.f32.mrb[0].mxu0
        %v1473 = vadd.f32 %v1423, %v1472
        %v1474 = vpop.f32.mrb[0].mxu0
        %v1475 = vadd.f32 %v1425, %v1474
        %v1476 = vpop.f32.mrb[0].mxu0
        %v1477 = vpop.f32.mrb[0].mxu0
        %1478 = vdwg.mxu0
        %1479 = vrot.lane.b32.xlu0 %v679, 15
        %v1480 = vpop.permute.xlu0 %1479
        %1481 = vrot.lane.b32.xlu0 %v681, 15
        %v1482 = vpop.permute.xlu0 %1481
        %1483 = vrot.lane.b32.xlu0 %v680, 15
        %v1484 = vpop.permute.xlu0 %1483
        %1485 = vrot.lane.b32.xlu0 %v682, 15
        %v1486 = vpop.permute.xlu0 %1485
        %vm1487 = vcmp.lt.s32.totalorder %v607, 15
        %v1488 = vsel %vm1487, %v1480, %v1484
        %v1489 = vsel %vm1487, %v1482, %v1486
        %v1490 = vsel %vm1487, %v1484, %v1480
        %v1491 = vsel %vm1487, %v1486, %v1482
        %vm1492 = vmand %vm702, %vm1079
        %vm1493 = vmand %vm703, %vm1080
        %vm1494 = vmand %vm1492, %vm1083
        %vm1495 = vmand %vm1493, %vm1084
        %v1496 = vsel %vm1494, 1, 0
        %v1497 = vsel %vm1495, 1, 0
        %vm1498 = vcmp.eq.s32.totalorder %v1496, 1
        %vm1499 = vcmp.eq.s32.totalorder %v1497, 1
        %v1500 = vsel %vm1498, %v1490, 0.0
        %v1501 = vsel %vm1499, %v1488, 0.0
        %v1502 = vsel %vm1498, %v1491, 0.0
        %v1503 = vsel %vm1499, %v1489, 0.0
        %v1504 = vpack.c.bf16 %v1502, %v1500
        %v1505 = vpack.c.bf16 %v1503, %v1501
        %s1506 = scalar_lea.vmem %s9, 4
        %v1507 = vld [vmem:[%s1506] sm:$0x3]
        %v1509 = vsel %vm727, %v1507, 0
        %v1512 = vsel %vm731, %v1504, 0
        %v1515 = vsel %vm731, %v1505, 0
        %1517 = vmatprep.subr.bf16.mxu0 %v1515
        %1518 = vmatpush1.bf16.msra.mxu0 %v1512
        %1519 = vmatprep.subr.bf16.mxu0 0
        %1520 = vmatpush1.bf16.msra.mxu0 0
        %1521 = vmatprep.subr.bf16.mxu0 0
        %1522 = vmatpush1.bf16.msra.mxu0 0
        %1523 = vmatprep.subr.bf16.mxu0 0
        %1524 = vmatpush1.bf16.msra.mxu0 0
        %1525 = vmatprep.subr.bf16.mxu0 0
        %1526 = vmatpush1.bf16.msra.mxu0 0
        %1527 = vmatprep.subr.bf16.mxu0 0
        %1528 = vmatpush1.bf16.msra.mxu0 0
        %1529 = vmatprep.subr.bf16.mxu0 0
        %1530 = vmatpush1.bf16.msra.mxu0 0
        %1531 = vmatprep.subr.bf16.mxu0 0
        %1532 = vmatpush1.bf16.msra.mxu0 0
        %1533 = vmatprep.subr.bf16.mxu0 0
        %1534 = vmatpush1.bf16.msra.mxu0 0
        %1535 = vmatprep.subr.bf16.mxu0 0
        %1536 = vmatpush1.bf16.msra.mxu0 0
        %1537 = vmatprep.subr.bf16.mxu0 0
        %1538 = vmatpush1.bf16.msra.mxu0 0
        %1539 = vmatprep.subr.bf16.mxu0 0
        %1540 = vmatpush1.bf16.msra.mxu0 0
        %1541 = vmatprep.subr.bf16.mxu0 0
        %1542 = vmatpush1.bf16.msra.mxu0 0
        %1543 = vmatprep.subr.bf16.mxu0 0
        %1544 = vmatpush1.bf16.msra.mxu0 0
        %1545 = vmatprep.subr.bf16.mxu0 0
        %1546 = vmatpush1.bf16.msra.mxu0 0
        %1547 = vmatprep.subr.bf16.mxu0 0
        %1548 = vmatpush1.bf16.msra.mxu0 0
        %1549 = vmatprep.mubr.bf16.mxu0 0
        %1550 = vmatmul.mubr.bf16.gmra.mrb[0].mxu0 %v1509
        %v1551 = vpop.f32.mrb[0].mxu0
        %v1552 = vadd.f32 0.0, %v1551
        %v1553 = vpop.f32.mrb[0].mxu0
        %v1554 = vadd.f32 0.0, %v1553
        %v1555 = vpop.f32.mrb[0].mxu0
        %v1556 = vpop.f32.mrb[0].mxu0
        %1557 = vdwg.mxu0
        %v1558 = vadd.f32 %v1473, %v1552
        %v1559 = vadd.f32 %v1475, %v1554
        %s1560 = scalar_lea.vmem %s9, 6
        %v1561 = vld [vmem:[%s1560] sm:$0x3]
        %v1563 = vsel %vm727, %v1561, 0
        %1565 = vmatprep.subr.bf16.mxu0 %v1021
        %1566 = vmatpush1.bf16.msra.mxu0 %v1018
        %1567 = vmatprep.subr.bf16.mxu0 0
        %1568 = vmatpush1.bf16.msra.mxu0 0
        %1569 = vmatprep.subr.bf16.mxu0 0
        %1570 = vmatpush1.bf16.msra.mxu0 0
        %1571 = vmatprep.subr.bf16.mxu0 0
        %1572 = vmatpush1.bf16.msra.mxu0 0
        %1573 = vmatprep.subr.bf16.mxu0 0
        %1574 = vmatpush1.bf16.msra.mxu0 0
        %1575 = vmatprep.subr.bf16.mxu0 0
        %1576 = vmatpush1.bf16.msra.mxu0 0
        %1577 = vmatprep.subr.bf16.mxu0 0
        %1578 = vmatpush1.bf16.msra.mxu0 0
        %1579 = vmatprep.subr.bf16.mxu0 0
        %1580 = vmatpush1.bf16.msra.mxu0 0
        %1581 = vmatprep.subr.bf16.mxu0 0
        %1582 = vmatpush1.bf16.msra.mxu0 0
        %1583 = vmatprep.subr.bf16.mxu0 0
        %1584 = vmatpush1.bf16.msra.mxu0 0
        %1585 = vmatprep.subr.bf16.mxu0 0
        %1586 = vmatpush1.bf16.msra.mxu0 0
        %1587 = vmatprep.subr.bf16.mxu0 0
        %1588 = vmatpush1.bf16.msra.mxu0 0
        %1589 = vmatprep.subr.bf16.mxu0 0
        %1590 = vmatpush1.bf16.msra.mxu0 0
        %1591 = vmatprep.subr.bf16.mxu0 0
        %1592 = vmatpush1.bf16.msra.mxu0 0
        %1593 = vmatprep.subr.bf16.mxu0 0
        %1594 = vmatpush1.bf16.msra.mxu0 0
        %1595 = vmatprep.subr.bf16.mxu0 0
        %1596 = vmatpush1.bf16.msra.mxu0 0
        %1597 = vmatprep.mubr.bf16.mxu0 0
        %1598 = vmatmul.mubr.bf16.gmra.mrb[0].mxu0 %v1563
        %v1599 = vpop.f32.mrb[0].mxu0
        %v1600 = vadd.f32 0.0, %v1599
        %v1601 = vpop.f32.mrb[0].mxu0
        %v1602 = vadd.f32 0.0, %v1601
        %v1603 = vpop.f32.mrb[0].mxu0
        %v1604 = vpop.f32.mrb[0].mxu0
        %1605 = vdwg.mxu0
        %v1606 = vadd.f32 %v1558, %v1600
        %v1607 = vadd.f32 %v1559, %v1602
        %s1608 = scalar_lea.vmem %s9, 8
        %v1609 = vld [vmem:[%s1608] sm:$0x3]
        %v1611 = vsel %vm727, %v1609, 0
        %1613 = vmatprep.subr.bf16.mxu0 %v736
        %1614 = vmatpush1.bf16.msra.mxu0 %v733
        %1615 = vmatprep.subr.bf16.mxu0 0
        %1616 = vmatpush1.bf16.msra.mxu0 0
        %1617 = vmatprep.subr.bf16.mxu0 0
        %1618 = vmatpush1.bf16.msra.mxu0 0
        %1619 = vmatprep.subr.bf16.mxu0 0
        %1620 = vmatpush1.bf16.msra.mxu0 0
        %1621 = vmatprep.subr.bf16.mxu0 0
        %1622 = vmatpush1.bf16.msra.mxu0 0
        %1623 = vmatprep.subr.bf16.mxu0 0
        %1624 = vmatpush1.bf16.msra.mxu0 0
        %1625 = vmatprep.subr.bf16.mxu0 0
        %1626 = vmatpush1.bf16.msra.mxu0 0
        %1627 = vmatprep.subr.bf16.mxu0 0
        %1628 = vmatpush1.bf16.msra.mxu0 0
        %1629 = vmatprep.subr.bf16.mxu0 0
        %1630 = vmatpush1.bf16.msra.mxu0 0
        %1631 = vmatprep.subr.bf16.mxu0 0
        %1632 = vmatpush1.bf16.msra.mxu0 0
        %1633 = vmatprep.subr.bf16.mxu0 0
        %1634 = vmatpush1.bf16.msra.mxu0 0
        %1635 = vmatprep.subr.bf16.mxu0 0
        %1636 = vmatpush1.bf16.msra.mxu0 0
        %1637 = vmatprep.subr.bf16.mxu0 0
        %1638 = vmatpush1.bf16.msra.mxu0 0
        %1639 = vmatprep.subr.bf16.mxu0 0
        %1640 = vmatpush1.bf16.msra.mxu0 0
        %1641 = vmatprep.subr.bf16.mxu0 0
        %1642 = vmatpush1.bf16.msra.mxu0 0
        %1643 = vmatprep.subr.bf16.mxu0 0
        %1644 = vmatpush1.bf16.msra.mxu0 0
        %1645 = vmatprep.mubr.bf16.mxu0 0
        %1646 = vmatmul.mubr.bf16.gmra.mrb[0].mxu0 %v1611
        %v1647 = vpop.f32.mrb[0].mxu0
        %v1648 = vadd.f32 0.0, %v1647
        %v1649 = vpop.f32.mrb[0].mxu0
        %v1650 = vadd.f32 0.0, %v1649
        %v1651 = vpop.f32.mrb[0].mxu0
        %v1652 = vpop.f32.mrb[0].mxu0
        %1653 = vdwg.mxu0
        %v1654 = vadd.f32 %v1606, %v1648
        %v1655 = vadd.f32 %v1607, %v1650
        %s1656 = scalar_lea.vmem %s9, 10
        %v1657 = vld [vmem:[%s1656] sm:$0x3]
        %v1659 = vsel %vm727, %v1657, 0
        %1661 = vmatprep.subr.bf16.mxu0 %v1106
        %1662 = vmatpush1.bf16.msra.mxu0 %v1103
        %1663 = vmatprep.subr.bf16.mxu0 0
        %1664 = vmatpush1.bf16.msra.mxu0 0
        %1665 = vmatprep.subr.bf16.mxu0 0
        %1666 = vmatpush1.bf16.msra.mxu0 0
        %1667 = vmatprep.subr.bf16.mxu0 0
        %1668 = vmatpush1.bf16.msra.mxu0 0
        %1669 = vmatprep.subr.bf16.mxu0 0
        %1670 = vmatpush1.bf16.msra.mxu0 0
        %1671 = vmatprep.subr.bf16.mxu0 0
        %1672 = vmatpush1.bf16.msra.mxu0 0
        %1673 = vmatprep.subr.bf16.mxu0 0
        %1674 = vmatpush1.bf16.msra.mxu0 0
        %1675 = vmatprep.subr.bf16.mxu0 0
        %1676 = vmatpush1.bf16.msra.mxu0 0
        %1677 = vmatprep.subr.bf16.mxu0 0
        %1678 = vmatpush1.bf16.msra.mxu0 0
        %1679 = vmatprep.subr.bf16.mxu0 0
        %1680 = vmatpush1.bf16.msra.mxu0 0
        %1681 = vmatprep.subr.bf16.mxu0 0
        %1682 = vmatpush1.bf16.msra.mxu0 0
        %1683 = vmatprep.subr.bf16.mxu0 0
        %1684 = vmatpush1.bf16.msra.mxu0 0
        %1685 = vmatprep.subr.bf16.mxu0 0
        %1686 = vmatpush1.bf16.msra.mxu0 0
        %1687 = vmatprep.subr.bf16.mxu0 0
        %1688 = vmatpush1.bf16.msra.mxu0 0
        %1689 = vmatprep.subr.bf16.mxu0 0
        %1690 = vmatpush1.bf16.msra.mxu0 0
        %1691 = vmatprep.subr.bf16.mxu0 0
        %1692 = vmatpush1.bf16.msra.mxu0 0
        %1693 = vmatprep.mubr.bf16.mxu0 0
        %1694 = vmatmul.mubr.bf16.gmra.mrb[0].mxu0 %v1659
        %v1695 = vpop.f32.mrb[0].mxu0
        %v1696 = vadd.f32 0.0, %v1695
        %v1697 = vpop.f32.mrb[0].mxu0
        %v1698 = vadd.f32 0.0, %v1697
        %v1699 = vpop.f32.mrb[0].mxu0
        %v1700 = vpop.f32.mrb[0].mxu0
        %1701 = vdwg.mxu0
        %v1702 = vadd.f32 %v1654, %v1696
        %v1703 = vadd.f32 %v1655, %v1698
        %1704 = vrot.lane.b32.xlu0 %v679, 113
        %v1705 = vpop.permute.xlu0 %1704
        %1706 = vrot.lane.b32.xlu0 %v681, 113
        %v1707 = vpop.permute.xlu0 %1706
        %1708 = vrot.lane.b32.xlu0 %v680, 113
        %v1709 = vpop.permute.xlu0 %1708
        %1710 = vrot.lane.b32.xlu0 %v682, 113
        %v1711 = vpop.permute.xlu0 %1710
        %vm1712 = vcmp.lt.s32.totalorder %v607, 113
        %v1713 = vsel %vm1712, %v1705, %v1709
        %v1714 = vsel %vm1712, %v1707, %v1711
        %v1715 = vsel %vm1712, %v1709, %v1705
        %v1716 = vsel %vm1712, %v1711, %v1707
        %vm1717 = vmand %vm848, %vm949
        %vm1718 = vmand %vm849, %vm950
        %vm1719 = vmand %vm1717, %vm953
        %vm1720 = vmand %vm1718, %vm954
        %v1721 = vsel %vm1719, 1, 0
        %v1722 = vsel %vm1720, 1, 0
        %vm1723 = vcmp.eq.s32.totalorder %v1721, 1
        %vm1724 = vcmp.eq.s32.totalorder %v1722, 1
        %v1725 = vsel %vm1723, %v1713, 0.0
        %v1726 = vsel %vm1724, %v1715, 0.0
        %v1727 = vsel %vm1723, %v1714, 0.0
        %v1728 = vsel %vm1724, %v1716, 0.0
        %v1729 = vpack.c.bf16 %v1727, %v1725
        %v1730 = vpack.c.bf16 %v1728, %v1726
        %s1731 = scalar_lea.vmem %s9, 12
        %v1732 = vld [vmem:[%s1731] sm:$0x3]
        %v1734 = vsel %vm727, %v1732, 0
        %v1737 = vsel %vm731, %v1729, 0
        %v1740 = vsel %vm731, %v1730, 0
        %1742 = vmatprep.subr.bf16.mxu0 %v1740
        %1743 = vmatpush1.bf16.msra.mxu0 %v1737
        %1744 = vmatprep.subr.bf16.mxu0 0
        %1745 = vmatpush1.bf16.msra.mxu0 0
        %1746 = vmatprep.subr.bf16.mxu0 0
        %1747 = vmatpush1.bf16.msra.mxu0 0
        %1748 = vmatprep.subr.bf16.mxu0 0
        %1749 = vmatpush1.bf16.msra.mxu0 0
        %1750 = vmatprep.subr.bf16.mxu0 0
        %1751 = vmatpush1.bf16.msra.mxu0 0
        %1752 = vmatprep.subr.bf16.mxu0 0
        %1753 = vmatpush1.bf16.msra.mxu0 0
        %1754 = vmatprep.subr.bf16.mxu0 0
        %1755 = vmatpush1.bf16.msra.mxu0 0
        %1756 = vmatprep.subr.bf16.mxu0 0
        %1757 = vmatpush1.bf16.msra.mxu0 0
        %1758 = vmatprep.subr.bf16.mxu0 0
        %1759 = vmatpush1.bf16.msra.mxu0 0
        %1760 = vmatprep.subr.bf16.mxu0 0
        %1761 = vmatpush1.bf16.msra.mxu0 0
        %1762 = vmatprep.subr.bf16.mxu0 0
        %1763 = vmatpush1.bf16.msra.mxu0 0
        %1764 = vmatprep.subr.bf16.mxu0 0
        %1765 = vmatpush1.bf16.msra.mxu0 0
        %1766 = vmatprep.subr.bf16.mxu0 0
        %1767 = vmatpush1.bf16.msra.mxu0 0
        %1768 = vmatprep.subr.bf16.mxu0 0
        %1769 = vmatpush1.bf16.msra.mxu0 0
        %1770 = vmatprep.subr.bf16.mxu0 0
        %1771 = vmatpush1.bf16.msra.mxu0 0
        %1772 = vmatprep.subr.bf16.mxu0 0
        %1773 = vmatpush1.bf16.msra.mxu0 0
        %1774 = vmatprep.mubr.bf16.mxu0 0
        %1775 = vmatmul.mubr.bf16.gmra.mrb[0].mxu0 %v1734
        %v1776 = vpop.f32.mrb[0].mxu0
        %v1777 = vadd.f32 0.0, %v1776
        %v1778 = vpop.f32.mrb[0].mxu0
        %v1779 = vadd.f32 0.0, %v1778
        %v1780 = vpop.f32.mrb[0].mxu0
        %v1781 = vpop.f32.mrb[0].mxu0
        %1782 = vdwg.mxu0
        %v1783 = vadd.f32 %v1702, %v1777
        %v1784 = vadd.f32 %v1703, %v1779
        %s1785 = scalar_lea.vmem %s9, 14
        %v1786 = vld [vmem:[%s1785] sm:$0x3]
        %v1788 = vsel %vm727, %v1786, 0
        %1790 = vmatprep.subr.bf16.mxu0 %v873
        %1791 = vmatpush1.bf16.msra.mxu0 %v870
        %1792 = vmatprep.subr.bf16.mxu0 0
        %1793 = vmatpush1.bf16.msra.mxu0 0
        %1794 = vmatprep.subr.bf16.mxu0 0
        %1795 = vmatpush1.bf16.msra.mxu0 0
        %1796 = vmatprep.subr.bf16.mxu0 0
        %1797 = vmatpush1.bf16.msra.mxu0 0
        %1798 = vmatprep.subr.bf16.mxu0 0
        %1799 = vmatpush1.bf16.msra.mxu0 0
        %1800 = vmatprep.subr.bf16.mxu0 0
        %1801 = vmatpush1.bf16.msra.mxu0 0
        %1802 = vmatprep.subr.bf16.mxu0 0
        %1803 = vmatpush1.bf16.msra.mxu0 0
        %1804 = vmatprep.subr.bf16.mxu0 0
        %1805 = vmatpush1.bf16.msra.mxu0 0
        %1806 = vmatprep.subr.bf16.mxu0 0
        %1807 = vmatpush1.bf16.msra.mxu0 0
        %1808 = vmatprep.subr.bf16.mxu0 0
        %1809 = vmatpush1.bf16.msra.mxu0 0
        %1810 = vmatprep.subr.bf16.mxu0 0
        %1811 = vmatpush1.bf16.msra.mxu0 0
        %1812 = vmatprep.subr.bf16.mxu0 0
        %1813 = vmatpush1.bf16.msra.mxu0 0
        %1814 = vmatprep.subr.bf16.mxu0 0
        %1815 = vmatpush1.bf16.msra.mxu0 0
        %1816 = vmatprep.subr.bf16.mxu0 0
        %1817 = vmatpush1.bf16.msra.mxu0 0
        %1818 = vmatprep.subr.bf16.mxu0 0
        %1819 = vmatpush1.bf16.msra.mxu0 0
        %1820 = vmatprep.subr.bf16.mxu0 0
        %1821 = vmatpush1.bf16.msra.mxu0 0
        %1822 = vmatprep.mubr.bf16.mxu0 0
        %1823 = vmatmul.mubr.bf16.gmra.mrb[0].mxu0 %v1788
        %v1824 = vpop.f32.mrb[0].mxu0
        %v1825 = vadd.f32 0.0, %v1824
        %v1826 = vpop.f32.mrb[0].mxu0
        %v1827 = vadd.f32 0.0, %v1826
        %v1828 = vpop.f32.mrb[0].mxu0
        %v1829 = vpop.f32.mrb[0].mxu0
        %1830 = vdwg.mxu0
        %v1831 = vadd.f32 %v1783, %v1825
        %v1832 = vadd.f32 %v1784, %v1827
        %1833 = vrot.lane.b32.xlu0 %v679, 111
        %v1834 = vpop.permute.xlu0 %1833
        %1835 = vrot.lane.b32.xlu0 %v681, 111
        %v1836 = vpop.permute.xlu0 %1835
        %1837 = vrot.lane.b32.xlu0 %v680, 111
        %v1838 = vpop.permute.xlu0 %1837
        %1839 = vrot.lane.b32.xlu0 %v682, 111
        %v1840 = vpop.permute.xlu0 %1839
        %vm1841 = vcmp.lt.s32.totalorder %v607, 111
        %v1842 = vsel %vm1841, %v1834, %v1838
        %v1843 = vsel %vm1841, %v1836, %v1840
        %v1844 = vsel %vm1841, %v1838, %v1834
        %v1845 = vsel %vm1841, %v1840, %v1836
        %vm1846 = vmand %vm848, %vm1079
        %vm1847 = vmand %vm849, %vm1080
        %vm1848 = vmand %vm1846, %vm1083
        %vm1849 = vmand %vm1847, %vm1084
        %v1850 = vsel %vm1848, 1, 0
        %v1851 = vsel %vm1849, 1, 0
        %vm1852 = vcmp.eq.s32.totalorder %v1850, 1
        %vm1853 = vcmp.eq.s32.totalorder %v1851, 1
        %v1854 = vsel %vm1852, %v1842, 0.0
        %v1855 = vsel %vm1853, %v1844, 0.0
        %v1856 = vsel %vm1852, %v1843, 0.0
        %v1857 = vsel %vm1853, %v1845, 0.0
        %v1858 = vpack.c.bf16 %v1856, %v1854
        %v1859 = vpack.c.bf16 %v1857, %v1855
        %s1860 = scalar_lea.vmem %s9, 16
        %v1861 = vld [vmem:[%s1860] sm:$0x3]
        %v1863 = vsel %vm727, %v1861, 0
        %v1866 = vsel %vm731, %v1858, 0
        %v1869 = vsel %vm731, %v1859, 0
        %1871 = vmatprep.subr.bf16.mxu0 %v1869
        %1872 = vmatpush1.bf16.msra.mxu0 %v1866
        %1873 = vmatprep.subr.bf16.mxu0 0
        %1874 = vmatpush1.bf16.msra.mxu0 0
        %1875 = vmatprep.subr.bf16.mxu0 0
        %1876 = vmatpush1.bf16.msra.mxu0 0
        %1877 = vmatprep.subr.bf16.mxu0 0
        %1878 = vmatpush1.bf16.msra.mxu0 0
        %1879 = vmatprep.subr.bf16.mxu0 0
        %1880 = vmatpush1.bf16.msra.mxu0 0
        %1881 = vmatprep.subr.bf16.mxu0 0
        %1882 = vmatpush1.bf16.msra.mxu0 0
        %1883 = vmatprep.subr.bf16.mxu0 0
        %1884 = vmatpush1.bf16.msra.mxu0 0
        %1885 = vmatprep.subr.bf16.mxu0 0
        %1886 = vmatpush1.bf16.msra.mxu0 0
        %1887 = vmatprep.subr.bf16.mxu0 0
        %1888 = vmatpush1.bf16.msra.mxu0 0
        %1889 = vmatprep.subr.bf16.mxu0 0
        %1890 = vmatpush1.bf16.msra.mxu0 0
        %1891 = vmatprep.subr.bf16.mxu0 0
        %1892 = vmatpush1.bf16.msra.mxu0 0
        %1893 = vmatprep.subr.bf16.mxu0 0
        %1894 = vmatpush1.bf16.msra.mxu0 0
        %1895 = vmatprep.subr.bf16.mxu0 0
        %1896 = vmatpush1.bf16.msra.mxu0 0
        %1897 = vmatprep.subr.bf16.mxu0 0
        %1898 = vmatpush1.bf16.msra.mxu0 0
        %1899 = vmatprep.subr.bf16.mxu0 0
        %1900 = vmatpush1.bf16.msra.mxu0 0
        %1901 = vmatprep.subr.bf16.mxu0 0
        %1902 = vmatpush1.bf16.msra.mxu0 0
        %1903 = vmatprep.mubr.bf16.mxu0 0
        %1904 = vmatmul.mubr.bf16.gmra.mrb[0].mxu0 %v1863
        %v1905 = vpop.f32.mrb[0].mxu0
        %v1906 = vadd.f32 0.0, %v1905
        %v1907 = vpop.f32.mrb[0].mxu0
        %v1908 = vadd.f32 0.0, %v1907
        %v1909 = vpop.f32.mrb[0].mxu0
        %v1910 = vpop.f32.mrb[0].mxu0
        %1911 = vdwg.mxu0
        %v1912 = vadd.f32 %v1831, %v1906
        %v1913 = vadd.f32 %v1832, %v1908
        %v1914 = vld [vmem:[%s10] sm:$0xf]
        %1916 = vset.pattern.permute.xlu0 0
        %1917 = vperm.xlu0 %1916, %v1914
        %v1918 = vpop.permute.xlu0 %1917
        %v1920 = vadd.f32 %v1912, %v1918
        %v1921 = vadd.f32 %v1913, %v1918
        %1922 = vrot.lane.b32.xlu0 %v926, 51
        %v1923 = vpop.permute.xlu0 %1922
        %1924 = vrot.lane.b32.xlu0 %v927, 51
        %v1925 = vpop.permute.xlu0 %1924
        %vm1926 = vcmp.lt.s32.totalorder %v607, 51
        %v1927 = vsel %vm1926, %v1923, %v1925
        %v1928 = vsel %vm1926, %v1925, %v1923
        %v1929 = vadd.s32 %v607, 4294967248
        %v1930 = vadd.s32 %v608, 4294967248
        %vm1931 = vcmp.ge.s32.totalorder %v1929, 0
        %vm1932 = vcmp.ge.s32.totalorder %v1930, 0
        %vm1933 = vcmp.lt.s32.totalorder %v1929, 256
        %vm1934 = vcmp.lt.s32.totalorder %v1930, 256
        %vm1935 = vmand %vm1931, %vm1933
        %vm1936 = vmand %vm1932, %vm1934
        %v1937 = vadd.s32 %v609, 4294967293
        %v1938 = vadd.s32 %v610, 4294967293
        %vm1939 = vcmp.ge.s32.totalorder %v1937, 0
        %vm1940 = vcmp.ge.s32.totalorder %v1938, 0
        %vm1941 = vmand %vm1935, %vm1939
        %vm1942 = vmand %vm1936, %vm1940
        %vm1943 = vcmp.lt.s32.totalorder %v1937, 16
        %vm1944 = vcmp.lt.s32.totalorder %v1938, 16
        %vm1945 = vmand %vm1941, %vm1943
        %vm1946 = vmand %vm1942, %vm1944
        %v1947 = vsel %vm1945, 1, 0
        %v1948 = vsel %vm1946, 1, 0
        %vm1949 = vcmp.eq.s32.totalorder %v1947, 1
        %vm1950 = vcmp.eq.s32.totalorder %v1948, 1
        %v1951 = vsel %vm1949, %v1928, 0.0
        %v1952 = vsel %vm1950, %v1927, 0.0
        %v1953 = vpack.c.bf16 %v1951, %v1951
        %v1954 = vpack.c.bf16 %v1952, %v1952
        %v1955 = vld [vmem:[%s11] sm:$0x3]
        %1956 = vrot.lane.b32.xlu0 %v926, 48
        %v1957 = vpop.permute.xlu0 %1956
        %1958 = vrot.lane.b32.xlu0 %v927, 48
        %v1959 = vpop.permute.xlu0 %1958
        %vm1960 = vcmp.lt.s32.totalorder %v607, 48
        %v1961 = vsel %vm1960, %v1957, %v1959
        %v1962 = vsel %vm1960, %v1959, %v1957
        %vm1963 = vmand %vm1935, %vm704
        %vm1964 = vmand %vm1936, %vm705
        %vm1965 = vmand %vm1963, %vm708
        %vm1966 = vmand %vm1964, %vm709
        %v1967 = vsel %vm1965, 1, 0
        %v1968 = vsel %vm1966, 1, 0
        %vm1969 = vcmp.eq.s32.totalorder %v1967, 1
        %vm1970 = vcmp.eq.s32.totalorder %v1968, 1
        %v1971 = vsel %vm1969, %v1962, 0.0
        %v1972 = vsel %vm1970, %v1961, 0.0
        %v1973 = vpack.c.bf16 %v1971, %v1971
        %v1974 = vpack.c.bf16 %v1972, %v1972
        %s1975 = scalar_lea.vmem %s11, 2
        %v1976 = vld [vmem:[%s1975] sm:$0x3]
        %vm1977 = vcmask 31744
        %v1979 = vsel %vm1977, %v1976, 0
        %vm1981 = vcmask 1041408
        %v1983 = vsel %vm1981, %v1973, 0
        %v1986 = vsel %vm1981, %v1974, 0
        %1988 = vmatprep.subr.bf16.mxu0 %v1986
        %1989 = vmatpush1.bf16.msra.mxu0 %v1983
        %1990 = vmatprep.subr.bf16.mxu0 0
        %1991 = vmatpush1.bf16.msra.mxu0 0
        %1992 = vmatprep.subr.bf16.mxu0 0
        %1993 = vmatpush1.bf16.msra.mxu0 0
        %1994 = vmatprep.subr.bf16.mxu0 0
        %1995 = vmatpush1.bf16.msra.mxu0 0
        %1996 = vmatprep.subr.bf16.mxu0 0
        %1997 = vmatpush1.bf16.msra.mxu0 0
        %1998 = vmatprep.subr.bf16.mxu0 0
        %1999 = vmatpush1.bf16.msra.mxu0 0
        %2000 = vmatprep.subr.bf16.mxu0 0
        %2001 = vmatpush1.bf16.msra.mxu0 0
        %2002 = vmatprep.subr.bf16.mxu0 0
        %2003 = vmatpush1.bf16.msra.mxu0 0
        %2004 = vmatprep.subr.bf16.mxu0 0
        %2005 = vmatpush1.bf16.msra.mxu0 0
        %2006 = vmatprep.subr.bf16.mxu0 0
        %2007 = vmatpush1.bf16.msra.mxu0 0
        %2008 = vmatprep.subr.bf16.mxu0 0
        %2009 = vmatpush1.bf16.msra.mxu0 0
        %2010 = vmatprep.subr.bf16.mxu0 0
        %2011 = vmatpush1.bf16.msra.mxu0 0
        %2012 = vmatprep.subr.bf16.mxu0 0
        %2013 = vmatpush1.bf16.msra.mxu0 0
        %2014 = vmatprep.subr.bf16.mxu0 0
        %2015 = vmatpush1.bf16.msra.mxu0 0
        %2016 = vmatprep.subr.bf16.mxu0 0
        %2017 = vmatpush1.bf16.msra.mxu0 0
        %2018 = vmatprep.subr.bf16.mxu0 0
        %2019 = vmatpush1.bf16.msra.mxu0 0
        %2020 = vmatprep.mubr.bf16.mxu0 0
        %2021 = vmatmul.mubr.bf16.gmra.mrb[0].mxu0 %v1979
        %v2022 = vpop.f32.mrb[0].mxu0
        %v2023 = vadd.f32 0.0, %v2022
        %v2024 = vpop.f32.mrb[0].mxu0
        %v2025 = vadd.f32 0.0, %v2024
        %v2026 = vpop.f32.mrb[0].mxu0
        %v2027 = vpop.f32.mrb[0].mxu0
        %2028 = vdwg.mxu0
        %v2030 = vsel %vm1977, %v1955, 0
        %v2033 = vsel %vm1981, %v1953, 0
        %v2036 = vsel %vm1981, %v1954, 0
        %2038 = vmatprep.subr.bf16.mxu0 %v2036
        %2039 = vmatpush1.bf16.msra.mxu0 %v2033
        %2040 = vmatprep.subr.bf16.mxu0 0
        %2041 = vmatpush1.bf16.msra.mxu0 0
        %2042 = vmatprep.subr.bf16.mxu0 0
        %2043 = vmatpush1.bf16.msra.mxu0 0
        %2044 = vmatprep.subr.bf16.mxu0 0
        %2045 = vmatpush1.bf16.msra.mxu0 0
        %2046 = vmatprep.subr.bf16.mxu0 0
        %2047 = vmatpush1.bf16.msra.mxu0 0
        %2048 = vmatprep.subr.bf16.mxu0 0
        %2049 = vmatpush1.bf16.msra.mxu0 0
        %2050 = vmatprep.subr.bf16.mxu0 0
        %2051 = vmatpush1.bf16.msra.mxu0 0
        %2052 = vmatprep.subr.bf16.mxu0 0
        %2053 = vmatpush1.bf16.msra.mxu0 0
        %2054 = vmatprep.subr.bf16.mxu0 0
        %2055 = vmatpush1.bf16.msra.mxu0 0
        %2056 = vmatprep.subr.bf16.mxu0 0
        %2057 = vmatpush1.bf16.msra.mxu0 0
        %2058 = vmatprep.subr.bf16.mxu0 0
        %2059 = vmatpush1.bf16.msra.mxu0 0
        %2060 = vmatprep.subr.bf16.mxu0 0
        %2061 = vmatpush1.bf16.msra.mxu0 0
        %2062 = vmatprep.subr.bf16.mxu0 0
        %2063 = vmatpush1.bf16.msra.mxu0 0
        %2064 = vmatprep.subr.bf16.mxu0 0
        %2065 = vmatpush1.bf16.msra.mxu0 0
        %2066 = vmatprep.subr.bf16.mxu0 0
        %2067 = vmatpush1.bf16.msra.mxu0 0
        %2068 = vmatprep.subr.bf16.mxu0 0
        %2069 = vmatpush1.bf16.msra.mxu0 0
        %2070 = vmatprep.mubr.bf16.mxu0 0
        %2071 = vmatmul.mubr.bf16.gmra.mrb[0].mxu0 %v2030
        %v2072 = vpop.f32.mrb[0].mxu0
        %v2073 = vadd.f32 %v2023, %v2072
        %v2074 = vpop.f32.mrb[0].mxu0
        %v2075 = vadd.f32 %v2025, %v2074
        %v2076 = vpop.f32.mrb[0].mxu0
        %v2077 = vpop.f32.mrb[0].mxu0
        %2078 = vdwg.mxu0
        %2079 = vrot.lane.b32.xlu0 %v926, 45
        %v2080 = vpop.permute.xlu0 %2079
        %2081 = vrot.lane.b32.xlu0 %v927, 45
        %v2082 = vpop.permute.xlu0 %2081
        %vm2083 = vcmp.lt.s32.totalorder %v607, 45
        %v2084 = vsel %vm2083, %v2080, %v2082
        %v2085 = vsel %vm2083, %v2082, %v2080
        %v2086 = vadd.s32 %v609, 3
        %v2087 = vadd.s32 %v610, 3
        %vm2088 = vcmp.ge.s32.totalorder %v2086, 0
        %vm2089 = vcmp.ge.s32.totalorder %v2087, 0
        %vm2090 = vmand %vm1935, %vm2088
        %vm2091 = vmand %vm1936, %vm2089
        %vm2092 = vcmp.lt.s32.totalorder %v2086, 16
        %vm2093 = vcmp.lt.s32.totalorder %v2087, 16
        %vm2094 = vmand %vm2090, %vm2092
        %vm2095 = vmand %vm2091, %vm2093
        %v2096 = vsel %vm2094, 1, 0
        %v2097 = vsel %vm2095, 1, 0
        %vm2098 = vcmp.eq.s32.totalorder %v2096, 1
        %vm2099 = vcmp.eq.s32.totalorder %v2097, 1
        %v2100 = vsel %vm2098, %v2085, 0.0
        %v2101 = vsel %vm2099, %v2084, 0.0
        %v2102 = vpack.c.bf16 %v2100, %v2100
        %v2103 = vpack.c.bf16 %v2101, %v2101
        %s2104 = scalar_lea.vmem %s11, 4
        %v2105 = vld [vmem:[%s2104] sm:$0x3]
        %v2107 = vsel %vm1977, %v2105, 0
        %v2110 = vsel %vm1981, %v2102, 0
        %v2113 = vsel %vm1981, %v2103, 0
        %2115 = vmatprep.subr.bf16.mxu0 %v2113
        %2116 = vmatpush1.bf16.msra.mxu0 %v2110
        %2117 = vmatprep.subr.bf16.mxu0 0
        %2118 = vmatpush1.bf16.msra.mxu0 0
        %2119 = vmatprep.subr.bf16.mxu0 0
        %2120 = vmatpush1.bf16.msra.mxu0 0
        %2121 = vmatprep.subr.bf16.mxu0 0
        %2122 = vmatpush1.bf16.msra.mxu0 0
        %2123 = vmatprep.subr.bf16.mxu0 0
        %2124 = vmatpush1.bf16.msra.mxu0 0
        %2125 = vmatprep.subr.bf16.mxu0 0
        %2126 = vmatpush1.bf16.msra.mxu0 0
        %2127 = vmatprep.subr.bf16.mxu0 0
        %2128 = vmatpush1.bf16.msra.mxu0 0
        %2129 = vmatprep.subr.bf16.mxu0 0
        %2130 = vmatpush1.bf16.msra.mxu0 0
        %2131 = vmatprep.subr.bf16.mxu0 0
        %2132 = vmatpush1.bf16.msra.mxu0 0
        %2133 = vmatprep.subr.bf16.mxu0 0
        %2134 = vmatpush1.bf16.msra.mxu0 0
        %2135 = vmatprep.subr.bf16.mxu0 0
        %2136 = vmatpush1.bf16.msra.mxu0 0
        %2137 = vmatprep.subr.bf16.mxu0 0
        %2138 = vmatpush1.bf16.msra.mxu0 0
        %2139 = vmatprep.subr.bf16.mxu0 0
        %2140 = vmatpush1.bf16.msra.mxu0 0
        %2141 = vmatprep.subr.bf16.mxu0 0
        %2142 = vmatpush1.bf16.msra.mxu0 0
        %2143 = vmatprep.subr.bf16.mxu0 0
        %2144 = vmatpush1.bf16.msra.mxu0 0
        %2145 = vmatprep.subr.bf16.mxu0 0
        %2146 = vmatpush1.bf16.msra.mxu0 0
        %2147 = vmatprep.mubr.bf16.mxu0 0
        %2148 = vmatmul.mubr.bf16.gmra.mrb[0].mxu0 %v2107
        %v2149 = vpop.f32.mrb[0].mxu0
        %v2150 = vadd.f32 0.0, %v2149
        %v2151 = vpop.f32.mrb[0].mxu0
        %v2152 = vadd.f32 0.0, %v2151
        %v2153 = vpop.f32.mrb[0].mxu0
        %v2154 = vpop.f32.mrb[0].mxu0
        %2155 = vdwg.mxu0
        %v2156 = vadd.f32 %v2073, %v2150
        %v2157 = vadd.f32 %v2075, %v2152
        %2158 = vrot.lane.b32.xlu0 %v926, 3
        %v2159 = vpop.permute.xlu0 %2158
        %2160 = vrot.lane.b32.xlu0 %v927, 3
        %v2161 = vpop.permute.xlu0 %2160
        %vm2162 = vcmp.lt.s32.totalorder %v607, 3
        %v2163 = vsel %vm2162, %v2159, %v2161
        %v2164 = vsel %vm2162, %v2161, %v2159
        %vm2165 = vmand %vm945, %vm1939
        %vm2166 = vmand %vm946, %vm1940
        %vm2167 = vmand %vm2165, %vm1943
        %vm2168 = vmand %vm2166, %vm1944
        %v2169 = vsel %vm2167, 1, 0
        %v2170 = vsel %vm2168, 1, 0
        %vm2171 = vcmp.eq.s32.totalorder %v2169, 1
        %vm2172 = vcmp.eq.s32.totalorder %v2170, 1
        %v2173 = vsel %vm2171, %v2164, 0.0
        %v2174 = vsel %vm2172, %v2163, 0.0
        %v2175 = vpack.c.bf16 %v2173, %v2173
        %v2176 = vpack.c.bf16 %v2174, %v2174
        %s2177 = scalar_lea.vmem %s11, 6
        %v2178 = vld [vmem:[%s2177] sm:$0x3]
        %v2180 = vsel %vm1977, %v2178, 0
        %v2183 = vsel %vm1981, %v2175, 0
        %v2186 = vsel %vm1981, %v2176, 0
        %2188 = vmatprep.subr.bf16.mxu0 %v2186
        %2189 = vmatpush1.bf16.msra.mxu0 %v2183
        %2190 = vmatprep.subr.bf16.mxu0 0
        %2191 = vmatpush1.bf16.msra.mxu0 0
        %2192 = vmatprep.subr.bf16.mxu0 0
        %2193 = vmatpush1.bf16.msra.mxu0 0
        %2194 = vmatprep.subr.bf16.mxu0 0
        %2195 = vmatpush1.bf16.msra.mxu0 0
        %2196 = vmatprep.subr.bf16.mxu0 0
        %2197 = vmatpush1.bf16.msra.mxu0 0
        %2198 = vmatprep.subr.bf16.mxu0 0
        %2199 = vmatpush1.bf16.msra.mxu0 0
        %2200 = vmatprep.subr.bf16.mxu0 0
        %2201 = vmatpush1.bf16.msra.mxu0 0
        %2202 = vmatprep.subr.bf16.mxu0 0
        %2203 = vmatpush1.bf16.msra.mxu0 0
        %2204 = vmatprep.subr.bf16.mxu0 0
        %2205 = vmatpush1.bf16.msra.mxu0 0
        %2206 = vmatprep.subr.bf16.mxu0 0
        %2207 = vmatpush1.bf16.msra.mxu0 0
        %2208 = vmatprep.subr.bf16.mxu0 0
        %2209 = vmatpush1.bf16.msra.mxu0 0
        %2210 = vmatprep.subr.bf16.mxu0 0
        %2211 = vmatpush1.bf16.msra.mxu0 0
        %2212 = vmatprep.subr.bf16.mxu0 0
        %2213 = vmatpush1.bf16.msra.mxu0 0
        %2214 = vmatprep.subr.bf16.mxu0 0
        %2215 = vmatpush1.bf16.msra.mxu0 0
        %2216 = vmatprep.subr.bf16.mxu0 0
        %2217 = vmatpush1.bf16.msra.mxu0 0
        %2218 = vmatprep.subr.bf16.mxu0 0
        %2219 = vmatpush1.bf16.msra.mxu0 0
        %2220 = vmatprep.mubr.bf16.mxu0 0
        %2221 = vmatmul.mubr.bf16.gmra.mrb[0].mxu0 %v2180
        %v2222 = vpop.f32.mrb[0].mxu0
        %v2223 = vadd.f32 0.0, %v2222
        %v2224 = vpop.f32.mrb[0].mxu0
        %v2225 = vadd.f32 0.0, %v2224
        %v2226 = vpop.f32.mrb[0].mxu0
        %v2227 = vpop.f32.mrb[0].mxu0
        %2228 = vdwg.mxu0
        %v2229 = vadd.f32 %v2156, %v2223
        %v2230 = vadd.f32 %v2157, %v2225
        %v2231 = vpack.c.bf16 %v926, %v926
        %v2232 = vpack.c.bf16 %v927, %v927
        %s2233 = scalar_lea.vmem %s11, 8
        %v2234 = vld [vmem:[%s2233] sm:$0x3]
        %v2236 = vsel %vm1977, %v2234, 0
        %v2239 = vsel %vm1981, %v2231, 0
        %v2242 = vsel %vm1981, %v2232, 0
        %2244 = vmatprep.subr.bf16.mxu0 %v2242
        %2245 = vmatpush1.bf16.msra.mxu0 %v2239
        %2246 = vmatprep.subr.bf16.mxu0 0
        %2247 = vmatpush1.bf16.msra.mxu0 0
        %2248 = vmatprep.subr.bf16.mxu0 0
        %2249 = vmatpush1.bf16.msra.mxu0 0
        %2250 = vmatprep.subr.bf16.mxu0 0
        %2251 = vmatpush1.bf16.msra.mxu0 0
        %2252 = vmatprep.subr.bf16.mxu0 0
        %2253 = vmatpush1.bf16.msra.mxu0 0
        %2254 = vmatprep.subr.bf16.mxu0 0
        %2255 = vmatpush1.bf16.msra.mxu0 0
        %2256 = vmatprep.subr.bf16.mxu0 0
        %2257 = vmatpush1.bf16.msra.mxu0 0
        %2258 = vmatprep.subr.bf16.mxu0 0
        %2259 = vmatpush1.bf16.msra.mxu0 0
        %2260 = vmatprep.subr.bf16.mxu0 0
        %2261 = vmatpush1.bf16.msra.mxu0 0
        %2262 = vmatprep.subr.bf16.mxu0 0
        %2263 = vmatpush1.bf16.msra.mxu0 0
        %2264 = vmatprep.subr.bf16.mxu0 0
        %2265 = vmatpush1.bf16.msra.mxu0 0
        %2266 = vmatprep.subr.bf16.mxu0 0
        %2267 = vmatpush1.bf16.msra.mxu0 0
        %2268 = vmatprep.subr.bf16.mxu0 0
        %2269 = vmatpush1.bf16.msra.mxu0 0
        %2270 = vmatprep.subr.bf16.mxu0 0
        %2271 = vmatpush1.bf16.msra.mxu0 0
        %2272 = vmatprep.subr.bf16.mxu0 0
        %2273 = vmatpush1.bf16.msra.mxu0 0
        %2274 = vmatprep.subr.bf16.mxu0 0
        %2275 = vmatpush1.bf16.msra.mxu0 0
        %2276 = vmatprep.mubr.bf16.mxu0 0
        %2277 = vmatmul.mubr.bf16.gmra.mrb[0].mxu0 %v2236
        %v2278 = vpop.f32.mrb[0].mxu0
        %v2279 = vadd.f32 0.0, %v2278
        %v2280 = vpop.f32.mrb[0].mxu0
        %v2281 = vadd.f32 0.0, %v2280
        %v2282 = vpop.f32.mrb[0].mxu0
        %v2283 = vpop.f32.mrb[0].mxu0
        %2284 = vdwg.mxu0
        %v2285 = vadd.f32 %v2229, %v2279
        %v2286 = vadd.f32 %v2230, %v2281
        %2287 = vrot.lane.b32.xlu0 %v926, 125
        %v2288 = vpop.permute.xlu0 %2287
        %2289 = vrot.lane.b32.xlu0 %v927, 125
        %v2290 = vpop.permute.xlu0 %2289
        %vm2291 = vcmp.lt.s32.totalorder %v607, 125
        %v2292 = vsel %vm2291, %v2288, %v2290
        %v2293 = vsel %vm2291, %v2290, %v2288
        %vm2294 = vmand %vm945, %vm2088
        %vm2295 = vmand %vm946, %vm2089
        %vm2296 = vmand %vm2294, %vm2092
        %vm2297 = vmand %vm2295, %vm2093
        %v2298 = vsel %vm2296, 1, 0
        %v2299 = vsel %vm2297, 1, 0
        %vm2300 = vcmp.eq.s32.totalorder %v2298, 1
        %vm2301 = vcmp.eq.s32.totalorder %v2299, 1
        %v2302 = vsel %vm2300, %v2292, 0.0
        %v2303 = vsel %vm2301, %v2293, 0.0
        %v2304 = vpack.c.bf16 %v2302, %v2302
        %v2305 = vpack.c.bf16 %v2303, %v2303
        %s2306 = scalar_lea.vmem %s11, 10
        %v2307 = vld [vmem:[%s2306] sm:$0x3]
        %v2309 = vsel %vm1977, %v2307, 0
        %v2312 = vsel %vm1981, %v2304, 0
        %v2315 = vsel %vm1981, %v2305, 0
        %2317 = vmatprep.subr.bf16.mxu0 %v2315
        %2318 = vmatpush1.bf16.msra.mxu0 %v2312
        %2319 = vmatprep.subr.bf16.mxu0 0
        %2320 = vmatpush1.bf16.msra.mxu0 0
        %2321 = vmatprep.subr.bf16.mxu0 0
        %2322 = vmatpush1.bf16.msra.mxu0 0
        %2323 = vmatprep.subr.bf16.mxu0 0
        %2324 = vmatpush1.bf16.msra.mxu0 0
        %2325 = vmatprep.subr.bf16.mxu0 0
        %2326 = vmatpush1.bf16.msra.mxu0 0
        %2327 = vmatprep.subr.bf16.mxu0 0
        %2328 = vmatpush1.bf16.msra.mxu0 0
        %2329 = vmatprep.subr.bf16.mxu0 0
        %2330 = vmatpush1.bf16.msra.mxu0 0
        %2331 = vmatprep.subr.bf16.mxu0 0
        %2332 = vmatpush1.bf16.msra.mxu0 0
        %2333 = vmatprep.subr.bf16.mxu0 0
        %2334 = vmatpush1.bf16.msra.mxu0 0
        %2335 = vmatprep.subr.bf16.mxu0 0
        %2336 = vmatpush1.bf16.msra.mxu0 0
        %2337 = vmatprep.subr.bf16.mxu0 0
        %2338 = vmatpush1.bf16.msra.mxu0 0
        %2339 = vmatprep.subr.bf16.mxu0 0
        %2340 = vmatpush1.bf16.msra.mxu0 0
        %2341 = vmatprep.subr.bf16.mxu0 0
        %2342 = vmatpush1.bf16.msra.mxu0 0
        %2343 = vmatprep.subr.bf16.mxu0 0
        %2344 = vmatpush1.bf16.msra.mxu0 0
        %2345 = vmatprep.subr.bf16.mxu0 0
        %2346 = vmatpush1.bf16.msra.mxu0 0
        %2347 = vmatprep.subr.bf16.mxu0 0
        %2348 = vmatpush1.bf16.msra.mxu0 0
        %2349 = vmatprep.mubr.bf16.mxu0 0
        %2350 = vmatmul.mubr.bf16.gmra.mrb[0].mxu0 %v2309
        %v2351 = vpop.f32.mrb[0].mxu0
        %v2352 = vadd.f32 0.0, %v2351
        %v2353 = vpop.f32.mrb[0].mxu0
        %v2354 = vadd.f32 0.0, %v2353
        %v2355 = vpop.f32.mrb[0].mxu0
        %v2356 = vpop.f32.mrb[0].mxu0
        %2357 = vdwg.mxu0
        %v2358 = vadd.f32 %v2285, %v2352
        %v2359 = vadd.f32 %v2286, %v2354
        %2360 = vrot.lane.b32.xlu0 %v926, 83
        %v2361 = vpop.permute.xlu0 %2360
        %2362 = vrot.lane.b32.xlu0 %v927, 83
        %v2363 = vpop.permute.xlu0 %2362
        %vm2364 = vcmp.lt.s32.totalorder %v607, 83
        %v2365 = vsel %vm2364, %v2361, %v2363
        %v2366 = vsel %vm2364, %v2363, %v2361
        %v2367 = vadd.s32 %v607, 48
        %v2368 = vadd.s32 %v608, 48
        %vm2369 = vcmp.ge.s32.totalorder %v2367, 0
        %vm2370 = vcmp.ge.s32.totalorder %v2368, 0
        %vm2371 = vcmp.lt.s32.totalorder %v2367, 256
        %vm2372 = vcmp.lt.s32.totalorder %v2368, 256
        %vm2373 = vmand %vm2369, %vm2371
        %vm2374 = vmand %vm2370, %vm2372
        %vm2375 = vmand %vm2373, %vm1939
        %vm2376 = vmand %vm2374, %vm1940
        %vm2377 = vmand %vm2375, %vm1943
        %vm2378 = vmand %vm2376, %vm1944
        %v2379 = vsel %vm2377, 1, 0
        %v2380 = vsel %vm2378, 1, 0
        %vm2381 = vcmp.eq.s32.totalorder %v2379, 1
        %vm2382 = vcmp.eq.s32.totalorder %v2380, 1
        %v2383 = vsel %vm2381, %v2365, 0.0
        %v2384 = vsel %vm2382, %v2366, 0.0
        %v2385 = vpack.c.bf16 %v2383, %v2383
        %v2386 = vpack.c.bf16 %v2384, %v2384
        %s2387 = scalar_lea.vmem %s11, 12
        %v2388 = vld [vmem:[%s2387] sm:$0x3]
        %v2390 = vsel %vm1977, %v2388, 0
        %v2393 = vsel %vm1981, %v2385, 0
        %v2396 = vsel %vm1981, %v2386, 0
        %2398 = vmatprep.subr.bf16.mxu0 %v2396
        %2399 = vmatpush1.bf16.msra.mxu0 %v2393
        %2400 = vmatprep.subr.bf16.mxu0 0
        %2401 = vmatpush1.bf16.msra.mxu0 0
        %2402 = vmatprep.subr.bf16.mxu0 0
        %2403 = vmatpush1.bf16.msra.mxu0 0
        %2404 = vmatprep.subr.bf16.mxu0 0
        %2405 = vmatpush1.bf16.msra.mxu0 0
        %2406 = vmatprep.subr.bf16.mxu0 0
        %2407 = vmatpush1.bf16.msra.mxu0 0
        %2408 = vmatprep.subr.bf16.mxu0 0
        %2409 = vmatpush1.bf16.msra.mxu0 0
        %2410 = vmatprep.subr.bf16.mxu0 0
        %2411 = vmatpush1.bf16.msra.mxu0 0
        %2412 = vmatprep.subr.bf16.mxu0 0
        %2413 = vmatpush1.bf16.msra.mxu0 0
        %2414 = vmatprep.subr.bf16.mxu0 0
        %2415 = vmatpush1.bf16.msra.mxu0 0
        %2416 = vmatprep.subr.bf16.mxu0 0
        %2417 = vmatpush1.bf16.msra.mxu0 0
        %2418 = vmatprep.subr.bf16.mxu0 0
        %2419 = vmatpush1.bf16.msra.mxu0 0
        %2420 = vmatprep.subr.bf16.mxu0 0
        %2421 = vmatpush1.bf16.msra.mxu0 0
        %2422 = vmatprep.subr.bf16.mxu0 0
        %2423 = vmatpush1.bf16.msra.mxu0 0
        %2424 = vmatprep.subr.bf16.mxu0 0
        %2425 = vmatpush1.bf16.msra.mxu0 0
        %2426 = vmatprep.subr.bf16.mxu0 0
        %2427 = vmatpush1.bf16.msra.mxu0 0
        %2428 = vmatprep.subr.bf16.mxu0 0
        %2429 = vmatpush1.bf16.msra.mxu0 0
        %2430 = vmatprep.mubr.bf16.mxu0 0
        %2431 = vmatmul.mubr.bf16.gmra.mrb[0].mxu0 %v2390
        %v2432 = vpop.f32.mrb[0].mxu0
        %v2433 = vadd.f32 0.0, %v2432
        %v2434 = vpop.f32.mrb[0].mxu0
        %v2435 = vadd.f32 0.0, %v2434
        %v2436 = vpop.f32.mrb[0].mxu0
        %v2437 = vpop.f32.mrb[0].mxu0
        %2438 = vdwg.mxu0
        %v2439 = vadd.f32 %v2358, %v2433
        %v2440 = vadd.f32 %v2359, %v2435
        %2441 = vrot.lane.b32.xlu0 %v926, 80
        %v2442 = vpop.permute.xlu0 %2441
        %2443 = vrot.lane.b32.xlu0 %v927, 80
        %v2444 = vpop.permute.xlu0 %2443
        %vm2445 = vcmp.lt.s32.totalorder %v607, 80
        %v2446 = vsel %vm2445, %v2442, %v2444
        %v2447 = vsel %vm2445, %v2444, %v2442
        %vm2448 = vmand %vm2373, %vm704
        %vm2449 = vmand %vm2374, %vm705
        %vm2450 = vmand %vm2448, %vm708
        %vm2451 = vmand %vm2449, %vm709
        %v2452 = vsel %vm2450, 1, 0
        %v2453 = vsel %vm2451, 1, 0
        %vm2454 = vcmp.eq.s32.totalorder %v2452, 1
        %vm2455 = vcmp.eq.s32.totalorder %v2453, 1
        %v2456 = vsel %vm2454, %v2446, 0.0
        %v2457 = vsel %vm2455, %v2447, 0.0
        %v2458 = vpack.c.bf16 %v2456, %v2456
        %v2459 = vpack.c.bf16 %v2457, %v2457
        %s2460 = scalar_lea.vmem %s11, 14
        %v2461 = vld [vmem:[%s2460] sm:$0x3]
        %v2463 = vsel %vm1977, %v2461, 0
        %v2466 = vsel %vm1981, %v2458, 0
        %v2469 = vsel %vm1981, %v2459, 0
        %2471 = vmatprep.subr.bf16.mxu0 %v2469
        %2472 = vmatpush1.bf16.msra.mxu0 %v2466
        %2473 = vmatprep.subr.bf16.mxu0 0
        %2474 = vmatpush1.bf16.msra.mxu0 0
        %2475 = vmatprep.subr.bf16.mxu0 0
        %2476 = vmatpush1.bf16.msra.mxu0 0
        %2477 = vmatprep.subr.bf16.mxu0 0
        %2478 = vmatpush1.bf16.msra.mxu0 0
        %2479 = vmatprep.subr.bf16.mxu0 0
        %2480 = vmatpush1.bf16.msra.mxu0 0
        %2481 = vmatprep.subr.bf16.mxu0 0
        %2482 = vmatpush1.bf16.msra.mxu0 0
        %2483 = vmatprep.subr.bf16.mxu0 0
        %2484 = vmatpush1.bf16.msra.mxu0 0
        %2485 = vmatprep.subr.bf16.mxu0 0
        %2486 = vmatpush1.bf16.msra.mxu0 0
        %2487 = vmatprep.subr.bf16.mxu0 0
        %2488 = vmatpush1.bf16.msra.mxu0 0
        %2489 = vmatprep.subr.bf16.mxu0 0
        %2490 = vmatpush1.bf16.msra.mxu0 0
        %2491 = vmatprep.subr.bf16.mxu0 0
        %2492 = vmatpush1.bf16.msra.mxu0 0
        %2493 = vmatprep.subr.bf16.mxu0 0
        %2494 = vmatpush1.bf16.msra.mxu0 0
        %2495 = vmatprep.subr.bf16.mxu0 0
        %2496 = vmatpush1.bf16.msra.mxu0 0
        %2497 = vmatprep.subr.bf16.mxu0 0
        %2498 = vmatpush1.bf16.msra.mxu0 0
        %2499 = vmatprep.subr.bf16.mxu0 0
        %2500 = vmatpush1.bf16.msra.mxu0 0
        %2501 = vmatprep.subr.bf16.mxu0 0
        %2502 = vmatpush1.bf16.msra.mxu0 0
        %2503 = vmatprep.mubr.bf16.mxu0 0
        %2504 = vmatmul.mubr.bf16.gmra.mrb[0].mxu0 %v2463
        %v2505 = vpop.f32.mrb[0].mxu0
        %v2506 = vadd.f32 0.0, %v2505
        %v2507 = vpop.f32.mrb[0].mxu0
        %v2508 = vadd.f32 0.0, %v2507
        %v2509 = vpop.f32.mrb[0].mxu0
        %v2510 = vpop.f32.mrb[0].mxu0
        %2511 = vdwg.mxu0
        %v2512 = vadd.f32 %v2439, %v2506
        %v2513 = vadd.f32 %v2440, %v2508
        %2514 = vrot.lane.b32.xlu0 %v926, 77
        %v2515 = vpop.permute.xlu0 %2514
        %2516 = vrot.lane.b32.xlu0 %v927, 77
        %v2517 = vpop.permute.xlu0 %2516
        %vm2518 = vcmp.lt.s32.totalorder %v607, 77
        %v2519 = vsel %vm2518, %v2515, %v2517
        %v2520 = vsel %vm2518, %v2517, %v2515
        %vm2521 = vmand %vm2373, %vm2088
        %vm2522 = vmand %vm2374, %vm2089
        %vm2523 = vmand %vm2521, %vm2092
        %vm2524 = vmand %vm2522, %vm2093
        %v2525 = vsel %vm2523, 1, 0
        %v2526 = vsel %vm2524, 1, 0
        %vm2527 = vcmp.eq.s32.totalorder %v2525, 1
        %vm2528 = vcmp.eq.s32.totalorder %v2526, 1
        %v2529 = vsel %vm2527, %v2519, 0.0
        %v2530 = vsel %vm2528, %v2520, 0.0
        %v2531 = vpack.c.bf16 %v2529, %v2529
        %v2532 = vpack.c.bf16 %v2530, %v2530
        %s2533 = scalar_lea.vmem %s11, 16
        %v2534 = vld [vmem:[%s2533] sm:$0x3]
        %v2536 = vsel %vm1977, %v2534, 0
        %v2539 = vsel %vm1981, %v2531, 0
        %v2542 = vsel %vm1981, %v2532, 0
        %2544 = vmatprep.subr.bf16.mxu0 %v2542
        %2545 = vmatpush1.bf16.msra.mxu0 %v2539
        %2546 = vmatprep.subr.bf16.mxu0 0
        %2547 = vmatpush1.bf16.msra.mxu0 0
        %2548 = vmatprep.subr.bf16.mxu0 0
        %2549 = vmatpush1.bf16.msra.mxu0 0
        %2550 = vmatprep.subr.bf16.mxu0 0
        %2551 = vmatpush1.bf16.msra.mxu0 0
        %2552 = vmatprep.subr.bf16.mxu0 0
        %2553 = vmatpush1.bf16.msra.mxu0 0
        %2554 = vmatprep.subr.bf16.mxu0 0
        %2555 = vmatpush1.bf16.msra.mxu0 0
        %2556 = vmatprep.subr.bf16.mxu0 0
        %2557 = vmatpush1.bf16.msra.mxu0 0
        %2558 = vmatprep.subr.bf16.mxu0 0
        %2559 = vmatpush1.bf16.msra.mxu0 0
        %2560 = vmatprep.subr.bf16.mxu0 0
        %2561 = vmatpush1.bf16.msra.mxu0 0
        %2562 = vmatprep.subr.bf16.mxu0 0
        %2563 = vmatpush1.bf16.msra.mxu0 0
        %2564 = vmatprep.subr.bf16.mxu0 0
        %2565 = vmatpush1.bf16.msra.mxu0 0
        %2566 = vmatprep.subr.bf16.mxu0 0
        %2567 = vmatpush1.bf16.msra.mxu0 0
        %2568 = vmatprep.subr.bf16.mxu0 0
        %2569 = vmatpush1.bf16.msra.mxu0 0
        %2570 = vmatprep.subr.bf16.mxu0 0
        %2571 = vmatpush1.bf16.msra.mxu0 0
        %2572 = vmatprep.subr.bf16.mxu0 0
        %2573 = vmatpush1.bf16.msra.mxu0 0
        %2574 = vmatprep.subr.bf16.mxu0 0
        %2575 = vmatpush1.bf16.msra.mxu0 0
        %2576 = vmatprep.mubr.bf16.mxu0 0
        %2577 = vmatmul.mubr.bf16.gmra.mrb[0].mxu0 %v2536
        %v2578 = vpop.f32.mrb[0].mxu0
        %v2579 = vadd.f32 0.0, %v2578
        %v2580 = vpop.f32.mrb[0].mxu0
        %v2581 = vadd.f32 0.0, %v2580
        %v2582 = vpop.f32.mrb[0].mxu0
        %v2583 = vpop.f32.mrb[0].mxu0
        %2584 = vdwg.mxu0
        %v2585 = vadd.f32 %v2512, %v2579
        %v2586 = vadd.f32 %v2513, %v2581
        %v2587 = vld [vmem:[%s12] sm:$0xf]
        %2589 = vset.pattern.permute.xlu0 0
        %2590 = vperm.xlu0 %2589, %v2587
        %v2591 = vpop.permute.xlu0 %2590
        %v2593 = vadd.f32 %v2585, %v2591
        %v2594 = vadd.f32 %v2586, %v2591
        %2595 = vrot.lane.b32.xlu0 %v1159, 51
        %v2596 = vpop.permute.xlu0 %2595
        %2597 = vrot.lane.b32.xlu0 %v1160, 51
        %v2598 = vpop.permute.xlu0 %2597
        %v2599 = vsel %vm1926, %v2596, %v2598
        %v2600 = vsel %vm1926, %v2598, %v2596
        %v2601 = vsel %vm1949, %v2600, 0.0
        %v2602 = vsel %vm1950, %v2599, 0.0
        %v2603 = vpack.c.bf16 %v2601, %v2601
        %v2604 = vpack.c.bf16 %v2602, %v2602
        %v2605 = vld [vmem:[%s13] sm:$0x3]
        %2606 = vrot.lane.b32.xlu0 %v1159, 48
        %v2607 = vpop.permute.xlu0 %2606
        %2608 = vrot.lane.b32.xlu0 %v1160, 48
        %v2609 = vpop.permute.xlu0 %2608
        %v2610 = vsel %vm1960, %v2607, %v2609
        %v2611 = vsel %vm1960, %v2609, %v2607
        %v2612 = vsel %vm1969, %v2611, 0.0
        %v2613 = vsel %vm1970, %v2610, 0.0
        %v2614 = vpack.c.bf16 %v2612, %v2612
        %v2615 = vpack.c.bf16 %v2613, %v2613
        %s2616 = scalar_lea.vmem %s13, 2
        %v2617 = vld [vmem:[%s2616] sm:$0x3]
        %v2619 = vsel %vm1176, %v2617, 0
        %v2622 = vand.u32 %v2614, %v1183
        %v2625 = vand.u32 %v2615, %v1183
        %2627 = vmatprep.subr.bf16.mxu0 %v2625
        %2628 = vmatpush1.bf16.msra.mxu0 %v2622
        %2629 = vmatprep.subr.bf16.mxu0 0
        %2630 = vmatpush1.bf16.msra.mxu0 0
        %2631 = vmatprep.subr.bf16.mxu0 0
        %2632 = vmatpush1.bf16.msra.mxu0 0
        %2633 = vmatprep.subr.bf16.mxu0 0
        %2634 = vmatpush1.bf16.msra.mxu0 0
        %2635 = vmatprep.subr.bf16.mxu0 0
        %2636 = vmatpush1.bf16.msra.mxu0 0
        %2637 = vmatprep.subr.bf16.mxu0 0
        %2638 = vmatpush1.bf16.msra.mxu0 0
        %2639 = vmatprep.subr.bf16.mxu0 0
        %2640 = vmatpush1.bf16.msra.mxu0 0
        %2641 = vmatprep.subr.bf16.mxu0 0
        %2642 = vmatpush1.bf16.msra.mxu0 0
        %2643 = vmatprep.subr.bf16.mxu0 0
        %2644 = vmatpush1.bf16.msra.mxu0 0
        %2645 = vmatprep.subr.bf16.mxu0 0
        %2646 = vmatpush1.bf16.msra.mxu0 0
        %2647 = vmatprep.subr.bf16.mxu0 0
        %2648 = vmatpush1.bf16.msra.mxu0 0
        %2649 = vmatprep.subr.bf16.mxu0 0
        %2650 = vmatpush1.bf16.msra.mxu0 0
        %2651 = vmatprep.subr.bf16.mxu0 0
        %2652 = vmatpush1.bf16.msra.mxu0 0
        %2653 = vmatprep.subr.bf16.mxu0 0
        %2654 = vmatpush1.bf16.msra.mxu0 0
        %2655 = vmatprep.subr.bf16.mxu0 0
        %2656 = vmatpush1.bf16.msra.mxu0 0
        %2657 = vmatprep.subr.bf16.mxu0 0
        %2658 = vmatpush1.bf16.msra.mxu0 0
        %2659 = vmatprep.mubr.bf16.mxu0 0
        %2660 = vmatmul.mubr.bf16.gmra.mrb[0].mxu0 %v2619
        %v2661 = vpop.f32.mrb[0].mxu0
        %v2662 = vadd.f32 0.0, %v2661
        %v2663 = vpop.f32.mrb[0].mxu0
        %v2664 = vadd.f32 0.0, %v2663
        %v2665 = vpop.f32.mrb[0].mxu0
        %v2666 = vpop.f32.mrb[0].mxu0
        %2667 = vdwg.mxu0
        %v2669 = vsel %vm1176, %v2605, 0
        %v2672 = vand.u32 %v2603, %v1183
        %v2675 = vand.u32 %v2604, %v1183
        %2677 = vmatprep.subr.bf16.mxu0 %v2675
        %2678 = vmatpush1.bf16.msra.mxu0 %v2672
        %2679 = vmatprep.subr.bf16.mxu0 0
        %2680 = vmatpush1.bf16.msra.mxu0 0
        %2681 = vmatprep.subr.bf16.mxu0 0
        %2682 = vmatpush1.bf16.msra.mxu0 0
        %2683 = vmatprep.subr.bf16.mxu0 0
        %2684 = vmatpush1.bf16.msra.mxu0 0
        %2685 = vmatprep.subr.bf16.mxu0 0
        %2686 = vmatpush1.bf16.msra.mxu0 0
        %2687 = vmatprep.subr.bf16.mxu0 0
        %2688 = vmatpush1.bf16.msra.mxu0 0
        %2689 = vmatprep.subr.bf16.mxu0 0
        %2690 = vmatpush1.bf16.msra.mxu0 0
        %2691 = vmatprep.subr.bf16.mxu0 0
        %2692 = vmatpush1.bf16.msra.mxu0 0
        %2693 = vmatprep.subr.bf16.mxu0 0
        %2694 = vmatpush1.bf16.msra.mxu0 0
        %2695 = vmatprep.subr.bf16.mxu0 0
        %2696 = vmatpush1.bf16.msra.mxu0 0
        %2697 = vmatprep.subr.bf16.mxu0 0
        %2698 = vmatpush1.bf16.msra.mxu0 0
        %2699 = vmatprep.subr.bf16.mxu0 0
        %2700 = vmatpush1.bf16.msra.mxu0 0
        %2701 = vmatprep.subr.bf16.mxu0 0
        %2702 = vmatpush1.bf16.msra.mxu0 0
        %2703 = vmatprep.subr.bf16.mxu0 0
        %2704 = vmatpush1.bf16.msra.mxu0 0
        %2705 = vmatprep.subr.bf16.mxu0 0
        %2706 = vmatpush1.bf16.msra.mxu0 0
        %2707 = vmatprep.subr.bf16.mxu0 0
        %2708 = vmatpush1.bf16.msra.mxu0 0
        %2709 = vmatprep.mubr.bf16.mxu0 0
        %2710 = vmatmul.mubr.bf16.gmra.mrb[0].mxu0 %v2669
        %v2711 = vpop.f32.mrb[0].mxu0
        %v2712 = vadd.f32 %v2662, %v2711
        %v2713 = vpop.f32.mrb[0].mxu0
        %v2714 = vadd.f32 %v2664, %v2713
        %v2715 = vpop.f32.mrb[0].mxu0
        %v2716 = vpop.f32.mrb[0].mxu0
        %2717 = vdwg.mxu0
        %2718 = vrot.lane.b32.xlu0 %v1159, 45
        %v2719 = vpop.permute.xlu0 %2718
        %2720 = vrot.lane.b32.xlu0 %v1160, 45
        %v2721 = vpop.permute.xlu0 %2720
        %v2722 = vsel %vm2083, %v2719, %v2721
        %v2723 = vsel %vm2083, %v2721, %v2719
        %v2724 = vsel %vm2098, %v2723, 0.0
        %v2725 = vsel %vm2099, %v2722, 0.0
        %v2726 = vpack.c.bf16 %v2724, %v2724
        %v2727 = vpack.c.bf16 %v2725, %v2725
        %s2728 = scalar_lea.vmem %s13, 4
        %v2729 = vld [vmem:[%s2728] sm:$0x3]
        %v2731 = vsel %vm1176, %v2729, 0
        %v2734 = vand.u32 %v2726, %v1183
        %v2737 = vand.u32 %v2727, %v1183
        %2739 = vmatprep.subr.bf16.mxu0 %v2737
        %2740 = vmatpush1.bf16.msra.mxu0 %v2734
        %2741 = vmatprep.subr.bf16.mxu0 0
        %2742 = vmatpush1.bf16.msra.mxu0 0
        %2743 = vmatprep.subr.bf16.mxu0 0
        %2744 = vmatpush1.bf16.msra.mxu0 0
        %2745 = vmatprep.subr.bf16.mxu0 0
        %2746 = vmatpush1.bf16.msra.mxu0 0
        %2747 = vmatprep.subr.bf16.mxu0 0
        %2748 = vmatpush1.bf16.msra.mxu0 0
        %2749 = vmatprep.subr.bf16.mxu0 0
        %2750 = vmatpush1.bf16.msra.mxu0 0
        %2751 = vmatprep.subr.bf16.mxu0 0
        %2752 = vmatpush1.bf16.msra.mxu0 0
        %2753 = vmatprep.subr.bf16.mxu0 0
        %2754 = vmatpush1.bf16.msra.mxu0 0
        %2755 = vmatprep.subr.bf16.mxu0 0
        %2756 = vmatpush1.bf16.msra.mxu0 0
        %2757 = vmatprep.subr.bf16.mxu0 0
        %2758 = vmatpush1.bf16.msra.mxu0 0
        %2759 = vmatprep.subr.bf16.mxu0 0
        %2760 = vmatpush1.bf16.msra.mxu0 0
        %2761 = vmatprep.subr.bf16.mxu0 0
        %2762 = vmatpush1.bf16.msra.mxu0 0
        %2763 = vmatprep.subr.bf16.mxu0 0
        %2764 = vmatpush1.bf16.msra.mxu0 0
        %2765 = vmatprep.subr.bf16.mxu0 0
        %2766 = vmatpush1.bf16.msra.mxu0 0
        %2767 = vmatprep.subr.bf16.mxu0 0
        %2768 = vmatpush1.bf16.msra.mxu0 0
        %2769 = vmatprep.subr.bf16.mxu0 0
        %2770 = vmatpush1.bf16.msra.mxu0 0
        %2771 = vmatprep.mubr.bf16.mxu0 0
        %2772 = vmatmul.mubr.bf16.gmra.mrb[0].mxu0 %v2731
        %v2773 = vpop.f32.mrb[0].mxu0
        %v2774 = vadd.f32 0.0, %v2773
        %v2775 = vpop.f32.mrb[0].mxu0
        %v2776 = vadd.f32 0.0, %v2775
        %v2777 = vpop.f32.mrb[0].mxu0
        %v2778 = vpop.f32.mrb[0].mxu0
        %2779 = vdwg.mxu0
        %v2780 = vadd.f32 %v2712, %v2774
        %v2781 = vadd.f32 %v2714, %v2776
        %2782 = vrot.lane.b32.xlu0 %v1159, 3
        %v2783 = vpop.permute.xlu0 %2782
        %2784 = vrot.lane.b32.xlu0 %v1160, 3
        %v2785 = vpop.permute.xlu0 %2784
        %v2786 = vsel %vm2162, %v2783, %v2785
        %v2787 = vsel %vm2162, %v2785, %v2783
        %v2788 = vsel %vm2171, %v2787, 0.0
        %v2789 = vsel %vm2172, %v2786, 0.0
        %v2790 = vpack.c.bf16 %v2788, %v2788
        %v2791 = vpack.c.bf16 %v2789, %v2789
        %s2792 = scalar_lea.vmem %s13, 6
        %v2793 = vld [vmem:[%s2792] sm:$0x3]
        %v2795 = vsel %vm1176, %v2793, 0
        %v2798 = vand.u32 %v2790, %v1183
        %v2801 = vand.u32 %v2791, %v1183
        %2803 = vmatprep.subr.bf16.mxu0 %v2801
        %2804 = vmatpush1.bf16.msra.mxu0 %v2798
        %2805 = vmatprep.subr.bf16.mxu0 0
        %2806 = vmatpush1.bf16.msra.mxu0 0
        %2807 = vmatprep.subr.bf16.mxu0 0
        %2808 = vmatpush1.bf16.msra.mxu0 0
        %2809 = vmatprep.subr.bf16.mxu0 0
        %2810 = vmatpush1.bf16.msra.mxu0 0
        %2811 = vmatprep.subr.bf16.mxu0 0
        %2812 = vmatpush1.bf16.msra.mxu0 0
        %2813 = vmatprep.subr.bf16.mxu0 0
        %2814 = vmatpush1.bf16.msra.mxu0 0
        %2815 = vmatprep.subr.bf16.mxu0 0
        %2816 = vmatpush1.bf16.msra.mxu0 0
        %2817 = vmatprep.subr.bf16.mxu0 0
        %2818 = vmatpush1.bf16.msra.mxu0 0
        %2819 = vmatprep.subr.bf16.mxu0 0
        %2820 = vmatpush1.bf16.msra.mxu0 0
        %2821 = vmatprep.subr.bf16.mxu0 0
        %2822 = vmatpush1.bf16.msra.mxu0 0
        %2823 = vmatprep.subr.bf16.mxu0 0
        %2824 = vmatpush1.bf16.msra.mxu0 0
        %2825 = vmatprep.subr.bf16.mxu0 0
        %2826 = vmatpush1.bf16.msra.mxu0 0
        %2827 = vmatprep.subr.bf16.mxu0 0
        %2828 = vmatpush1.bf16.msra.mxu0 0
        %2829 = vmatprep.subr.bf16.mxu0 0
        %2830 = vmatpush1.bf16.msra.mxu0 0
        %2831 = vmatprep.subr.bf16.mxu0 0
        %2832 = vmatpush1.bf16.msra.mxu0 0
        %2833 = vmatprep.subr.bf16.mxu0 0
        %2834 = vmatpush1.bf16.msra.mxu0 0
        %2835 = vmatprep.mubr.bf16.mxu0 0
        %2836 = vmatmul.mubr.bf16.gmra.mrb[0].mxu0 %v2795
        %v2837 = vpop.f32.mrb[0].mxu0
        %v2838 = vadd.f32 0.0, %v2837
        %v2839 = vpop.f32.mrb[0].mxu0
        %v2840 = vadd.f32 0.0, %v2839
        %v2841 = vpop.f32.mrb[0].mxu0
        %v2842 = vpop.f32.mrb[0].mxu0
        %2843 = vdwg.mxu0
        %v2844 = vadd.f32 %v2780, %v2838
        %v2845 = vadd.f32 %v2781, %v2840
        %s2846 = scalar_lea.vmem %s13, 8
        %v2847 = vld [vmem:[%s2846] sm:$0x3]
        %v2849 = vsel %vm1176, %v2847, 0
        %2851 = vmatprep.subr.bf16.mxu0 %v1188
        %2852 = vmatpush1.bf16.msra.mxu0 %v1185
        %2853 = vmatprep.subr.bf16.mxu0 0
        %2854 = vmatpush1.bf16.msra.mxu0 0
        %2855 = vmatprep.subr.bf16.mxu0 0
        %2856 = vmatpush1.bf16.msra.mxu0 0
        %2857 = vmatprep.subr.bf16.mxu0 0
        %2858 = vmatpush1.bf16.msra.mxu0 0
        %2859 = vmatprep.subr.bf16.mxu0 0
        %2860 = vmatpush1.bf16.msra.mxu0 0
        %2861 = vmatprep.subr.bf16.mxu0 0
        %2862 = vmatpush1.bf16.msra.mxu0 0
        %2863 = vmatprep.subr.bf16.mxu0 0
        %2864 = vmatpush1.bf16.msra.mxu0 0
        %2865 = vmatprep.subr.bf16.mxu0 0
        %2866 = vmatpush1.bf16.msra.mxu0 0
        %2867 = vmatprep.subr.bf16.mxu0 0
        %2868 = vmatpush1.bf16.msra.mxu0 0
        %2869 = vmatprep.subr.bf16.mxu0 0
        %2870 = vmatpush1.bf16.msra.mxu0 0
        %2871 = vmatprep.subr.bf16.mxu0 0
        %2872 = vmatpush1.bf16.msra.mxu0 0
        %2873 = vmatprep.subr.bf16.mxu0 0
        %2874 = vmatpush1.bf16.msra.mxu0 0
        %2875 = vmatprep.subr.bf16.mxu0 0
        %2876 = vmatpush1.bf16.msra.mxu0 0
        %2877 = vmatprep.subr.bf16.mxu0 0
        %2878 = vmatpush1.bf16.msra.mxu0 0
        %2879 = vmatprep.subr.bf16.mxu0 0
        %2880 = vmatpush1.bf16.msra.mxu0 0
        %2881 = vmatprep.subr.bf16.mxu0 0
        %2882 = vmatpush1.bf16.msra.mxu0 0
        %2883 = vmatprep.mubr.bf16.mxu0 0
        %2884 = vmatmul.mubr.bf16.gmra.mrb[0].mxu0 %v2849
        %v2885 = vpop.f32.mrb[0].mxu0
        %v2886 = vadd.f32 0.0, %v2885
        %v2887 = vpop.f32.mrb[0].mxu0
        %v2888 = vadd.f32 0.0, %v2887
        %v2889 = vpop.f32.mrb[0].mxu0
        %v2890 = vpop.f32.mrb[0].mxu0
        %2891 = vdwg.mxu0
        %v2892 = vadd.f32 %v2844, %v2886
        %v2893 = vadd.f32 %v2845, %v2888
        %2894 = vrot.lane.b32.xlu0 %v1159, 125
        %v2895 = vpop.permute.xlu0 %2894
        %2896 = vrot.lane.b32.xlu0 %v1160, 125
        %v2897 = vpop.permute.xlu0 %2896
        %v2898 = vsel %vm2291, %v2895, %v2897
        %v2899 = vsel %vm2291, %v2897, %v2895
        %v2900 = vsel %vm2300, %v2898, 0.0
        %v2901 = vsel %vm2301, %v2899, 0.0
        %v2902 = vpack.c.bf16 %v2900, %v2900
        %v2903 = vpack.c.bf16 %v2901, %v2901
        %s2904 = scalar_lea.vmem %s13, 10
        %v2905 = vld [vmem:[%s2904] sm:$0x3]
        %v2907 = vsel %vm1176, %v2905, 0
        %v2910 = vand.u32 %v2902, %v1183
        %v2913 = vand.u32 %v2903, %v1183
        %2915 = vmatprep.subr.bf16.mxu0 %v2913
        %2916 = vmatpush1.bf16.msra.mxu0 %v2910
        %2917 = vmatprep.subr.bf16.mxu0 0
        %2918 = vmatpush1.bf16.msra.mxu0 0
        %2919 = vmatprep.subr.bf16.mxu0 0
        %2920 = vmatpush1.bf16.msra.mxu0 0
        %2921 = vmatprep.subr.bf16.mxu0 0
        %2922 = vmatpush1.bf16.msra.mxu0 0
        %2923 = vmatprep.subr.bf16.mxu0 0
        %2924 = vmatpush1.bf16.msra.mxu0 0
        %2925 = vmatprep.subr.bf16.mxu0 0
        %2926 = vmatpush1.bf16.msra.mxu0 0
        %2927 = vmatprep.subr.bf16.mxu0 0
        %2928 = vmatpush1.bf16.msra.mxu0 0
        %2929 = vmatprep.subr.bf16.mxu0 0
        %2930 = vmatpush1.bf16.msra.mxu0 0
        %2931 = vmatprep.subr.bf16.mxu0 0
        %2932 = vmatpush1.bf16.msra.mxu0 0
        %2933 = vmatprep.subr.bf16.mxu0 0
        %2934 = vmatpush1.bf16.msra.mxu0 0
        %2935 = vmatprep.subr.bf16.mxu0 0
        %2936 = vmatpush1.bf16.msra.mxu0 0
        %2937 = vmatprep.subr.bf16.mxu0 0
        %2938 = vmatpush1.bf16.msra.mxu0 0
        %2939 = vmatprep.subr.bf16.mxu0 0
        %2940 = vmatpush1.bf16.msra.mxu0 0
        %2941 = vmatprep.subr.bf16.mxu0 0
        %2942 = vmatpush1.bf16.msra.mxu0 0
        %2943 = vmatprep.subr.bf16.mxu0 0
        %2944 = vmatpush1.bf16.msra.mxu0 0
        %2945 = vmatprep.subr.bf16.mxu0 0
        %2946 = vmatpush1.bf16.msra.mxu0 0
        %2947 = vmatprep.mubr.bf16.mxu0 0
        %2948 = vmatmul.mubr.bf16.gmra.mrb[0].mxu0 %v2907
        %v2949 = vpop.f32.mrb[0].mxu0
        %v2950 = vadd.f32 0.0, %v2949
        %v2951 = vpop.f32.mrb[0].mxu0
        %v2952 = vadd.f32 0.0, %v2951
        %v2953 = vpop.f32.mrb[0].mxu0
        %v2954 = vpop.f32.mrb[0].mxu0
        %2955 = vdwg.mxu0
        %v2956 = vadd.f32 %v2892, %v2950
        %v2957 = vadd.f32 %v2893, %v2952
        %2958 = vrot.lane.b32.xlu0 %v1159, 83
        %v2959 = vpop.permute.xlu0 %2958
        %2960 = vrot.lane.b32.xlu0 %v1160, 83
        %v2961 = vpop.permute.xlu0 %2960
        %v2962 = vsel %vm2364, %v2959, %v2961
        %v2963 = vsel %vm2364, %v2961, %v2959
        %v2964 = vsel %vm2381, %v2962, 0.0
        %v2965 = vsel %vm2382, %v2963, 0.0
        %v2966 = vpack.c.bf16 %v2964, %v2964
        %v2967 = vpack.c.bf16 %v2965, %v2965
        %s2968 = scalar_lea.vmem %s13, 12
        %v2969 = vld [vmem:[%s2968] sm:$0x3]
        %v2971 = vsel %vm1176, %v2969, 0
        %v2974 = vand.u32 %v2966, %v1183
        %v2977 = vand.u32 %v2967, %v1183
        %2979 = vmatprep.subr.bf16.mxu0 %v2977
        %2980 = vmatpush1.bf16.msra.mxu0 %v2974
        %2981 = vmatprep.subr.bf16.mxu0 0
        %2982 = vmatpush1.bf16.msra.mxu0 0
        %2983 = vmatprep.subr.bf16.mxu0 0
        %2984 = vmatpush1.bf16.msra.mxu0 0
        %2985 = vmatprep.subr.bf16.mxu0 0
        %2986 = vmatpush1.bf16.msra.mxu0 0
        %2987 = vmatprep.subr.bf16.mxu0 0
        %2988 = vmatpush1.bf16.msra.mxu0 0
        %2989 = vmatprep.subr.bf16.mxu0 0
        %2990 = vmatpush1.bf16.msra.mxu0 0
        %2991 = vmatprep.subr.bf16.mxu0 0
        %2992 = vmatpush1.bf16.msra.mxu0 0
        %2993 = vmatprep.subr.bf16.mxu0 0
        %2994 = vmatpush1.bf16.msra.mxu0 0
        %2995 = vmatprep.subr.bf16.mxu0 0
        %2996 = vmatpush1.bf16.msra.mxu0 0
        %2997 = vmatprep.subr.bf16.mxu0 0
        %2998 = vmatpush1.bf16.msra.mxu0 0
        %2999 = vmatprep.subr.bf16.mxu0 0
        %3000 = vmatpush1.bf16.msra.mxu0 0
        %3001 = vmatprep.subr.bf16.mxu0 0
        %3002 = vmatpush1.bf16.msra.mxu0 0
        %3003 = vmatprep.subr.bf16.mxu0 0
        %3004 = vmatpush1.bf16.msra.mxu0 0
        %3005 = vmatprep.subr.bf16.mxu0 0
        %3006 = vmatpush1.bf16.msra.mxu0 0
        %3007 = vmatprep.subr.bf16.mxu0 0
        %3008 = vmatpush1.bf16.msra.mxu0 0
        %3009 = vmatprep.subr.bf16.mxu0 0
        %3010 = vmatpush1.bf16.msra.mxu0 0
        %3011 = vmatprep.mubr.bf16.mxu0 0
        %3012 = vmatmul.mubr.bf16.gmra.mrb[0].mxu0 %v2971
        %v3013 = vpop.f32.mrb[0].mxu0
        %v3014 = vadd.f32 0.0, %v3013
        %v3015 = vpop.f32.mrb[0].mxu0
        %v3016 = vadd.f32 0.0, %v3015
        %v3017 = vpop.f32.mrb[0].mxu0
        %v3018 = vpop.f32.mrb[0].mxu0
        %3019 = vdwg.mxu0
        %v3020 = vadd.f32 %v2956, %v3014
        %v3021 = vadd.f32 %v2957, %v3016
        %3022 = vrot.lane.b32.xlu0 %v1159, 80
        %v3023 = vpop.permute.xlu0 %3022
        %3024 = vrot.lane.b32.xlu0 %v1160, 80
        %v3025 = vpop.permute.xlu0 %3024
        %v3026 = vsel %vm2445, %v3023, %v3025
        %v3027 = vsel %vm2445, %v3025, %v3023
        %v3028 = vsel %vm2454, %v3026, 0.0
        %v3029 = vsel %vm2455, %v3027, 0.0
        %v3030 = vpack.c.bf16 %v3028, %v3028
        %v3031 = vpack.c.bf16 %v3029, %v3029
        %s3032 = scalar_lea.vmem %s13, 14
        %v3033 = vld [vmem:[%s3032] sm:$0x3]
        %v3035 = vsel %vm1176, %v3033, 0
        %v3038 = vand.u32 %v3030, %v1183
        %v3041 = vand.u32 %v3031, %v1183
        %3043 = vmatprep.subr.bf16.mxu0 %v3041
        %3044 = vmatpush1.bf16.msra.mxu0 %v3038
        %3045 = vmatprep.subr.bf16.mxu0 0
        %3046 = vmatpush1.bf16.msra.mxu0 0
        %3047 = vmatprep.subr.bf16.mxu0 0
        %3048 = vmatpush1.bf16.msra.mxu0 0
        %3049 = vmatprep.subr.bf16.mxu0 0
        %3050 = vmatpush1.bf16.msra.mxu0 0
        %3051 = vmatprep.subr.bf16.mxu0 0
        %3052 = vmatpush1.bf16.msra.mxu0 0
        %3053 = vmatprep.subr.bf16.mxu0 0
        %3054 = vmatpush1.bf16.msra.mxu0 0
        %3055 = vmatprep.subr.bf16.mxu0 0
        %3056 = vmatpush1.bf16.msra.mxu0 0
        %3057 = vmatprep.subr.bf16.mxu0 0
        %3058 = vmatpush1.bf16.msra.mxu0 0
        %3059 = vmatprep.subr.bf16.mxu0 0
        %3060 = vmatpush1.bf16.msra.mxu0 0
        %3061 = vmatprep.subr.bf16.mxu0 0
        %3062 = vmatpush1.bf16.msra.mxu0 0
        %3063 = vmatprep.subr.bf16.mxu0 0
        %3064 = vmatpush1.bf16.msra.mxu0 0
        %3065 = vmatprep.subr.bf16.mxu0 0
        %3066 = vmatpush1.bf16.msra.mxu0 0
        %3067 = vmatprep.subr.bf16.mxu0 0
        %3068 = vmatpush1.bf16.msra.mxu0 0
        %3069 = vmatprep.subr.bf16.mxu0 0
        %3070 = vmatpush1.bf16.msra.mxu0 0
        %3071 = vmatprep.subr.bf16.mxu0 0
        %3072 = vmatpush1.bf16.msra.mxu0 0
        %3073 = vmatprep.subr.bf16.mxu0 0
        %3074 = vmatpush1.bf16.msra.mxu0 0
        %3075 = vmatprep.mubr.bf16.mxu0 0
        %3076 = vmatmul.mubr.bf16.gmra.mrb[0].mxu0 %v3035
        %v3077 = vpop.f32.mrb[0].mxu0
        %v3078 = vadd.f32 0.0, %v3077
        %v3079 = vpop.f32.mrb[0].mxu0
        %v3080 = vadd.f32 0.0, %v3079
        %v3081 = vpop.f32.mrb[0].mxu0
        %v3082 = vpop.f32.mrb[0].mxu0
        %3083 = vdwg.mxu0
        %v3084 = vadd.f32 %v3020, %v3078
        %v3085 = vadd.f32 %v3021, %v3080
        %3086 = vrot.lane.b32.xlu0 %v1159, 77
        %v3087 = vpop.permute.xlu0 %3086
        %3088 = vrot.lane.b32.xlu0 %v1160, 77
        %v3089 = vpop.permute.xlu0 %3088
        %v3090 = vsel %vm2518, %v3087, %v3089
        %v3091 = vsel %vm2518, %v3089, %v3087
        %v3092 = vsel %vm2527, %v3090, 0.0
        %v3093 = vsel %vm2528, %v3091, 0.0
        %v3094 = vpack.c.bf16 %v3092, %v3092
        %v3095 = vpack.c.bf16 %v3093, %v3093
        %s3096 = scalar_lea.vmem %s13, 16
        %v3097 = vld [vmem:[%s3096] sm:$0x3]
        %v3099 = vsel %vm1176, %v3097, 0
        %v3102 = vand.u32 %v3094, %v1183
        %v3105 = vand.u32 %v3095, %v1183
        %3107 = vmatprep.subr.bf16.mxu0 %v3105
        %3108 = vmatpush1.bf16.msra.mxu0 %v3102
        %3109 = vmatprep.subr.bf16.mxu0 0
        %3110 = vmatpush1.bf16.msra.mxu0 0
        %3111 = vmatprep.subr.bf16.mxu0 0
        %3112 = vmatpush1.bf16.msra.mxu0 0
        %3113 = vmatprep.subr.bf16.mxu0 0
        %3114 = vmatpush1.bf16.msra.mxu0 0
        %3115 = vmatprep.subr.bf16.mxu0 0
        %3116 = vmatpush1.bf16.msra.mxu0 0
        %3117 = vmatprep.subr.bf16.mxu0 0
        %3118 = vmatpush1.bf16.msra.mxu0 0
        %3119 = vmatprep.subr.bf16.mxu0 0
        %3120 = vmatpush1.bf16.msra.mxu0 0
        %3121 = vmatprep.subr.bf16.mxu0 0
        %3122 = vmatpush1.bf16.msra.mxu0 0
        %3123 = vmatprep.subr.bf16.mxu0 0
        %3124 = vmatpush1.bf16.msra.mxu0 0
        %3125 = vmatprep.subr.bf16.mxu0 0
        %3126 = vmatpush1.bf16.msra.mxu0 0
        %3127 = vmatprep.subr.bf16.mxu0 0
        %3128 = vmatpush1.bf16.msra.mxu0 0
        %3129 = vmatprep.subr.bf16.mxu0 0
        %3130 = vmatpush1.bf16.msra.mxu0 0
        %3131 = vmatprep.subr.bf16.mxu0 0
        %3132 = vmatpush1.bf16.msra.mxu0 0
        %3133 = vmatprep.subr.bf16.mxu0 0
        %3134 = vmatpush1.bf16.msra.mxu0 0
        %3135 = vmatprep.subr.bf16.mxu0 0
        %3136 = vmatpush1.bf16.msra.mxu0 0
        %3137 = vmatprep.subr.bf16.mxu0 0
        %3138 = vmatpush1.bf16.msra.mxu0 0
        %3139 = vmatprep.mubr.bf16.mxu0 0
        %3140 = vmatmul.mubr.bf16.gmra.mrb[0].mxu0 %v3099
        %v3141 = vpop.f32.mrb[0].mxu0
        %v3142 = vadd.f32 0.0, %v3141
        %v3143 = vpop.f32.mrb[0].mxu0
        %v3144 = vadd.f32 0.0, %v3143
        %v3145 = vpop.f32.mrb[0].mxu0
        %v3146 = vpop.f32.mrb[0].mxu0
        %3147 = vdwg.mxu0
        %v3148 = vadd.f32 %v3084, %v3142
        %v3149 = vadd.f32 %v3085, %v3144
        %v3150 = vld [vmem:[%s14] sm:$0xf]
        %3152 = vset.pattern.permute.xlu0 0
        %3153 = vperm.xlu0 %3152, %v3150
        %v3154 = vpop.permute.xlu0 %3153
        %v3156 = vadd.f32 %v3148, %v3154
        %v3157 = vadd.f32 %v3149, %v3154
        %3158 = vrot.lane.b32.xlu0 %v1353, 85
        %v3159 = vpop.permute.xlu0 %3158
        %3160 = vrot.lane.b32.xlu0 %v1354, 85
        %v3161 = vpop.permute.xlu0 %3160
        %vm3162 = vcmp.lt.s32.totalorder %v607, 85
        %v3163 = vsel %vm3162, %v3159, %v3161
        %v3164 = vsel %vm3162, %v3161, %v3159
        %v3165 = vadd.s32 %v607, 4294967216
        %v3166 = vadd.s32 %v608, 4294967216
        %vm3167 = vcmp.ge.s32.totalorder %v3165, 0
        %vm3168 = vcmp.ge.s32.totalorder %v3166, 0
        %vm3169 = vcmp.lt.s32.totalorder %v3165, 256
        %vm3170 = vcmp.lt.s32.totalorder %v3166, 256
        %vm3171 = vmand %vm3167, %vm3169
        %vm3172 = vmand %vm3168, %vm3170
        %v3173 = vadd.s32 %v609, 4294967291
        %v3174 = vadd.s32 %v610, 4294967291
        %vm3175 = vcmp.ge.s32.totalorder %v3173, 0
        %vm3176 = vcmp.ge.s32.totalorder %v3174, 0
        %vm3177 = vmand %vm3171, %vm3175
        %vm3178 = vmand %vm3172, %vm3176
        %vm3179 = vcmp.lt.s32.totalorder %v3173, 16
        %vm3180 = vcmp.lt.s32.totalorder %v3174, 16
        %vm3181 = vmand %vm3177, %vm3179
        %vm3182 = vmand %vm3178, %vm3180
        %v3183 = vsel %vm3181, 1, 0
        %v3184 = vsel %vm3182, 1, 0
        %vm3185 = vcmp.eq.s32.totalorder %v3183, 1
        %vm3186 = vcmp.eq.s32.totalorder %v3184, 1
        %v3187 = vsel %vm3185, %v3164, 0.0
        %v3188 = vsel %vm3186, %v3163, 0.0
        %v3189 = vpack.c.bf16 %v3187, %v3187
        %v3190 = vpack.c.bf16 %v3188, %v3188
        %v3191 = vld [vmem:[%s15] sm:$0x3]
        %3192 = vrot.lane.b32.xlu0 %v1353, 80
        %v3193 = vpop.permute.xlu0 %3192
        %3194 = vrot.lane.b32.xlu0 %v1354, 80
        %v3195 = vpop.permute.xlu0 %3194
        %v3196 = vsel %vm2445, %v3193, %v3195
        %v3197 = vsel %vm2445, %v3195, %v3193
        %vm3198 = vmand %vm3171, %vm704
        %vm3199 = vmand %vm3172, %vm705
        %vm3200 = vmand %vm3198, %vm708
        %vm3201 = vmand %vm3199, %vm709
        %v3202 = vsel %vm3200, 1, 0
        %v3203 = vsel %vm3201, 1, 0
        %vm3204 = vcmp.eq.s32.totalorder %v3202, 1
        %vm3205 = vcmp.eq.s32.totalorder %v3203, 1
        %v3206 = vsel %vm3204, %v3197, 0.0
        %v3207 = vsel %vm3205, %v3196, 0.0
        %v3208 = vpack.c.bf16 %v3206, %v3206
        %v3209 = vpack.c.bf16 %v3207, %v3207
        %s3210 = scalar_lea.vmem %s15, 2
        %v3211 = vld [vmem:[%s3210] sm:$0x3]
        %v3213 = vsel %vm1977, %v3211, 0
        %v3216 = vsel %vm1981, %v3208, 0
        %v3219 = vsel %vm1981, %v3209, 0
        %3221 = vmatprep.subr.bf16.mxu0 %v3219
        %3222 = vmatpush1.bf16.msra.mxu0 %v3216
        %3223 = vmatprep.subr.bf16.mxu0 0
        %3224 = vmatpush1.bf16.msra.mxu0 0
        %3225 = vmatprep.subr.bf16.mxu0 0
        %3226 = vmatpush1.bf16.msra.mxu0 0
        %3227 = vmatprep.subr.bf16.mxu0 0
        %3228 = vmatpush1.bf16.msra.mxu0 0
        %3229 = vmatprep.subr.bf16.mxu0 0
        %3230 = vmatpush1.bf16.msra.mxu0 0
        %3231 = vmatprep.subr.bf16.mxu0 0
        %3232 = vmatpush1.bf16.msra.mxu0 0
        %3233 = vmatprep.subr.bf16.mxu0 0
        %3234 = vmatpush1.bf16.msra.mxu0 0
        %3235 = vmatprep.subr.bf16.mxu0 0
        %3236 = vmatpush1.bf16.msra.mxu0 0
        %3237 = vmatprep.subr.bf16.mxu0 0
        %3238 = vmatpush1.bf16.msra.mxu0 0
        %3239 = vmatprep.subr.bf16.mxu0 0
        %3240 = vmatpush1.bf16.msra.mxu0 0
        %3241 = vmatprep.subr.bf16.mxu0 0
        %3242 = vmatpush1.bf16.msra.mxu0 0
        %3243 = vmatprep.subr.bf16.mxu0 0
        %3244 = vmatpush1.bf16.msra.mxu0 0
        %3245 = vmatprep.subr.bf16.mxu0 0
        %3246 = vmatpush1.bf16.msra.mxu0 0
        %3247 = vmatprep.subr.bf16.mxu0 0
        %3248 = vmatpush1.bf16.msra.mxu0 0
        %3249 = vmatprep.subr.bf16.mxu0 0
        %3250 = vmatpush1.bf16.msra.mxu0 0
        %3251 = vmatprep.subr.bf16.mxu0 0
        %3252 = vmatpush1.bf16.msra.mxu0 0
        %3253 = vmatprep.mubr.bf16.mxu0 0
        %3254 = vmatmul.mubr.bf16.gmra.mrb[0].mxu0 %v3213
        %v3255 = vpop.f32.mrb[0].mxu0
        %v3256 = vadd.f32 0.0, %v3255
        %v3257 = vpop.f32.mrb[0].mxu0
        %v3258 = vadd.f32 0.0, %v3257
        %v3259 = vpop.f32.mrb[0].mxu0
        %v3260 = vpop.f32.mrb[0].mxu0
        %3261 = vdwg.mxu0
        %v3263 = vsel %vm1977, %v3191, 0
        %v3266 = vsel %vm1981, %v3189, 0
        %v3269 = vsel %vm1981, %v3190, 0
        %3271 = vmatprep.subr.bf16.mxu0 %v3269
        %3272 = vmatpush1.bf16.msra.mxu0 %v3266
        %3273 = vmatprep.subr.bf16.mxu0 0
        %3274 = vmatpush1.bf16.msra.mxu0 0
        %3275 = vmatprep.subr.bf16.mxu0 0
        %3276 = vmatpush1.bf16.msra.mxu0 0
        %3277 = vmatprep.subr.bf16.mxu0 0
        %3278 = vmatpush1.bf16.msra.mxu0 0
        %3279 = vmatprep.subr.bf16.mxu0 0
        %3280 = vmatpush1.bf16.msra.mxu0 0
        %3281 = vmatprep.subr.bf16.mxu0 0
        %3282 = vmatpush1.bf16.msra.mxu0 0
        %3283 = vmatprep.subr.bf16.mxu0 0
        %3284 = vmatpush1.bf16.msra.mxu0 0
        %3285 = vmatprep.subr.bf16.mxu0 0
        %3286 = vmatpush1.bf16.msra.mxu0 0
        %3287 = vmatprep.subr.bf16.mxu0 0
        %3288 = vmatpush1.bf16.msra.mxu0 0
        %3289 = vmatprep.subr.bf16.mxu0 0
        %3290 = vmatpush1.bf16.msra.mxu0 0
        %3291 = vmatprep.subr.bf16.mxu0 0
        %3292 = vmatpush1.bf16.msra.mxu0 0
        %3293 = vmatprep.subr.bf16.mxu0 0
        %3294 = vmatpush1.bf16.msra.mxu0 0
        %3295 = vmatprep.subr.bf16.mxu0 0
        %3296 = vmatpush1.bf16.msra.mxu0 0
        %3297 = vmatprep.subr.bf16.mxu0 0
        %3298 = vmatpush1.bf16.msra.mxu0 0
        %3299 = vmatprep.subr.bf16.mxu0 0
        %3300 = vmatpush1.bf16.msra.mxu0 0
        %3301 = vmatprep.subr.bf16.mxu0 0
        %3302 = vmatpush1.bf16.msra.mxu0 0
        %3303 = vmatprep.mubr.bf16.mxu0 0
        %3304 = vmatmul.mubr.bf16.gmra.mrb[0].mxu0 %v3263
        %v3305 = vpop.f32.mrb[0].mxu0
        %v3306 = vadd.f32 %v3256, %v3305
        %v3307 = vpop.f32.mrb[0].mxu0
        %v3308 = vadd.f32 %v3258, %v3307
        %v3309 = vpop.f32.mrb[0].mxu0
        %v3310 = vpop.f32.mrb[0].mxu0
        %3311 = vdwg.mxu0
        %3312 = vrot.lane.b32.xlu0 %v1353, 75
        %v3313 = vpop.permute.xlu0 %3312
        %3314 = vrot.lane.b32.xlu0 %v1354, 75
        %v3315 = vpop.permute.xlu0 %3314
        %vm3316 = vcmp.lt.s32.totalorder %v607, 75
        %v3317 = vsel %vm3316, %v3313, %v3315
        %v3318 = vsel %vm3316, %v3315, %v3313
        %v3319 = vadd.s32 %v609, 5
        %v3320 = vadd.s32 %v610, 5
        %vm3321 = vcmp.ge.s32.totalorder %v3319, 0
        %vm3322 = vcmp.ge.s32.totalorder %v3320, 0
        %vm3323 = vmand %vm3171, %vm3321
        %vm3324 = vmand %vm3172, %vm3322
        %vm3325 = vcmp.lt.s32.totalorder %v3319, 16
        %vm3326 = vcmp.lt.s32.totalorder %v3320, 16
        %vm3327 = vmand %vm3323, %vm3325
        %vm3328 = vmand %vm3324, %vm3326
        %v3329 = vsel %vm3327, 1, 0
        %v3330 = vsel %vm3328, 1, 0
        %vm3331 = vcmp.eq.s32.totalorder %v3329, 1
        %vm3332 = vcmp.eq.s32.totalorder %v3330, 1
        %v3333 = vsel %vm3331, %v3318, 0.0
        %v3334 = vsel %vm3332, %v3317, 0.0
        %v3335 = vpack.c.bf16 %v3333, %v3333
        %v3336 = vpack.c.bf16 %v3334, %v3334
        %s3337 = scalar_lea.vmem %s15, 4
        %v3338 = vld [vmem:[%s3337] sm:$0x3]
        %v3340 = vsel %vm1977, %v3338, 0
        %v3343 = vsel %vm1981, %v3335, 0
        %v3346 = vsel %vm1981, %v3336, 0
        %3348 = vmatprep.subr.bf16.mxu0 %v3346
        %3349 = vmatpush1.bf16.msra.mxu0 %v3343
        %3350 = vmatprep.subr.bf16.mxu0 0
        %3351 = vmatpush1.bf16.msra.mxu0 0
        %3352 = vmatprep.subr.bf16.mxu0 0
        %3353 = vmatpush1.bf16.msra.mxu0 0
        %3354 = vmatprep.subr.bf16.mxu0 0
        %3355 = vmatpush1.bf16.msra.mxu0 0
        %3356 = vmatprep.subr.bf16.mxu0 0
        %3357 = vmatpush1.bf16.msra.mxu0 0
        %3358 = vmatprep.subr.bf16.mxu0 0
        %3359 = vmatpush1.bf16.msra.mxu0 0
        %3360 = vmatprep.subr.bf16.mxu0 0
        %3361 = vmatpush1.bf16.msra.mxu0 0
        %3362 = vmatprep.subr.bf16.mxu0 0
        %3363 = vmatpush1.bf16.msra.mxu0 0
        %3364 = vmatprep.subr.bf16.mxu0 0
        %3365 = vmatpush1.bf16.msra.mxu0 0
        %3366 = vmatprep.subr.bf16.mxu0 0
        %3367 = vmatpush1.bf16.msra.mxu0 0
        %3368 = vmatprep.subr.bf16.mxu0 0
        %3369 = vmatpush1.bf16.msra.mxu0 0
        %3370 = vmatprep.subr.bf16.mxu0 0
        %3371 = vmatpush1.bf16.msra.mxu0 0
        %3372 = vmatprep.subr.bf16.mxu0 0
        %3373 = vmatpush1.bf16.msra.mxu0 0
        %3374 = vmatprep.subr.bf16.mxu0 0
        %3375 = vmatpush1.bf16.msra.mxu0 0
        %3376 = vmatprep.subr.bf16.mxu0 0
        %3377 = vmatpush1.bf16.msra.mxu0 0
        %3378 = vmatprep.subr.bf16.mxu0 0
        %3379 = vmatpush1.bf16.msra.mxu0 0
        %3380 = vmatprep.mubr.bf16.mxu0 0
        %3381 = vmatmul.mubr.bf16.gmra.mrb[0].mxu0 %v3340
        %v3382 = vpop.f32.mrb[0].mxu0
        %v3383 = vadd.f32 0.0, %v3382
        %v3384 = vpop.f32.mrb[0].mxu0
        %v3385 = vadd.f32 0.0, %v3384
        %v3386 = vpop.f32.mrb[0].mxu0
        %v3387 = vpop.f32.mrb[0].mxu0
        %3388 = vdwg.mxu0
        %v3389 = vadd.f32 %v3306, %v3383
        %v3390 = vadd.f32 %v3308, %v3385
        %3391 = vrot.lane.b32.xlu0 %v1353, 5
        %v3392 = vpop.permute.xlu0 %3391
        %3393 = vrot.lane.b32.xlu0 %v1354, 5
        %v3394 = vpop.permute.xlu0 %3393
        %vm3395 = vcmp.lt.s32.totalorder %v607, 5
        %v3396 = vsel %vm3395, %v3392, %v3394
        %v3397 = vsel %vm3395, %v3394, %v3392
        %vm3398 = vmand %vm945, %vm3175
        %vm3399 = vmand %vm946, %vm3176
        %vm3400 = vmand %vm3398, %vm3179
        %vm3401 = vmand %vm3399, %vm3180
        %v3402 = vsel %vm3400, 1, 0
        %v3403 = vsel %vm3401, 1, 0
        %vm3404 = vcmp.eq.s32.totalorder %v3402, 1
        %vm3405 = vcmp.eq.s32.totalorder %v3403, 1
        %v3406 = vsel %vm3404, %v3397, 0.0
        %v3407 = vsel %vm3405, %v3396, 0.0
        %v3408 = vpack.c.bf16 %v3406, %v3406
        %v3409 = vpack.c.bf16 %v3407, %v3407
        %s3410 = scalar_lea.vmem %s15, 6
        %v3411 = vld [vmem:[%s3410] sm:$0x3]
        %v3413 = vsel %vm1977, %v3411, 0
        %v3416 = vsel %vm1981, %v3408, 0
        %v3419 = vsel %vm1981, %v3409, 0
        %3421 = vmatprep.subr.bf16.mxu0 %v3419
        %3422 = vmatpush1.bf16.msra.mxu0 %v3416
        %3423 = vmatprep.subr.bf16.mxu0 0
        %3424 = vmatpush1.bf16.msra.mxu0 0
        %3425 = vmatprep.subr.bf16.mxu0 0
        %3426 = vmatpush1.bf16.msra.mxu0 0
        %3427 = vmatprep.subr.bf16.mxu0 0
        %3428 = vmatpush1.bf16.msra.mxu0 0
        %3429 = vmatprep.subr.bf16.mxu0 0
        %3430 = vmatpush1.bf16.msra.mxu0 0
        %3431 = vmatprep.subr.bf16.mxu0 0
        %3432 = vmatpush1.bf16.msra.mxu0 0
        %3433 = vmatprep.subr.bf16.mxu0 0
        %3434 = vmatpush1.bf16.msra.mxu0 0
        %3435 = vmatprep.subr.bf16.mxu0 0
        %3436 = vmatpush1.bf16.msra.mxu0 0
        %3437 = vmatprep.subr.bf16.mxu0 0
        %3438 = vmatpush1.bf16.msra.mxu0 0
        %3439 = vmatprep.subr.bf16.mxu0 0
        %3440 = vmatpush1.bf16.msra.mxu0 0
        %3441 = vmatprep.subr.bf16.mxu0 0
        %3442 = vmatpush1.bf16.msra.mxu0 0
        %3443 = vmatprep.subr.bf16.mxu0 0
        %3444 = vmatpush1.bf16.msra.mxu0 0
        %3445 = vmatprep.subr.bf16.mxu0 0
        %3446 = vmatpush1.bf16.msra.mxu0 0
        %3447 = vmatprep.subr.bf16.mxu0 0
        %3448 = vmatpush1.bf16.msra.mxu0 0
        %3449 = vmatprep.subr.bf16.mxu0 0
        %3450 = vmatpush1.bf16.msra.mxu0 0
        %3451 = vmatprep.subr.bf16.mxu0 0
        %3452 = vmatpush1.bf16.msra.mxu0 0
        %3453 = vmatprep.mubr.bf16.mxu0 0
        %3454 = vmatmul.mubr.bf16.gmra.mrb[0].mxu0 %v3413
        %v3455 = vpop.f32.mrb[0].mxu0
        %v3456 = vadd.f32 0.0, %v3455
        %v3457 = vpop.f32.mrb[0].mxu0
        %v3458 = vadd.f32 0.0, %v3457
        %v3459 = vpop.f32.mrb[0].mxu0
        %v3460 = vpop.f32.mrb[0].mxu0
        %3461 = vdwg.mxu0
        %v3462 = vadd.f32 %v3389, %v3456
        %v3463 = vadd.f32 %v3390, %v3458
        %v3464 = vpack.c.bf16 %v1353, %v1353
        %v3465 = vpack.c.bf16 %v1354, %v1354
        %s3466 = scalar_lea.vmem %s15, 8
        %v3467 = vld [vmem:[%s3466] sm:$0x3]
        %v3469 = vsel %vm1977, %v3467, 0
        %v3472 = vsel %vm1981, %v3464, 0
        %v3475 = vsel %vm1981, %v3465, 0
        %3477 = vmatprep.subr.bf16.mxu0 %v3475
        %3478 = vmatpush1.bf16.msra.mxu0 %v3472
        %3479 = vmatprep.subr.bf16.mxu0 0
        %3480 = vmatpush1.bf16.msra.mxu0 0
        %3481 = vmatprep.subr.bf16.mxu0 0
        %3482 = vmatpush1.bf16.msra.mxu0 0
        %3483 = vmatprep.subr.bf16.mxu0 0
        %3484 = vmatpush1.bf16.msra.mxu0 0
        %3485 = vmatprep.subr.bf16.mxu0 0
        %3486 = vmatpush1.bf16.msra.mxu0 0
        %3487 = vmatprep.subr.bf16.mxu0 0
        %3488 = vmatpush1.bf16.msra.mxu0 0
        %3489 = vmatprep.subr.bf16.mxu0 0
        %3490 = vmatpush1.bf16.msra.mxu0 0
        %3491 = vmatprep.subr.bf16.mxu0 0
        %3492 = vmatpush1.bf16.msra.mxu0 0
        %3493 = vmatprep.subr.bf16.mxu0 0
        %3494 = vmatpush1.bf16.msra.mxu0 0
        %3495 = vmatprep.subr.bf16.mxu0 0
        %3496 = vmatpush1.bf16.msra.mxu0 0
        %3497 = vmatprep.subr.bf16.mxu0 0
        %3498 = vmatpush1.bf16.msra.mxu0 0
        %3499 = vmatprep.subr.bf16.mxu0 0
        %3500 = vmatpush1.bf16.msra.mxu0 0
        %3501 = vmatprep.subr.bf16.mxu0 0
        %3502 = vmatpush1.bf16.msra.mxu0 0
        %3503 = vmatprep.subr.bf16.mxu0 0
        %3504 = vmatpush1.bf16.msra.mxu0 0
        %3505 = vmatprep.subr.bf16.mxu0 0
        %3506 = vmatpush1.bf16.msra.mxu0 0
        %3507 = vmatprep.subr.bf16.mxu0 0
        %3508 = vmatpush1.bf16.msra.mxu0 0
        %3509 = vmatprep.mubr.bf16.mxu0 0
        %3510 = vmatmul.mubr.bf16.gmra.mrb[0].mxu0 %v3469
        %v3511 = vpop.f32.mrb[0].mxu0
        %v3512 = vadd.f32 0.0, %v3511
        %v3513 = vpop.f32.mrb[0].mxu0
        %v3514 = vadd.f32 0.0, %v3513
        %v3515 = vpop.f32.mrb[0].mxu0
        %v3516 = vpop.f32.mrb[0].mxu0
        %3517 = vdwg.mxu0
        %v3518 = vadd.f32 %v3462, %v3512
        %v3519 = vadd.f32 %v3463, %v3514
        %3520 = vrot.lane.b32.xlu0 %v1353, 123
        %v3521 = vpop.permute.xlu0 %3520
        %3522 = vrot.lane.b32.xlu0 %v1354, 123
        %v3523 = vpop.permute.xlu0 %3522
        %vm3524 = vcmp.lt.s32.totalorder %v607, 123
        %v3525 = vsel %vm3524, %v3521, %v3523
        %v3526 = vsel %vm3524, %v3523, %v3521
        %vm3527 = vmand %vm945, %vm3321
        %vm3528 = vmand %vm946, %vm3322
        %vm3529 = vmand %vm3527, %vm3325
        %vm3530 = vmand %vm3528, %vm3326
        %v3531 = vsel %vm3529, 1, 0
        %v3532 = vsel %vm3530, 1, 0
        %vm3533 = vcmp.eq.s32.totalorder %v3531, 1
        %vm3534 = vcmp.eq.s32.totalorder %v3532, 1
        %v3535 = vsel %vm3533, %v3525, 0.0
        %v3536 = vsel %vm3534, %v3526, 0.0
        %v3537 = vpack.c.bf16 %v3535, %v3535
        %v3538 = vpack.c.bf16 %v3536, %v3536
        %s3539 = scalar_lea.vmem %s15, 10
        %v3540 = vld [vmem:[%s3539] sm:$0x3]
        %v3542 = vsel %vm1977, %v3540, 0
        %v3545 = vsel %vm1981, %v3537, 0
        %v3548 = vsel %vm1981, %v3538, 0
        %3550 = vmatprep.subr.bf16.mxu0 %v3548
        %3551 = vmatpush1.bf16.msra.mxu0 %v3545
        %3552 = vmatprep.subr.bf16.mxu0 0
        %3553 = vmatpush1.bf16.msra.mxu0 0
        %3554 = vmatprep.subr.bf16.mxu0 0
        %3555 = vmatpush1.bf16.msra.mxu0 0
        %3556 = vmatprep.subr.bf16.mxu0 0
        %3557 = vmatpush1.bf16.msra.mxu0 0
        %3558 = vmatprep.subr.bf16.mxu0 0
        %3559 = vmatpush1.bf16.msra.mxu0 0
        %3560 = vmatprep.subr.bf16.mxu0 0
        %3561 = vmatpush1.bf16.msra.mxu0 0
        %3562 = vmatprep.subr.bf16.mxu0 0
        %3563 = vmatpush1.bf16.msra.mxu0 0
        %3564 = vmatprep.subr.bf16.mxu0 0
        %3565 = vmatpush1.bf16.msra.mxu0 0
        %3566 = vmatprep.subr.bf16.mxu0 0
        %3567 = vmatpush1.bf16.msra.mxu0 0
        %3568 = vmatprep.subr.bf16.mxu0 0
        %3569 = vmatpush1.bf16.msra.mxu0 0
        %3570 = vmatprep.subr.bf16.mxu0 0
        %3571 = vmatpush1.bf16.msra.mxu0 0
        %3572 = vmatprep.subr.bf16.mxu0 0
        %3573 = vmatpush1.bf16.msra.mxu0 0
        %3574 = vmatprep.subr.bf16.mxu0 0
        %3575 = vmatpush1.bf16.msra.mxu0 0
        %3576 = vmatprep.subr.bf16.mxu0 0
        %3577 = vmatpush1.bf16.msra.mxu0 0
        %3578 = vmatprep.subr.bf16.mxu0 0
        %3579 = vmatpush1.bf16.msra.mxu0 0
        %3580 = vmatprep.subr.bf16.mxu0 0
        %3581 = vmatpush1.bf16.msra.mxu0 0
        %3582 = vmatprep.mubr.bf16.mxu0 0
        %3583 = vmatmul.mubr.bf16.gmra.mrb[0].mxu0 %v3542
        %v3584 = vpop.f32.mrb[0].mxu0
        %v3585 = vadd.f32 0.0, %v3584
        %v3586 = vpop.f32.mrb[0].mxu0
        %v3587 = vadd.f32 0.0, %v3586
        %v3588 = vpop.f32.mrb[0].mxu0
        %v3589 = vpop.f32.mrb[0].mxu0
        %3590 = vdwg.mxu0
        %v3591 = vadd.f32 %v3518, %v3585
        %v3592 = vadd.f32 %v3519, %v3587
        %3593 = vrot.lane.b32.xlu0 %v1353, 53
        %v3594 = vpop.permute.xlu0 %3593
        %3595 = vrot.lane.b32.xlu0 %v1354, 53
        %v3596 = vpop.permute.xlu0 %3595
        %vm3597 = vcmp.lt.s32.totalorder %v607, 53
        %v3598 = vsel %vm3597, %v3594, %v3596
        %v3599 = vsel %vm3597, %v3596, %v3594
        %v3600 = vadd.s32 %v607, 80
        %v3601 = vadd.s32 %v608, 80
        %vm3602 = vcmp.ge.s32.totalorder %v3600, 0
        %vm3603 = vcmp.ge.s32.totalorder %v3601, 0
        %vm3604 = vcmp.lt.s32.totalorder %v3600, 256
        %vm3605 = vcmp.lt.s32.totalorder %v3601, 256
        %vm3606 = vmand %vm3602, %vm3604
        %vm3607 = vmand %vm3603, %vm3605
        %vm3608 = vmand %vm3606, %vm3175
        %vm3609 = vmand %vm3607, %vm3176
        %vm3610 = vmand %vm3608, %vm3179
        %vm3611 = vmand %vm3609, %vm3180
        %v3612 = vsel %vm3610, 1, 0
        %v3613 = vsel %vm3611, 1, 0
        %vm3614 = vcmp.eq.s32.totalorder %v3612, 1
        %vm3615 = vcmp.eq.s32.totalorder %v3613, 1
        %v3616 = vsel %vm3614, %v3598, 0.0
        %v3617 = vsel %vm3615, %v3599, 0.0
        %v3618 = vpack.c.bf16 %v3616, %v3616
        %v3619 = vpack.c.bf16 %v3617, %v3617
        %s3620 = scalar_lea.vmem %s15, 12
        %v3621 = vld [vmem:[%s3620] sm:$0x3]
        %v3623 = vsel %vm1977, %v3621, 0
        %v3626 = vsel %vm1981, %v3618, 0
        %v3629 = vsel %vm1981, %v3619, 0
        %3631 = vmatprep.subr.bf16.mxu0 %v3629
        %3632 = vmatpush1.bf16.msra.mxu0 %v3626
        %3633 = vmatprep.subr.bf16.mxu0 0
        %3634 = vmatpush1.bf16.msra.mxu0 0
        %3635 = vmatprep.subr.bf16.mxu0 0
        %3636 = vmatpush1.bf16.msra.mxu0 0
        %3637 = vmatprep.subr.bf16.mxu0 0
        %3638 = vmatpush1.bf16.msra.mxu0 0
        %3639 = vmatprep.subr.bf16.mxu0 0
        %3640 = vmatpush1.bf16.msra.mxu0 0
        %3641 = vmatprep.subr.bf16.mxu0 0
        %3642 = vmatpush1.bf16.msra.mxu0 0
        %3643 = vmatprep.subr.bf16.mxu0 0
        %3644 = vmatpush1.bf16.msra.mxu0 0
        %3645 = vmatprep.subr.bf16.mxu0 0
        %3646 = vmatpush1.bf16.msra.mxu0 0
        %3647 = vmatprep.subr.bf16.mxu0 0
        %3648 = vmatpush1.bf16.msra.mxu0 0
        %3649 = vmatprep.subr.bf16.mxu0 0
        %3650 = vmatpush1.bf16.msra.mxu0 0
        %3651 = vmatprep.subr.bf16.mxu0 0
        %3652 = vmatpush1.bf16.msra.mxu0 0
        %3653 = vmatprep.subr.bf16.mxu0 0
        %3654 = vmatpush1.bf16.msra.mxu0 0
        %3655 = vmatprep.subr.bf16.mxu0 0
        %3656 = vmatpush1.bf16.msra.mxu0 0
        %3657 = vmatprep.subr.bf16.mxu0 0
        %3658 = vmatpush1.bf16.msra.mxu0 0
        %3659 = vmatprep.subr.bf16.mxu0 0
        %3660 = vmatpush1.bf16.msra.mxu0 0
        %3661 = vmatprep.subr.bf16.mxu0 0
        %3662 = vmatpush1.bf16.msra.mxu0 0
        %3663 = vmatprep.mubr.bf16.mxu0 0
        %3664 = vmatmul.mubr.bf16.gmra.mrb[0].mxu0 %v3623
        %v3665 = vpop.f32.mrb[0].mxu0
        %v3666 = vadd.f32 0.0, %v3665
        %v3667 = vpop.f32.mrb[0].mxu0
        %v3668 = vadd.f32 0.0, %v3667
        %v3669 = vpop.f32.mrb[0].mxu0
        %v3670 = vpop.f32.mrb[0].mxu0
        %3671 = vdwg.mxu0
        %v3672 = vadd.f32 %v3591, %v3666
        %v3673 = vadd.f32 %v3592, %v3668
        %3674 = vrot.lane.b32.xlu0 %v1353, 48
        %v3675 = vpop.permute.xlu0 %3674
        %3676 = vrot.lane.b32.xlu0 %v1354, 48
        %v3677 = vpop.permute.xlu0 %3676
        %v3678 = vsel %vm1960, %v3675, %v3677
        %v3679 = vsel %vm1960, %v3677, %v3675
        %vm3680 = vmand %vm3606, %vm704
        %vm3681 = vmand %vm3607, %vm705
        %vm3682 = vmand %vm3680, %vm708
        %vm3683 = vmand %vm3681, %vm709
        %v3684 = vsel %vm3682, 1, 0
        %v3685 = vsel %vm3683, 1, 0
        %vm3686 = vcmp.eq.s32.totalorder %v3684, 1
        %vm3687 = vcmp.eq.s32.totalorder %v3685, 1
        %v3688 = vsel %vm3686, %v3678, 0.0
        %v3689 = vsel %vm3687, %v3679, 0.0
        %v3690 = vpack.c.bf16 %v3688, %v3688
        %v3691 = vpack.c.bf16 %v3689, %v3689
        %s3692 = scalar_lea.vmem %s15, 14
        %v3693 = vld [vmem:[%s3692] sm:$0x3]
        %v3695 = vsel %vm1977, %v3693, 0
        %v3698 = vsel %vm1981, %v3690, 0
        %v3701 = vsel %vm1981, %v3691, 0
        %3703 = vmatprep.subr.bf16.mxu0 %v3701
        %3704 = vmatpush1.bf16.msra.mxu0 %v3698
        %3705 = vmatprep.subr.bf16.mxu0 0
        %3706 = vmatpush1.bf16.msra.mxu0 0
        %3707 = vmatprep.subr.bf16.mxu0 0
        %3708 = vmatpush1.bf16.msra.mxu0 0
        %3709 = vmatprep.subr.bf16.mxu0 0
        %3710 = vmatpush1.bf16.msra.mxu0 0
        %3711 = vmatprep.subr.bf16.mxu0 0
        %3712 = vmatpush1.bf16.msra.mxu0 0
        %3713 = vmatprep.subr.bf16.mxu0 0
        %3714 = vmatpush1.bf16.msra.mxu0 0
        %3715 = vmatprep.subr.bf16.mxu0 0
        %3716 = vmatpush1.bf16.msra.mxu0 0
        %3717 = vmatprep.subr.bf16.mxu0 0
        %3718 = vmatpush1.bf16.msra.mxu0 0
        %3719 = vmatprep.subr.bf16.mxu0 0
        %3720 = vmatpush1.bf16.msra.mxu0 0
        %3721 = vmatprep.subr.bf16.mxu0 0
        %3722 = vmatpush1.bf16.msra.mxu0 0
        %3723 = vmatprep.subr.bf16.mxu0 0
        %3724 = vmatpush1.bf16.msra.mxu0 0
        %3725 = vmatprep.subr.bf16.mxu0 0
        %3726 = vmatpush1.bf16.msra.mxu0 0
        %3727 = vmatprep.subr.bf16.mxu0 0
        %3728 = vmatpush1.bf16.msra.mxu0 0
        %3729 = vmatprep.subr.bf16.mxu0 0
        %3730 = vmatpush1.bf16.msra.mxu0 0
        %3731 = vmatprep.subr.bf16.mxu0 0
        %3732 = vmatpush1.bf16.msra.mxu0 0
        %3733 = vmatprep.subr.bf16.mxu0 0
        %3734 = vmatpush1.bf16.msra.mxu0 0
        %3735 = vmatprep.mubr.bf16.mxu0 0
        %3736 = vmatmul.mubr.bf16.gmra.mrb[0].mxu0 %v3695
        %v3737 = vpop.f32.mrb[0].mxu0
        %v3738 = vadd.f32 0.0, %v3737
        %v3739 = vpop.f32.mrb[0].mxu0
        %v3740 = vadd.f32 0.0, %v3739
        %v3741 = vpop.f32.mrb[0].mxu0
        %v3742 = vpop.f32.mrb[0].mxu0
        %3743 = vdwg.mxu0
        %v3744 = vadd.f32 %v3672, %v3738
        %v3745 = vadd.f32 %v3673, %v3740
        %3746 = vrot.lane.b32.xlu0 %v1353, 43
        %v3747 = vpop.permute.xlu0 %3746
        %3748 = vrot.lane.b32.xlu0 %v1354, 43
        %v3749 = vpop.permute.xlu0 %3748
        %vm3750 = vcmp.lt.s32.totalorder %v607, 43
        %v3751 = vsel %vm3750, %v3747, %v3749
        %v3752 = vsel %vm3750, %v3749, %v3747
        %vm3753 = vmand %vm3606, %vm3321
        %vm3754 = vmand %vm3607, %vm3322
        %vm3755 = vmand %vm3753, %vm3325
        %vm3756 = vmand %vm3754, %vm3326
        %v3757 = vsel %vm3755, 1, 0
        %v3758 = vsel %vm3756, 1, 0
        %vm3759 = vcmp.eq.s32.totalorder %v3757, 1
        %vm3760 = vcmp.eq.s32.totalorder %v3758, 1
        %v3761 = vsel %vm3759, %v3751, 0.0
        %v3762 = vsel %vm3760, %v3752, 0.0
        %v3763 = vpack.c.bf16 %v3761, %v3761
        %v3764 = vpack.c.bf16 %v3762, %v3762
        %s3765 = scalar_lea.vmem %s15, 16
        %v3766 = vld [vmem:[%s3765] sm:$0x3]
        %v3768 = vsel %vm1977, %v3766, 0
        %v3771 = vsel %vm1981, %v3763, 0
        %v3774 = vsel %vm1981, %v3764, 0
        %3776 = vmatprep.subr.bf16.mxu0 %v3774
        %3777 = vmatpush1.bf16.msra.mxu0 %v3771
        %3778 = vmatprep.subr.bf16.mxu0 0
        %3779 = vmatpush1.bf16.msra.mxu0 0
        %3780 = vmatprep.subr.bf16.mxu0 0
        %3781 = vmatpush1.bf16.msra.mxu0 0
        %3782 = vmatprep.subr.bf16.mxu0 0
        %3783 = vmatpush1.bf16.msra.mxu0 0
        %3784 = vmatprep.subr.bf16.mxu0 0
        %3785 = vmatpush1.bf16.msra.mxu0 0
        %3786 = vmatprep.subr.bf16.mxu0 0
        %3787 = vmatpush1.bf16.msra.mxu0 0
        %3788 = vmatprep.subr.bf16.mxu0 0
        %3789 = vmatpush1.bf16.msra.mxu0 0
        %3790 = vmatprep.subr.bf16.mxu0 0
        %3791 = vmatpush1.bf16.msra.mxu0 0
        %3792 = vmatprep.subr.bf16.mxu0 0
        %3793 = vmatpush1.bf16.msra.mxu0 0
        %3794 = vmatprep.subr.bf16.mxu0 0
        %3795 = vmatpush1.bf16.msra.mxu0 0
        %3796 = vmatprep.subr.bf16.mxu0 0
        %3797 = vmatpush1.bf16.msra.mxu0 0
        %3798 = vmatprep.subr.bf16.mxu0 0
        %3799 = vmatpush1.bf16.msra.mxu0 0
        %3800 = vmatprep.subr.bf16.mxu0 0
        %3801 = vmatpush1.bf16.msra.mxu0 0
        %3802 = vmatprep.subr.bf16.mxu0 0
        %3803 = vmatpush1.bf16.msra.mxu0 0
        %3804 = vmatprep.subr.bf16.mxu0 0
        %3805 = vmatpush1.bf16.msra.mxu0 0
        %3806 = vmatprep.subr.bf16.mxu0 0
        %3807 = vmatpush1.bf16.msra.mxu0 0
        %3808 = vmatprep.mubr.bf16.mxu0 0
        %3809 = vmatmul.mubr.bf16.gmra.mrb[0].mxu0 %v3768
        %v3810 = vpop.f32.mrb[0].mxu0
        %v3811 = vadd.f32 0.0, %v3810
        %v3812 = vpop.f32.mrb[0].mxu0
        %v3813 = vadd.f32 0.0, %v3812
        %v3814 = vpop.f32.mrb[0].mxu0
        %v3815 = vpop.f32.mrb[0].mxu0
        %3816 = vdwg.mxu0
        %v3817 = vadd.f32 %v3744, %v3811
        %v3818 = vadd.f32 %v3745, %v3813
        %v3819 = vld [vmem:[%s16] sm:$0xf]
        %3821 = vset.pattern.permute.xlu0 0
        %3822 = vperm.xlu0 %3821, %v3819
        %v3823 = vpop.permute.xlu0 %3822
        %v3825 = vadd.f32 %v3817, %v3823
        %v3826 = vadd.f32 %v3818, %v3823
        %v3827 = vld [vmem:[%s17] sm:$0xf]
        %v3828 = vld [vmem:[%s17 + $0x4] sm:$0xf]
        %v3829 = vpack.c.bf16 %v1920, %v1920
        %v3830 = vpack.c.bf16 %v1921, %v1921
        %s3831 = scalar_lea.vmem %s17, 8
        %v3832 = vld [vmem:[%s3831] sm:$0xf]
        %v3833 = vld [vmem:[%s3831 + $0x4] sm:$0xf]
        %v3834 = vpack.c.bf16 %v2593, %v2593
        %v3835 = vpack.c.bf16 %v2594, %v2594
        %v3838 = vunpack.c.l.b16 %v3832
        %v3839 = vunpack.c.l.b16 %v3833
        %v3840 = vpack.c.b16 %v3839, %v3838
        %v3842 = vsel %vm1977, %v3840, 0
        %v3845 = vsel %vm1981, %v3834, 0
        %v3848 = vsel %vm1981, %v3835, 0
        %3850 = vmatprep.subr.bf16.mxu0 %v3848
        %3851 = vmatpush1.bf16.msra.mxu0 %v3845
        %3852 = vmatprep.subr.bf16.mxu0 0
        %3853 = vmatpush1.bf16.msra.mxu0 0
        %3854 = vmatprep.subr.bf16.mxu0 0
        %3855 = vmatpush1.bf16.msra.mxu0 0
        %3856 = vmatprep.subr.bf16.mxu0 0
        %3857 = vmatpush1.bf16.msra.mxu0 0
        %3858 = vmatprep.subr.bf16.mxu0 0
        %3859 = vmatpush1.bf16.msra.mxu0 0
        %3860 = vmatprep.subr.bf16.mxu0 0
        %3861 = vmatpush1.bf16.msra.mxu0 0
        %3862 = vmatprep.subr.bf16.mxu0 0
        %3863 = vmatpush1.bf16.msra.mxu0 0
        %3864 = vmatprep.subr.bf16.mxu0 0
        %3865 = vmatpush1.bf16.msra.mxu0 0
        %3866 = vmatprep.subr.bf16.mxu0 0
        %3867 = vmatpush1.bf16.msra.mxu0 0
        %3868 = vmatprep.subr.bf16.mxu0 0
        %3869 = vmatpush1.bf16.msra.mxu0 0
        %3870 = vmatprep.subr.bf16.mxu0 0
        %3871 = vmatpush1.bf16.msra.mxu0 0
        %3872 = vmatprep.subr.bf16.mxu0 0
        %3873 = vmatpush1.bf16.msra.mxu0 0
        %3874 = vmatprep.subr.bf16.mxu0 0
        %3875 = vmatpush1.bf16.msra.mxu0 0
        %3876 = vmatprep.subr.bf16.mxu0 0
        %3877 = vmatpush1.bf16.msra.mxu0 0
        %3878 = vmatprep.subr.bf16.mxu0 0
        %3879 = vmatpush1.bf16.msra.mxu0 0
        %3880 = vmatprep.subr.bf16.mxu0 0
        %3881 = vmatpush1.bf16.msra.mxu0 0
        %3882 = vmatprep.mubr.bf16.mxu0 0
        %3883 = vmatmul.mubr.bf16.gmra.mrb[0].mxu0 %v3842
        %v3884 = vpop.f32.mrb[0].mxu0
        %v3885 = vadd.f32 0.0, %v3884
        %v3886 = vpop.f32.mrb[0].mxu0
        %v3887 = vadd.f32 0.0, %v3886
        %v3888 = vpop.f32.mrb[0].mxu0
        %v3889 = vadd.f32 0.0, %v3888
        %v3890 = vpop.f32.mrb[0].mxu0
        %v3891 = vadd.f32 0.0, %v3890
        %3892 = vdwg.mxu0
        %v3895 = vunpack.c.l.b16 %v3827
        %v3896 = vunpack.c.l.b16 %v3828
        %v3897 = vpack.c.b16 %v3896, %v3895
        %v3899 = vsel %vm1977, %v3897, 0
        %v3902 = vsel %vm1981, %v3829, 0
        %v3905 = vsel %vm1981, %v3830, 0
        %3907 = vmatprep.subr.bf16.mxu0 %v3905
        %3908 = vmatpush1.bf16.msra.mxu0 %v3902
        %3909 = vmatprep.subr.bf16.mxu0 0
        %3910 = vmatpush1.bf16.msra.mxu0 0
        %3911 = vmatprep.subr.bf16.mxu0 0
        %3912 = vmatpush1.bf16.msra.mxu0 0
        %3913 = vmatprep.subr.bf16.mxu0 0
        %3914 = vmatpush1.bf16.msra.mxu0 0
        %3915 = vmatprep.subr.bf16.mxu0 0
        %3916 = vmatpush1.bf16.msra.mxu0 0
        %3917 = vmatprep.subr.bf16.mxu0 0
        %3918 = vmatpush1.bf16.msra.mxu0 0
        %3919 = vmatprep.subr.bf16.mxu0 0
        %3920 = vmatpush1.bf16.msra.mxu0 0
        %3921 = vmatprep.subr.bf16.mxu0 0
        %3922 = vmatpush1.bf16.msra.mxu0 0
        %3923 = vmatprep.subr.bf16.mxu0 0
        %3924 = vmatpush1.bf16.msra.mxu0 0
        %3925 = vmatprep.subr.bf16.mxu0 0
        %3926 = vmatpush1.bf16.msra.mxu0 0
        %3927 = vmatprep.subr.bf16.mxu0 0
        %3928 = vmatpush1.bf16.msra.mxu0 0
        %3929 = vmatprep.subr.bf16.mxu0 0
        %3930 = vmatpush1.bf16.msra.mxu0 0
        %3931 = vmatprep.subr.bf16.mxu0 0
        %3932 = vmatpush1.bf16.msra.mxu0 0
        %3933 = vmatprep.subr.bf16.mxu0 0
        %3934 = vmatpush1.bf16.msra.mxu0 0
        %3935 = vmatprep.subr.bf16.mxu0 0
        %3936 = vmatpush1.bf16.msra.mxu0 0
        %3937 = vmatprep.subr.bf16.mxu0 0
        %3938 = vmatpush1.bf16.msra.mxu0 0
        %3939 = vmatprep.mubr.bf16.mxu0 0
        %3940 = vmatmul.mubr.bf16.gmra.mrb[0].mxu0 %v3899
        %v3941 = vpop.f32.mrb[0].mxu0
        %v3942 = vadd.f32 %v3885, %v3941
        %v3943 = vpop.f32.mrb[0].mxu0
        %v3944 = vadd.f32 %v3887, %v3943
        %v3945 = vpop.f32.mrb[0].mxu0
        %v3946 = vadd.f32 %v3889, %v3945
        %v3947 = vpop.f32.mrb[0].mxu0
        %v3948 = vadd.f32 %v3891, %v3947
        %3949 = vdwg.mxu0
        %s3950 = scalar_lea.vmem %s17, 16
        %v3951 = vld [vmem:[%s3950] sm:$0xf]
        %v3952 = vld [vmem:[%s3950 + $0x4] sm:$0xf]
        %v3953 = vpack.c.bf16 %v3156, %v3156
        %v3954 = vpack.c.bf16 %v3157, %v3157
        %v3957 = vunpack.c.l.b16 %v3951
        %v3958 = vunpack.c.l.b16 %v3952
        %v3959 = vpack.c.b16 %v3958, %v3957
        %v3961 = vsel %vm1977, %v3959, 0
        %v3964 = vsel %vm1981, %v3953, 0
        %v3967 = vsel %vm1981, %v3954, 0
        %3969 = vmatprep.subr.bf16.mxu0 %v3967
        %3970 = vmatpush1.bf16.msra.mxu0 %v3964
        %3971 = vmatprep.subr.bf16.mxu0 0
        %3972 = vmatpush1.bf16.msra.mxu0 0
        %3973 = vmatprep.subr.bf16.mxu0 0
        %3974 = vmatpush1.bf16.msra.mxu0 0
        %3975 = vmatprep.subr.bf16.mxu0 0
        %3976 = vmatpush1.bf16.msra.mxu0 0
        %3977 = vmatprep.subr.bf16.mxu0 0
        %3978 = vmatpush1.bf16.msra.mxu0 0
        %3979 = vmatprep.subr.bf16.mxu0 0
        %3980 = vmatpush1.bf16.msra.mxu0 0
        %3981 = vmatprep.subr.bf16.mxu0 0
        %3982 = vmatpush1.bf16.msra.mxu0 0
        %3983 = vmatprep.subr.bf16.mxu0 0
        %3984 = vmatpush1.bf16.msra.mxu0 0
        %3985 = vmatprep.subr.bf16.mxu0 0
        %3986 = vmatpush1.bf16.msra.mxu0 0
        %3987 = vmatprep.subr.bf16.mxu0 0
        %3988 = vmatpush1.bf16.msra.mxu0 0
        %3989 = vmatprep.subr.bf16.mxu0 0
        %3990 = vmatpush1.bf16.msra.mxu0 0
        %3991 = vmatprep.subr.bf16.mxu0 0
        %3992 = vmatpush1.bf16.msra.mxu0 0
        %3993 = vmatprep.subr.bf16.mxu0 0
        %3994 = vmatpush1.bf16.msra.mxu0 0
        %3995 = vmatprep.subr.bf16.mxu0 0
        %3996 = vmatpush1.bf16.msra.mxu0 0
        %3997 = vmatprep.subr.bf16.mxu0 0
        %3998 = vmatpush1.bf16.msra.mxu0 0
        %3999 = vmatprep.subr.bf16.mxu0 0
        %4000 = vmatpush1.bf16.msra.mxu0 0
        %4001 = vmatprep.mubr.bf16.mxu0 0
        %4002 = vmatmul.mubr.bf16.gmra.mrb[0].mxu0 %v3961
        %v4003 = vpop.f32.mrb[0].mxu0
        %v4004 = vadd.f32 0.0, %v4003
        %v4005 = vpop.f32.mrb[0].mxu0
        %v4006 = vadd.f32 0.0, %v4005
        %v4007 = vpop.f32.mrb[0].mxu0
        %v4008 = vadd.f32 0.0, %v4007
        %v4009 = vpop.f32.mrb[0].mxu0
        %v4010 = vadd.f32 0.0, %v4009
        %4011 = vdwg.mxu0
        %v4012 = vadd.f32 %v3942, %v4004
        %v4013 = vadd.f32 %v3944, %v4006
        %v4014 = vadd.f32 %v3946, %v4008
        %v4015 = vadd.f32 %v3948, %v4010
        %s4016 = scalar_lea.vmem %s17, 24
        %v4017 = vld [vmem:[%s4016] sm:$0xf]
        %v4018 = vld [vmem:[%s4016 + $0x4] sm:$0xf]
        %v4019 = vpack.c.bf16 %v3825, %v3825
        %v4020 = vpack.c.bf16 %v3826, %v3826
        %v4023 = vunpack.c.l.b16 %v4017
        %v4024 = vunpack.c.l.b16 %v4018
        %v4025 = vpack.c.b16 %v4024, %v4023
        %v4027 = vsel %vm1977, %v4025, 0
        %v4030 = vsel %vm1981, %v4019, 0
        %v4033 = vsel %vm1981, %v4020, 0
        %4035 = vmatprep.subr.bf16.mxu0 %v4033
        %4036 = vmatpush1.bf16.msra.mxu0 %v4030
        %4037 = vmatprep.subr.bf16.mxu0 0
        %4038 = vmatpush1.bf16.msra.mxu0 0
        %4039 = vmatprep.subr.bf16.mxu0 0
        %4040 = vmatpush1.bf16.msra.mxu0 0
        %4041 = vmatprep.subr.bf16.mxu0 0
        %4042 = vmatpush1.bf16.msra.mxu0 0
        %4043 = vmatprep.subr.bf16.mxu0 0
        %4044 = vmatpush1.bf16.msra.mxu0 0
        %4045 = vmatprep.subr.bf16.mxu0 0
        %4046 = vmatpush1.bf16.msra.mxu0 0
        %4047 = vmatprep.subr.bf16.mxu0 0
        %4048 = vmatpush1.bf16.msra.mxu0 0
        %4049 = vmatprep.subr.bf16.mxu0 0
        %4050 = vmatpush1.bf16.msra.mxu0 0
        %4051 = vmatprep.subr.bf16.mxu0 0
        %4052 = vmatpush1.bf16.msra.mxu0 0
        %4053 = vmatprep.subr.bf16.mxu0 0
        %4054 = vmatpush1.bf16.msra.mxu0 0
        %4055 = vmatprep.subr.bf16.mxu0 0
        %4056 = vmatpush1.bf16.msra.mxu0 0
        %4057 = vmatprep.subr.bf16.mxu0 0
        %4058 = vmatpush1.bf16.msra.mxu0 0
        %4059 = vmatprep.subr.bf16.mxu0 0
        %4060 = vmatpush1.bf16.msra.mxu0 0
        %4061 = vmatprep.subr.bf16.mxu0 0
        %4062 = vmatpush1.bf16.msra.mxu0 0
        %4063 = vmatprep.subr.bf16.mxu0 0
        %4064 = vmatpush1.bf16.msra.mxu0 0
        %4065 = vmatprep.subr.bf16.mxu0 0
        %4066 = vmatpush1.bf16.msra.mxu0 0
        %4067 = vmatprep.mubr.bf16.mxu0 0
        %4068 = vmatmul.mubr.bf16.gmra.mrb[0].mxu0 %v4027
        %v4069 = vpop.f32.mrb[0].mxu0
        %v4070 = vadd.f32 0.0, %v4069
        %v4071 = vpop.f32.mrb[0].mxu0
        %v4072 = vadd.f32 0.0, %v4071
        %v4073 = vpop.f32.mrb[0].mxu0
        %v4074 = vadd.f32 0.0, %v4073
        %v4075 = vpop.f32.mrb[0].mxu0
        %v4076 = vadd.f32 0.0, %v4075
        %4077 = vdwg.mxu0
        %v4078 = vadd.f32 %v4012, %v4070
        %v4079 = vadd.f32 %v4013, %v4072
        %v4080 = vadd.f32 %v4014, %v4074
        %v4081 = vadd.f32 %v4015, %v4076
        %v4082 = vld [vmem:[%s18] sm:$0xff]
        %v4083 = vld [vmem:[%s18 + $0x8] sm:$0xff]
        %4085 = vset.pattern.permute.xlu0 0
        %4086 = vperm.xlu0 %4085, %v4082
        %v4087 = vpop.permute.xlu0 %4086
        %4090 = vset.pattern.permute.xlu0 0
        %4091 = vperm.xlu0 %4090, %v4083
        %v4092 = vpop.permute.xlu0 %4091
        %v4094 = vadd.f32 %v4078, %v4087
        %v4095 = vadd.f32 %v4079, %v4087
        %v4096 = vadd.f32 %v4080, %v4092
        %v4097 = vadd.f32 %v4081, %v4092
        %v4098 = vmul.f32 %v4094, 0.1
        %v4099 = vmul.f32 %v4095, 0.1
        %v4100 = vmul.f32 %v4096, 0.1
        %v4101 = vmul.f32 %v4097, 0.1
        %v4102 = vadd.f32 %v4098, %v602
        %v4103 = vadd.f32 %v4099, %v603
        %v4104 = vadd.f32 %v4100, %v604
        %v4105 = vadd.f32 %v4101, %v605
        %v4106 = vmax.f32 %v4102, 0.0
        %v4107 = vmax.f32 %v4103, 0.0
        %v4108 = vmax.f32 %v4104, 0.0
        %v4109 = vmax.f32 %v4105, 0.0
        %4110 = vst [vmem:[%s595] sm:$0xff] %v4106
        %4111 = vst [vmem:[%s595 + $0x8] sm:$0xff] %v4107
        %4112 = vst [vmem:[%s595 + $0x10] sm:$0xff] %v4108
        %4113 = vst [vmem:[%s595 + $0x18] sm:$0xff] %v4109
        %s4114 = sand.u32 %s445, 1
        %s4115 = scalar_lea.sflag [#allocation3], %s4114
        %s4116 = sand.u32 %s445, 1
        %s4117 = smul.addr %s4116, 32
        %s4118 = scalar_lea.vmem [#allocation2], %s4117
        // Predicated region
        $region97: #{tpu_custom_call.1} parent=95 // pred_check
          %p4119 = pneg %p455
        $region98: #{tpu_custom_call.1} parent=95 // pred_check_branch
          %4121 = sbr.rel (%p4119) target = $region100
        $region99: #{tpu_custom_call.1} parent=95 // pred_region
          %s4123 = ssub.s32 512, 512
          %4124 = vsyncadd %s4115, %s4123
          %s4125 = smul.addr %s33, 4
          %s4126 = smul.addr %s4125, 128
          %s4127 = scalar_lea.hbm %s19, %s4126
          %s4128 = sshll.u32 %s4118, 4
          %s4129 = int_to_ptr.vmem [resolvable:$true] %s4128
          %4134 = dma.vmem_to_hbm [thread:$0]  %s4129, 512, %s4127, %s4115, 256, 256, 16
        $region100: #{tpu_custom_call.1} parent=95 // pred_fallthru
          _
      $region96: #{tpu_custom_call.1} parent=5 // pred_fallthru
        _
      %p4135 = scmp.le.s32.totalorder 2, %s28
      // Predicated region
      $region101: #{tpu_custom_call.1} parent=5 // pred_check
        %p4136 = pneg %p4135
      $region102: #{tpu_custom_call.1} parent=5 // pred_check_branch
        %4138 = sbr.rel (%p4136) target = $region104
      $region103: #{tpu_custom_call.1} parent=5 // pred_region
        %s4139 = ssub.s32 %s28, 2
        // Predicated region
        $region105: #{tpu_custom_call.1} parent=103 // pred_check
          %p4140 = pneg %p461
        $region106: #{tpu_custom_call.1} parent=103 // pred_check_branch
          %4142 = sbr.rel (%p4140) target = $region108
        $region107: #{tpu_custom_call.1} parent=103 // pred_region
          %s4143 = sand.u32 %s446, 1
          %s4144 = scalar_lea.sflag [#allocation3], %s4143
          %s4145 = sand.u32 %s446, 1
          %s4146 = smul.addr %s4145, 32
          %s4147 = scalar_lea.vmem [#allocation2], %s4146
          %4148 = dma.done %s4144, 512
        $region108: #{tpu_custom_call.1} parent=103 // pred_fallthru
          _
      $region104: #{tpu_custom_call.1} parent=5 // pred_fallthru
        _
    $region6: #{tpu_custom_call.1} parent=1 // loop_footer
      %s32 = sadd.s32 1, %s28
    $region7: #{tpu_custom_call.1} parent=1 // loop_footer_branch
      %27 = sbr.rel target = $region3
    $region8: #{tpu_custom_call.1} parent=1 // loop_exit
      _
    %4149 = vsyncpa [#allocation3], 1
    %s4150 = scalar_lea.sflag [#allocation3], 1
    %4151 = vsyncpa %s4150, 1

</llo_original>
